<compile_context>
chip_gen: v7x
topology: tpu7x:2x2x1
jax: 0.10.0
libtpu: 0.0.40
codegen_flags: <defaults>
</compile_context>

<pallas_src>
import functools
import math

import jax
import jax.numpy as jnp
from jax.experimental import pallas as pl
from jax.experimental.pallas import tpu as pltpu


_WEIGHT_NAMES = ("ln1_g", "ln1_b", "wqkv", "bqkv", "wo", "bo",
                 "ln2_g", "ln2_b", "w1", "b1", "w2", "b2")


# ----------------------------------------------------------------------------
# in-kernel helpers (pure jnp; traced inside kernels)
# ----------------------------------------------------------------------------
def _layernorm(v, g, b, eps=1e-5):
    # one-pass statistics: E[x] and E[x^2] are independent reductions, so the
    # XLU can overlap them (vs. the serial mean -> centered -> var chain).
    mu = jnp.mean(v, axis=-1, keepdims=True)
    ms = jnp.mean(v * v, axis=-1, keepdims=True)
    var = ms - mu * mu
    return (v - mu) * jax.lax.rsqrt(var + eps) * g + b


def _attn_mlp_block(x, w, *, num_heads, block_batch, seq):
    """One CLIP ResidualAttentionBlock on a (TB*S, D) f32 residual stream."""
    ln1_g, ln1_b, wqkv, bqkv, wo, bo, ln2_g, ln2_b, w1, b1, w2, b2 = w
    TB, S = block_batch, seq
    R, D = x.shape                       # R = TB * S
    H = num_heads
    hd = D // H
    Z = TB * H
    scale = 1.0 / math.sqrt(hd)

    # --- attention branch: x + attn(ln_1(x)) --------------------------------
    h = _layernorm(x, ln1_g[...], ln1_b[...]).astype(jnp.bfloat16)
    # fused QKV projection: ONE K=D, N=3D MXU matmul, f32 accumulate + f32 bias
    qkv = jnp.dot(h, wqkv[...], preferred_element_type=jnp.float32) + bqkv[...]

    def split_heads(t):                  # (R, D) f32 -> (Z, S, hd) bf16
        t = t.reshape(TB, S, H, hd).transpose(0, 2, 1, 3)   # one relayout total
        return t.reshape(Z, S, hd).astype(jnp.bfloat16)

    qh = split_heads(qkv[:, :D])
    kh = split_heads(qkv[:, D:2 * D])
    vh = split_heads(qkv[:, 2 * D:])

    # causal mask built in-kernel from iota (no (S,S) HBM traffic per step)
    row = jax.lax.broadcasted_iota(jnp.int32, (S, S), 0)
    col = jax.lax.broadcasted_iota(jnp.int32, (S, S), 1)
    mask = jnp.where(col > row, jnp.float32(-1e9), jnp.float32(0.0))

    # head+batch batched contractions over the single batch dim Z = TB*H
    # (no Python loop, no per-example unrolling, no concatenate)
    s = jnp.einsum('zqd,zkd->zqk', qh, kh, preferred_element_type=jnp.float32)
    s = s * scale + mask[None]
    s = s - jnp.max(s, axis=-1, keepdims=True)       # softmax stats in f32
    p = jnp.exp(s)
    p = p * pl.reciprocal(jnp.sum(p, axis=-1, keepdims=True), approx=True)
    ctx = jnp.einsum('zqk,zkd->zqd', p.astype(jnp.bfloat16), vh,
                     preferred_element_type=jnp.float32)
    # merge heads back into (R, D) with one relayout
    ctx = (ctx.reshape(TB, H, S, hd).transpose(0, 2, 1, 3).reshape(R, D))

    # output projection: ONE K=D matmul on the re-assembled context
    attn = jnp.dot(ctx.astype(jnp.bfloat16), wo[...],
                   preferred_element_type=jnp.float32) + bo[...]
    x = x + attn

    # --- MLP branch: x + mlp(ln_2(x)), QuickGELU ----------------------------
    h2 = _layernorm(x, ln2_g[...], ln2_b[...]).astype(jnp.bfloat16)
    h2 = jnp.dot(h2, w1[...], preferred_element_type=jnp.float32) + b1[...]
    h2 = h2.astype(jnp.bfloat16)          # largest elementwise tensor -> bf16
    h2 = h2 * jax.nn.sigmoid(1.702 * h2)  # QuickGELU (bf16 VALU/EUP on v6e/v7x)
    h2 = jnp.dot(h2, w2[...], preferred_element_type=jnp.float32) + b2[...]
    return x + h2


# ----------------------------------------------------------------------------
# kernels
# ----------------------------------------------------------------------------
def blocks_kernel(*refs, num_heads, layers, block_batch, seq):
    # refs = (x_ref, <layers * 12 weight refs>, out_ref)
    x_ref = refs[0]
    out_ref = refs[-1]
    w_refs = refs[1:-1]
    TB, S, D = x_ref.shape
    n = len(_WEIGHT_NAMES)
    # residual stream travels bf16 over HBM; upcast once, keep math in f32
    x = x_ref[...].astype(jnp.float32).reshape(TB * S, D)
    for l in range(layers):
        w = w_refs[l * n:(l + 1) * n]
        x = _attn_mlp_block(x, w, num_heads=num_heads,
                            block_batch=block_batch, seq=seq)
    out_ref[...] = x.reshape(TB, S, D).astype(out_ref.dtype)


def ln_proj_kernel(x_ref, g_ref, b_ref, p_ref, out_ref):
    # Fused ln_final (only on the gathered EOT rows) + text projection.
    h = _layernorm(x_ref[...].astype(jnp.float32), g_ref[...], b_ref[...])
    out_ref[...] = jnp.dot(h.astype(jnp.bfloat16), p_ref[...],
                           preferred_element_type=jnp.float32)


# ----------------------------------------------------------------------------
# pallas_call wrappers
# ----------------------------------------------------------------------------
def _vmem_capacity_bytes():
    try:
        return int(pltpu.get_tpu_info().vmem_capacity_bytes)
    except Exception:
        return 128 << 20            # v5e / v6e physical VMEM fallback


def transformer_layer_group(x, layer_params, num_heads, block_batch,
                            single_buffer_weights):
    """Run len(layer_params) ResidualAttentionBlocks in ONE pallas_call."""
    B, S, D = x.shape
    TB = block_batch
    assert B % TB == 0
    layers = len(layer_params)

    ordered = []
    for blk in layer_params:
        ordered += [blk[name] for name in _WEIGHT_NAMES]

    def weight_spec(arr):
        # whole-array block, grid-invariant index map.  Single-buffered:
        # double-buffering a constant block buys nothing and doubles its VMEM.
        if single_buffer_weights:
            return pl.BlockSpec(arr.shape, lambda b: (0, 0),
                                pipeline_mode=pl.Buffered(1))
        return pl.BlockSpec(arr.shape, lambda b: (0, 0))

    # --- explicit scoped-VMEM budget ----------------------------------------
    rows = TB * S
    wbytes = sum(int(a.size) * a.dtype.itemsize for a in ordered)
    wbytes *= 1 if single_buffer_weights else 2
    io_bytes = 2 * 2 * (TB * S * D * 2)            # x in + out, 2 bufs each, bf16
    inter = (rows * 3 * D * (4 + 2)                # qkv f32 + bf16 head copies
             + 2 * TB * num_heads * S * S * 4      # scores + probs (f32)
             + rows * D * (4 + 4 + 2 + 2)          # residual / attn / bf16 copies
             + rows * 4 * D * (4 + 2))             # GELU intermediate f32 + bf16
    need = wbytes + io_bytes + inter + (8 << 20)   # + compiler-internal headroom
    cap = max(_vmem_capacity_bytes() - (16 << 20), 32 << 20)   # ~48M v7x, ~112M v6e
    vmem_limit = int(min(max(need, 32 << 20), cap))

    grid_steps = B // TB
    # >=2 grid steps: let v7x's two TensorCores split the batch axis.
    dim_sem = "parallel" if grid_steps >= 2 else "arbitrary"

    kern = functools.partial(blocks_kernel, num_heads=num_heads, layers=layers,
                             block_batch=TB, seq=S)
    return pl.pallas_call(
        kern,
        out_shape=jax.ShapeDtypeStruct((B, S, D), x.dtype),
        grid=(grid_steps,),
        in_specs=[pl.BlockSpec((TB, S, D), lambda b: (b, 0, 0))]
                 + [weight_spec(a) for a in ordered],
        out_specs=pl.BlockSpec((TB, S, D), lambda b: (b, 0, 0)),
        input_output_aliases={0: 0},    # reuse the residual-stream HBM buffer
        compiler_params=pltpu.CompilerParams(
            dimension_semantics=(dim_sem,),
            vmem_limit_bytes=vmem_limit),
    )(x, *ordered)


def ln_project_eot(x_eot, ln_g, ln_b, proj):
    B, _ = x_eot.shape
    E = proj.shape[1]
    return pl.pallas_call(
        ln_proj_kernel,
        out_shape=jax.ShapeDtypeStruct((B, E), jnp.float32),
    )(x_eot, ln_g, ln_b, proj)


# ----------------------------------------------------------------------------
# parameters (deterministic, synthetic) and full forward
# ----------------------------------------------------------------------------
def init_params(key, vocab, seq, d, layers, embed_dim):
    bf = jnp.bfloat16
    keys = jax.random.split(key, 3 + layers)
    params = {
        "token_embedding": jax.random.normal(keys[0], (vocab, d), jnp.float32) * 0.02,
        "pos_embedding":   jax.random.normal(keys[1], (1, seq, d), jnp.float32) * 0.01,
        "ln_final_g": jnp.ones((1, d), jnp.float32),
        "ln_final_b": jnp.zeros((1, d), jnp.float32),
        "text_projection": (jax.random.normal(keys[2], (d, embed_dim), jnp.float32)
                            * d ** -0.5).astype(bf),
    }
    blocks = []
    for l in range(layers):
        k = jax.random.split(keys[3 + l], 8)
        blocks.append(dict(
            ln1_g=jnp.ones((1, d), jnp.float32),
            ln1_b=jnp.zeros((1, d), jnp.float32),
            # Q/K/V fused into one (D, 3D) weight -> single N=3D MXU matmul
            wqkv=(jax.random.normal(k[0], (d, 3 * d), jnp.float32) * d ** -0.5).astype(bf),
            bqkv=jax.random.normal(k[1], (1, 3 * d), jnp.float32) * 0.01,
            wo=(jax.random.normal(k[2], (d, d), jnp.float32) * d ** -0.5).astype(bf),
            bo=jax.random.normal(k[3], (1, d), jnp.float32) * 0.01,
            ln2_g=jnp.ones((1, d), jnp.float32),
            ln2_b=jnp.zeros((1, d), jnp.float32),
            w1=(jax.random.normal(k[4], (d, 4 * d), jnp.float32) * d ** -0.5).astype(bf),
            b1=jax.random.normal(k[5], (1, 4 * d), jnp.float32) * 0.01,
            w2=(jax.random.normal(k[6], (4 * d, d), jnp.float32)
                * (4 * d) ** -0.5).astype(bf),
            b2=jax.random.normal(k[7], (1, d), jnp.float32) * 0.01,
        ))
    params["blocks"] = blocks
    return params


def _pick_block_batch(B, S, target_rows=512):
    # smallest divisor of B whose row count TB*S fills the MXU M dimension and
    # amortizes the ~0.35 us per-grid-step overhead
    for tb in range(1, B + 1):
        if B % tb == 0 and tb * S >= target_rows:
            return tb
    return B


def text_encoder_forward(text, params, num_heads, single_buffer_weights=True):
    B, S = text.shape
    # token embedding gather + positional add (data-dependent row gather: plain JAX)
    x = jnp.take(params["token_embedding"], text, axis=0) + params["pos_embedding"][0]
    x = x.astype(jnp.bfloat16)            # residual stream carried bf16 across HBM
    tb = _pick_block_batch(B, S)
    blocks = params["blocks"]
    # fuse 2 layers per pallas_call: hides the per-layer weight-DMA prologue and
    # halves the (B,S,D) residual-stream HBM round trips
    for i in range(0, len(blocks), 2):
        x = transformer_layer_group(x, blocks[i:i + 2], num_heads, tb,
                                    single_buffer_weights)
    # EOT position (argmax assumes EOT has the largest token id — CLIP convention)
    eot = jnp.argmax(text, axis=-1)
    x_eot = x[jnp.arange(B), eot]         # (B, D) data-dependent row gather (glue)
    # ln_final commutes with the per-row gather; fuse it with the text projection
    return ln_project_eot(x_eot, params["ln_final_g"], params["ln_final_b"],
                          params["text_projection"])


if __name__ == "__main__":
    B, S, D, H, L, V, E = 2, 8, 32, 4, 2, 64, 16
    key = jax.random.PRNGKey(0)
    k_tok, k_par = jax.random.split(key)
    text = jax.random.randint(k_tok, (B, S), 0, V, dtype=jnp.int32)
    params = init_params(k_par, V, S, D, L, E)

    fwd = functools.partial(text_encoder_forward, num_heads=H)
    try:
        out = jax.block_until_ready(
            jax.jit(functools.partial(fwd, single_buffer_weights=True))(text, params))
    except Exception:
        # pl.Buffered(1) (single-buffered weights) not supported on this build:
        # fall back to default double-buffered weight specs.
        out = jax.block_until_ready(
            jax.jit(functools.partial(fwd, single_buffer_weights=False))(text, params))

    assert out.shape == (B, E) and out.dtype == jnp.float32
    assert bool(jnp.all(jnp.isfinite(out)))
    print("KERNEL_OK")
</pallas_src>

<mosaic_0001>
module attributes {stable_mosaic.version = 11 : i64} {
  func.func @blocks_kernel(%arg0: i32, %arg1: memref<2x8x32xbf16, #tpu.memory_space<vmem>>, %arg2: memref<1x32xf32, #tpu.memory_space<vmem>>, %arg3: memref<1x32xf32, #tpu.memory_space<vmem>>, %arg4: memref<32x96xbf16, #tpu.memory_space<vmem>>, %arg5: memref<1x96xf32, #tpu.memory_space<vmem>>, %arg6: memref<32x32xbf16, #tpu.memory_space<vmem>>, %arg7: memref<1x32xf32, #tpu.memory_space<vmem>>, %arg8: memref<1x32xf32, #tpu.memory_space<vmem>>, %arg9: memref<1x32xf32, #tpu.memory_space<vmem>>, %arg10: memref<32x128xbf16, #tpu.memory_space<vmem>>, %arg11: memref<1x128xf32, #tpu.memory_space<vmem>>, %arg12: memref<128x32xbf16, #tpu.memory_space<vmem>>, %arg13: memref<1x32xf32, #tpu.memory_space<vmem>>, %arg14: memref<1x32xf32, #tpu.memory_space<vmem>>, %arg15: memref<1x32xf32, #tpu.memory_space<vmem>>, %arg16: memref<32x96xbf16, #tpu.memory_space<vmem>>, %arg17: memref<1x96xf32, #tpu.memory_space<vmem>>, %arg18: memref<32x32xbf16, #tpu.memory_space<vmem>>, %arg19: memref<1x32xf32, #tpu.memory_space<vmem>>, %arg20: memref<1x32xf32, #tpu.memory_space<vmem>>, %arg21: memref<1x32xf32, #tpu.memory_space<vmem>>, %arg22: memref<32x128xbf16, #tpu.memory_space<vmem>>, %arg23: memref<1x128xf32, #tpu.memory_space<vmem>>, %arg24: memref<128x32xbf16, #tpu.memory_space<vmem>>, %arg25: memref<1x32xf32, #tpu.memory_space<vmem>>, %arg26: memref<2x8x32xbf16, #tpu.memory_space<vmem>>) attributes {dimension_semantics = [#tpu.dimension_semantics<arbitrary>], iteration_bounds = array<i64: 1>, scalar_prefetch = 0 : i64, scratch_operands = 0 : i64, tpu.core_type = #tpu.core_type<tc>, window_params = [{transform_indices = @transform_0, window_bounds = array<i64: 2, 8, 32>}, {pipeline_mode = #tpu.pipeline_mode<synchronous>, transform_indices = @transform_1, window_bounds = array<i64: 1, 32>}, {pipeline_mode = #tpu.pipeline_mode<synchronous>, transform_indices = @transform_2, window_bounds = array<i64: 1, 32>}, {pipeline_mode = #tpu.pipeline_mode<synchronous>, transform_indices = @transform_3, window_bounds = array<i64: 32, 96>}, {pipeline_mode = #tpu.pipeline_mode<synchronous>, transform_indices = @transform_4, window_bounds = array<i64: 1, 96>}, {pipeline_mode = #tpu.pipeline_mode<synchronous>, transform_indices = @transform_5, window_bounds = array<i64: 32, 32>}, {pipeline_mode = #tpu.pipeline_mode<synchronous>, transform_indices = @transform_6, window_bounds = array<i64: 1, 32>}, {pipeline_mode = #tpu.pipeline_mode<synchronous>, transform_indices = @transform_7, window_bounds = array<i64: 1, 32>}, {pipeline_mode = #tpu.pipeline_mode<synchronous>, transform_indices = @transform_8, window_bounds = array<i64: 1, 32>}, {pipeline_mode = #tpu.pipeline_mode<synchronous>, transform_indices = @transform_9, window_bounds = array<i64: 32, 128>}, {pipeline_mode = #tpu.pipeline_mode<synchronous>, transform_indices = @transform_10, window_bounds = array<i64: 1, 128>}, {pipeline_mode = #tpu.pipeline_mode<synchronous>, transform_indices = @transform_11, window_bounds = array<i64: 128, 32>}, {pipeline_mode = #tpu.pipeline_mode<synchronous>, transform_indices = @transform_12, window_bounds = array<i64: 1, 32>}, {pipeline_mode = #tpu.pipeline_mode<synchronous>, transform_indices = @transform_13, window_bounds = array<i64: 1, 32>}, {pipeline_mode = #tpu.pipeline_mode<synchronous>, transform_indices = @transform_14, window_bounds = array<i64: 1, 32>}, {pipeline_mode = #tpu.pipeline_mode<synchronous>, transform_indices = @transform_15, window_bounds = array<i64: 32, 96>}, {pipeline_mode = #tpu.pipeline_mode<synchronous>, transform_indices = @transform_16, window_bounds = array<i64: 1, 96>}, {pipeline_mode = #tpu.pipeline_mode<synchronous>, transform_indices = @transform_17, window_bounds = array<i64: 32, 32>}, {pipeline_mode = #tpu.pipeline_mode<synchronous>, transform_indices = @transform_18, window_bounds = array<i64: 1, 32>}, {pipeline_mode = #tpu.pipeline_mode<synchronous>, transform_indices = @transform_19, window_bounds = array<i64: 1, 32>}, {pipeline_mode = #tpu.pipeline_mode<synchronous>, transform_indices = @transform_20, window_bounds = array<i64: 1, 32>}, {pipeline_mode = #tpu.pipeline_mode<synchronous>, transform_indices = @transform_21, window_bounds = array<i64: 32, 128>}, {pipeline_mode = #tpu.pipeline_mode<synchronous>, transform_indices = @transform_22, window_bounds = array<i64: 1, 128>}, {pipeline_mode = #tpu.pipeline_mode<synchronous>, transform_indices = @transform_23, window_bounds = array<i64: 128, 32>}, {pipeline_mode = #tpu.pipeline_mode<synchronous>, transform_indices = @transform_24, window_bounds = array<i64: 1, 32>}, {transform_indices = @transform_25, window_bounds = array<i64: 2, 8, 32>}]} {
    %c0 = arith.constant 0 : index
    %c0_0 = arith.constant 0 : index
    %c0_1 = arith.constant 0 : index
    %0 = vector.load %arg1[%c0, %c0_0, %c0_1] : memref<2x8x32xbf16, #tpu.memory_space<vmem>>, vector<2x8x32xbf16>
    %1 = arith.extf %0 : vector<2x8x32xbf16> to vector<2x8x32xf32>
    %2 = vector.shape_cast %1 : vector<2x8x32xf32> to vector<16x32xf32>
    %c0_2 = arith.constant 0 : index
    %c0_3 = arith.constant 0 : index
    %3 = vector.load %arg2[%c0_2, %c0_3] : memref<1x32xf32, #tpu.memory_space<vmem>>, vector<1x32xf32>
    %c0_4 = arith.constant 0 : index
    %c0_5 = arith.constant 0 : index
    %4 = vector.load %arg3[%c0_4, %c0_5] : memref<1x32xf32, #tpu.memory_space<vmem>>, vector<1x32xf32>
    %cst = arith.constant dense<0.000000e+00> : vector<16xf32>
    %5 = vector.multi_reduction <add>, %2, %cst [1] : vector<16x32xf32> to vector<16xf32>
    %6 = vector.shape_cast %5 : vector<16xf32> to vector<16x1xf32>
    %cst_6 = arith.constant 3.200000e+01 : f32
    %7 = vector.broadcast %cst_6 : f32 to vector<16x1xf32>
    %8 = arith.divf %6, %7 : vector<16x1xf32>
    %9 = arith.mulf %2, %2 : vector<16x32xf32>
    %cst_7 = arith.constant dense<0.000000e+00> : vector<16xf32>
    %10 = vector.multi_reduction <add>, %9, %cst_7 [1] : vector<16x32xf32> to vector<16xf32>
    %11 = vector.shape_cast %10 : vector<16xf32> to vector<16x1xf32>
    %cst_8 = arith.constant 3.200000e+01 : f32
    %12 = vector.broadcast %cst_8 : f32 to vector<16x1xf32>
    %13 = arith.divf %11, %12 : vector<16x1xf32>
    %14 = arith.mulf %8, %8 : vector<16x1xf32>
    %15 = arith.subf %13, %14 : vector<16x1xf32>
    %16 = vector.broadcast %8 : vector<16x1xf32> to vector<16x32xf32>
    %17 = arith.subf %2, %16 : vector<16x32xf32>
    %cst_9 = arith.constant 9.99999974E-6 : f32
    %18 = vector.broadcast %cst_9 : f32 to vector<16x1xf32>
    %19 = arith.addf %15, %18 : vector<16x1xf32>
    %20 = math.rsqrt %19 : vector<16x1xf32>
    %21 = vector.broadcast %20 : vector<16x1xf32> to vector<16x32xf32>
    %22 = arith.mulf %17, %21 : vector<16x32xf32>
    %23 = vector.broadcast %3 : vector<1x32xf32> to vector<16x32xf32>
    %24 = arith.mulf %22, %23 : vector<16x32xf32>
    %25 = vector.broadcast %4 : vector<1x32xf32> to vector<16x32xf32>
    %26 = arith.addf %24, %25 : vector<16x32xf32>
    %27 = arith.truncf %26 : vector<16x32xf32> to vector<16x32xbf16>
    %c0_10 = arith.constant 0 : index
    %c0_11 = arith.constant 0 : index
    %28 = vector.load %arg4[%c0_10, %c0_11] : memref<32x96xbf16, #tpu.memory_space<vmem>>, vector<32x96xbf16>
    %cst_12 = arith.constant dense<0.000000e+00> : vector<16x96xf32>
    %29 = tpu.matmul %27, %28, %cst_12 {dimension_numbers = #tpu.dot_dimension_numbers<[1], [0], [0], [1], [0, 0, 1, 1], [], []>} : vector<16x32xbf16>, vector<32x96xbf16>, vector<16x96xf32> -> vector<16x96xf32>
    %c0_13 = arith.constant 0 : index
    %c0_14 = arith.constant 0 : index
    %30 = vector.load %arg5[%c0_13, %c0_14] : memref<1x96xf32, #tpu.memory_space<vmem>>, vector<1x96xf32>
    %31 = vector.broadcast %30 : vector<1x96xf32> to vector<16x96xf32>
    %32 = arith.addf %29, %31 : vector<16x96xf32>
    %33 = vector.extract_strided_slice %32 {offsets = [0, 0], sizes = [16, 32], strides = [1, 1]} : vector<16x96xf32> to vector<16x32xf32>
    %34 = vector.shape_cast %33 : vector<16x32xf32> to vector<2x8x4x8xf32>
    %35 = tpu.transpose %34, [0, 2, 1, 3] : vector<2x8x4x8xf32> -> vector<2x4x8x8xf32>
    %36 = vector.shape_cast %35 : vector<2x4x8x8xf32> to vector<8x8x8xf32>
    %37 = arith.truncf %36 : vector<8x8x8xf32> to vector<8x8x8xbf16>
    %38 = vector.extract_strided_slice %32 {offsets = [0, 32], sizes = [16, 32], strides = [1, 1]} : vector<16x96xf32> to vector<16x32xf32>
    %39 = vector.shape_cast %38 : vector<16x32xf32> to vector<2x8x4x8xf32>
    %40 = tpu.transpose %39, [0, 2, 1, 3] : vector<2x8x4x8xf32> -> vector<2x4x8x8xf32>
    %41 = vector.shape_cast %40 : vector<2x4x8x8xf32> to vector<8x8x8xf32>
    %42 = arith.truncf %41 : vector<8x8x8xf32> to vector<8x8x8xbf16>
    %43 = vector.extract_strided_slice %32 {offsets = [0, 64], sizes = [16, 32], strides = [1, 1]} : vector<16x96xf32> to vector<16x32xf32>
    %44 = vector.shape_cast %43 : vector<16x32xf32> to vector<2x8x4x8xf32>
    %45 = tpu.transpose %44, [0, 2, 1, 3] : vector<2x8x4x8xf32> -> vector<2x4x8x8xf32>
    %46 = vector.shape_cast %45 : vector<2x4x8x8xf32> to vector<8x8x8xf32>
    %47 = arith.truncf %46 : vector<8x8x8xf32> to vector<8x8x8xbf16>
    %48 = tpu.iota {dimensions = array<i32: 0>} : vector<8x8xi32>
    %49 = tpu.iota {dimensions = array<i32: 1>} : vector<8x8xi32>
    %50 = arith.cmpi sgt, %49, %48 : vector<8x8xi32>
    %cst_15 = arith.constant -1.000000e+09 : f32
    %cst_16 = arith.constant 0.000000e+00 : f32
    %51 = vector.broadcast %cst_15 : f32 to vector<8x8xf32>
    %52 = vector.broadcast %cst_16 : f32 to vector<8x8xf32>
    %53 = arith.select %50, %51, %52 : vector<8x8xi1>, vector<8x8xf32>
    "tpu.trace_start"() <{level = 10 : i32, message = "zqd,zkd->zqk"}> : () -> ()
    %cst_17 = arith.constant dense<0.000000e+00> : vector<8x8x8xf32>
    %54 = tpu.matmul %37, %42, %cst_17 {dimension_numbers = #tpu.dot_dimension_numbers<[2], [2], [1], [1], [0, 0, 0, 1, 1, 1], [0], [0]>} : vector<8x8x8xbf16>, vector<8x8x8xbf16>, vector<8x8x8xf32> -> vector<8x8x8xf32>
    "tpu.trace_stop"() : () -> ()
    %cst_18 = arith.constant 0.353553385 : f32
    %55 = vector.broadcast %cst_18 : f32 to vector<8x8x8xf32>
    %56 = arith.mulf %54, %55 : vector<8x8x8xf32>
    %57 = vector.shape_cast %53 : vector<8x8xf32> to vector<1x8x8xf32>
    %58 = vector.broadcast %57 : vector<1x8x8xf32> to vector<8x8x8xf32>
    %59 = arith.addf %56, %58 : vector<8x8x8xf32>
    %cst_19 = arith.constant dense<0xFF800000> : vector<8x8xf32>
    %60 = vector.multi_reduction <maximumf>, %59, %cst_19 [2] : vector<8x8x8xf32> to vector<8x8xf32>
    %61 = vector.shape_cast %60 : vector<8x8xf32> to vector<8x8x1xf32>
    %62 = vector.broadcast %61 : vector<8x8x1xf32> to vector<8x8x8xf32>
    %63 = arith.subf %59, %62 : vector<8x8x8xf32>
    %64 = math.exp %63 : vector<8x8x8xf32>
    %cst_20 = arith.constant dense<0.000000e+00> : vector<8x8xf32>
    %65 = vector.multi_reduction <add>, %64, %cst_20 [2] : vector<8x8x8xf32> to vector<8x8xf32>
    %66 = vector.shape_cast %65 : vector<8x8xf32> to vector<8x8x1xf32>
    %67 = tpu.reciprocal %66 {approx = true} : vector<8x8x1xf32> -> vector<8x8x1xf32>
    %68 = vector.broadcast %67 : vector<8x8x1xf32> to vector<8x8x8xf32>
    %69 = arith.mulf %64, %68 : vector<8x8x8xf32>
    %70 = arith.truncf %69 : vector<8x8x8xf32> to vector<8x8x8xbf16>
    "tpu.trace_start"() <{level = 10 : i32, message = "zqk,zkd->zqd"}> : () -> ()
    %cst_21 = arith.constant dense<0.000000e+00> : vector<8x8x8xf32>
    %71 = tpu.matmul %70, %47, %cst_21 {dimension_numbers = #tpu.dot_dimension_numbers<[2], [1], [1], [2], [0, 0, 0, 1, 1, 2], [0], [0]>} : vector<8x8x8xbf16>, vector<8x8x8xbf16>, vector<8x8x8xf32> -> vector<8x8x8xf32>
    "tpu.trace_stop"() : () -> ()
    %72 = vector.shape_cast %71 : vector<8x8x8xf32> to vector<2x4x8x8xf32>
    %73 = tpu.transpose %72, [0, 2, 1, 3] : vector<2x4x8x8xf32> -> vector<2x8x4x8xf32>
    %74 = vector.shape_cast %73 : vector<2x8x4x8xf32> to vector<16x32xf32>
    %75 = arith.truncf %74 : vector<16x32xf32> to vector<16x32xbf16>
    %c0_22 = arith.constant 0 : index
    %c0_23 = arith.constant 0 : index
    %76 = vector.load %arg6[%c0_22, %c0_23] : memref<32x32xbf16, #tpu.memory_space<vmem>>, vector<32x32xbf16>
    %cst_24 = arith.constant dense<0.000000e+00> : vector<16x32xf32>
    %77 = tpu.matmul %75, %76, %cst_24 {dimension_numbers = #tpu.dot_dimension_numbers<[1], [0], [0], [1], [0, 0, 1, 1], [], []>} : vector<16x32xbf16>, vector<32x32xbf16>, vector<16x32xf32> -> vector<16x32xf32>
    %c0_25 = arith.constant 0 : index
    %c0_26 = arith.constant 0 : index
    %78 = vector.load %arg7[%c0_25, %c0_26] : memref<1x32xf32, #tpu.memory_space<vmem>>, vector<1x32xf32>
    %79 = vector.broadcast %78 : vector<1x32xf32> to vector<16x32xf32>
    %80 = arith.addf %77, %79 : vector<16x32xf32>
    %81 = arith.addf %2, %80 : vector<16x32xf32>
    %c0_27 = arith.constant 0 : index
    %c0_28 = arith.constant 0 : index
    %82 = vector.load %arg8[%c0_27, %c0_28] : memref<1x32xf32, #tpu.memory_space<vmem>>, vector<1x32xf32>
    %c0_29 = arith.constant 0 : index
    %c0_30 = arith.constant 0 : index
    %83 = vector.load %arg9[%c0_29, %c0_30] : memref<1x32xf32, #tpu.memory_space<vmem>>, vector<1x32xf32>
    %cst_31 = arith.constant dense<0.000000e+00> : vector<16xf32>
    %84 = vector.multi_reduction <add>, %81, %cst_31 [1] : vector<16x32xf32> to vector<16xf32>
    %85 = vector.shape_cast %84 : vector<16xf32> to vector<16x1xf32>
    %cst_32 = arith.constant 3.200000e+01 : f32
    %86 = vector.broadcast %cst_32 : f32 to vector<16x1xf32>
    %87 = arith.divf %85, %86 : vector<16x1xf32>
    %88 = arith.mulf %81, %81 : vector<16x32xf32>
    %cst_33 = arith.constant dense<0.000000e+00> : vector<16xf32>
    %89 = vector.multi_reduction <add>, %88, %cst_33 [1] : vector<16x32xf32> to vector<16xf32>
    %90 = vector.shape_cast %89 : vector<16xf32> to vector<16x1xf32>
    %cst_34 = arith.constant 3.200000e+01 : f32
    %91 = vector.broadcast %cst_34 : f32 to vector<16x1xf32>
    %92 = arith.divf %90, %91 : vector<16x1xf32>
    %93 = arith.mulf %87, %87 : vector<16x1xf32>
    %94 = arith.subf %92, %93 : vector<16x1xf32>
    %95 = vector.broadcast %87 : vector<16x1xf32> to vector<16x32xf32>
    %96 = arith.subf %81, %95 : vector<16x32xf32>
    %cst_35 = arith.constant 9.99999974E-6 : f32
    %97 = vector.broadcast %cst_35 : f32 to vector<16x1xf32>
    %98 = arith.addf %94, %97 : vector<16x1xf32>
    %99 = math.rsqrt %98 : vector<16x1xf32>
    %100 = vector.broadcast %99 : vector<16x1xf32> to vector<16x32xf32>
    %101 = arith.mulf %96, %100 : vector<16x32xf32>
    %102 = vector.broadcast %82 : vector<1x32xf32> to vector<16x32xf32>
    %103 = arith.mulf %101, %102 : vector<16x32xf32>
    %104 = vector.broadcast %83 : vector<1x32xf32> to vector<16x32xf32>
    %105 = arith.addf %103, %104 : vector<16x32xf32>
    %106 = arith.truncf %105 : vector<16x32xf32> to vector<16x32xbf16>
    %c0_36 = arith.constant 0 : index
    %c0_37 = arith.constant 0 : index
    %107 = vector.load %arg10[%c0_36, %c0_37] : memref<32x128xbf16, #tpu.memory_space<vmem>>, vector<32x128xbf16>
    %cst_38 = arith.constant dense<0.000000e+00> : vector<16x128xf32>
    %108 = tpu.matmul %106, %107, %cst_38 {dimension_numbers = #tpu.dot_dimension_numbers<[1], [0], [0], [1], [0, 0, 1, 1], [], []>} : vector<16x32xbf16>, vector<32x128xbf16>, vector<16x128xf32> -> vector<16x128xf32>
    %c0_39 = arith.constant 0 : index
    %c0_40 = arith.constant 0 : index
    %109 = vector.load %arg11[%c0_39, %c0_40] : memref<1x128xf32, #tpu.memory_space<vmem>>, vector<1x128xf32>
    %110 = vector.broadcast %109 : vector<1x128xf32> to vector<16x128xf32>
    %111 = arith.addf %108, %110 : vector<16x128xf32>
    %112 = arith.truncf %111 : vector<16x128xf32> to vector<16x128xbf16>
    %cst_41 = arith.constant 1.703130e+00 : bf16
    %113 = vector.broadcast %cst_41 : bf16 to vector<16x128xbf16>
    %114 = arith.mulf %113, %112 : vector<16x128xbf16>
    %115 = arith.negf %114 : vector<16x128xbf16>
    %116 = math.exp %115 : vector<16x128xbf16>
    %cst_42 = arith.constant 1.000000e+00 : bf16
    %117 = vector.broadcast %cst_42 : bf16 to vector<16x128xbf16>
    %118 = arith.addf %117, %116 : vector<16x128xbf16>
    %119 = arith.divf %117, %118 : vector<16x128xbf16>
    %120 = arith.mulf %112, %119 : vector<16x128xbf16>
    %c0_43 = arith.constant 0 : index
    %c0_44 = arith.constant 0 : index
    %121 = vector.load %arg12[%c0_43, %c0_44] : memref<128x32xbf16, #tpu.memory_space<vmem>>, vector<128x32xbf16>
    %cst_45 = arith.constant dense<0.000000e+00> : vector<16x32xf32>
    %122 = tpu.matmul %120, %121, %cst_45 {dimension_numbers = #tpu.dot_dimension_numbers<[1], [0], [0], [1], [0, 0, 1, 1], [], []>} : vector<16x128xbf16>, vector<128x32xbf16>, vector<16x32xf32> -> vector<16x32xf32>
    %c0_46 = arith.constant 0 : index
    %c0_47 = arith.constant 0 : index
    %123 = vector.load %arg13[%c0_46, %c0_47] : memref<1x32xf32, #tpu.memory_space<vmem>>, vector<1x32xf32>
    %124 = vector.broadcast %123 : vector<1x32xf32> to vector<16x32xf32>
    %125 = arith.addf %122, %124 : vector<16x32xf32>
    %126 = arith.addf %81, %125 : vector<16x32xf32>
    %c0_48 = arith.constant 0 : index
    %c0_49 = arith.constant 0 : index
    %127 = vector.load %arg14[%c0_48, %c0_49] : memref<1x32xf32, #tpu.memory_space<vmem>>, vector<1x32xf32>
    %c0_50 = arith.constant 0 : index
    %c0_51 = arith.constant 0 : index
    %128 = vector.load %arg15[%c0_50, %c0_51] : memref<1x32xf32, #tpu.memory_space<vmem>>, vector<1x32xf32>
    %cst_52 = arith.constant dense<0.000000e+00> : vector<16xf32>
    %129 = vector.multi_reduction <add>, %126, %cst_52 [1] : vector<16x32xf32> to vector<16xf32>
    %130 = vector.shape_cast %129 : vector<16xf32> to vector<16x1xf32>
    %cst_53 = arith.constant 3.200000e+01 : f32
    %131 = vector.broadcast %cst_53 : f32 to vector<16x1xf32>
    %132 = arith.divf %130, %131 : vector<16x1xf32>
    %133 = arith.mulf %126, %126 : vector<16x32xf32>
    %cst_54 = arith.constant dense<0.000000e+00> : vector<16xf32>
    %134 = vector.multi_reduction <add>, %133, %cst_54 [1] : vector<16x32xf32> to vector<16xf32>
    %135 = vector.shape_cast %134 : vector<16xf32> to vector<16x1xf32>
    %cst_55 = arith.constant 3.200000e+01 : f32
    %136 = vector.broadcast %cst_55 : f32 to vector<16x1xf32>
    %137 = arith.divf %135, %136 : vector<16x1xf32>
    %138 = arith.mulf %132, %132 : vector<16x1xf32>
    %139 = arith.subf %137, %138 : vector<16x1xf32>
    %140 = vector.broadcast %132 : vector<16x1xf32> to vector<16x32xf32>
    %141 = arith.subf %126, %140 : vector<16x32xf32>
    %cst_56 = arith.constant 9.99999974E-6 : f32
    %142 = vector.broadcast %cst_56 : f32 to vector<16x1xf32>
    %143 = arith.addf %139, %142 : vector<16x1xf32>
    %144 = math.rsqrt %143 : vector<16x1xf32>
    %145 = vector.broadcast %144 : vector<16x1xf32> to vector<16x32xf32>
    %146 = arith.mulf %141, %145 : vector<16x32xf32>
    %147 = vector.broadcast %127 : vector<1x32xf32> to vector<16x32xf32>
    %148 = arith.mulf %146, %147 : vector<16x32xf32>
    %149 = vector.broadcast %128 : vector<1x32xf32> to vector<16x32xf32>
    %150 = arith.addf %148, %149 : vector<16x32xf32>
    %151 = arith.truncf %150 : vector<16x32xf32> to vector<16x32xbf16>
    %c0_57 = arith.constant 0 : index
    %c0_58 = arith.constant 0 : index
    %152 = vector.load %arg16[%c0_57, %c0_58] : memref<32x96xbf16, #tpu.memory_space<vmem>>, vector<32x96xbf16>
    %cst_59 = arith.constant dense<0.000000e+00> : vector<16x96xf32>
    %153 = tpu.matmul %151, %152, %cst_59 {dimension_numbers = #tpu.dot_dimension_numbers<[1], [0], [0], [1], [0, 0, 1, 1], [], []>} : vector<16x32xbf16>, vector<32x96xbf16>, vector<16x96xf32> -> vector<16x96xf32>
    %c0_60 = arith.constant 0 : index
    %c0_61 = arith.constant 0 : index
    %154 = vector.load %arg17[%c0_60, %c0_61] : memref<1x96xf32, #tpu.memory_space<vmem>>, vector<1x96xf32>
    %155 = vector.broadcast %154 : vector<1x96xf32> to vector<16x96xf32>
    %156 = arith.addf %153, %155 : vector<16x96xf32>
    %157 = vector.extract_strided_slice %156 {offsets = [0, 0], sizes = [16, 32], strides = [1, 1]} : vector<16x96xf32> to vector<16x32xf32>
    %158 = vector.shape_cast %157 : vector<16x32xf32> to vector<2x8x4x8xf32>
    %159 = tpu.transpose %158, [0, 2, 1, 3] : vector<2x8x4x8xf32> -> vector<2x4x8x8xf32>
    %160 = vector.shape_cast %159 : vector<2x4x8x8xf32> to vector<8x8x8xf32>
    %161 = arith.truncf %160 : vector<8x8x8xf32> to vector<8x8x8xbf16>
    %162 = vector.extract_strided_slice %156 {offsets = [0, 32], sizes = [16, 32], strides = [1, 1]} : vector<16x96xf32> to vector<16x32xf32>
    %163 = vector.shape_cast %162 : vector<16x32xf32> to vector<2x8x4x8xf32>
    %164 = tpu.transpose %163, [0, 2, 1, 3] : vector<2x8x4x8xf32> -> vector<2x4x8x8xf32>
    %165 = vector.shape_cast %164 : vector<2x4x8x8xf32> to vector<8x8x8xf32>
    %166 = arith.truncf %165 : vector<8x8x8xf32> to vector<8x8x8xbf16>
    %167 = vector.extract_strided_slice %156 {offsets = [0, 64], sizes = [16, 32], strides = [1, 1]} : vector<16x96xf32> to vector<16x32xf32>
    %168 = vector.shape_cast %167 : vector<16x32xf32> to vector<2x8x4x8xf32>
    %169 = tpu.transpose %168, [0, 2, 1, 3] : vector<2x8x4x8xf32> -> vector<2x4x8x8xf32>
    %170 = vector.shape_cast %169 : vector<2x4x8x8xf32> to vector<8x8x8xf32>
    %171 = arith.truncf %170 : vector<8x8x8xf32> to vector<8x8x8xbf16>
    %172 = tpu.iota {dimensions = array<i32: 0>} : vector<8x8xi32>
    %173 = tpu.iota {dimensions = array<i32: 1>} : vector<8x8xi32>
    %174 = arith.cmpi sgt, %173, %172 : vector<8x8xi32>
    %cst_62 = arith.constant -1.000000e+09 : f32
    %cst_63 = arith.constant 0.000000e+00 : f32
    %175 = vector.broadcast %cst_62 : f32 to vector<8x8xf32>
    %176 = vector.broadcast %cst_63 : f32 to vector<8x8xf32>
    %177 = arith.select %174, %175, %176 : vector<8x8xi1>, vector<8x8xf32>
    "tpu.trace_start"() <{level = 10 : i32, message = "zqd,zkd->zqk"}> : () -> ()
    %cst_64 = arith.constant dense<0.000000e+00> : vector<8x8x8xf32>
    %178 = tpu.matmul %161, %166, %cst_64 {dimension_numbers = #tpu.dot_dimension_numbers<[2], [2], [1], [1], [0, 0, 0, 1, 1, 1], [0], [0]>} : vector<8x8x8xbf16>, vector<8x8x8xbf16>, vector<8x8x8xf32> -> vector<8x8x8xf32>
    "tpu.trace_stop"() : () -> ()
    %cst_65 = arith.constant 0.353553385 : f32
    %179 = vector.broadcast %cst_65 : f32 to vector<8x8x8xf32>
    %180 = arith.mulf %178, %179 : vector<8x8x8xf32>
    %181 = vector.shape_cast %177 : vector<8x8xf32> to vector<1x8x8xf32>
    %182 = vector.broadcast %181 : vector<1x8x8xf32> to vector<8x8x8xf32>
    %183 = arith.addf %180, %182 : vector<8x8x8xf32>
    %cst_66 = arith.constant dense<0xFF800000> : vector<8x8xf32>
    %184 = vector.multi_reduction <maximumf>, %183, %cst_66 [2] : vector<8x8x8xf32> to vector<8x8xf32>
    %185 = vector.shape_cast %184 : vector<8x8xf32> to vector<8x8x1xf32>
    %186 = vector.broadcast %185 : vector<8x8x1xf32> to vector<8x8x8xf32>
    %187 = arith.subf %183, %186 : vector<8x8x8xf32>
    %188 = math.exp %187 : vector<8x8x8xf32>
    %cst_67 = arith.constant dense<0.000000e+00> : vector<8x8xf32>
    %189 = vector.multi_reduction <add>, %188, %cst_67 [2] : vector<8x8x8xf32> to vector<8x8xf32>
    %190 = vector.shape_cast %189 : vector<8x8xf32> to vector<8x8x1xf32>
    %191 = tpu.reciprocal %190 {approx = true} : vector<8x8x1xf32> -> vector<8x8x1xf32>
    %192 = vector.broadcast %191 : vector<8x8x1xf32> to vector<8x8x8xf32>
    %193 = arith.mulf %188, %192 : vector<8x8x8xf32>
    %194 = arith.truncf %193 : vector<8x8x8xf32> to vector<8x8x8xbf16>
    "tpu.trace_start"() <{level = 10 : i32, message = "zqk,zkd->zqd"}> : () -> ()
    %cst_68 = arith.constant dense<0.000000e+00> : vector<8x8x8xf32>
    %195 = tpu.matmul %194, %171, %cst_68 {dimension_numbers = #tpu.dot_dimension_numbers<[2], [1], [1], [2], [0, 0, 0, 1, 1, 2], [0], [0]>} : vector<8x8x8xbf16>, vector<8x8x8xbf16>, vector<8x8x8xf32> -> vector<8x8x8xf32>
    "tpu.trace_stop"() : () -> ()
    %196 = vector.shape_cast %195 : vector<8x8x8xf32> to vector<2x4x8x8xf32>
    %197 = tpu.transpose %196, [0, 2, 1, 3] : vector<2x4x8x8xf32> -> vector<2x8x4x8xf32>
    %198 = vector.shape_cast %197 : vector<2x8x4x8xf32> to vector<16x32xf32>
    %199 = arith.truncf %198 : vector<16x32xf32> to vector<16x32xbf16>
    %c0_69 = arith.constant 0 : index
    %c0_70 = arith.constant 0 : index
    %200 = vector.load %arg18[%c0_69, %c0_70] : memref<32x32xbf16, #tpu.memory_space<vmem>>, vector<32x32xbf16>
    %cst_71 = arith.constant dense<0.000000e+00> : vector<16x32xf32>
    %201 = tpu.matmul %199, %200, %cst_71 {dimension_numbers = #tpu.dot_dimension_numbers<[1], [0], [0], [1], [0, 0, 1, 1], [], []>} : vector<16x32xbf16>, vector<32x32xbf16>, vector<16x32xf32> -> vector<16x32xf32>
    %c0_72 = arith.constant 0 : index
    %c0_73 = arith.constant 0 : index
    %202 = vector.load %arg19[%c0_72, %c0_73] : memref<1x32xf32, #tpu.memory_space<vmem>>, vector<1x32xf32>
    %203 = vector.broadcast %202 : vector<1x32xf32> to vector<16x32xf32>
    %204 = arith.addf %201, %203 : vector<16x32xf32>
    %205 = arith.addf %126, %204 : vector<16x32xf32>
    %c0_74 = arith.constant 0 : index
    %c0_75 = arith.constant 0 : index
    %206 = vector.load %arg20[%c0_74, %c0_75] : memref<1x32xf32, #tpu.memory_space<vmem>>, vector<1x32xf32>
    %c0_76 = arith.constant 0 : index
    %c0_77 = arith.constant 0 : index
    %207 = vector.load %arg21[%c0_76, %c0_77] : memref<1x32xf32, #tpu.memory_space<vmem>>, vector<1x32xf32>
    %cst_78 = arith.constant dense<0.000000e+00> : vector<16xf32>
    %208 = vector.multi_reduction <add>, %205, %cst_78 [1] : vector<16x32xf32> to vector<16xf32>
    %209 = vector.shape_cast %208 : vector<16xf32> to vector<16x1xf32>
    %cst_79 = arith.constant 3.200000e+01 : f32
    %210 = vector.broadcast %cst_79 : f32 to vector<16x1xf32>
    %211 = arith.divf %209, %210 : vector<16x1xf32>
    %212 = arith.mulf %205, %205 : vector<16x32xf32>
    %cst_80 = arith.constant dense<0.000000e+00> : vector<16xf32>
    %213 = vector.multi_reduction <add>, %212, %cst_80 [1] : vector<16x32xf32> to vector<16xf32>
    %214 = vector.shape_cast %213 : vector<16xf32> to vector<16x1xf32>
    %cst_81 = arith.constant 3.200000e+01 : f32
    %215 = vector.broadcast %cst_81 : f32 to vector<16x1xf32>
    %216 = arith.divf %214, %215 : vector<16x1xf32>
    %217 = arith.mulf %211, %211 : vector<16x1xf32>
    %218 = arith.subf %216, %217 : vector<16x1xf32>
    %219 = vector.broadcast %211 : vector<16x1xf32> to vector<16x32xf32>
    %220 = arith.subf %205, %219 : vector<16x32xf32>
    %cst_82 = arith.constant 9.99999974E-6 : f32
    %221 = vector.broadcast %cst_82 : f32 to vector<16x1xf32>
    %222 = arith.addf %218, %221 : vector<16x1xf32>
    %223 = math.rsqrt %222 : vector<16x1xf32>
    %224 = vector.broadcast %223 : vector<16x1xf32> to vector<16x32xf32>
    %225 = arith.mulf %220, %224 : vector<16x32xf32>
    %226 = vector.broadcast %206 : vector<1x32xf32> to vector<16x32xf32>
    %227 = arith.mulf %225, %226 : vector<16x32xf32>
    %228 = vector.broadcast %207 : vector<1x32xf32> to vector<16x32xf32>
    %229 = arith.addf %227, %228 : vector<16x32xf32>
    %230 = arith.truncf %229 : vector<16x32xf32> to vector<16x32xbf16>
    %c0_83 = arith.constant 0 : index
    %c0_84 = arith.constant 0 : index
    %231 = vector.load %arg22[%c0_83, %c0_84] : memref<32x128xbf16, #tpu.memory_space<vmem>>, vector<32x128xbf16>
    %cst_85 = arith.constant dense<0.000000e+00> : vector<16x128xf32>
    %232 = tpu.matmul %230, %231, %cst_85 {dimension_numbers = #tpu.dot_dimension_numbers<[1], [0], [0], [1], [0, 0, 1, 1], [], []>} : vector<16x32xbf16>, vector<32x128xbf16>, vector<16x128xf32> -> vector<16x128xf32>
    %c0_86 = arith.constant 0 : index
    %c0_87 = arith.constant 0 : index
    %233 = vector.load %arg23[%c0_86, %c0_87] : memref<1x128xf32, #tpu.memory_space<vmem>>, vector<1x128xf32>
    %234 = vector.broadcast %233 : vector<1x128xf32> to vector<16x128xf32>
    %235 = arith.addf %232, %234 : vector<16x128xf32>
    %236 = arith.truncf %235 : vector<16x128xf32> to vector<16x128xbf16>
    %cst_88 = arith.constant 1.703130e+00 : bf16
    %237 = vector.broadcast %cst_88 : bf16 to vector<16x128xbf16>
    %238 = arith.mulf %237, %236 : vector<16x128xbf16>
    %239 = arith.negf %238 : vector<16x128xbf16>
    %240 = math.exp %239 : vector<16x128xbf16>
    %cst_89 = arith.constant 1.000000e+00 : bf16
    %241 = vector.broadcast %cst_89 : bf16 to vector<16x128xbf16>
    %242 = arith.addf %241, %240 : vector<16x128xbf16>
    %243 = arith.divf %241, %242 : vector<16x128xbf16>
    %244 = arith.mulf %236, %243 : vector<16x128xbf16>
    %c0_90 = arith.constant 0 : index
    %c0_91 = arith.constant 0 : index
    %245 = vector.load %arg24[%c0_90, %c0_91] : memref<128x32xbf16, #tpu.memory_space<vmem>>, vector<128x32xbf16>
    %cst_92 = arith.constant dense<0.000000e+00> : vector<16x32xf32>
    %246 = tpu.matmul %244, %245, %cst_92 {dimension_numbers = #tpu.dot_dimension_numbers<[1], [0], [0], [1], [0, 0, 1, 1], [], []>} : vector<16x128xbf16>, vector<128x32xbf16>, vector<16x32xf32> -> vector<16x32xf32>
    %c0_93 = arith.constant 0 : index
    %c0_94 = arith.constant 0 : index
    %247 = vector.load %arg25[%c0_93, %c0_94] : memref<1x32xf32, #tpu.memory_space<vmem>>, vector<1x32xf32>
    %248 = vector.broadcast %247 : vector<1x32xf32> to vector<16x32xf32>
    %249 = arith.addf %246, %248 : vector<16x32xf32>
    %250 = arith.addf %205, %249 : vector<16x32xf32>
    %251 = vector.shape_cast %250 : vector<16x32xf32> to vector<2x8x32xf32>
    %252 = arith.truncf %251 : vector<2x8x32xf32> to vector<2x8x32xbf16>
    %c0_95 = arith.constant 0 : index
    %c0_96 = arith.constant 0 : index
    %c0_97 = arith.constant 0 : index
    %253 = vector.load %arg26[%c0_95, %c0_96, %c0_97] : memref<2x8x32xbf16, #tpu.memory_space<vmem>>, vector<2x8x32xbf16>
    tpu.vector_store %arg26[%c0_95, %c0_96, %c0_97], %252 {strides = array<i32>} : memref<2x8x32xbf16, #tpu.memory_space<vmem>>, vector<2x8x32xbf16>,
    return
  }
  func.func @transform_0(%arg0: i32) -> (i32, i32, i32) {
    %c0_i32 = arith.constant 0 : i32
    %c0_i32_0 = arith.constant 0 : i32
    %c0_i32_1 = arith.constant 0 : i32
    return %arg0, %c0_i32, %c0_i32_0 : i32, i32, i32
  }
  func.func @transform_1(%arg0: i32) -> (i32, i32) {
    %c0_i32 = arith.constant 0 : i32
    %c0_i32_0 = arith.constant 0 : i32
    %c0_i32_1 = arith.constant 0 : i32
    return %c0_i32, %c0_i32_0 : i32, i32
  }
  func.func @transform_2(%arg0: i32) -> (i32, i32) {
    %c0_i32 = arith.constant 0 : i32
    %c0_i32_0 = arith.constant 0 : i32
    %c0_i32_1 = arith.constant 0 : i32
    return %c0_i32, %c0_i32_0 : i32, i32
  }
  func.func @transform_3(%arg0: i32) -> (i32, i32) {
    %c0_i32 = arith.constant 0 : i32
    %c0_i32_0 = arith.constant 0 : i32
    %c0_i32_1 = arith.constant 0 : i32
    return %c0_i32, %c0_i32_0 : i32, i32
  }
  func.func @transform_4(%arg0: i32) -> (i32, i32) {
    %c0_i32 = arith.constant 0 : i32
    %c0_i32_0 = arith.constant 0 : i32
    %c0_i32_1 = arith.constant 0 : i32
    return %c0_i32, %c0_i32_0 : i32, i32
  }
  func.func @transform_5(%arg0: i32) -> (i32, i32) {
    %c0_i32 = arith.constant 0 : i32
    %c0_i32_0 = arith.constant 0 : i32
    %c0_i32_1 = arith.constant 0 : i32
    return %c0_i32, %c0_i32_0 : i32, i32
  }
  func.func @transform_6(%arg0: i32) -> (i32, i32) {
    %c0_i32 = arith.constant 0 : i32
    %c0_i32_0 = arith.constant 0 : i32
    %c0_i32_1 = arith.constant 0 : i32
    return %c0_i32, %c0_i32_0 : i32, i32
  }
  func.func @transform_7(%arg0: i32) -> (i32, i32) {
    %c0_i32 = arith.constant 0 : i32
    %c0_i32_0 = arith.constant 0 : i32
    %c0_i32_1 = arith.constant 0 : i32
    return %c0_i32, %c0_i32_0 : i32, i32
  }
  func.func @transform_8(%arg0: i32) -> (i32, i32) {
    %c0_i32 = arith.constant 0 : i32
    %c0_i32_0 = arith.constant 0 : i32
    %c0_i32_1 = arith.constant 0 : i32
    return %c0_i32, %c0_i32_0 : i32, i32
  }
  func.func @transform_9(%arg0: i32) -> (i32, i32) {
    %c0_i32 = arith.constant 0 : i32
    %c0_i32_0 = arith.constant 0 : i32
    %c0_i32_1 = arith.constant 0 : i32
    return %c0_i32, %c0_i32_0 : i32, i32
  }
  func.func @transform_10(%arg0: i32) -> (i32, i32) {
    %c0_i32 = arith.constant 0 : i32
    %c0_i32_0 = arith.constant 0 : i32
    %c0_i32_1 = arith.constant 0 : i32
    return %c0_i32, %c0_i32_0 : i32, i32
  }
  func.func @transform_11(%arg0: i32) -> (i32, i32) {
    %c0_i32 = arith.constant 0 : i32
    %c0_i32_0 = arith.constant 0 : i32
    %c0_i32_1 = arith.constant 0 : i32
    return %c0_i32, %c0_i32_0 : i32, i32
  }
  func.func @transform_12(%arg0: i32) -> (i32, i32) {
    %c0_i32 = arith.constant 0 : i32
    %c0_i32_0 = arith.constant 0 : i32
    %c0_i32_1 = arith.constant 0 : i32
    return %c0_i32, %c0_i32_0 : i32, i32
  }
  func.func @transform_13(%arg0: i32) -> (i32, i32) {
    %c0_i32 = arith.constant 0 : i32
    %c0_i32_0 = arith.constant 0 : i32
    %c0_i32_1 = arith.constant 0 : i32
    return %c0_i32, %c0_i32_0 : i32, i32
  }
  func.func @transform_14(%arg0: i32) -> (i32, i32) {
    %c0_i32 = arith.constant 0 : i32
    %c0_i32_0 = arith.constant 0 : i32
    %c0_i32_1 = arith.constant 0 : i32
    return %c0_i32, %c0_i32_0 : i32, i32
  }
  func.func @transform_15(%arg0: i32) -> (i32, i32) {
    %c0_i32 = arith.constant 0 : i32
    %c0_i32_0 = arith.constant 0 : i32
    %c0_i32_1 = arith.constant 0 : i32
    return %c0_i32, %c0_i32_0 : i32, i32
  }
  func.func @transform_16(%arg0: i32) -> (i32, i32) {
    %c0_i32 = arith.constant 0 : i32
    %c0_i32_0 = arith.constant 0 : i32
    %c0_i32_1 = arith.constant 0 : i32
    return %c0_i32, %c0_i32_0 : i32, i32
  }
  func.func @transform_17(%arg0: i32) -> (i32, i32) {
    %c0_i32 = arith.constant 0 : i32
    %c0_i32_0 = arith.constant 0 : i32
    %c0_i32_1 = arith.constant 0 : i32
    return %c0_i32, %c0_i32_0 : i32, i32
  }
  func.func @transform_18(%arg0: i32) -> (i32, i32) {
    %c0_i32 = arith.constant 0 : i32
    %c0_i32_0 = arith.constant 0 : i32
    %c0_i32_1 = arith.constant 0 : i32
    return %c0_i32, %c0_i32_0 : i32, i32
  }
  func.func @transform_19(%arg0: i32) -> (i32, i32) {
    %c0_i32 = arith.constant 0 : i32
    %c0_i32_0 = arith.constant 0 : i32
    %c0_i32_1 = arith.constant 0 : i32
    return %c0_i32, %c0_i32_0 : i32, i32
  }
  func.func @transform_20(%arg0: i32) -> (i32, i32) {
    %c0_i32 = arith.constant 0 : i32
    %c0_i32_0 = arith.constant 0 : i32
    %c0_i32_1 = arith.constant 0 : i32
    return %c0_i32, %c0_i32_0 : i32, i32
  }
  func.func @transform_21(%arg0: i32) -> (i32, i32) {
    %c0_i32 = arith.constant 0 : i32
    %c0_i32_0 = arith.constant 0 : i32
    %c0_i32_1 = arith.constant 0 : i32
    return %c0_i32, %c0_i32_0 : i32, i32
  }
  func.func @transform_22(%arg0: i32) -> (i32, i32) {
    %c0_i32 = arith.constant 0 : i32
    %c0_i32_0 = arith.constant 0 : i32
    %c0_i32_1 = arith.constant 0 : i32
    return %c0_i32, %c0_i32_0 : i32, i32
  }
  func.func @transform_23(%arg0: i32) -> (i32, i32) {
    %c0_i32 = arith.constant 0 : i32
    %c0_i32_0 = arith.constant 0 : i32
    %c0_i32_1 = arith.constant 0 : i32
    return %c0_i32, %c0_i32_0 : i32, i32
  }
  func.func @transform_24(%arg0: i32) -> (i32, i32) {
    %c0_i32 = arith.constant 0 : i32
    %c0_i32_0 = arith.constant 0 : i32
    %c0_i32_1 = arith.constant 0 : i32
    return %c0_i32, %c0_i32_0 : i32, i32
  }
  func.func @transform_25(%arg0: i32) -> (i32, i32, i32) {
    %c0_i32 = arith.constant 0 : i32
    %c0_i32_0 = arith.constant 0 : i32
    %c0_i32_1 = arith.constant 0 : i32
    return %arg0, %c0_i32, %c0_i32_0 : i32, i32, i32
  }
}

module attributes {stable_mosaic.version = 11 : i64} {
  func.func @ln_proj_kernel(%arg0: memref<2x32xbf16, #tpu.memory_space<vmem>>, %arg1: memref<1x32xf32, #tpu.memory_space<vmem>>, %arg2: memref<1x32xf32, #tpu.memory_space<vmem>>, %arg3: memref<32x16xbf16, #tpu.memory_space<vmem>>, %arg4: memref<2x16xf32, #tpu.memory_space<vmem>>) attributes {dimension_semantics = [], scalar_prefetch = 0 : i64, scratch_operands = 0 : i64, tpu.core_type = #tpu.core_type<tc>} {
    %c0 = arith.constant 0 : index
    %c0_0 = arith.constant 0 : index
    %0 = vector.load %arg0[%c0, %c0_0] : memref<2x32xbf16, #tpu.memory_space<vmem>>, vector<2x32xbf16>
    %1 = arith.extf %0 : vector<2x32xbf16> to vector<2x32xf32>
    %c0_1 = arith.constant 0 : index
    %c0_2 = arith.constant 0 : index
    %2 = vector.load %arg1[%c0_1, %c0_2] : memref<1x32xf32, #tpu.memory_space<vmem>>, vector<1x32xf32>
    %c0_3 = arith.constant 0 : index
    %c0_4 = arith.constant 0 : index
    %3 = vector.load %arg2[%c0_3, %c0_4] : memref<1x32xf32, #tpu.memory_space<vmem>>, vector<1x32xf32>
    %cst = arith.constant dense<0.000000e+00> : vector<2xf32>
    %4 = vector.multi_reduction <add>, %1, %cst [1] : vector<2x32xf32> to vector<2xf32>
    %5 = vector.shape_cast %4 : vector<2xf32> to vector<2x1xf32>
    %cst_5 = arith.constant 3.200000e+01 : f32
    %6 = vector.broadcast %cst_5 : f32 to vector<2x1xf32>
    %7 = arith.divf %5, %6 : vector<2x1xf32>
    %8 = arith.mulf %1, %1 : vector<2x32xf32>
    %cst_6 = arith.constant dense<0.000000e+00> : vector<2xf32>
    %9 = vector.multi_reduction <add>, %8, %cst_6 [1] : vector<2x32xf32> to vector<2xf32>
    %10 = vector.shape_cast %9 : vector<2xf32> to vector<2x1xf32>
    %cst_7 = arith.constant 3.200000e+01 : f32
    %11 = vector.broadcast %cst_7 : f32 to vector<2x1xf32>
    %12 = arith.divf %10, %11 : vector<2x1xf32>
    %13 = arith.mulf %7, %7 : vector<2x1xf32>
    %14 = arith.subf %12, %13 : vector<2x1xf32>
    %15 = vector.broadcast %7 : vector<2x1xf32> to vector<2x32xf32>
    %16 = arith.subf %1, %15 : vector<2x32xf32>
    %cst_8 = arith.constant 9.99999974E-6 : f32
    %17 = vector.broadcast %cst_8 : f32 to vector<2x1xf32>
    %18 = arith.addf %14, %17 : vector<2x1xf32>
    %19 = math.rsqrt %18 : vector<2x1xf32>
    %20 = vector.broadcast %19 : vector<2x1xf32> to vector<2x32xf32>
    %21 = arith.mulf %16, %20 : vector<2x32xf32>
    %22 = vector.broadcast %2 : vector<1x32xf32> to vector<2x32xf32>
    %23 = arith.mulf %21, %22 : vector<2x32xf32>
    %24 = vector.broadcast %3 : vector<1x32xf32> to vector<2x32xf32>
    %25 = arith.addf %23, %24 : vector<2x32xf32>
    %26 = arith.truncf %25 : vector<2x32xf32> to vector<2x32xbf16>
    %c0_9 = arith.constant 0 : index
    %c0_10 = arith.constant 0 : index
    %27 = vector.load %arg3[%c0_9, %c0_10] : memref<32x16xbf16, #tpu.memory_space<vmem>>, vector<32x16xbf16>
    %cst_11 = arith.constant dense<0.000000e+00> : vector<2x16xf32>
    %28 = tpu.matmul %26, %27, %cst_11 {dimension_numbers = #tpu.dot_dimension_numbers<[1], [0], [0], [1], [0, 0, 1, 1], [], []>} : vector<2x32xbf16>, vector<32x16xbf16>, vector<2x16xf32> -> vector<2x16xf32>
    %c0_12 = arith.constant 0 : index
    %c0_13 = arith.constant 0 : index
    %29 = vector.load %arg4[%c0_12, %c0_13] : memref<2x16xf32, #tpu.memory_space<vmem>>, vector<2x16xf32>
    tpu.vector_store %arg4[%c0_12, %c0_13], %28 {strides = array<i32>} : memref<2x16xf32, #tpu.memory_space<vmem>>, vector<2x16xf32>,
    return
  }
}

module attributes {stable_mosaic.version = 11 : i64} {
  func.func @ln_proj_kernel(%arg0: memref<2x32xbf16, #tpu.memory_space<vmem>>, %arg1: memref<1x32xf32, #tpu.memory_space<vmem>>, %arg2: memref<1x32xf32, #tpu.memory_space<vmem>>, %arg3: memref<32x16xbf16, #tpu.memory_space<vmem>>, %arg4: memref<2x16xf32, #tpu.memory_space<vmem>>) attributes {dimension_semantics = [], scalar_prefetch = 0 : i64, scratch_operands = 0 : i64, tpu.core_type = #tpu.core_type<tc>} {
    %c0 = arith.constant 0 : index
    %c0_0 = arith.constant 0 : index
    %0 = vector.load %arg0[%c0, %c0_0] : memref<2x32xbf16, #tpu.memory_space<vmem>>, vector<2x32xbf16>
    %1 = arith.extf %0 : vector<2x32xbf16> to vector<2x32xf32>
    %c0_1 = arith.constant 0 : index
    %c0_2 = arith.constant 0 : index
    %2 = vector.load %arg1[%c0_1, %c0_2] : memref<1x32xf32, #tpu.memory_space<vmem>>, vector<1x32xf32>
    %c0_3 = arith.constant 0 : index
    %c0_4 = arith.constant 0 : index
    %3 = vector.load %arg2[%c0_3, %c0_4] : memref<1x32xf32, #tpu.memory_space<vmem>>, vector<1x32xf32>
    %cst = arith.constant dense<0.000000e+00> : vector<2xf32>
    %4 = vector.multi_reduction <add>, %1, %cst [1] : vector<2x32xf32> to vector<2xf32>
    %5 = vector.shape_cast %4 : vector<2xf32> to vector<2x1xf32>
    %cst_5 = arith.constant 3.200000e+01 : f32
    %6 = vector.broadcast %cst_5 : f32 to vector<2x1xf32>
    %7 = arith.divf %5, %6 : vector<2x1xf32>
    %8 = arith.mulf %1, %1 : vector<2x32xf32>
    %cst_6 = arith.constant dense<0.000000e+00> : vector<2xf32>
    %9 = vector.multi_reduction <add>, %8, %cst_6 [1] : vector<2x32xf32> to vector<2xf32>
    %10 = vector.shape_cast %9 : vector<2xf32> to vector<2x1xf32>
    %cst_7 = arith.constant 3.200000e+01 : f32
    %11 = vector.broadcast %cst_7 : f32 to vector<2x1xf32>
    %12 = arith.divf %10, %11 : vector<2x1xf32>
    %13 = arith.mulf %7, %7 : vector<2x1xf32>
    %14 = arith.subf %12, %13 : vector<2x1xf32>
    %15 = vector.broadcast %7 : vector<2x1xf32> to vector<2x32xf32>
    %16 = arith.subf %1, %15 : vector<2x32xf32>
    %cst_8 = arith.constant 9.99999974E-6 : f32
    %17 = vector.broadcast %cst_8 : f32 to vector<2x1xf32>
    %18 = arith.addf %14, %17 : vector<2x1xf32>
    %19 = math.rsqrt %18 : vector<2x1xf32>
    %20 = vector.broadcast %19 : vector<2x1xf32> to vector<2x32xf32>
    %21 = arith.mulf %16, %20 : vector<2x32xf32>
    %22 = vector.broadcast %2 : vector<1x32xf32> to vector<2x32xf32>
    %23 = arith.mulf %21, %22 : vector<2x32xf32>
    %24 = vector.broadcast %3 : vector<1x32xf32> to vector<2x32xf32>
    %25 = arith.addf %23, %24 : vector<2x32xf32>
    %26 = arith.truncf %25 : vector<2x32xf32> to vector<2x32xbf16>
    %c0_9 = arith.constant 0 : index
    %c0_10 = arith.constant 0 : index
    %27 = vector.load %arg3[%c0_9, %c0_10] : memref<32x16xbf16, #tpu.memory_space<vmem>>, vector<32x16xbf16>
    %cst_11 = arith.constant dense<0.000000e+00> : vector<2x16xf32>
    %28 = tpu.matmul %26, %27, %cst_11 {dimension_numbers = #tpu.dot_dimension_numbers<[1], [0], [0], [1], [0, 0, 1, 1], [], []>} : vector<2x32xbf16>, vector<32x16xbf16>, vector<2x16xf32> -> vector<2x16xf32>
    %c0_12 = arith.constant 0 : index
    %c0_13 = arith.constant 0 : index
    %29 = vector.load %arg4[%c0_12, %c0_13] : memref<2x16xf32, #tpu.memory_space<vmem>>, vector<2x16xf32>
    tpu.vector_store %arg4[%c0_12, %c0_13], %28 {strides = array<i32>} : memref<2x16xf32, #tpu.memory_space<vmem>>, vector<2x16xf32>,
    return
  }
}

module attributes {stable_mosaic.version = 11 : i64} {
  func.func @blocks_kernel(%arg0: i32, %arg1: memref<2x8x32xbf16, #tpu.memory_space<vmem>>, %arg2: memref<1x32xf32, #tpu.memory_space<vmem>>, %arg3: memref<1x32xf32, #tpu.memory_space<vmem>>, %arg4: memref<32x96xbf16, #tpu.memory_space<vmem>>, %arg5: memref<1x96xf32, #tpu.memory_space<vmem>>, %arg6: memref<32x32xbf16, #tpu.memory_space<vmem>>, %arg7: memref<1x32xf32, #tpu.memory_space<vmem>>, %arg8: memref<1x32xf32, #tpu.memory_space<vmem>>, %arg9: memref<1x32xf32, #tpu.memory_space<vmem>>, %arg10: memref<32x128xbf16, #tpu.memory_space<vmem>>, %arg11: memref<1x128xf32, #tpu.memory_space<vmem>>, %arg12: memref<128x32xbf16, #tpu.memory_space<vmem>>, %arg13: memref<1x32xf32, #tpu.memory_space<vmem>>, %arg14: memref<1x32xf32, #tpu.memory_space<vmem>>, %arg15: memref<1x32xf32, #tpu.memory_space<vmem>>, %arg16: memref<32x96xbf16, #tpu.memory_space<vmem>>, %arg17: memref<1x96xf32, #tpu.memory_space<vmem>>, %arg18: memref<32x32xbf16, #tpu.memory_space<vmem>>, %arg19: memref<1x32xf32, #tpu.memory_space<vmem>>, %arg20: memref<1x32xf32, #tpu.memory_space<vmem>>, %arg21: memref<1x32xf32, #tpu.memory_space<vmem>>, %arg22: memref<32x128xbf16, #tpu.memory_space<vmem>>, %arg23: memref<1x128xf32, #tpu.memory_space<vmem>>, %arg24: memref<128x32xbf16, #tpu.memory_space<vmem>>, %arg25: memref<1x32xf32, #tpu.memory_space<vmem>>, %arg26: memref<2x8x32xbf16, #tpu.memory_space<vmem>>) attributes {dimension_semantics = [#tpu.dimension_semantics<arbitrary>], iteration_bounds = array<i64: 1>, scalar_prefetch = 0 : i64, scratch_operands = 0 : i64, tpu.core_type = #tpu.core_type<tc>, window_params = [{transform_indices = @transform_0, window_bounds = array<i64: 2, 8, 32>}, {pipeline_mode = #tpu.pipeline_mode<synchronous>, transform_indices = @transform_1, window_bounds = array<i64: 1, 32>}, {pipeline_mode = #tpu.pipeline_mode<synchronous>, transform_indices = @transform_2, window_bounds = array<i64: 1, 32>}, {pipeline_mode = #tpu.pipeline_mode<synchronous>, transform_indices = @transform_3, window_bounds = array<i64: 32, 96>}, {pipeline_mode = #tpu.pipeline_mode<synchronous>, transform_indices = @transform_4, window_bounds = array<i64: 1, 96>}, {pipeline_mode = #tpu.pipeline_mode<synchronous>, transform_indices = @transform_5, window_bounds = array<i64: 32, 32>}, {pipeline_mode = #tpu.pipeline_mode<synchronous>, transform_indices = @transform_6, window_bounds = array<i64: 1, 32>}, {pipeline_mode = #tpu.pipeline_mode<synchronous>, transform_indices = @transform_7, window_bounds = array<i64: 1, 32>}, {pipeline_mode = #tpu.pipeline_mode<synchronous>, transform_indices = @transform_8, window_bounds = array<i64: 1, 32>}, {pipeline_mode = #tpu.pipeline_mode<synchronous>, transform_indices = @transform_9, window_bounds = array<i64: 32, 128>}, {pipeline_mode = #tpu.pipeline_mode<synchronous>, transform_indices = @transform_10, window_bounds = array<i64: 1, 128>}, {pipeline_mode = #tpu.pipeline_mode<synchronous>, transform_indices = @transform_11, window_bounds = array<i64: 128, 32>}, {pipeline_mode = #tpu.pipeline_mode<synchronous>, transform_indices = @transform_12, window_bounds = array<i64: 1, 32>}, {pipeline_mode = #tpu.pipeline_mode<synchronous>, transform_indices = @transform_13, window_bounds = array<i64: 1, 32>}, {pipeline_mode = #tpu.pipeline_mode<synchronous>, transform_indices = @transform_14, window_bounds = array<i64: 1, 32>}, {pipeline_mode = #tpu.pipeline_mode<synchronous>, transform_indices = @transform_15, window_bounds = array<i64: 32, 96>}, {pipeline_mode = #tpu.pipeline_mode<synchronous>, transform_indices = @transform_16, window_bounds = array<i64: 1, 96>}, {pipeline_mode = #tpu.pipeline_mode<synchronous>, transform_indices = @transform_17, window_bounds = array<i64: 32, 32>}, {pipeline_mode = #tpu.pipeline_mode<synchronous>, transform_indices = @transform_18, window_bounds = array<i64: 1, 32>}, {pipeline_mode = #tpu.pipeline_mode<synchronous>, transform_indices = @transform_19, window_bounds = array<i64: 1, 32>}, {pipeline_mode = #tpu.pipeline_mode<synchronous>, transform_indices = @transform_20, window_bounds = array<i64: 1, 32>}, {pipeline_mode = #tpu.pipeline_mode<synchronous>, transform_indices = @transform_21, window_bounds = array<i64: 32, 128>}, {pipeline_mode = #tpu.pipeline_mode<synchronous>, transform_indices = @transform_22, window_bounds = array<i64: 1, 128>}, {pipeline_mode = #tpu.pipeline_mode<synchronous>, transform_indices = @transform_23, window_bounds = array<i64: 128, 32>}, {pipeline_mode = #tpu.pipeline_mode<synchronous>, transform_indices = @transform_24, window_bounds = array<i64: 1, 32>}, {transform_indices = @transform_25, window_bounds = array<i64: 2, 8, 32>}]} {
    %c0 = arith.constant 0 : index
    %c0_0 = arith.constant 0 : index
    %c0_1 = arith.constant 0 : index
    %0 = vector.load %arg1[%c0, %c0_0, %c0_1] : memref<2x8x32xbf16, #tpu.memory_space<vmem>>, vector<2x8x32xbf16>
    %1 = arith.extf %0 : vector<2x8x32xbf16> to vector<2x8x32xf32>
    %2 = vector.shape_cast %1 : vector<2x8x32xf32> to vector<16x32xf32>
    %c0_2 = arith.constant 0 : index
    %c0_3 = arith.constant 0 : index
    %3 = vector.load %arg2[%c0_2, %c0_3] : memref<1x32xf32, #tpu.memory_space<vmem>>, vector<1x32xf32>
    %c0_4 = arith.constant 0 : index
    %c0_5 = arith.constant 0 : index
    %4 = vector.load %arg3[%c0_4, %c0_5] : memref<1x32xf32, #tpu.memory_space<vmem>>, vector<1x32xf32>
    %cst = arith.constant dense<0.000000e+00> : vector<16xf32>
    %5 = vector.multi_reduction <add>, %2, %cst [1] : vector<16x32xf32> to vector<16xf32>
    %6 = vector.shape_cast %5 : vector<16xf32> to vector<16x1xf32>
    %cst_6 = arith.constant 3.200000e+01 : f32
    %7 = vector.broadcast %cst_6 : f32 to vector<16x1xf32>
    %8 = arith.divf %6, %7 : vector<16x1xf32>
    %9 = arith.mulf %2, %2 : vector<16x32xf32>
    %cst_7 = arith.constant dense<0.000000e+00> : vector<16xf32>
    %10 = vector.multi_reduction <add>, %9, %cst_7 [1] : vector<16x32xf32> to vector<16xf32>
    %11 = vector.shape_cast %10 : vector<16xf32> to vector<16x1xf32>
    %cst_8 = arith.constant 3.200000e+01 : f32
    %12 = vector.broadcast %cst_8 : f32 to vector<16x1xf32>
    %13 = arith.divf %11, %12 : vector<16x1xf32>
    %14 = arith.mulf %8, %8 : vector<16x1xf32>
    %15 = arith.subf %13, %14 : vector<16x1xf32>
    %16 = vector.broadcast %8 : vector<16x1xf32> to vector<16x32xf32>
    %17 = arith.subf %2, %16 : vector<16x32xf32>
    %cst_9 = arith.constant 9.99999974E-6 : f32
    %18 = vector.broadcast %cst_9 : f32 to vector<16x1xf32>
    %19 = arith.addf %15, %18 : vector<16x1xf32>
    %20 = math.rsqrt %19 : vector<16x1xf32>
    %21 = vector.broadcast %20 : vector<16x1xf32> to vector<16x32xf32>
    %22 = arith.mulf %17, %21 : vector<16x32xf32>
    %23 = vector.broadcast %3 : vector<1x32xf32> to vector<16x32xf32>
    %24 = arith.mulf %22, %23 : vector<16x32xf32>
    %25 = vector.broadcast %4 : vector<1x32xf32> to vector<16x32xf32>
    %26 = arith.addf %24, %25 : vector<16x32xf32>
    %27 = arith.truncf %26 : vector<16x32xf32> to vector<16x32xbf16>
    %c0_10 = arith.constant 0 : index
    %c0_11 = arith.constant 0 : index
    %28 = vector.load %arg4[%c0_10, %c0_11] : memref<32x96xbf16, #tpu.memory_space<vmem>>, vector<32x96xbf16>
    %cst_12 = arith.constant dense<0.000000e+00> : vector<16x96xf32>
    %29 = tpu.matmul %27, %28, %cst_12 {dimension_numbers = #tpu.dot_dimension_numbers<[1], [0], [0], [1], [0, 0, 1, 1], [], []>} : vector<16x32xbf16>, vector<32x96xbf16>, vector<16x96xf32> -> vector<16x96xf32>
    %c0_13 = arith.constant 0 : index
    %c0_14 = arith.constant 0 : index
    %30 = vector.load %arg5[%c0_13, %c0_14] : memref<1x96xf32, #tpu.memory_space<vmem>>, vector<1x96xf32>
    %31 = vector.broadcast %30 : vector<1x96xf32> to vector<16x96xf32>
    %32 = arith.addf %29, %31 : vector<16x96xf32>
    %33 = vector.extract_strided_slice %32 {offsets = [0, 0], sizes = [16, 32], strides = [1, 1]} : vector<16x96xf32> to vector<16x32xf32>
    %34 = vector.shape_cast %33 : vector<16x32xf32> to vector<2x8x4x8xf32>
    %35 = tpu.transpose %34, [0, 2, 1, 3] : vector<2x8x4x8xf32> -> vector<2x4x8x8xf32>
    %36 = vector.shape_cast %35 : vector<2x4x8x8xf32> to vector<8x8x8xf32>
    %37 = arith.truncf %36 : vector<8x8x8xf32> to vector<8x8x8xbf16>
    %38 = vector.extract_strided_slice %32 {offsets = [0, 32], sizes = [16, 32], strides = [1, 1]} : vector<16x96xf32> to vector<16x32xf32>
    %39 = vector.shape_cast %38 : vector<16x32xf32> to vector<2x8x4x8xf32>
    %40 = tpu.transpose %39, [0, 2, 1, 3] : vector<2x8x4x8xf32> -> vector<2x4x8x8xf32>
    %41 = vector.shape_cast %40 : vector<2x4x8x8xf32> to vector<8x8x8xf32>
    %42 = arith.truncf %41 : vector<8x8x8xf32> to vector<8x8x8xbf16>
    %43 = vector.extract_strided_slice %32 {offsets = [0, 64], sizes = [16, 32], strides = [1, 1]} : vector<16x96xf32> to vector<16x32xf32>
    %44 = vector.shape_cast %43 : vector<16x32xf32> to vector<2x8x4x8xf32>
    %45 = tpu.transpose %44, [0, 2, 1, 3] : vector<2x8x4x8xf32> -> vector<2x4x8x8xf32>
    %46 = vector.shape_cast %45 : vector<2x4x8x8xf32> to vector<8x8x8xf32>
    %47 = arith.truncf %46 : vector<8x8x8xf32> to vector<8x8x8xbf16>
    %48 = tpu.iota {dimensions = array<i32: 0>} : vector<8x8xi32>
    %49 = tpu.iota {dimensions = array<i32: 1>} : vector<8x8xi32>
    %50 = arith.cmpi sgt, %49, %48 : vector<8x8xi32>
    %cst_15 = arith.constant -1.000000e+09 : f32
    %cst_16 = arith.constant 0.000000e+00 : f32
    %51 = vector.broadcast %cst_15 : f32 to vector<8x8xf32>
    %52 = vector.broadcast %cst_16 : f32 to vector<8x8xf32>
    %53 = arith.select %50, %51, %52 : vector<8x8xi1>, vector<8x8xf32>
    "tpu.trace_start"() <{level = 10 : i32, message = "zqd,zkd->zqk"}> : () -> ()
    %cst_17 = arith.constant dense<0.000000e+00> : vector<8x8x8xf32>
    %54 = tpu.matmul %37, %42, %cst_17 {dimension_numbers = #tpu.dot_dimension_numbers<[2], [2], [1], [1], [0, 0, 0, 1, 1, 1], [0], [0]>} : vector<8x8x8xbf16>, vector<8x8x8xbf16>, vector<8x8x8xf32> -> vector<8x8x8xf32>
    "tpu.trace_stop"() : () -> ()
    %cst_18 = arith.constant 0.353553385 : f32
    %55 = vector.broadcast %cst_18 : f32 to vector<8x8x8xf32>
    %56 = arith.mulf %54, %55 : vector<8x8x8xf32>
    %57 = vector.shape_cast %53 : vector<8x8xf32> to vector<1x8x8xf32>
    %58 = vector.broadcast %57 : vector<1x8x8xf32> to vector<8x8x8xf32>
    %59 = arith.addf %56, %58 : vector<8x8x8xf32>
    %cst_19 = arith.constant dense<0xFF800000> : vector<8x8xf32>
    %60 = vector.multi_reduction <maximumf>, %59, %cst_19 [2] : vector<8x8x8xf32> to vector<8x8xf32>
    %61 = vector.shape_cast %60 : vector<8x8xf32> to vector<8x8x1xf32>
    %62 = vector.broadcast %61 : vector<8x8x1xf32> to vector<8x8x8xf32>
    %63 = arith.subf %59, %62 : vector<8x8x8xf32>
    %64 = math.exp %63 : vector<8x8x8xf32>
    %cst_20 = arith.constant dense<0.000000e+00> : vector<8x8xf32>
    %65 = vector.multi_reduction <add>, %64, %cst_20 [2] : vector<8x8x8xf32> to vector<8x8xf32>
    %66 = vector.shape_cast %65 : vector<8x8xf32> to vector<8x8x1xf32>
    %67 = tpu.reciprocal %66 {approx = true} : vector<8x8x1xf32> -> vector<8x8x1xf32>
    %68 = vector.broadcast %67 : vector<8x8x1xf32> to vector<8x8x8xf32>
    %69 = arith.mulf %64, %68 : vector<8x8x8xf32>
    %70 = arith.truncf %69 : vector<8x8x8xf32> to vector<8x8x8xbf16>
    "tpu.trace_start"() <{level = 10 : i32, message = "zqk,zkd->zqd"}> : () -> ()
    %cst_21 = arith.constant dense<0.000000e+00> : vector<8x8x8xf32>
    %71 = tpu.matmul %70, %47, %cst_21 {dimension_numbers = #tpu.dot_dimension_numbers<[2], [1], [1], [2], [0, 0, 0, 1, 1, 2], [0], [0]>} : vector<8x8x8xbf16>, vector<8x8x8xbf16>, vector<8x8x8xf32> -> vector<8x8x8xf32>
    "tpu.trace_stop"() : () -> ()
    %72 = vector.shape_cast %71 : vector<8x8x8xf32> to vector<2x4x8x8xf32>
    %73 = tpu.transpose %72, [0, 2, 1, 3] : vector<2x4x8x8xf32> -> vector<2x8x4x8xf32>
    %74 = vector.shape_cast %73 : vector<2x8x4x8xf32> to vector<16x32xf32>
    %75 = arith.truncf %74 : vector<16x32xf32> to vector<16x32xbf16>
    %c0_22 = arith.constant 0 : index
    %c0_23 = arith.constant 0 : index
    %76 = vector.load %arg6[%c0_22, %c0_23] : memref<32x32xbf16, #tpu.memory_space<vmem>>, vector<32x32xbf16>
    %cst_24 = arith.constant dense<0.000000e+00> : vector<16x32xf32>
    %77 = tpu.matmul %75, %76, %cst_24 {dimension_numbers = #tpu.dot_dimension_numbers<[1], [0], [0], [1], [0, 0, 1, 1], [], []>} : vector<16x32xbf16>, vector<32x32xbf16>, vector<16x32xf32> -> vector<16x32xf32>
    %c0_25 = arith.constant 0 : index
    %c0_26 = arith.constant 0 : index
    %78 = vector.load %arg7[%c0_25, %c0_26] : memref<1x32xf32, #tpu.memory_space<vmem>>, vector<1x32xf32>
    %79 = vector.broadcast %78 : vector<1x32xf32> to vector<16x32xf32>
    %80 = arith.addf %77, %79 : vector<16x32xf32>
    %81 = arith.addf %2, %80 : vector<16x32xf32>
    %c0_27 = arith.constant 0 : index
    %c0_28 = arith.constant 0 : index
    %82 = vector.load %arg8[%c0_27, %c0_28] : memref<1x32xf32, #tpu.memory_space<vmem>>, vector<1x32xf32>
    %c0_29 = arith.constant 0 : index
    %c0_30 = arith.constant 0 : index
    %83 = vector.load %arg9[%c0_29, %c0_30] : memref<1x32xf32, #tpu.memory_space<vmem>>, vector<1x32xf32>
    %cst_31 = arith.constant dense<0.000000e+00> : vector<16xf32>
    %84 = vector.multi_reduction <add>, %81, %cst_31 [1] : vector<16x32xf32> to vector<16xf32>
    %85 = vector.shape_cast %84 : vector<16xf32> to vector<16x1xf32>
    %cst_32 = arith.constant 3.200000e+01 : f32
    %86 = vector.broadcast %cst_32 : f32 to vector<16x1xf32>
    %87 = arith.divf %85, %86 : vector<16x1xf32>
    %88 = arith.mulf %81, %81 : vector<16x32xf32>
    %cst_33 = arith.constant dense<0.000000e+00> : vector<16xf32>
    %89 = vector.multi_reduction <add>, %88, %cst_33 [1] : vector<16x32xf32> to vector<16xf32>
    %90 = vector.shape_cast %89 : vector<16xf32> to vector<16x1xf32>
    %cst_34 = arith.constant 3.200000e+01 : f32
    %91 = vector.broadcast %cst_34 : f32 to vector<16x1xf32>
    %92 = arith.divf %90, %91 : vector<16x1xf32>
    %93 = arith.mulf %87, %87 : vector<16x1xf32>
    %94 = arith.subf %92, %93 : vector<16x1xf32>
    %95 = vector.broadcast %87 : vector<16x1xf32> to vector<16x32xf32>
    %96 = arith.subf %81, %95 : vector<16x32xf32>
    %cst_35 = arith.constant 9.99999974E-6 : f32
    %97 = vector.broadcast %cst_35 : f32 to vector<16x1xf32>
    %98 = arith.addf %94, %97 : vector<16x1xf32>
    %99 = math.rsqrt %98 : vector<16x1xf32>
    %100 = vector.broadcast %99 : vector<16x1xf32> to vector<16x32xf32>
    %101 = arith.mulf %96, %100 : vector<16x32xf32>
    %102 = vector.broadcast %82 : vector<1x32xf32> to vector<16x32xf32>
    %103 = arith.mulf %101, %102 : vector<16x32xf32>
    %104 = vector.broadcast %83 : vector<1x32xf32> to vector<16x32xf32>
    %105 = arith.addf %103, %104 : vector<16x32xf32>
    %106 = arith.truncf %105 : vector<16x32xf32> to vector<16x32xbf16>
    %c0_36 = arith.constant 0 : index
    %c0_37 = arith.constant 0 : index
    %107 = vector.load %arg10[%c0_36, %c0_37] : memref<32x128xbf16, #tpu.memory_space<vmem>>, vector<32x128xbf16>
    %cst_38 = arith.constant dense<0.000000e+00> : vector<16x128xf32>
    %108 = tpu.matmul %106, %107, %cst_38 {dimension_numbers = #tpu.dot_dimension_numbers<[1], [0], [0], [1], [0, 0, 1, 1], [], []>} : vector<16x32xbf16>, vector<32x128xbf16>, vector<16x128xf32> -> vector<16x128xf32>
    %c0_39 = arith.constant 0 : index
    %c0_40 = arith.constant 0 : index
    %109 = vector.load %arg11[%c0_39, %c0_40] : memref<1x128xf32, #tpu.memory_space<vmem>>, vector<1x128xf32>
    %110 = vector.broadcast %109 : vector<1x128xf32> to vector<16x128xf32>
    %111 = arith.addf %108, %110 : vector<16x128xf32>
    %112 = arith.truncf %111 : vector<16x128xf32> to vector<16x128xbf16>
    %cst_41 = arith.constant 1.703130e+00 : bf16
    %113 = vector.broadcast %cst_41 : bf16 to vector<16x128xbf16>
    %114 = arith.mulf %113, %112 : vector<16x128xbf16>
    %115 = arith.negf %114 : vector<16x128xbf16>
    %116 = math.exp %115 : vector<16x128xbf16>
    %cst_42 = arith.constant 1.000000e+00 : bf16
    %117 = vector.broadcast %cst_42 : bf16 to vector<16x128xbf16>
    %118 = arith.addf %117, %116 : vector<16x128xbf16>
    %119 = arith.divf %117, %118 : vector<16x128xbf16>
    %120 = arith.mulf %112, %119 : vector<16x128xbf16>
    %c0_43 = arith.constant 0 : index
    %c0_44 = arith.constant 0 : index
    %121 = vector.load %arg12[%c0_43, %c0_44] : memref<128x32xbf16, #tpu.memory_space<vmem>>, vector<128x32xbf16>
    %cst_45 = arith.constant dense<0.000000e+00> : vector<16x32xf32>
    %122 = tpu.matmul %120, %121, %cst_45 {dimension_numbers = #tpu.dot_dimension_numbers<[1], [0], [0], [1], [0, 0, 1, 1], [], []>} : vector<16x128xbf16>, vector<128x32xbf16>, vector<16x32xf32> -> vector<16x32xf32>
    %c0_46 = arith.constant 0 : index
    %c0_47 = arith.constant 0 : index
    %123 = vector.load %arg13[%c0_46, %c0_47] : memref<1x32xf32, #tpu.memory_space<vmem>>, vector<1x32xf32>
    %124 = vector.broadcast %123 : vector<1x32xf32> to vector<16x32xf32>
    %125 = arith.addf %122, %124 : vector<16x32xf32>
    %126 = arith.addf %81, %125 : vector<16x32xf32>
    %c0_48 = arith.constant 0 : index
    %c0_49 = arith.constant 0 : index
    %127 = vector.load %arg14[%c0_48, %c0_49] : memref<1x32xf32, #tpu.memory_space<vmem>>, vector<1x32xf32>
    %c0_50 = arith.constant 0 : index
    %c0_51 = arith.constant 0 : index
    %128 = vector.load %arg15[%c0_50, %c0_51] : memref<1x32xf32, #tpu.memory_space<vmem>>, vector<1x32xf32>
    %cst_52 = arith.constant dense<0.000000e+00> : vector<16xf32>
    %129 = vector.multi_reduction <add>, %126, %cst_52 [1] : vector<16x32xf32> to vector<16xf32>
    %130 = vector.shape_cast %129 : vector<16xf32> to vector<16x1xf32>
    %cst_53 = arith.constant 3.200000e+01 : f32
    %131 = vector.broadcast %cst_53 : f32 to vector<16x1xf32>
    %132 = arith.divf %130, %131 : vector<16x1xf32>
    %133 = arith.mulf %126, %126 : vector<16x32xf32>
    %cst_54 = arith.constant dense<0.000000e+00> : vector<16xf32>
    %134 = vector.multi_reduction <add>, %133, %cst_54 [1] : vector<16x32xf32> to vector<16xf32>
    %135 = vector.shape_cast %134 : vector<16xf32> to vector<16x1xf32>
    %cst_55 = arith.constant 3.200000e+01 : f32
    %136 = vector.broadcast %cst_55 : f32 to vector<16x1xf32>
    %137 = arith.divf %135, %136 : vector<16x1xf32>
    %138 = arith.mulf %132, %132 : vector<16x1xf32>
    %139 = arith.subf %137, %138 : vector<16x1xf32>
    %140 = vector.broadcast %132 : vector<16x1xf32> to vector<16x32xf32>
    %141 = arith.subf %126, %140 : vector<16x32xf32>
    %cst_56 = arith.constant 9.99999974E-6 : f32
    %142 = vector.broadcast %cst_56 : f32 to vector<16x1xf32>
    %143 = arith.addf %139, %142 : vector<16x1xf32>
    %144 = math.rsqrt %143 : vector<16x1xf32>
    %145 = vector.broadcast %144 : vector<16x1xf32> to vector<16x32xf32>
    %146 = arith.mulf %141, %145 : vector<16x32xf32>
    %147 = vector.broadcast %127 : vector<1x32xf32> to vector<16x32xf32>
    %148 = arith.mulf %146, %147 : vector<16x32xf32>
    %149 = vector.broadcast %128 : vector<1x32xf32> to vector<16x32xf32>
    %150 = arith.addf %148, %149 : vector<16x32xf32>
    %151 = arith.truncf %150 : vector<16x32xf32> to vector<16x32xbf16>
    %c0_57 = arith.constant 0 : index
    %c0_58 = arith.constant 0 : index
    %152 = vector.load %arg16[%c0_57, %c0_58] : memref<32x96xbf16, #tpu.memory_space<vmem>>, vector<32x96xbf16>
    %cst_59 = arith.constant dense<0.000000e+00> : vector<16x96xf32>
    %153 = tpu.matmul %151, %152, %cst_59 {dimension_numbers = #tpu.dot_dimension_numbers<[1], [0], [0], [1], [0, 0, 1, 1], [], []>} : vector<16x32xbf16>, vector<32x96xbf16>, vector<16x96xf32> -> vector<16x96xf32>
    %c0_60 = arith.constant 0 : index
    %c0_61 = arith.constant 0 : index
    %154 = vector.load %arg17[%c0_60, %c0_61] : memref<1x96xf32, #tpu.memory_space<vmem>>, vector<1x96xf32>
    %155 = vector.broadcast %154 : vector<1x96xf32> to vector<16x96xf32>
    %156 = arith.addf %153, %155 : vector<16x96xf32>
    %157 = vector.extract_strided_slice %156 {offsets = [0, 0], sizes = [16, 32], strides = [1, 1]} : vector<16x96xf32> to vector<16x32xf32>
    %158 = vector.shape_cast %157 : vector<16x32xf32> to vector<2x8x4x8xf32>
    %159 = tpu.transpose %158, [0, 2, 1, 3] : vector<2x8x4x8xf32> -> vector<2x4x8x8xf32>
    %160 = vector.shape_cast %159 : vector<2x4x8x8xf32> to vector<8x8x8xf32>
    %161 = arith.truncf %160 : vector<8x8x8xf32> to vector<8x8x8xbf16>
    %162 = vector.extract_strided_slice %156 {offsets = [0, 32], sizes = [16, 32], strides = [1, 1]} : vector<16x96xf32> to vector<16x32xf32>
    %163 = vector.shape_cast %162 : vector<16x32xf32> to vector<2x8x4x8xf32>
    %164 = tpu.transpose %163, [0, 2, 1, 3] : vector<2x8x4x8xf32> -> vector<2x4x8x8xf32>
    %165 = vector.shape_cast %164 : vector<2x4x8x8xf32> to vector<8x8x8xf32>
    %166 = arith.truncf %165 : vector<8x8x8xf32> to vector<8x8x8xbf16>
    %167 = vector.extract_strided_slice %156 {offsets = [0, 64], sizes = [16, 32], strides = [1, 1]} : vector<16x96xf32> to vector<16x32xf32>
    %168 = vector.shape_cast %167 : vector<16x32xf32> to vector<2x8x4x8xf32>
    %169 = tpu.transpose %168, [0, 2, 1, 3] : vector<2x8x4x8xf32> -> vector<2x4x8x8xf32>
    %170 = vector.shape_cast %169 : vector<2x4x8x8xf32> to vector<8x8x8xf32>
    %171 = arith.truncf %170 : vector<8x8x8xf32> to vector<8x8x8xbf16>
    %172 = tpu.iota {dimensions = array<i32: 0>} : vector<8x8xi32>
    %173 = tpu.iota {dimensions = array<i32: 1>} : vector<8x8xi32>
    %174 = arith.cmpi sgt, %173, %172 : vector<8x8xi32>
    %cst_62 = arith.constant -1.000000e+09 : f32
    %cst_63 = arith.constant 0.000000e+00 : f32
    %175 = vector.broadcast %cst_62 : f32 to vector<8x8xf32>
    %176 = vector.broadcast %cst_63 : f32 to vector<8x8xf32>
    %177 = arith.select %174, %175, %176 : vector<8x8xi1>, vector<8x8xf32>
    "tpu.trace_start"() <{level = 10 : i32, message = "zqd,zkd->zqk"}> : () -> ()
    %cst_64 = arith.constant dense<0.000000e+00> : vector<8x8x8xf32>
    %178 = tpu.matmul %161, %166, %cst_64 {dimension_numbers = #tpu.dot_dimension_numbers<[2], [2], [1], [1], [0, 0, 0, 1, 1, 1], [0], [0]>} : vector<8x8x8xbf16>, vector<8x8x8xbf16>, vector<8x8x8xf32> -> vector<8x8x8xf32>
    "tpu.trace_stop"() : () -> ()
    %cst_65 = arith.constant 0.353553385 : f32
    %179 = vector.broadcast %cst_65 : f32 to vector<8x8x8xf32>
    %180 = arith.mulf %178, %179 : vector<8x8x8xf32>
    %181 = vector.shape_cast %177 : vector<8x8xf32> to vector<1x8x8xf32>
    %182 = vector.broadcast %181 : vector<1x8x8xf32> to vector<8x8x8xf32>
    %183 = arith.addf %180, %182 : vector<8x8x8xf32>
    %cst_66 = arith.constant dense<0xFF800000> : vector<8x8xf32>
    %184 = vector.multi_reduction <maximumf>, %183, %cst_66 [2] : vector<8x8x8xf32> to vector<8x8xf32>
    %185 = vector.shape_cast %184 : vector<8x8xf32> to vector<8x8x1xf32>
    %186 = vector.broadcast %185 : vector<8x8x1xf32> to vector<8x8x8xf32>
    %187 = arith.subf %183, %186 : vector<8x8x8xf32>
    %188 = math.exp %187 : vector<8x8x8xf32>
    %cst_67 = arith.constant dense<0.000000e+00> : vector<8x8xf32>
    %189 = vector.multi_reduction <add>, %188, %cst_67 [2] : vector<8x8x8xf32> to vector<8x8xf32>
    %190 = vector.shape_cast %189 : vector<8x8xf32> to vector<8x8x1xf32>
    %191 = tpu.reciprocal %190 {approx = true} : vector<8x8x1xf32> -> vector<8x8x1xf32>
    %192 = vector.broadcast %191 : vector<8x8x1xf32> to vector<8x8x8xf32>
    %193 = arith.mulf %188, %192 : vector<8x8x8xf32>
    %194 = arith.truncf %193 : vector<8x8x8xf32> to vector<8x8x8xbf16>
    "tpu.trace_start"() <{level = 10 : i32, message = "zqk,zkd->zqd"}> : () -> ()
    %cst_68 = arith.constant dense<0.000000e+00> : vector<8x8x8xf32>
    %195 = tpu.matmul %194, %171, %cst_68 {dimension_numbers = #tpu.dot_dimension_numbers<[2], [1], [1], [2], [0, 0, 0, 1, 1, 2], [0], [0]>} : vector<8x8x8xbf16>, vector<8x8x8xbf16>, vector<8x8x8xf32> -> vector<8x8x8xf32>
    "tpu.trace_stop"() : () -> ()
    %196 = vector.shape_cast %195 : vector<8x8x8xf32> to vector<2x4x8x8xf32>
    %197 = tpu.transpose %196, [0, 2, 1, 3] : vector<2x4x8x8xf32> -> vector<2x8x4x8xf32>
    %198 = vector.shape_cast %197 : vector<2x8x4x8xf32> to vector<16x32xf32>
    %199 = arith.truncf %198 : vector<16x32xf32> to vector<16x32xbf16>
    %c0_69 = arith.constant 0 : index
    %c0_70 = arith.constant 0 : index
    %200 = vector.load %arg18[%c0_69, %c0_70] : memref<32x32xbf16, #tpu.memory_space<vmem>>, vector<32x32xbf16>
    %cst_71 = arith.constant dense<0.000000e+00> : vector<16x32xf32>
    %201 = tpu.matmul %199, %200, %cst_71 {dimension_numbers = #tpu.dot_dimension_numbers<[1], [0], [0], [1], [0, 0, 1, 1], [], []>} : vector<16x32xbf16>, vector<32x32xbf16>, vector<16x32xf32> -> vector<16x32xf32>
    %c0_72 = arith.constant 0 : index
    %c0_73 = arith.constant 0 : index
    %202 = vector.load %arg19[%c0_72, %c0_73] : memref<1x32xf32, #tpu.memory_space<vmem>>, vector<1x32xf32>
    %203 = vector.broadcast %202 : vector<1x32xf32> to vector<16x32xf32>
    %204 = arith.addf %201, %203 : vector<16x32xf32>
    %205 = arith.addf %126, %204 : vector<16x32xf32>
    %c0_74 = arith.constant 0 : index
    %c0_75 = arith.constant 0 : index
    %206 = vector.load %arg20[%c0_74, %c0_75] : memref<1x32xf32, #tpu.memory_space<vmem>>, vector<1x32xf32>
    %c0_76 = arith.constant 0 : index
    %c0_77 = arith.constant 0 : index
    %207 = vector.load %arg21[%c0_76, %c0_77] : memref<1x32xf32, #tpu.memory_space<vmem>>, vector<1x32xf32>
    %cst_78 = arith.constant dense<0.000000e+00> : vector<16xf32>
    %208 = vector.multi_reduction <add>, %205, %cst_78 [1] : vector<16x32xf32> to vector<16xf32>
    %209 = vector.shape_cast %208 : vector<16xf32> to vector<16x1xf32>
    %cst_79 = arith.constant 3.200000e+01 : f32
    %210 = vector.broadcast %cst_79 : f32 to vector<16x1xf32>
    %211 = arith.divf %209, %210 : vector<16x1xf32>
    %212 = arith.mulf %205, %205 : vector<16x32xf32>
    %cst_80 = arith.constant dense<0.000000e+00> : vector<16xf32>
    %213 = vector.multi_reduction <add>, %212, %cst_80 [1] : vector<16x32xf32> to vector<16xf32>
    %214 = vector.shape_cast %213 : vector<16xf32> to vector<16x1xf32>
    %cst_81 = arith.constant 3.200000e+01 : f32
    %215 = vector.broadcast %cst_81 : f32 to vector<16x1xf32>
    %216 = arith.divf %214, %215 : vector<16x1xf32>
    %217 = arith.mulf %211, %211 : vector<16x1xf32>
    %218 = arith.subf %216, %217 : vector<16x1xf32>
    %219 = vector.broadcast %211 : vector<16x1xf32> to vector<16x32xf32>
    %220 = arith.subf %205, %219 : vector<16x32xf32>
    %cst_82 = arith.constant 9.99999974E-6 : f32
    %221 = vector.broadcast %cst_82 : f32 to vector<16x1xf32>
    %222 = arith.addf %218, %221 : vector<16x1xf32>
    %223 = math.rsqrt %222 : vector<16x1xf32>
    %224 = vector.broadcast %223 : vector<16x1xf32> to vector<16x32xf32>
    %225 = arith.mulf %220, %224 : vector<16x32xf32>
    %226 = vector.broadcast %206 : vector<1x32xf32> to vector<16x32xf32>
    %227 = arith.mulf %225, %226 : vector<16x32xf32>
    %228 = vector.broadcast %207 : vector<1x32xf32> to vector<16x32xf32>
    %229 = arith.addf %227, %228 : vector<16x32xf32>
    %230 = arith.truncf %229 : vector<16x32xf32> to vector<16x32xbf16>
    %c0_83 = arith.constant 0 : index
    %c0_84 = arith.constant 0 : index
    %231 = vector.load %arg22[%c0_83, %c0_84] : memref<32x128xbf16, #tpu.memory_space<vmem>>, vector<32x128xbf16>
    %cst_85 = arith.constant dense<0.000000e+00> : vector<16x128xf32>
    %232 = tpu.matmul %230, %231, %cst_85 {dimension_numbers = #tpu.dot_dimension_numbers<[1], [0], [0], [1], [0, 0, 1, 1], [], []>} : vector<16x32xbf16>, vector<32x128xbf16>, vector<16x128xf32> -> vector<16x128xf32>
    %c0_86 = arith.constant 0 : index
    %c0_87 = arith.constant 0 : index
    %233 = vector.load %arg23[%c0_86, %c0_87] : memref<1x128xf32, #tpu.memory_space<vmem>>, vector<1x128xf32>
    %234 = vector.broadcast %233 : vector<1x128xf32> to vector<16x128xf32>
    %235 = arith.addf %232, %234 : vector<16x128xf32>
    %236 = arith.truncf %235 : vector<16x128xf32> to vector<16x128xbf16>
    %cst_88 = arith.constant 1.703130e+00 : bf16
    %237 = vector.broadcast %cst_88 : bf16 to vector<16x128xbf16>
    %238 = arith.mulf %237, %236 : vector<16x128xbf16>
    %239 = arith.negf %238 : vector<16x128xbf16>
    %240 = math.exp %239 : vector<16x128xbf16>
    %cst_89 = arith.constant 1.000000e+00 : bf16
    %241 = vector.broadcast %cst_89 : bf16 to vector<16x128xbf16>
    %242 = arith.addf %241, %240 : vector<16x128xbf16>
    %243 = arith.divf %241, %242 : vector<16x128xbf16>
    %244 = arith.mulf %236, %243 : vector<16x128xbf16>
    %c0_90 = arith.constant 0 : index
    %c0_91 = arith.constant 0 : index
    %245 = vector.load %arg24[%c0_90, %c0_91] : memref<128x32xbf16, #tpu.memory_space<vmem>>, vector<128x32xbf16>
    %cst_92 = arith.constant dense<0.000000e+00> : vector<16x32xf32>
    %246 = tpu.matmul %244, %245, %cst_92 {dimension_numbers = #tpu.dot_dimension_numbers<[1], [0], [0], [1], [0, 0, 1, 1], [], []>} : vector<16x128xbf16>, vector<128x32xbf16>, vector<16x32xf32> -> vector<16x32xf32>
    %c0_93 = arith.constant 0 : index
    %c0_94 = arith.constant 0 : index
    %247 = vector.load %arg25[%c0_93, %c0_94] : memref<1x32xf32, #tpu.memory_space<vmem>>, vector<1x32xf32>
    %248 = vector.broadcast %247 : vector<1x32xf32> to vector<16x32xf32>
    %249 = arith.addf %246, %248 : vector<16x32xf32>
    %250 = arith.addf %205, %249 : vector<16x32xf32>
    %251 = vector.shape_cast %250 : vector<16x32xf32> to vector<2x8x32xf32>
    %252 = arith.truncf %251 : vector<2x8x32xf32> to vector<2x8x32xbf16>
    %c0_95 = arith.constant 0 : index
    %c0_96 = arith.constant 0 : index
    %c0_97 = arith.constant 0 : index
    %253 = vector.load %arg26[%c0_95, %c0_96, %c0_97] : memref<2x8x32xbf16, #tpu.memory_space<vmem>>, vector<2x8x32xbf16>
    tpu.vector_store %arg26[%c0_95, %c0_96, %c0_97], %252 {strides = array<i32>} : memref<2x8x32xbf16, #tpu.memory_space<vmem>>, vector<2x8x32xbf16>,
    return
  }
  func.func @transform_0(%arg0: i32) -> (i32, i32, i32) {
    %c0_i32 = arith.constant 0 : i32
    %c0_i32_0 = arith.constant 0 : i32
    %c0_i32_1 = arith.constant 0 : i32
    return %arg0, %c0_i32, %c0_i32_0 : i32, i32, i32
  }
  func.func @transform_1(%arg0: i32) -> (i32, i32) {
    %c0_i32 = arith.constant 0 : i32
    %c0_i32_0 = arith.constant 0 : i32
    %c0_i32_1 = arith.constant 0 : i32
    return %c0_i32, %c0_i32_0 : i32, i32
  }
  func.func @transform_2(%arg0: i32) -> (i32, i32) {
    %c0_i32 = arith.constant 0 : i32
    %c0_i32_0 = arith.constant 0 : i32
    %c0_i32_1 = arith.constant 0 : i32
    return %c0_i32, %c0_i32_0 : i32, i32
  }
  func.func @transform_3(%arg0: i32) -> (i32, i32) {
    %c0_i32 = arith.constant 0 : i32
    %c0_i32_0 = arith.constant 0 : i32
    %c0_i32_1 = arith.constant 0 : i32
    return %c0_i32, %c0_i32_0 : i32, i32
  }
  func.func @transform_4(%arg0: i32) -> (i32, i32) {
    %c0_i32 = arith.constant 0 : i32
    %c0_i32_0 = arith.constant 0 : i32
    %c0_i32_1 = arith.constant 0 : i32
    return %c0_i32, %c0_i32_0 : i32, i32
  }
  func.func @transform_5(%arg0: i32) -> (i32, i32) {
    %c0_i32 = arith.constant 0 : i32
    %c0_i32_0 = arith.constant 0 : i32
    %c0_i32_1 = arith.constant 0 : i32
    return %c0_i32, %c0_i32_0 : i32, i32
  }
  func.func @transform_6(%arg0: i32) -> (i32, i32) {
    %c0_i32 = arith.constant 0 : i32
    %c0_i32_0 = arith.constant 0 : i32
    %c0_i32_1 = arith.constant 0 : i32
    return %c0_i32, %c0_i32_0 : i32, i32
  }
  func.func @transform_7(%arg0: i32) -> (i32, i32) {
    %c0_i32 = arith.constant 0 : i32
    %c0_i32_0 = arith.constant 0 : i32
    %c0_i32_1 = arith.constant 0 : i32
    return %c0_i32, %c0_i32_0 : i32, i32
  }
  func.func @transform_8(%arg0: i32) -> (i32, i32) {
    %c0_i32 = arith.constant 0 : i32
    %c0_i32_0 = arith.constant 0 : i32
    %c0_i32_1 = arith.constant 0 : i32
    return %c0_i32, %c0_i32_0 : i32, i32
  }
  func.func @transform_9(%arg0: i32) -> (i32, i32) {
    %c0_i32 = arith.constant 0 : i32
    %c0_i32_0 = arith.constant 0 : i32
    %c0_i32_1 = arith.constant 0 : i32
    return %c0_i32, %c0_i32_0 : i32, i32
  }
  func.func @transform_10(%arg0: i32) -> (i32, i32) {
    %c0_i32 = arith.constant 0 : i32
    %c0_i32_0 = arith.constant 0 : i32
    %c0_i32_1 = arith.constant 0 : i32
    return %c0_i32, %c0_i32_0 : i32, i32
  }
  func.func @transform_11(%arg0: i32) -> (i32, i32) {
    %c0_i32 = arith.constant 0 : i32
    %c0_i32_0 = arith.constant 0 : i32
    %c0_i32_1 = arith.constant 0 : i32
    return %c0_i32, %c0_i32_0 : i32, i32
  }
  func.func @transform_12(%arg0: i32) -> (i32, i32) {
    %c0_i32 = arith.constant 0 : i32
    %c0_i32_0 = arith.constant 0 : i32
    %c0_i32_1 = arith.constant 0 : i32
    return %c0_i32, %c0_i32_0 : i32, i32
  }
  func.func @transform_13(%arg0: i32) -> (i32, i32) {
    %c0_i32 = arith.constant 0 : i32
    %c0_i32_0 = arith.constant 0 : i32
    %c0_i32_1 = arith.constant 0 : i32
    return %c0_i32, %c0_i32_0 : i32, i32
  }
  func.func @transform_14(%arg0: i32) -> (i32, i32) {
    %c0_i32 = arith.constant 0 : i32
    %c0_i32_0 = arith.constant 0 : i32
    %c0_i32_1 = arith.constant 0 : i32
    return %c0_i32, %c0_i32_0 : i32, i32
  }
  func.func @transform_15(%arg0: i32) -> (i32, i32) {
    %c0_i32 = arith.constant 0 : i32
    %c0_i32_0 = arith.constant 0 : i32
    %c0_i32_1 = arith.constant 0 : i32
    return %c0_i32, %c0_i32_0 : i32, i32
  }
  func.func @transform_16(%arg0: i32) -> (i32, i32) {
    %c0_i32 = arith.constant 0 : i32
    %c0_i32_0 = arith.constant 0 : i32
    %c0_i32_1 = arith.constant 0 : i32
    return %c0_i32, %c0_i32_0 : i32, i32
  }
  func.func @transform_17(%arg0: i32) -> (i32, i32) {
    %c0_i32 = arith.constant 0 : i32
    %c0_i32_0 = arith.constant 0 : i32
    %c0_i32_1 = arith.constant 0 : i32
    return %c0_i32, %c0_i32_0 : i32, i32
  }
  func.func @transform_18(%arg0: i32) -> (i32, i32) {
    %c0_i32 = arith.constant 0 : i32
    %c0_i32_0 = arith.constant 0 : i32
    %c0_i32_1 = arith.constant 0 : i32
    return %c0_i32, %c0_i32_0 : i32, i32
  }
  func.func @transform_19(%arg0: i32) -> (i32, i32) {
    %c0_i32 = arith.constant 0 : i32
    %c0_i32_0 = arith.constant 0 : i32
    %c0_i32_1 = arith.constant 0 : i32
    return %c0_i32, %c0_i32_0 : i32, i32
  }
  func.func @transform_20(%arg0: i32) -> (i32, i32) {
    %c0_i32 = arith.constant 0 : i32
    %c0_i32_0 = arith.constant 0 : i32
    %c0_i32_1 = arith.constant 0 : i32
    return %c0_i32, %c0_i32_0 : i32, i32
  }
  func.func @transform_21(%arg0: i32) -> (i32, i32) {
    %c0_i32 = arith.constant 0 : i32
    %c0_i32_0 = arith.constant 0 : i32
    %c0_i32_1 = arith.constant 0 : i32
    return %c0_i32, %c0_i32_0 : i32, i32
  }
  func.func @transform_22(%arg0: i32) -> (i32, i32) {
    %c0_i32 = arith.constant 0 : i32
    %c0_i32_0 = arith.constant 0 : i32
    %c0_i32_1 = arith.constant 0 : i32
    return %c0_i32, %c0_i32_0 : i32, i32
  }
  func.func @transform_23(%arg0: i32) -> (i32, i32) {
    %c0_i32 = arith.constant 0 : i32
    %c0_i32_0 = arith.constant 0 : i32
    %c0_i32_1 = arith.constant 0 : i32
    return %c0_i32, %c0_i32_0 : i32, i32
  }
  func.func @transform_24(%arg0: i32) -> (i32, i32) {
    %c0_i32 = arith.constant 0 : i32
    %c0_i32_0 = arith.constant 0 : i32
    %c0_i32_1 = arith.constant 0 : i32
    return %c0_i32, %c0_i32_0 : i32, i32
  }
  func.func @transform_25(%arg0: i32) -> (i32, i32, i32) {
    %c0_i32 = arith.constant 0 : i32
    %c0_i32_0 = arith.constant 0 : i32
    %c0_i32_1 = arith.constant 0 : i32
    return %arg0, %c0_i32, %c0_i32_0 : i32, i32, i32
  }
}

</mosaic_0001>

<llo_original>
// kernel: text_encoder_forward.3
$region0: #{text_encoder_forward.3}
  #allocation0 [shape = 'u32[]', space=smem, size = 0x4, offset = 0x4, fixed_abs, tag = 'smem constant byte address 0x4 - core index']
  #allocation1 [shape = 'u32[144,128]{1,0:T(1,128)}', space=vmem, size = 0x12000, scoped, tag = 'internal scratch']
  %s0 = inlined_call_operand.vmem [shape: bf16[2,32], index: 0, kind: input, shape index: {}]
  %s1 = inlined_call_operand.vmem [shape: f32[1,32], index: 1, kind: input, shape index: {}]
  %s2 = inlined_call_operand.vmem [shape: f32[1,32], index: 2, kind: input, shape index: {}]
  %s3 = inlined_call_operand.vmem [shape: bf16[32,16], index: 3, kind: input, shape index: {}]
  %s4 = inlined_call_operand.hbm [shape: f32[2,16], index: 4, kind: output, shape index: {}]
  %s5 = sld [smem:[#allocation0]]
  $region26: #{text_encoder_forward.3} parent=0
    _
  %s7 = ssub.s32 1, %s5
  %s8 = scalar_select 0, %s7, %s5
  $region1: #{text_encoder_forward.3} parent=0
    #allocation2 [shape = 'u8[1024]{0}', space=vmem, size = 0x400, scoped, tag = 'output window, operand 0, single buffered']
    #allocation3 [shape = 's32[1]{0}', space=sflag, size = 0x4, scoped, tag = 'scoped memory for text_encoder_forward.3']
    %9 = vsyncpa [#allocation3], 0
    // Predicated region
    $region2: #{text_encoder_forward.3} parent=1 // pred_check
      _
    $region3: #{text_encoder_forward.3} parent=1 // pred_check_branch
      %11 = sbr.rel (0) target = $region5
    $region4: #{text_encoder_forward.3} parent=1 // pred_region
      _
    $region5: #{text_encoder_forward.3} parent=1 // pred_fallthru
      _
    // Predicated region
    $region6: #{text_encoder_forward.3} parent=1 // pred_check
      _
    $region7: #{text_encoder_forward.3} parent=1 // pred_check_branch
      %13 = sbr.rel (0) target = $region9
    $region8: #{text_encoder_forward.3} parent=1 // pred_region
      _
    $region9: #{text_encoder_forward.3} parent=1 // pred_fallthru
      _
    // Predicated region
    $region10: #{text_encoder_forward.3} parent=1 // pred_check
      _
    $region11: #{text_encoder_forward.3} parent=1 // pred_check_branch
      %15 = sbr.rel (0) target = $region13
    $region12: #{text_encoder_forward.3} parent=1 // pred_region
      _
    $region13: #{text_encoder_forward.3} parent=1 // pred_fallthru
      _
    // Predicated region
    $region14: #{text_encoder_forward.3} parent=1 // pred_check
      _
    $region15: #{text_encoder_forward.3} parent=1 // pred_check_branch
      %17 = sbr.rel (0) target = $region17
    $region16: #{text_encoder_forward.3} parent=1 // pred_region
      _
    $region17: #{text_encoder_forward.3} parent=1 // pred_fallthru
      _
    %v19 = vld [vmem:[%s0] sm:$0x1]
    %v20 = vunpack.c.l.bf16 %v19
    %v21 = vld [vmem:[%s1] sm:$0x1]
    %v22 = vld [vmem:[%s2] sm:$0x1]
    %vm23 = vcmask 254976
    %v24 = vsel %vm23, %v20, 0.0
    %25 = vadd.xlane.f32.xlu0 %v24
    %v26 = vpop.xlane.xlu0 %25
    %v27 = vrcp.pop 32.0
    %v28 = vmul.f32 %v26, %v27
    %v29 = vmul.f32 %v20, %v20
    %v30 = vsel %vm23, %v29, 0.0
    %31 = vadd.xlane.f32.xlu0 %v30
    %v32 = vpop.xlane.xlu0 %31
    %v33 = vmul.f32 %v32, %v27
    %v34 = vmul.f32 %v28, %v28
    %v35 = vsub.f32 %v33, %v34
    %v36 = vsub.f32 %v20, %v28
    %v37 = vadd.f32 %v35, 1e-05
    %v38 = vrsqrt.pop %v37
    %v39 = vmul.f32 %v36, %v38
    %v41 = vlaneseq
    %v42 = vshrl.u32 %v41, 7
    %v43 = vsub.s32 0, %v42
    %v44 = vrot.slane %v21, %v43
    %v46 = vmul.f32 %v39, %v44
    %v48 = vlaneseq
    %v49 = vshrl.u32 %v48, 7
    %v50 = vsub.s32 0, %v49
    %v51 = vrot.slane %v22, %v50
    %v53 = vadd.f32 %v46, %v51
    %v54 = vpack.c.bf16 %v53, %v53
    %v55 = vld [vmem:[%s3] sm:$0xf]
    %v56 = vld [vmem:[%s3 + $0x4] sm:$0xf]
    %v57 = vld [vmem:[%s3 + $0x8] sm:$0xf]
    %v58 = vld [vmem:[%s3 + $0xc] sm:$0xf]
    %v63 = vunpack.c.l.b16 %v55
    %v64 = vunpack.c.l.b16 %v56
    %v65 = vunpack.c.l.b16 %v57
    %v66 = vunpack.c.l.b16 %v58
    %v67 = vpack.c.b16 %v64, %v63
    %v68 = vpack.c.b16 %v66, %v65
    %vm71 = vcmask 261120
    %v73 = vsel %vm71, %v54, 0
    %75 = vmatprep.subr.bf16.mxu0 0
    %76 = vmatpush1.bf16.msra.mxu0 %v67
    %77 = vmatprep.subr.bf16.mxu0 0
    %78 = vmatpush1.bf16.msra.mxu0 %v68
    %79 = vmatprep.subr.bf16.mxu0 0
    %80 = vmatpush1.bf16.msra.mxu0 0
    %81 = vmatprep.subr.bf16.mxu0 0
    %82 = vmatpush1.bf16.msra.mxu0 0
    %83 = vmatprep.subr.bf16.mxu0 0
    %84 = vmatpush1.bf16.msra.mxu0 0
    %85 = vmatprep.subr.bf16.mxu0 0
    %86 = vmatpush1.bf16.msra.mxu0 0
    %87 = vmatprep.subr.bf16.mxu0 0
    %88 = vmatpush1.bf16.msra.mxu0 0
    %89 = vmatprep.subr.bf16.mxu0 0
    %90 = vmatpush1.bf16.msra.mxu0 0
    %91 = vmatprep.subr.bf16.mxu0 0
    %92 = vmatpush1.bf16.msra.mxu0 0
    %93 = vmatprep.subr.bf16.mxu0 0
    %94 = vmatpush1.bf16.msra.mxu0 0
    %95 = vmatprep.subr.bf16.mxu0 0
    %96 = vmatpush1.bf16.msra.mxu0 0
    %97 = vmatprep.subr.bf16.mxu0 0
    %98 = vmatpush1.bf16.msra.mxu0 0
    %99 = vmatprep.subr.bf16.mxu0 0
    %100 = vmatpush1.bf16.msra.mxu0 0
    %101 = vmatprep.subr.bf16.mxu0 0
    %102 = vmatpush1.bf16.msra.mxu0 0
    %103 = vmatprep.subr.bf16.mxu0 0
    %104 = vmatpush1.bf16.msra.mxu0 0
    %105 = vmatprep.subr.bf16.mxu0 0
    %106 = vmatpush1.bf16.msra.mxu0 0
    %107 = vmatprep.mubr.bf16.mxu0 0
    %108 = vmatmul.mubr.bf16.gmra.mrb[0].mxu0 %v73
    %v109 = vpop.f32.mrb[0].mxu0
    %v110 = vadd.f32 0.0, %v109
    %v111 = vpop.f32.mrb[0].mxu0
    %v112 = vpop.f32.mrb[0].mxu0
    %v113 = vpop.f32.mrb[0].mxu0
    %114 = vdwg.mxu0
    %vm115 = vcmask 123904
    %116 = vst.msk [vmem:[#allocation2] sm:$0x3] %vm115, %v110
    // Predicated region
    $region18: #{text_encoder_forward.3} parent=1 // pred_check
      _
    $region19: #{text_encoder_forward.3} parent=1 // pred_check_branch
      %118 = sbr.rel (0) target = $region21
    $region20: #{text_encoder_forward.3} parent=1 // pred_region
      %s120 = ssub.s32 32, 32
      %121 = vsyncadd [#allocation3], %s120
      %s123 = sshll.u32 [#allocation2], 4
      %s124 = int_to_ptr.vmem [resolvable:$true] %s123
      %126 = dma.vmem_to_hbm [thread:$0]  %s124, 32, %s4, [#allocation3]
    $region21: #{text_encoder_forward.3} parent=1 // pred_fallthru
      _
    // Predicated region
    $region22: #{text_encoder_forward.3} parent=1 // pred_check
      _
    $region23: #{text_encoder_forward.3} parent=1 // pred_check_branch
      %128 = sbr.rel (0) target = $region25
    $region24: #{text_encoder_forward.3} parent=1 // pred_region
      %129 = dma.done [#allocation3], 32
    $region25: #{text_encoder_forward.3} parent=1 // pred_fallthru
      _
    %130 = vsyncpa [#allocation3], 1

// kernel: text_encoder_forward.2
$region0: #{text_encoder_forward.2}
  #allocation0 [shape = 'u32[]', space=smem, size = 0x4, offset = 0x4, fixed_abs, tag = 'smem constant byte address 0x4 - core index']
  #allocation1 [shape = 'u32[144,128]{1,0:T(1,128)}', space=vmem, size = 0x12000, scoped, tag = 'internal scratch']
  %s0 = inlined_call_operand.vmem [shape: bf16[2,8,32], index: 0, kind: input, shape index: {}, may-alias: {0,25}]
  %s1 = inlined_call_operand.vmem [shape: f32[1,32], index: 1, kind: input, shape index: {}]
  %s2 = inlined_call_operand.vmem [shape: f32[1,32], index: 2, kind: input, shape index: {}]
  %s3 = inlined_call_operand.vmem [shape: bf16[32,96], index: 3, kind: input, shape index: {}]
  %s4 = inlined_call_operand.vmem [shape: f32[1,96], index: 4, kind: input, shape index: {}]
  %s5 = inlined_call_operand.vmem [shape: bf16[32,32], index: 5, kind: input, shape index: {}]
  %s6 = inlined_call_operand.vmem [shape: f32[1,32], index: 6, kind: input, shape index: {}]
  %s7 = inlined_call_operand.vmem [shape: f32[1,32], index: 7, kind: input, shape index: {}]
  %s8 = inlined_call_operand.vmem [shape: f32[1,32], index: 8, kind: input, shape index: {}]
  %s9 = inlined_call_operand.vmem [shape: bf16[32,128], index: 9, kind: input, shape index: {}]
  %s10 = inlined_call_operand.vmem [shape: f32[1,128], index: 10, kind: input, shape index: {}]
  %s11 = inlined_call_operand.vmem [shape: bf16[128,32], index: 11, kind: input, shape index: {}]
  %s12 = inlined_call_operand.vmem [shape: f32[1,32], index: 12, kind: input, shape index: {}]
  %s13 = inlined_call_operand.vmem [shape: f32[1,32], index: 13, kind: input, shape index: {}]
  %s14 = inlined_call_operand.vmem [shape: f32[1,32], index: 14, kind: input, shape index: {}]
  %s15 = inlined_call_operand.vmem [shape: bf16[32,96], index: 15, kind: input, shape index: {}]
  %s16 = inlined_call_operand.vmem [shape: f32[1,96], index: 16, kind: input, shape index: {}]
  %s17 = inlined_call_operand.vmem [shape: bf16[32,32], index: 17, kind: input, shape index: {}]
  %s18 = inlined_call_operand.vmem [shape: f32[1,32], index: 18, kind: input, shape index: {}]
  %s19 = inlined_call_operand.vmem [shape: f32[1,32], index: 19, kind: input, shape index: {}]
  %s20 = inlined_call_operand.vmem [shape: f32[1,32], index: 20, kind: input, shape index: {}]
  %s21 = inlined_call_operand.vmem [shape: bf16[32,128], index: 21, kind: input, shape index: {}]
  %s22 = inlined_call_operand.vmem [shape: f32[1,128], index: 22, kind: input, shape index: {}]
  %s23 = inlined_call_operand.vmem [shape: bf16[128,32], index: 23, kind: input, shape index: {}]
  %s24 = inlined_call_operand.vmem [shape: f32[1,32], index: 24, kind: input, shape index: {}]
  %s25 = inlined_call_operand.vmem [shape: bf16[2,8,32], index: 25, kind: output, shape index: {}, may-alias: {0,25}]
  %s26 = sld [smem:[#allocation0]]
  $region110: #{text_encoder_forward.2} parent=0
    _
  %s28 = ssub.s32 1, %s26
  %s29 = scalar_select 0, %s28, %s26
  // Predicated region
  $region2: #{text_encoder_forward.2} parent=0 // pred_check
    _
  $region3: #{text_encoder_forward.2} parent=0 // pred_check_branch
    %31 = sbr.rel (0) target = $region5
  $region4: #{text_encoder_forward.2} parent=0 // pred_region
    _
  $region5: #{text_encoder_forward.2} parent=0 // pred_fallthru
    _
  // Predicated region
  $region6: #{text_encoder_forward.2} parent=0 // pred_check
    _
  $region7: #{text_encoder_forward.2} parent=0 // pred_check_branch
    %33 = sbr.rel (0) target = $region9
  $region8: #{text_encoder_forward.2} parent=0 // pred_region
    _
  $region9: #{text_encoder_forward.2} parent=0 // pred_fallthru
    _
  // Predicated region
  $region10: #{text_encoder_forward.2} parent=0 // pred_check
    _
  $region11: #{text_encoder_forward.2} parent=0 // pred_check_branch
    %35 = sbr.rel (0) target = $region13
  $region12: #{text_encoder_forward.2} parent=0 // pred_region
    _
  $region13: #{text_encoder_forward.2} parent=0 // pred_fallthru
    _
  // Predicated region
  $region14: #{text_encoder_forward.2} parent=0 // pred_check
    _
  $region15: #{text_encoder_forward.2} parent=0 // pred_check_branch
    %37 = sbr.rel (0) target = $region17
  $region16: #{text_encoder_forward.2} parent=0 // pred_region
    _
  $region17: #{text_encoder_forward.2} parent=0 // pred_fallthru
    _
  // Predicated region
  $region18: #{text_encoder_forward.2} parent=0 // pred_check
    _
  $region19: #{text_encoder_forward.2} parent=0 // pred_check_branch
    %39 = sbr.rel (0) target = $region21
  $region20: #{text_encoder_forward.2} parent=0 // pred_region
    _
  $region21: #{text_encoder_forward.2} parent=0 // pred_fallthru
    _
  // Predicated region
  $region22: #{text_encoder_forward.2} parent=0 // pred_check
    _
  $region23: #{text_encoder_forward.2} parent=0 // pred_check_branch
    %41 = sbr.rel (0) target = $region25
  $region24: #{text_encoder_forward.2} parent=0 // pred_region
    _
  $region25: #{text_encoder_forward.2} parent=0 // pred_fallthru
    _
  // Predicated region
  $region26: #{text_encoder_forward.2} parent=0 // pred_check
    _
  $region27: #{text_encoder_forward.2} parent=0 // pred_check_branch
    %43 = sbr.rel (0) target = $region29
  $region28: #{text_encoder_forward.2} parent=0 // pred_region
    _
  $region29: #{text_encoder_forward.2} parent=0 // pred_fallthru
    _
  // Predicated region
  $region30: #{text_encoder_forward.2} parent=0 // pred_check
    _
  $region31: #{text_encoder_forward.2} parent=0 // pred_check_branch
    %45 = sbr.rel (0) target = $region33
  $region32: #{text_encoder_forward.2} parent=0 // pred_region
    _
  $region33: #{text_encoder_forward.2} parent=0 // pred_fallthru
    _
  // Predicated region
  $region34: #{text_encoder_forward.2} parent=0 // pred_check
    _
  $region35: #{text_encoder_forward.2} parent=0 // pred_check_branch
    %47 = sbr.rel (0) target = $region37
  $region36: #{text_encoder_forward.2} parent=0 // pred_region
    _
  $region37: #{text_encoder_forward.2} parent=0 // pred_fallthru
    _
  // Predicated region
  $region38: #{text_encoder_forward.2} parent=0 // pred_check
    _
  $region39: #{text_encoder_forward.2} parent=0 // pred_check_branch
    %49 = sbr.rel (0) target = $region41
  $region40: #{text_encoder_forward.2} parent=0 // pred_region
    _
  $region41: #{text_encoder_forward.2} parent=0 // pred_fallthru
    _
  // Predicated region
  $region42: #{text_encoder_forward.2} parent=0 // pred_check
    _
  $region43: #{text_encoder_forward.2} parent=0 // pred_check_branch
    %51 = sbr.rel (0) target = $region45
  $region44: #{text_encoder_forward.2} parent=0 // pred_region
    _
  $region45: #{text_encoder_forward.2} parent=0 // pred_fallthru
    _
  // Predicated region
  $region46: #{text_encoder_forward.2} parent=0 // pred_check
    _
  $region47: #{text_encoder_forward.2} parent=0 // pred_check_branch
    %53 = sbr.rel (0) target = $region49
  $region48: #{text_encoder_forward.2} parent=0 // pred_region
    _
  $region49: #{text_encoder_forward.2} parent=0 // pred_fallthru
    _
  // Predicated region
  $region50: #{text_encoder_forward.2} parent=0 // pred_check
    _
  $region51: #{text_encoder_forward.2} parent=0 // pred_check_branch
    %55 = sbr.rel (0) target = $region53
  $region52: #{text_encoder_forward.2} parent=0 // pred_region
    _
  $region53: #{text_encoder_forward.2} parent=0 // pred_fallthru
    _
  // Predicated region
  $region54: #{text_encoder_forward.2} parent=0 // pred_check
    _
  $region55: #{text_encoder_forward.2} parent=0 // pred_check_branch
    %57 = sbr.rel (0) target = $region57
  $region56: #{text_encoder_forward.2} parent=0 // pred_region
    _
  $region57: #{text_encoder_forward.2} parent=0 // pred_fallthru
    _
  // Predicated region
  $region58: #{text_encoder_forward.2} parent=0 // pred_check
    _
  $region59: #{text_encoder_forward.2} parent=0 // pred_check_branch
    %59 = sbr.rel (0) target = $region61
  $region60: #{text_encoder_forward.2} parent=0 // pred_region
    _
  $region61: #{text_encoder_forward.2} parent=0 // pred_fallthru
    _
  // Predicated region
  $region62: #{text_encoder_forward.2} parent=0 // pred_check
    _
  $region63: #{text_encoder_forward.2} parent=0 // pred_check_branch
    %61 = sbr.rel (0) target = $region65
  $region64: #{text_encoder_forward.2} parent=0 // pred_region
    _
  $region65: #{text_encoder_forward.2} parent=0 // pred_fallthru
    _
  // Predicated region
  $region66: #{text_encoder_forward.2} parent=0 // pred_check
    _
  $region67: #{text_encoder_forward.2} parent=0 // pred_check_branch
    %63 = sbr.rel (0) target = $region69
  $region68: #{text_encoder_forward.2} parent=0 // pred_region
    _
  $region69: #{text_encoder_forward.2} parent=0 // pred_fallthru
    _
  // Predicated region
  $region70: #{text_encoder_forward.2} parent=0 // pred_check
    _
  $region71: #{text_encoder_forward.2} parent=0 // pred_check_branch
    %65 = sbr.rel (0) target = $region73
  $region72: #{text_encoder_forward.2} parent=0 // pred_region
    _
  $region73: #{text_encoder_forward.2} parent=0 // pred_fallthru
    _
  // Predicated region
  $region74: #{text_encoder_forward.2} parent=0 // pred_check
    _
  $region75: #{text_encoder_forward.2} parent=0 // pred_check_branch
    %67 = sbr.rel (0) target = $region77
  $region76: #{text_encoder_forward.2} parent=0 // pred_region
    _
  $region77: #{text_encoder_forward.2} parent=0 // pred_fallthru
    _
  // Predicated region
  $region78: #{text_encoder_forward.2} parent=0 // pred_check
    _
  $region79: #{text_encoder_forward.2} parent=0 // pred_check_branch
    %69 = sbr.rel (0) target = $region81
  $region80: #{text_encoder_forward.2} parent=0 // pred_region
    _
  $region81: #{text_encoder_forward.2} parent=0 // pred_fallthru
    _
  // Predicated region
  $region82: #{text_encoder_forward.2} parent=0 // pred_check
    _
  $region83: #{text_encoder_forward.2} parent=0 // pred_check_branch
    %71 = sbr.rel (0) target = $region85
  $region84: #{text_encoder_forward.2} parent=0 // pred_region
    _
  $region85: #{text_encoder_forward.2} parent=0 // pred_fallthru
    _
  // Predicated region
  $region86: #{text_encoder_forward.2} parent=0 // pred_check
    _
  $region87: #{text_encoder_forward.2} parent=0 // pred_check_branch
    %73 = sbr.rel (0) target = $region89
  $region88: #{text_encoder_forward.2} parent=0 // pred_region
    _
  $region89: #{text_encoder_forward.2} parent=0 // pred_fallthru
    _
  // Predicated region
  $region90: #{text_encoder_forward.2} parent=0 // pred_check
    _
  $region91: #{text_encoder_forward.2} parent=0 // pred_check_branch
    %75 = sbr.rel (0) target = $region93
  $region92: #{text_encoder_forward.2} parent=0 // pred_region
    _
  $region93: #{text_encoder_forward.2} parent=0 // pred_fallthru
    _
  // Predicated region
  $region94: #{text_encoder_forward.2} parent=0 // pred_check
    _
  $region95: #{text_encoder_forward.2} parent=0 // pred_check_branch
    %77 = sbr.rel (0) target = $region97
  $region96: #{text_encoder_forward.2} parent=0 // pred_region
    _
  $region97: #{text_encoder_forward.2} parent=0 // pred_fallthru
    _
  // Predicated region
  $region98: #{text_encoder_forward.2} parent=0 // pred_check
    _
  $region99: #{text_encoder_forward.2} parent=0 // pred_check_branch
    %79 = sbr.rel (0) target = $region101
  $region100: #{text_encoder_forward.2} parent=0 // pred_region
    _
  $region101: #{text_encoder_forward.2} parent=0 // pred_fallthru
    _
  %v83 = vld [vmem:[%s0] sm:$0xf]
  %v84 = vld [vmem:[%s0 + $0x4] sm:$0xf]
  %v85 = vunpack.c.l.bf16 %v83
  %v86 = vunpack.c.l.bf16 %v84
  %v87 = vld [vmem:[%s1] sm:$0x1]
  %v88 = vld [vmem:[%s2] sm:$0x1]
  %vm89 = vcmask 261120
  %v90 = vsel %vm89, %v85, 0.0
  %91 = vadd.xlane.f32.xlu0 %v90
  %v92 = vpop.xlane.xlu0 %91
  %v93 = vsel %vm89, %v86, 0.0
  %94 = vadd.xlane.f32.xlu0 %v93
  %v95 = vpop.xlane.xlu0 %94
  %v96 = vrcp.pop 32.0
  %v97 = vmul.f32 %v92, %v96
  %v98 = vmul.f32 %v95, %v96
  %v99 = vmul.f32 %v85, %v85
  %v100 = vmul.f32 %v86, %v86
  %v101 = vsel %vm89, %v99, 0.0
  %102 = vadd.xlane.f32.xlu0 %v101
  %v103 = vpop.xlane.xlu0 %102
  %v104 = vsel %vm89, %v100, 0.0
  %105 = vadd.xlane.f32.xlu0 %v104
  %v106 = vpop.xlane.xlu0 %105
  %v107 = vmul.f32 %v103, %v96
  %v108 = vmul.f32 %v106, %v96
  %v109 = vmul.f32 %v97, %v97
  %v110 = vmul.f32 %v98, %v98
  %v111 = vsub.f32 %v107, %v109
  %v112 = vsub.f32 %v108, %v110
  %v113 = vsub.f32 %v85, %v97
  %v114 = vsub.f32 %v86, %v98
  %v115 = vadd.f32 %v111, 1e-05
  %v116 = vadd.f32 %v112, 1e-05
  %v117 = vrsqrt.pop %v115
  %v118 = vrsqrt.pop %v116
  %v119 = vmul.f32 %v113, %v117
  %v120 = vmul.f32 %v114, %v118
  %v122 = vlaneseq
  %v123 = vshrl.u32 %v122, 7
  %v124 = vsub.s32 0, %v123
  %v125 = vrot.slane %v87, %v124
  %v127 = vmul.f32 %v119, %v125
  %v128 = vmul.f32 %v120, %v125
  %v130 = vlaneseq
  %v131 = vshrl.u32 %v130, 7
  %v132 = vsub.s32 0, %v131
  %v133 = vrot.slane %v88, %v132
  %v135 = vadd.f32 %v127, %v133
  %v136 = vadd.f32 %v128, %v133
  %v137 = vpack.c.bf16 %v136, %v135
  %v138 = vld [vmem:[%s3] sm:$0xf]
  %v139 = vld [vmem:[%s3 + $0x4] sm:$0xf]
  %v140 = vld [vmem:[%s3 + $0x8] sm:$0xf]
  %v141 = vld [vmem:[%s3 + $0xc] sm:$0xf]
  %v142 = vld [vmem:[%s4] sm:$0x1]
  %v144 = vlaneseq
  %v145 = vshrl.u32 %v144, 7
  %v146 = vsub.s32 0, %v145
  %v147 = vrot.slane %v142, %v146
  %v153 = vunpack.c.l.b16 %v138
  %v154 = vunpack.c.l.b16 %v139
  %v155 = vunpack.c.l.b16 %v140
  %v156 = vunpack.c.l.b16 %v141
  %v157 = vpack.c.b16 %v154, %v153
  %v158 = vpack.c.b16 %v156, %v155
  %v162 = vsel %vm89, %v137, 0
  %164 = vmatprep.subr.bf16.mxu0 0
  %165 = vmatpush1.bf16.msra.mxu0 %v157
  %166 = vmatprep.subr.bf16.mxu0 0
  %167 = vmatpush1.bf16.msra.mxu0 %v158
  %168 = vmatprep.subr.bf16.mxu0 0
  %169 = vmatpush1.bf16.msra.mxu0 0
  %170 = vmatprep.subr.bf16.mxu0 0
  %171 = vmatpush1.bf16.msra.mxu0 0
  %172 = vmatprep.subr.bf16.mxu0 0
  %173 = vmatpush1.bf16.msra.mxu0 0
  %174 = vmatprep.subr.bf16.mxu0 0
  %175 = vmatpush1.bf16.msra.mxu0 0
  %176 = vmatprep.subr.bf16.mxu0 0
  %177 = vmatpush1.bf16.msra.mxu0 0
  %178 = vmatprep.subr.bf16.mxu0 0
  %179 = vmatpush1.bf16.msra.mxu0 0
  %180 = vmatprep.subr.bf16.mxu0 0
  %181 = vmatpush1.bf16.msra.mxu0 0
  %182 = vmatprep.subr.bf16.mxu0 0
  %183 = vmatpush1.bf16.msra.mxu0 0
  %184 = vmatprep.subr.bf16.mxu0 0
  %185 = vmatpush1.bf16.msra.mxu0 0
  %186 = vmatprep.subr.bf16.mxu0 0
  %187 = vmatpush1.bf16.msra.mxu0 0
  %188 = vmatprep.subr.bf16.mxu0 0
  %189 = vmatpush1.bf16.msra.mxu0 0
  %190 = vmatprep.subr.bf16.mxu0 0
  %191 = vmatpush1.bf16.msra.mxu0 0
  %192 = vmatprep.subr.bf16.mxu0 0
  %193 = vmatpush1.bf16.msra.mxu0 0
  %194 = vmatprep.subr.bf16.mxu0 0
  %195 = vmatpush1.bf16.msra.mxu0 0
  %196 = vmatprep.mubr.bf16.mxu0 0
  %197 = vmatmul.mubr.bf16.gmra.mrb[0].mxu0 %v162
  %v198 = vpop.f32.mrb[0].mxu0
  %v199 = vadd.f32 %v147, %v198
  %v200 = vpop.f32.mrb[0].mxu0
  %v201 = vpop.f32.mrb[0].mxu0
  %v202 = vadd.f32 %v147, %v201
  %v203 = vpop.f32.mrb[0].mxu0
  %204 = vdwg.mxu0
  %207 = vrot.lane.b32.xlu0 %v199, 120
  %v208 = vpop.permute.xlu0 %207
  %209 = vrot.lane.b32.xlu0 %v202, 120
  %v210 = vpop.permute.xlu0 %209
  %213 = vrot.lane.b32.xlu0 %v199, 112
  %v214 = vpop.permute.xlu0 %213
  %215 = vrot.lane.b32.xlu0 %v202, 112
  %v216 = vpop.permute.xlu0 %215
  %219 = vrot.lane.b32.xlu0 %v199, 104
  %v220 = vpop.permute.xlu0 %219
  %221 = vrot.lane.b32.xlu0 %v202, 104
  %v222 = vpop.permute.xlu0 %221
  %v225 = vcombine.low %v199, %v214
  %v226 = vcombine.high %v199, %v214
  %v228 = vunpack.c.l.s4 1983009808
  %v229 = vunpack.c.0.s8 %v228
  %v230 = vlaneseq
  %v231 = vshrl.u32 %v230, 7
  %v232 = vsub.s32 %v229, %v231
  %v233 = vrot.slane %v225, %v232
  %v235 = vunpack.c.l.s4 1983009808
  %v236 = vunpack.c.0.s8 %v235
  %v237 = vlaneseq
  %v238 = vshrl.u32 %v237, 7
  %v239 = vsub.s32 %v236, %v238
  %v240 = vrot.slane %v226, %v239
  %v241 = vcombine.low %v208, %v220
  %v242 = vcombine.high %v208, %v220
  %v244 = vunpack.c.l.s4 1983009808
  %v245 = vunpack.c.0.s8 %v244
  %v246 = vlaneseq
  %v247 = vshrl.u32 %v246, 7
  %v248 = vsub.s32 %v245, %v247
  %v249 = vrot.slane %v241, %v248
  %v251 = vunpack.c.l.s4 1983009808
  %v252 = vunpack.c.0.s8 %v251
  %v253 = vlaneseq
  %v254 = vshrl.u32 %v253, 7
  %v255 = vsub.s32 %v252, %v254
  %v256 = vrot.slane %v242, %v255
  %v257 = vcombine.low %v233, %v249
  %v258 = vcombine.high %v233, %v249
  %v260 = vunpack.c.l.s4 1934713408
  %v261 = vunpack.c.0.s8 %v260
  %v262 = vlaneseq
  %v263 = vshrl.u32 %v262, 7
  %v264 = vsub.s32 %v261, %v263
  %v265 = vrot.slane %v257, %v264
  %v267 = vunpack.c.l.s4 1934713408
  %v268 = vunpack.c.0.s8 %v267
  %v269 = vlaneseq
  %v270 = vshrl.u32 %v269, 7
  %v271 = vsub.s32 %v268, %v270
  %v272 = vrot.slane %v258, %v271
  %v273 = vcombine.low %v240, %v256
  %v274 = vcombine.high %v240, %v256
  %v276 = vunpack.c.l.s4 1934713408
  %v277 = vunpack.c.0.s8 %v276
  %v278 = vlaneseq
  %v279 = vshrl.u32 %v278, 7
  %v280 = vsub.s32 %v277, %v279
  %v281 = vrot.slane %v273, %v280
  %v283 = vunpack.c.l.s4 1934713408
  %v284 = vunpack.c.0.s8 %v283
  %v285 = vlaneseq
  %v286 = vshrl.u32 %v285, 7
  %v287 = vsub.s32 %v284, %v286
  %v288 = vrot.slane %v274, %v287
  %v289 = vcombine.high %v265, 0.0
  %v290 = vcombine.high %v272, 0.0
  %v291 = vcombine.high %v281, 0.0
  %v292 = vcombine.high %v288, 0.0
  %v293 = vcombine.low %v202, %v216
  %v294 = vcombine.high %v202, %v216
  %v296 = vunpack.c.l.s4 1983009808
  %v297 = vunpack.c.0.s8 %v296
  %v298 = vlaneseq
  %v299 = vshrl.u32 %v298, 7
  %v300 = vsub.s32 %v297, %v299
  %v301 = vrot.slane %v293, %v300
  %v303 = vunpack.c.l.s4 1983009808
  %v304 = vunpack.c.0.s8 %v303
  %v305 = vlaneseq
  %v306 = vshrl.u32 %v305, 7
  %v307 = vsub.s32 %v304, %v306
  %v308 = vrot.slane %v294, %v307
  %v309 = vcombine.low %v210, %v222
  %v310 = vcombine.high %v210, %v222
  %v312 = vunpack.c.l.s4 1983009808
  %v313 = vunpack.c.0.s8 %v312
  %v314 = vlaneseq
  %v315 = vshrl.u32 %v314, 7
  %v316 = vsub.s32 %v313, %v315
  %v317 = vrot.slane %v309, %v316
  %v319 = vunpack.c.l.s4 1983009808
  %v320 = vunpack.c.0.s8 %v319
  %v321 = vlaneseq
  %v322 = vshrl.u32 %v321, 7
  %v323 = vsub.s32 %v320, %v322
  %v324 = vrot.slane %v310, %v323
  %v325 = vcombine.low %v301, %v317
  %v326 = vcombine.high %v301, %v317
  %v328 = vunpack.c.l.s4 1934713408
  %v329 = vunpack.c.0.s8 %v328
  %v330 = vlaneseq
  %v331 = vshrl.u32 %v330, 7
  %v332 = vsub.s32 %v329, %v331
  %v333 = vrot.slane %v325, %v332
  %v335 = vunpack.c.l.s4 1934713408
  %v336 = vunpack.c.0.s8 %v335
  %v337 = vlaneseq
  %v338 = vshrl.u32 %v337, 7
  %v339 = vsub.s32 %v336, %v338
  %v340 = vrot.slane %v326, %v339
  %v341 = vcombine.low %v308, %v324
  %v342 = vcombine.high %v308, %v324
  %v344 = vunpack.c.l.s4 1934713408
  %v345 = vunpack.c.0.s8 %v344
  %v346 = vlaneseq
  %v347 = vshrl.u32 %v346, 7
  %v348 = vsub.s32 %v345, %v347
  %v349 = vrot.slane %v341, %v348
  %v351 = vunpack.c.l.s4 1934713408
  %v352 = vunpack.c.0.s8 %v351
  %v353 = vlaneseq
  %v354 = vshrl.u32 %v353, 7
  %v355 = vsub.s32 %v352, %v354
  %v356 = vrot.slane %v342, %v355
  %v357 = vcombine.high %v333, 0.0
  %v358 = vcombine.high %v340, 0.0
  %v359 = vcombine.high %v349, 0.0
  %v360 = vcombine.high %v356, 0.0
  %v361 = vcombine.low %v265, %v272
  %v363 = vunpack.c.l.s4 1983009808
  %v364 = vunpack.c.0.s8 %v363
  %v365 = vlaneseq
  %v366 = vshrl.u32 %v365, 7
  %v367 = vsub.s32 %v364, %v366
  %v368 = vrot.slane %v361, %v367
  %v369 = vcombine.low %v289, %v290
  %v371 = vunpack.c.l.s4 1983009808
  %v372 = vunpack.c.0.s8 %v371
  %v373 = vlaneseq
  %v374 = vshrl.u32 %v373, 7
  %v375 = vsub.s32 %v372, %v374
  %v376 = vrot.slane %v369, %v375
  %v377 = vcombine.low %v281, %v288
  %v379 = vunpack.c.l.s4 1983009808
  %v380 = vunpack.c.0.s8 %v379
  %v381 = vlaneseq
  %v382 = vshrl.u32 %v381, 7
  %v383 = vsub.s32 %v380, %v382
  %v384 = vrot.slane %v377, %v383
  %v385 = vcombine.low %v291, %v292
  %v387 = vunpack.c.l.s4 1983009808
  %v388 = vunpack.c.0.s8 %v387
  %v389 = vlaneseq
  %v390 = vshrl.u32 %v389, 7
  %v391 = vsub.s32 %v388, %v390
  %v392 = vrot.slane %v385, %v391
  %v393 = vcombine.low %v368, %v376
  %v394 = vcombine.high %v368, %v376
  %v396 = vunpack.c.l.s4 1934713408
  %v397 = vunpack.c.0.s8 %v396
  %v398 = vlaneseq
  %v399 = vshrl.u32 %v398, 7
  %v400 = vsub.s32 %v397, %v399
  %v401 = vrot.slane %v393, %v400
  %v403 = vunpack.c.l.s4 1934713408
  %v404 = vunpack.c.0.s8 %v403
  %v405 = vlaneseq
  %v406 = vshrl.u32 %v405, 7
  %v407 = vsub.s32 %v404, %v406
  %v408 = vrot.slane %v394, %v407
  %v409 = vcombine.low %v384, %v392
  %v410 = vcombine.high %v384, %v392
  %v412 = vunpack.c.l.s4 1934713408
  %v413 = vunpack.c.0.s8 %v412
  %v414 = vlaneseq
  %v415 = vshrl.u32 %v414, 7
  %v416 = vsub.s32 %v413, %v415
  %v417 = vrot.slane %v409, %v416
  %v419 = vunpack.c.l.s4 1934713408
  %v420 = vunpack.c.0.s8 %v419
  %v421 = vlaneseq
  %v422 = vshrl.u32 %v421, 7
  %v423 = vsub.s32 %v420, %v422
  %v424 = vrot.slane %v410, %v423
  %v425 = vcombine.low %v401, %v417
  %v426 = vcombine.high %v401, %v417
  %v427 = vcombine.low %v408, %v424
  %v428 = vcombine.high %v408, %v424
  %v429 = vcombine.low %v333, %v340
  %v431 = vunpack.c.l.s4 1983009808
  %v432 = vunpack.c.0.s8 %v431
  %v433 = vlaneseq
  %v434 = vshrl.u32 %v433, 7
  %v435 = vsub.s32 %v432, %v434
  %v436 = vrot.slane %v429, %v435
  %v437 = vcombine.low %v357, %v358
  %v439 = vunpack.c.l.s4 1983009808
  %v440 = vunpack.c.0.s8 %v439
  %v441 = vlaneseq
  %v442 = vshrl.u32 %v441, 7
  %v443 = vsub.s32 %v440, %v442
  %v444 = vrot.slane %v437, %v443
  %v445 = vcombine.low %v349, %v356
  %v447 = vunpack.c.l.s4 1983009808
  %v448 = vunpack.c.0.s8 %v447
  %v449 = vlaneseq
  %v450 = vshrl.u32 %v449, 7
  %v451 = vsub.s32 %v448, %v450
  %v452 = vrot.slane %v445, %v451
  %v453 = vcombine.low %v359, %v360
  %v455 = vunpack.c.l.s4 1983009808
  %v456 = vunpack.c.0.s8 %v455
  %v457 = vlaneseq
  %v458 = vshrl.u32 %v457, 7
  %v459 = vsub.s32 %v456, %v458
  %v460 = vrot.slane %v453, %v459
  %v461 = vcombine.low %v436, %v444
  %v462 = vcombine.high %v436, %v444
  %v464 = vunpack.c.l.s4 1934713408
  %v465 = vunpack.c.0.s8 %v464
  %v466 = vlaneseq
  %v467 = vshrl.u32 %v466, 7
  %v468 = vsub.s32 %v465, %v467
  %v469 = vrot.slane %v461, %v468
  %v471 = vunpack.c.l.s4 1934713408
  %v472 = vunpack.c.0.s8 %v471
  %v473 = vlaneseq
  %v474 = vshrl.u32 %v473, 7
  %v475 = vsub.s32 %v472, %v474
  %v476 = vrot.slane %v462, %v475
  %v477 = vcombine.low %v452, %v460
  %v478 = vcombine.high %v452, %v460
  %v480 = vunpack.c.l.s4 1934713408
  %v481 = vunpack.c.0.s8 %v480
  %v482 = vlaneseq
  %v483 = vshrl.u32 %v482, 7
  %v484 = vsub.s32 %v481, %v483
  %v485 = vrot.slane %v477, %v484
  %v487 = vunpack.c.l.s4 1934713408
  %v488 = vunpack.c.0.s8 %v487
  %v489 = vlaneseq
  %v490 = vshrl.u32 %v489, 7
  %v491 = vsub.s32 %v488, %v490
  %v492 = vrot.slane %v478, %v491
  %v493 = vcombine.low %v469, %v485
  %v494 = vcombine.high %v469, %v485
  %v495 = vcombine.low %v476, %v492
  %v496 = vcombine.high %v476, %v492
  %v497 = vpack.c.bf16 %v425, %v425
  %v498 = vpack.c.bf16 %v426, %v426
  %v499 = vpack.c.bf16 %v427, %v427
  %v500 = vpack.c.bf16 %v428, %v428
  %v501 = vpack.c.bf16 %v493, %v493
  %v502 = vpack.c.bf16 %v494, %v494
  %v503 = vpack.c.bf16 %v495, %v495
  %v504 = vpack.c.bf16 %v496, %v496
  %505 = vrot.lane.b32.xlu0 %v199, 96
  %v506 = vpop.permute.xlu0 %505
  %507 = vrot.lane.b32.xlu0 %v202, 96
  %v508 = vpop.permute.xlu0 %507
  %509 = vrot.lane.b32.xlu0 %v208, 96
  %v510 = vpop.permute.xlu0 %509
  %511 = vrot.lane.b32.xlu0 %v210, 96
  %v512 = vpop.permute.xlu0 %511
  %513 = vrot.lane.b32.xlu0 %v214, 96
  %v514 = vpop.permute.xlu0 %513
  %515 = vrot.lane.b32.xlu0 %v216, 96
  %v516 = vpop.permute.xlu0 %515
  %517 = vrot.lane.b32.xlu0 %v220, 96
  %v518 = vpop.permute.xlu0 %517
  %519 = vrot.lane.b32.xlu0 %v222, 96
  %v520 = vpop.permute.xlu0 %519
  %v529 = vcombine.low %v506, %v514
  %v530 = vcombine.high %v506, %v514
  %v532 = vunpack.c.l.s4 1983009808
  %v533 = vunpack.c.0.s8 %v532
  %v534 = vlaneseq
  %v535 = vshrl.u32 %v534, 7
  %v536 = vsub.s32 %v533, %v535
  %v537 = vrot.slane %v529, %v536
  %v539 = vunpack.c.l.s4 1983009808
  %v540 = vunpack.c.0.s8 %v539
  %v541 = vlaneseq
  %v542 = vshrl.u32 %v541, 7
  %v543 = vsub.s32 %v540, %v542
  %v544 = vrot.slane %v530, %v543
  %v545 = vcombine.low %v510, %v518
  %v546 = vcombine.high %v510, %v518
  %v548 = vunpack.c.l.s4 1983009808
  %v549 = vunpack.c.0.s8 %v548
  %v550 = vlaneseq
  %v551 = vshrl.u32 %v550, 7
  %v552 = vsub.s32 %v549, %v551
  %v553 = vrot.slane %v545, %v552
  %v555 = vunpack.c.l.s4 1983009808
  %v556 = vunpack.c.0.s8 %v555
  %v557 = vlaneseq
  %v558 = vshrl.u32 %v557, 7
  %v559 = vsub.s32 %v556, %v558
  %v560 = vrot.slane %v546, %v559
  %v561 = vcombine.low %v537, %v553
  %v562 = vcombine.high %v537, %v553
  %v564 = vunpack.c.l.s4 1934713408
  %v565 = vunpack.c.0.s8 %v564
  %v566 = vlaneseq
  %v567 = vshrl.u32 %v566, 7
  %v568 = vsub.s32 %v565, %v567
  %v569 = vrot.slane %v561, %v568
  %v571 = vunpack.c.l.s4 1934713408
  %v572 = vunpack.c.0.s8 %v571
  %v573 = vlaneseq
  %v574 = vshrl.u32 %v573, 7
  %v575 = vsub.s32 %v572, %v574
  %v576 = vrot.slane %v562, %v575
  %v577 = vcombine.low %v544, %v560
  %v578 = vcombine.high %v544, %v560
  %v580 = vunpack.c.l.s4 1934713408
  %v581 = vunpack.c.0.s8 %v580
  %v582 = vlaneseq
  %v583 = vshrl.u32 %v582, 7
  %v584 = vsub.s32 %v581, %v583
  %v585 = vrot.slane %v577, %v584
  %v587 = vunpack.c.l.s4 1934713408
  %v588 = vunpack.c.0.s8 %v587
  %v589 = vlaneseq
  %v590 = vshrl.u32 %v589, 7
  %v591 = vsub.s32 %v588, %v590
  %v592 = vrot.slane %v578, %v591
  %v593 = vcombine.high %v569, 0.0
  %v594 = vcombine.high %v576, 0.0
  %v595 = vcombine.high %v585, 0.0
  %v596 = vcombine.high %v592, 0.0
  %v597 = vcombine.low %v508, %v516
  %v598 = vcombine.high %v508, %v516
  %v600 = vunpack.c.l.s4 1983009808
  %v601 = vunpack.c.0.s8 %v600
  %v602 = vlaneseq
  %v603 = vshrl.u32 %v602, 7
  %v604 = vsub.s32 %v601, %v603
  %v605 = vrot.slane %v597, %v604
  %v607 = vunpack.c.l.s4 1983009808
  %v608 = vunpack.c.0.s8 %v607
  %v609 = vlaneseq
  %v610 = vshrl.u32 %v609, 7
  %v611 = vsub.s32 %v608, %v610
  %v612 = vrot.slane %v598, %v611
  %v613 = vcombine.low %v512, %v520
  %v614 = vcombine.high %v512, %v520
  %v616 = vunpack.c.l.s4 1983009808
  %v617 = vunpack.c.0.s8 %v616
  %v618 = vlaneseq
  %v619 = vshrl.u32 %v618, 7
  %v620 = vsub.s32 %v617, %v619
  %v621 = vrot.slane %v613, %v620
  %v623 = vunpack.c.l.s4 1983009808
  %v624 = vunpack.c.0.s8 %v623
  %v625 = vlaneseq
  %v626 = vshrl.u32 %v625, 7
  %v627 = vsub.s32 %v624, %v626
  %v628 = vrot.slane %v614, %v627
  %v629 = vcombine.low %v605, %v621
  %v630 = vcombine.high %v605, %v621
  %v632 = vunpack.c.l.s4 1934713408
  %v633 = vunpack.c.0.s8 %v632
  %v634 = vlaneseq
  %v635 = vshrl.u32 %v634, 7
  %v636 = vsub.s32 %v633, %v635
  %v637 = vrot.slane %v629, %v636
  %v639 = vunpack.c.l.s4 1934713408
  %v640 = vunpack.c.0.s8 %v639
  %v641 = vlaneseq
  %v642 = vshrl.u32 %v641, 7
  %v643 = vsub.s32 %v640, %v642
  %v644 = vrot.slane %v630, %v643
  %v645 = vcombine.low %v612, %v628
  %v646 = vcombine.high %v612, %v628
  %v648 = vunpack.c.l.s4 1934713408
  %v649 = vunpack.c.0.s8 %v648
  %v650 = vlaneseq
  %v651 = vshrl.u32 %v650, 7
  %v652 = vsub.s32 %v649, %v651
  %v653 = vrot.slane %v645, %v652
  %v655 = vunpack.c.l.s4 1934713408
  %v656 = vunpack.c.0.s8 %v655
  %v657 = vlaneseq
  %v658 = vshrl.u32 %v657, 7
  %v659 = vsub.s32 %v656, %v658
  %v660 = vrot.slane %v646, %v659
  %v661 = vcombine.high %v637, 0.0
  %v662 = vcombine.high %v644, 0.0
  %v663 = vcombine.high %v653, 0.0
  %v664 = vcombine.high %v660, 0.0
  %v665 = vcombine.low %v569, %v576
  %v667 = vunpack.c.l.s4 1983009808
  %v668 = vunpack.c.0.s8 %v667
  %v669 = vlaneseq
  %v670 = vshrl.u32 %v669, 7
  %v671 = vsub.s32 %v668, %v670
  %v672 = vrot.slane %v665, %v671
  %v673 = vcombine.low %v593, %v594
  %v675 = vunpack.c.l.s4 1983009808
  %v676 = vunpack.c.0.s8 %v675
  %v677 = vlaneseq
  %v678 = vshrl.u32 %v677, 7
  %v679 = vsub.s32 %v676, %v678
  %v680 = vrot.slane %v673, %v679
  %v681 = vcombine.low %v585, %v592
  %v683 = vunpack.c.l.s4 1983009808
  %v684 = vunpack.c.0.s8 %v683
  %v685 = vlaneseq
  %v686 = vshrl.u32 %v685, 7
  %v687 = vsub.s32 %v684, %v686
  %v688 = vrot.slane %v681, %v687
  %v689 = vcombine.low %v595, %v596
  %v691 = vunpack.c.l.s4 1983009808
  %v692 = vunpack.c.0.s8 %v691
  %v693 = vlaneseq
  %v694 = vshrl.u32 %v693, 7
  %v695 = vsub.s32 %v692, %v694
  %v696 = vrot.slane %v689, %v695
  %v697 = vcombine.low %v672, %v680
  %v698 = vcombine.high %v672, %v680
  %v700 = vunpack.c.l.s4 1934713408
  %v701 = vunpack.c.0.s8 %v700
  %v702 = vlaneseq
  %v703 = vshrl.u32 %v702, 7
  %v704 = vsub.s32 %v701, %v703
  %v705 = vrot.slane %v697, %v704
  %v707 = vunpack.c.l.s4 1934713408
  %v708 = vunpack.c.0.s8 %v707
  %v709 = vlaneseq
  %v710 = vshrl.u32 %v709, 7
  %v711 = vsub.s32 %v708, %v710
  %v712 = vrot.slane %v698, %v711
  %v713 = vcombine.low %v688, %v696
  %v714 = vcombine.high %v688, %v696
  %v716 = vunpack.c.l.s4 1934713408
  %v717 = vunpack.c.0.s8 %v716
  %v718 = vlaneseq
  %v719 = vshrl.u32 %v718, 7
  %v720 = vsub.s32 %v717, %v719
  %v721 = vrot.slane %v713, %v720
  %v723 = vunpack.c.l.s4 1934713408
  %v724 = vunpack.c.0.s8 %v723
  %v725 = vlaneseq
  %v726 = vshrl.u32 %v725, 7
  %v727 = vsub.s32 %v724, %v726
  %v728 = vrot.slane %v714, %v727
  %v729 = vcombine.low %v705, %v721
  %v730 = vcombine.high %v705, %v721
  %v731 = vcombine.low %v712, %v728
  %v732 = vcombine.high %v712, %v728
  %v733 = vcombine.low %v637, %v644
  %v735 = vunpack.c.l.s4 1983009808
  %v736 = vunpack.c.0.s8 %v735
  %v737 = vlaneseq
  %v738 = vshrl.u32 %v737, 7
  %v739 = vsub.s32 %v736, %v738
  %v740 = vrot.slane %v733, %v739
  %v741 = vcombine.low %v661, %v662
  %v743 = vunpack.c.l.s4 1983009808
  %v744 = vunpack.c.0.s8 %v743
  %v745 = vlaneseq
  %v746 = vshrl.u32 %v745, 7
  %v747 = vsub.s32 %v744, %v746
  %v748 = vrot.slane %v741, %v747
  %v749 = vcombine.low %v653, %v660
  %v751 = vunpack.c.l.s4 1983009808
  %v752 = vunpack.c.0.s8 %v751
  %v753 = vlaneseq
  %v754 = vshrl.u32 %v753, 7
  %v755 = vsub.s32 %v752, %v754
  %v756 = vrot.slane %v749, %v755
  %v757 = vcombine.low %v663, %v664
  %v759 = vunpack.c.l.s4 1983009808
  %v760 = vunpack.c.0.s8 %v759
  %v761 = vlaneseq
  %v762 = vshrl.u32 %v761, 7
  %v763 = vsub.s32 %v760, %v762
  %v764 = vrot.slane %v757, %v763
  %v765 = vcombine.low %v740, %v748
  %v766 = vcombine.high %v740, %v748
  %v768 = vunpack.c.l.s4 1934713408
  %v769 = vunpack.c.0.s8 %v768
  %v770 = vlaneseq
  %v771 = vshrl.u32 %v770, 7
  %v772 = vsub.s32 %v769, %v771
  %v773 = vrot.slane %v765, %v772
  %v775 = vunpack.c.l.s4 1934713408
  %v776 = vunpack.c.0.s8 %v775
  %v777 = vlaneseq
  %v778 = vshrl.u32 %v777, 7
  %v779 = vsub.s32 %v776, %v778
  %v780 = vrot.slane %v766, %v779
  %v781 = vcombine.low %v756, %v764
  %v782 = vcombine.high %v756, %v764
  %v784 = vunpack.c.l.s4 1934713408
  %v785 = vunpack.c.0.s8 %v784
  %v786 = vlaneseq
  %v787 = vshrl.u32 %v786, 7
  %v788 = vsub.s32 %v785, %v787
  %v789 = vrot.slane %v781, %v788
  %v791 = vunpack.c.l.s4 1934713408
  %v792 = vunpack.c.0.s8 %v791
  %v793 = vlaneseq
  %v794 = vshrl.u32 %v793, 7
  %v795 = vsub.s32 %v792, %v794
  %v796 = vrot.slane %v782, %v795
  %v797 = vcombine.low %v773, %v789
  %v798 = vcombine.high %v773, %v789
  %v799 = vcombine.low %v780, %v796
  %v800 = vcombine.high %v780, %v796
  %v801 = vpack.c.bf16 %v729, %v729
  %v802 = vpack.c.bf16 %v730, %v730
  %v803 = vpack.c.bf16 %v731, %v731
  %v804 = vpack.c.bf16 %v732, %v732
  %v805 = vpack.c.bf16 %v797, %v797
  %v806 = vpack.c.bf16 %v798, %v798
  %v807 = vpack.c.bf16 %v799, %v799
  %v808 = vpack.c.bf16 %v800, %v800
  %809 = vrot.lane.b32.xlu0 %v199, 64
  %v810 = vpop.permute.xlu0 %809
  %811 = vrot.lane.b32.xlu0 %v202, 64
  %v812 = vpop.permute.xlu0 %811
  %813 = vrot.lane.b32.xlu0 %v208, 64
  %v814 = vpop.permute.xlu0 %813
  %815 = vrot.lane.b32.xlu0 %v210, 64
  %v816 = vpop.permute.xlu0 %815
  %817 = vrot.lane.b32.xlu0 %v214, 64
  %v818 = vpop.permute.xlu0 %817
  %819 = vrot.lane.b32.xlu0 %v216, 64
  %v820 = vpop.permute.xlu0 %819
  %821 = vrot.lane.b32.xlu0 %v220, 64
  %v822 = vpop.permute.xlu0 %821
  %823 = vrot.lane.b32.xlu0 %v222, 64
  %v824 = vpop.permute.xlu0 %823
  %v833 = vcombine.low %v810, %v818
  %v834 = vcombine.high %v810, %v818
  %v836 = vunpack.c.l.s4 1983009808
  %v837 = vunpack.c.0.s8 %v836
  %v838 = vlaneseq
  %v839 = vshrl.u32 %v838, 7
  %v840 = vsub.s32 %v837, %v839
  %v841 = vrot.slane %v833, %v840
  %v843 = vunpack.c.l.s4 1983009808
  %v844 = vunpack.c.0.s8 %v843
  %v845 = vlaneseq
  %v846 = vshrl.u32 %v845, 7
  %v847 = vsub.s32 %v844, %v846
  %v848 = vrot.slane %v834, %v847
  %v849 = vcombine.low %v814, %v822
  %v850 = vcombine.high %v814, %v822
  %v852 = vunpack.c.l.s4 1983009808
  %v853 = vunpack.c.0.s8 %v852
  %v854 = vlaneseq
  %v855 = vshrl.u32 %v854, 7
  %v856 = vsub.s32 %v853, %v855
  %v857 = vrot.slane %v849, %v856
  %v859 = vunpack.c.l.s4 1983009808
  %v860 = vunpack.c.0.s8 %v859
  %v861 = vlaneseq
  %v862 = vshrl.u32 %v861, 7
  %v863 = vsub.s32 %v860, %v862
  %v864 = vrot.slane %v850, %v863
  %v865 = vcombine.low %v841, %v857
  %v866 = vcombine.high %v841, %v857
  %v868 = vunpack.c.l.s4 1934713408
  %v869 = vunpack.c.0.s8 %v868
  %v870 = vlaneseq
  %v871 = vshrl.u32 %v870, 7
  %v872 = vsub.s32 %v869, %v871
  %v873 = vrot.slane %v865, %v872
  %v875 = vunpack.c.l.s4 1934713408
  %v876 = vunpack.c.0.s8 %v875
  %v877 = vlaneseq
  %v878 = vshrl.u32 %v877, 7
  %v879 = vsub.s32 %v876, %v878
  %v880 = vrot.slane %v866, %v879
  %v881 = vcombine.low %v848, %v864
  %v882 = vcombine.high %v848, %v864
  %v884 = vunpack.c.l.s4 1934713408
  %v885 = vunpack.c.0.s8 %v884
  %v886 = vlaneseq
  %v887 = vshrl.u32 %v886, 7
  %v888 = vsub.s32 %v885, %v887
  %v889 = vrot.slane %v881, %v888
  %v891 = vunpack.c.l.s4 1934713408
  %v892 = vunpack.c.0.s8 %v891
  %v893 = vlaneseq
  %v894 = vshrl.u32 %v893, 7
  %v895 = vsub.s32 %v892, %v894
  %v896 = vrot.slane %v882, %v895
  %v897 = vcombine.high %v873, 0.0
  %v898 = vcombine.high %v880, 0.0
  %v899 = vcombine.high %v889, 0.0
  %v900 = vcombine.high %v896, 0.0
  %v901 = vcombine.low %v812, %v820
  %v902 = vcombine.high %v812, %v820
  %v904 = vunpack.c.l.s4 1983009808
  %v905 = vunpack.c.0.s8 %v904
  %v906 = vlaneseq
  %v907 = vshrl.u32 %v906, 7
  %v908 = vsub.s32 %v905, %v907
  %v909 = vrot.slane %v901, %v908
  %v911 = vunpack.c.l.s4 1983009808
  %v912 = vunpack.c.0.s8 %v911
  %v913 = vlaneseq
  %v914 = vshrl.u32 %v913, 7
  %v915 = vsub.s32 %v912, %v914
  %v916 = vrot.slane %v902, %v915
  %v917 = vcombine.low %v816, %v824
  %v918 = vcombine.high %v816, %v824
  %v920 = vunpack.c.l.s4 1983009808
  %v921 = vunpack.c.0.s8 %v920
  %v922 = vlaneseq
  %v923 = vshrl.u32 %v922, 7
  %v924 = vsub.s32 %v921, %v923
  %v925 = vrot.slane %v917, %v924
  %v927 = vunpack.c.l.s4 1983009808
  %v928 = vunpack.c.0.s8 %v927
  %v929 = vlaneseq
  %v930 = vshrl.u32 %v929, 7
  %v931 = vsub.s32 %v928, %v930
  %v932 = vrot.slane %v918, %v931
  %v933 = vcombine.low %v909, %v925
  %v934 = vcombine.high %v909, %v925
  %v936 = vunpack.c.l.s4 1934713408
  %v937 = vunpack.c.0.s8 %v936
  %v938 = vlaneseq
  %v939 = vshrl.u32 %v938, 7
  %v940 = vsub.s32 %v937, %v939
  %v941 = vrot.slane %v933, %v940
  %v943 = vunpack.c.l.s4 1934713408
  %v944 = vunpack.c.0.s8 %v943
  %v945 = vlaneseq
  %v946 = vshrl.u32 %v945, 7
  %v947 = vsub.s32 %v944, %v946
  %v948 = vrot.slane %v934, %v947
  %v949 = vcombine.low %v916, %v932
  %v950 = vcombine.high %v916, %v932
  %v952 = vunpack.c.l.s4 1934713408
  %v953 = vunpack.c.0.s8 %v952
  %v954 = vlaneseq
  %v955 = vshrl.u32 %v954, 7
  %v956 = vsub.s32 %v953, %v955
  %v957 = vrot.slane %v949, %v956
  %v959 = vunpack.c.l.s4 1934713408
  %v960 = vunpack.c.0.s8 %v959
  %v961 = vlaneseq
  %v962 = vshrl.u32 %v961, 7
  %v963 = vsub.s32 %v960, %v962
  %v964 = vrot.slane %v950, %v963
  %v965 = vcombine.high %v941, 0.0
  %v966 = vcombine.high %v948, 0.0
  %v967 = vcombine.high %v957, 0.0
  %v968 = vcombine.high %v964, 0.0
  %v969 = vcombine.low %v873, %v880
  %v971 = vunpack.c.l.s4 1983009808
  %v972 = vunpack.c.0.s8 %v971
  %v973 = vlaneseq
  %v974 = vshrl.u32 %v973, 7
  %v975 = vsub.s32 %v972, %v974
  %v976 = vrot.slane %v969, %v975
  %v977 = vcombine.low %v897, %v898
  %v979 = vunpack.c.l.s4 1983009808
  %v980 = vunpack.c.0.s8 %v979
  %v981 = vlaneseq
  %v982 = vshrl.u32 %v981, 7
  %v983 = vsub.s32 %v980, %v982
  %v984 = vrot.slane %v977, %v983
  %v985 = vcombine.low %v889, %v896
  %v987 = vunpack.c.l.s4 1983009808
  %v988 = vunpack.c.0.s8 %v987
  %v989 = vlaneseq
  %v990 = vshrl.u32 %v989, 7
  %v991 = vsub.s32 %v988, %v990
  %v992 = vrot.slane %v985, %v991
  %v993 = vcombine.low %v899, %v900
  %v995 = vunpack.c.l.s4 1983009808
  %v996 = vunpack.c.0.s8 %v995
  %v997 = vlaneseq
  %v998 = vshrl.u32 %v997, 7
  %v999 = vsub.s32 %v996, %v998
  %v1000 = vrot.slane %v993, %v999
  %v1001 = vcombine.low %v976, %v984
  %v1002 = vcombine.high %v976, %v984
  %v1004 = vunpack.c.l.s4 1934713408
  %v1005 = vunpack.c.0.s8 %v1004
  %v1006 = vlaneseq
  %v1007 = vshrl.u32 %v1006, 7
  %v1008 = vsub.s32 %v1005, %v1007
  %v1009 = vrot.slane %v1001, %v1008
  %v1011 = vunpack.c.l.s4 1934713408
  %v1012 = vunpack.c.0.s8 %v1011
  %v1013 = vlaneseq
  %v1014 = vshrl.u32 %v1013, 7
  %v1015 = vsub.s32 %v1012, %v1014
  %v1016 = vrot.slane %v1002, %v1015
  %v1017 = vcombine.low %v992, %v1000
  %v1018 = vcombine.high %v992, %v1000
  %v1020 = vunpack.c.l.s4 1934713408
  %v1021 = vunpack.c.0.s8 %v1020
  %v1022 = vlaneseq
  %v1023 = vshrl.u32 %v1022, 7
  %v1024 = vsub.s32 %v1021, %v1023
  %v1025 = vrot.slane %v1017, %v1024
  %v1027 = vunpack.c.l.s4 1934713408
  %v1028 = vunpack.c.0.s8 %v1027
  %v1029 = vlaneseq
  %v1030 = vshrl.u32 %v1029, 7
  %v1031 = vsub.s32 %v1028, %v1030
  %v1032 = vrot.slane %v1018, %v1031
  %v1033 = vcombine.low %v1009, %v1025
  %v1034 = vcombine.high %v1009, %v1025
  %v1035 = vcombine.low %v1016, %v1032
  %v1036 = vcombine.high %v1016, %v1032
  %v1037 = vcombine.low %v941, %v948
  %v1039 = vunpack.c.l.s4 1983009808
  %v1040 = vunpack.c.0.s8 %v1039
  %v1041 = vlaneseq
  %v1042 = vshrl.u32 %v1041, 7
  %v1043 = vsub.s32 %v1040, %v1042
  %v1044 = vrot.slane %v1037, %v1043
  %v1045 = vcombine.low %v965, %v966
  %v1047 = vunpack.c.l.s4 1983009808
  %v1048 = vunpack.c.0.s8 %v1047
  %v1049 = vlaneseq
  %v1050 = vshrl.u32 %v1049, 7
  %v1051 = vsub.s32 %v1048, %v1050
  %v1052 = vrot.slane %v1045, %v1051
  %v1053 = vcombine.low %v957, %v964
  %v1055 = vunpack.c.l.s4 1983009808
  %v1056 = vunpack.c.0.s8 %v1055
  %v1057 = vlaneseq
  %v1058 = vshrl.u32 %v1057, 7
  %v1059 = vsub.s32 %v1056, %v1058
  %v1060 = vrot.slane %v1053, %v1059
  %v1061 = vcombine.low %v967, %v968
  %v1063 = vunpack.c.l.s4 1983009808
  %v1064 = vunpack.c.0.s8 %v1063
  %v1065 = vlaneseq
  %v1066 = vshrl.u32 %v1065, 7
  %v1067 = vsub.s32 %v1064, %v1066
  %v1068 = vrot.slane %v1061, %v1067
  %v1069 = vcombine.low %v1044, %v1052
  %v1070 = vcombine.high %v1044, %v1052
  %v1072 = vunpack.c.l.s4 1934713408
  %v1073 = vunpack.c.0.s8 %v1072
  %v1074 = vlaneseq
  %v1075 = vshrl.u32 %v1074, 7
  %v1076 = vsub.s32 %v1073, %v1075
  %v1077 = vrot.slane %v1069, %v1076
  %v1079 = vunpack.c.l.s4 1934713408
  %v1080 = vunpack.c.0.s8 %v1079
  %v1081 = vlaneseq
  %v1082 = vshrl.u32 %v1081, 7
  %v1083 = vsub.s32 %v1080, %v1082
  %v1084 = vrot.slane %v1070, %v1083
  %v1085 = vcombine.low %v1060, %v1068
  %v1086 = vcombine.high %v1060, %v1068
  %v1088 = vunpack.c.l.s4 1934713408
  %v1089 = vunpack.c.0.s8 %v1088
  %v1090 = vlaneseq
  %v1091 = vshrl.u32 %v1090, 7
  %v1092 = vsub.s32 %v1089, %v1091
  %v1093 = vrot.slane %v1085, %v1092
  %v1095 = vunpack.c.l.s4 1934713408
  %v1096 = vunpack.c.0.s8 %v1095
  %v1097 = vlaneseq
  %v1098 = vshrl.u32 %v1097, 7
  %v1099 = vsub.s32 %v1096, %v1098
  %v1100 = vrot.slane %v1086, %v1099
  %v1101 = vcombine.low %v1077, %v1093
  %v1102 = vcombine.high %v1077, %v1093
  %v1103 = vcombine.low %v1084, %v1100
  %v1104 = vcombine.high %v1084, %v1100
  %v1105 = vpack.c.bf16 %v1033, %v1033
  %v1106 = vpack.c.bf16 %v1034, %v1034
  %v1107 = vpack.c.bf16 %v1035, %v1035
  %v1108 = vpack.c.bf16 %v1036, %v1036
  %v1109 = vpack.c.bf16 %v1101, %v1101
  %v1110 = vpack.c.bf16 %v1102, %v1102
  %v1111 = vpack.c.bf16 %v1103, %v1103
  %v1112 = vpack.c.bf16 %v1104, %v1104
  %v1113 = vlaneseq
  %v1114 = vshrl.u32 %v1113, 7
  %v1115 = vlaneseq
  %v1116 = vand.u32 %v1115, 127
  %vm1117 = vcmp.gt.s32.totalorder %v1116, %v1114
  %v1118 = vsel %vm1117, -1e+09, 0.0
  %vm1119 = vcmask 64512
  %v1121 = vsel %vm1119, %v497, 0
  %v1124 = vsel %vm1119, %v801, 0
  %1126 = vmatprep.subr.bf16.mxu0 0
  %1127 = vmatpush1.bf16.xpose.msra.mxu0 %v1124
  %1128 = vmatprep.subr.bf16.mxu0 0
  %1129 = vmatpush1.bf16.xpose.msra.mxu0 0
  %1130 = vmatprep.subr.bf16.mxu0 0
  %1131 = vmatpush1.bf16.xpose.msra.mxu0 0
  %1132 = vmatprep.subr.bf16.mxu0 0
  %1133 = vmatpush1.bf16.xpose.msra.mxu0 0
  %1134 = vmatprep.subr.bf16.mxu0 0
  %1135 = vmatpush1.bf16.xpose.msra.mxu0 0
  %1136 = vmatprep.subr.bf16.mxu0 0
  %1137 = vmatpush1.bf16.xpose.msra.mxu0 0
  %1138 = vmatprep.subr.bf16.mxu0 0
  %1139 = vmatpush1.bf16.xpose.msra.mxu0 0
  %1140 = vmatprep.subr.bf16.mxu0 0
  %1141 = vmatpush1.bf16.xpose.msra.mxu0 0
  %1142 = vmatprep.subr.bf16.mxu0 0
  %1143 = vmatpush1.bf16.xpose.msra.mxu0 0
  %1144 = vmatprep.subr.bf16.mxu0 0
  %1145 = vmatpush1.bf16.xpose.msra.mxu0 0
  %1146 = vmatprep.subr.bf16.mxu0 0
  %1147 = vmatpush1.bf16.xpose.msra.mxu0 0
  %1148 = vmatprep.subr.bf16.mxu0 0
  %1149 = vmatpush1.bf16.xpose.msra.mxu0 0
  %1150 = vmatprep.subr.bf16.mxu0 0
  %1151 = vmatpush1.bf16.xpose.msra.mxu0 0
  %1152 = vmatprep.subr.bf16.mxu0 0
  %1153 = vmatpush1.bf16.xpose.msra.mxu0 0
  %1154 = vmatprep.subr.bf16.mxu0 0
  %1155 = vmatpush1.bf16.xpose.msra.mxu0 0
  %1156 = vmatprep.subr.bf16.mxu0 0
  %1157 = vmatpush1.bf16.xpose.msra.mxu0 0
  %1158 = vmatprep.mubr.bf16.mxu0 0
  %1159 = vmatmul.mubr.bf16.gmra.mrb[0].mxu0 %v1121
  %v1160 = vpop.f32.mrb[0].mxu0
  %v1161 = vadd.f32 0.0, %v1160
  %v1162 = vpop.f32.mrb[0].mxu0
  %v1163 = vpop.f32.mrb[0].mxu0
  %v1164 = vpop.f32.mrb[0].mxu0
  %1165 = vdwg.mxu0
  %v1167 = vsel %vm1119, %v498, 0
  %v1170 = vsel %vm1119, %v802, 0
  %1172 = vmatprep.subr.bf16.mxu0 0
  %1173 = vmatpush1.bf16.xpose.msra.mxu0 %v1170
  %1174 = vmatprep.subr.bf16.mxu0 0
  %1175 = vmatpush1.bf16.xpose.msra.mxu0 0
  %1176 = vmatprep.subr.bf16.mxu0 0
  %1177 = vmatpush1.bf16.xpose.msra.mxu0 0
  %1178 = vmatprep.subr.bf16.mxu0 0
  %1179 = vmatpush1.bf16.xpose.msra.mxu0 0
  %1180 = vmatprep.subr.bf16.mxu0 0
  %1181 = vmatpush1.bf16.xpose.msra.mxu0 0
  %1182 = vmatprep.subr.bf16.mxu0 0
  %1183 = vmatpush1.bf16.xpose.msra.mxu0 0
  %1184 = vmatprep.subr.bf16.mxu0 0
  %1185 = vmatpush1.bf16.xpose.msra.mxu0 0
  %1186 = vmatprep.subr.bf16.mxu0 0
  %1187 = vmatpush1.bf16.xpose.msra.mxu0 0
  %1188 = vmatprep.subr.bf16.mxu0 0
  %1189 = vmatpush1.bf16.xpose.msra.mxu0 0
  %1190 = vmatprep.subr.bf16.mxu0 0
  %1191 = vmatpush1.bf16.xpose.msra.mxu0 0
  %1192 = vmatprep.subr.bf16.mxu0 0
  %1193 = vmatpush1.bf16.xpose.msra.mxu0 0
  %1194 = vmatprep.subr.bf16.mxu0 0
  %1195 = vmatpush1.bf16.xpose.msra.mxu0 0
  %1196 = vmatprep.subr.bf16.mxu0 0
  %1197 = vmatpush1.bf16.xpose.msra.mxu0 0
  %1198 = vmatprep.subr.bf16.mxu0 0
  %1199 = vmatpush1.bf16.xpose.msra.mxu0 0
  %1200 = vmatprep.subr.bf16.mxu0 0
  %1201 = vmatpush1.bf16.xpose.msra.mxu0 0
  %1202 = vmatprep.subr.bf16.mxu0 0
  %1203 = vmatpush1.bf16.xpose.msra.mxu0 0
  %1204 = vmatprep.mubr.bf16.mxu0 0
  %1205 = vmatmul.mubr.bf16.gmra.mrb[0].mxu0 %v1167
  %v1206 = vpop.f32.mrb[0].mxu0
  %v1207 = vadd.f32 0.0, %v1206
  %v1208 = vpop.f32.mrb[0].mxu0
  %v1209 = vpop.f32.mrb[0].mxu0
  %v1210 = vpop.f32.mrb[0].mxu0
  %1211 = vdwg.mxu0
  %v1213 = vsel %vm1119, %v499, 0
  %v1216 = vsel %vm1119, %v803, 0
  %1218 = vmatprep.subr.bf16.mxu0 0
  %1219 = vmatpush1.bf16.xpose.msra.mxu0 %v1216
  %1220 = vmatprep.subr.bf16.mxu0 0
  %1221 = vmatpush1.bf16.xpose.msra.mxu0 0
  %1222 = vmatprep.subr.bf16.mxu0 0
  %1223 = vmatpush1.bf16.xpose.msra.mxu0 0
  %1224 = vmatprep.subr.bf16.mxu0 0
  %1225 = vmatpush1.bf16.xpose.msra.mxu0 0
  %1226 = vmatprep.subr.bf16.mxu0 0
  %1227 = vmatpush1.bf16.xpose.msra.mxu0 0
  %1228 = vmatprep.subr.bf16.mxu0 0
  %1229 = vmatpush1.bf16.xpose.msra.mxu0 0
  %1230 = vmatprep.subr.bf16.mxu0 0
  %1231 = vmatpush1.bf16.xpose.msra.mxu0 0
  %1232 = vmatprep.subr.bf16.mxu0 0
  %1233 = vmatpush1.bf16.xpose.msra.mxu0 0
  %1234 = vmatprep.subr.bf16.mxu0 0
  %1235 = vmatpush1.bf16.xpose.msra.mxu0 0
  %1236 = vmatprep.subr.bf16.mxu0 0
  %1237 = vmatpush1.bf16.xpose.msra.mxu0 0
  %1238 = vmatprep.subr.bf16.mxu0 0
  %1239 = vmatpush1.bf16.xpose.msra.mxu0 0
  %1240 = vmatprep.subr.bf16.mxu0 0
  %1241 = vmatpush1.bf16.xpose.msra.mxu0 0
  %1242 = vmatprep.subr.bf16.mxu0 0
  %1243 = vmatpush1.bf16.xpose.msra.mxu0 0
  %1244 = vmatprep.subr.bf16.mxu0 0
  %1245 = vmatpush1.bf16.xpose.msra.mxu0 0
  %1246 = vmatprep.subr.bf16.mxu0 0
  %1247 = vmatpush1.bf16.xpose.msra.mxu0 0
  %1248 = vmatprep.subr.bf16.mxu0 0
  %1249 = vmatpush1.bf16.xpose.msra.mxu0 0
  %1250 = vmatprep.mubr.bf16.mxu0 0
  %1251 = vmatmul.mubr.bf16.gmra.mrb[0].mxu0 %v1213
  %v1252 = vpop.f32.mrb[0].mxu0
  %v1253 = vadd.f32 0.0, %v1252
  %v1254 = vpop.f32.mrb[0].mxu0
  %v1255 = vpop.f32.mrb[0].mxu0
  %v1256 = vpop.f32.mrb[0].mxu0
  %1257 = vdwg.mxu0
  %v1259 = vsel %vm1119, %v500, 0
  %v1262 = vsel %vm1119, %v804, 0
  %1264 = vmatprep.subr.bf16.mxu0 0
  %1265 = vmatpush1.bf16.xpose.msra.mxu0 %v1262
  %1266 = vmatprep.subr.bf16.mxu0 0
  %1267 = vmatpush1.bf16.xpose.msra.mxu0 0
  %1268 = vmatprep.subr.bf16.mxu0 0
  %1269 = vmatpush1.bf16.xpose.msra.mxu0 0
  %1270 = vmatprep.subr.bf16.mxu0 0
  %1271 = vmatpush1.bf16.xpose.msra.mxu0 0
  %1272 = vmatprep.subr.bf16.mxu0 0
  %1273 = vmatpush1.bf16.xpose.msra.mxu0 0
  %1274 = vmatprep.subr.bf16.mxu0 0
  %1275 = vmatpush1.bf16.xpose.msra.mxu0 0
  %1276 = vmatprep.subr.bf16.mxu0 0
  %1277 = vmatpush1.bf16.xpose.msra.mxu0 0
  %1278 = vmatprep.subr.bf16.mxu0 0
  %1279 = vmatpush1.bf16.xpose.msra.mxu0 0
  %1280 = vmatprep.subr.bf16.mxu0 0
  %1281 = vmatpush1.bf16.xpose.msra.mxu0 0
  %1282 = vmatprep.subr.bf16.mxu0 0
  %1283 = vmatpush1.bf16.xpose.msra.mxu0 0
  %1284 = vmatprep.subr.bf16.mxu0 0
  %1285 = vmatpush1.bf16.xpose.msra.mxu0 0
  %1286 = vmatprep.subr.bf16.mxu0 0
  %1287 = vmatpush1.bf16.xpose.msra.mxu0 0
  %1288 = vmatprep.subr.bf16.mxu0 0
  %1289 = vmatpush1.bf16.xpose.msra.mxu0 0
  %1290 = vmatprep.subr.bf16.mxu0 0
  %1291 = vmatpush1.bf16.xpose.msra.mxu0 0
  %1292 = vmatprep.subr.bf16.mxu0 0
  %1293 = vmatpush1.bf16.xpose.msra.mxu0 0
  %1294 = vmatprep.subr.bf16.mxu0 0
  %1295 = vmatpush1.bf16.xpose.msra.mxu0 0
  %1296 = vmatprep.mubr.bf16.mxu0 0
  %1297 = vmatmul.mubr.bf16.gmra.mrb[0].mxu0 %v1259
  %v1298 = vpop.f32.mrb[0].mxu0
  %v1299 = vadd.f32 0.0, %v1298
  %v1300 = vpop.f32.mrb[0].mxu0
  %v1301 = vpop.f32.mrb[0].mxu0
  %v1302 = vpop.f32.mrb[0].mxu0
  %1303 = vdwg.mxu0
  %v1305 = vsel %vm1119, %v501, 0
  %v1308 = vsel %vm1119, %v805, 0
  %1310 = vmatprep.subr.bf16.mxu0 0
  %1311 = vmatpush1.bf16.xpose.msra.mxu0 %v1308
  %1312 = vmatprep.subr.bf16.mxu0 0
  %1313 = vmatpush1.bf16.xpose.msra.mxu0 0
  %1314 = vmatprep.subr.bf16.mxu0 0
  %1315 = vmatpush1.bf16.xpose.msra.mxu0 0
  %1316 = vmatprep.subr.bf16.mxu0 0
  %1317 = vmatpush1.bf16.xpose.msra.mxu0 0
  %1318 = vmatprep.subr.bf16.mxu0 0
  %1319 = vmatpush1.bf16.xpose.msra.mxu0 0
  %1320 = vmatprep.subr.bf16.mxu0 0
  %1321 = vmatpush1.bf16.xpose.msra.mxu0 0
  %1322 = vmatprep.subr.bf16.mxu0 0
  %1323 = vmatpush1.bf16.xpose.msra.mxu0 0
  %1324 = vmatprep.subr.bf16.mxu0 0
  %1325 = vmatpush1.bf16.xpose.msra.mxu0 0
  %1326 = vmatprep.subr.bf16.mxu0 0
  %1327 = vmatpush1.bf16.xpose.msra.mxu0 0
  %1328 = vmatprep.subr.bf16.mxu0 0
  %1329 = vmatpush1.bf16.xpose.msra.mxu0 0
  %1330 = vmatprep.subr.bf16.mxu0 0
  %1331 = vmatpush1.bf16.xpose.msra.mxu0 0
  %1332 = vmatprep.subr.bf16.mxu0 0
  %1333 = vmatpush1.bf16.xpose.msra.mxu0 0
  %1334 = vmatprep.subr.bf16.mxu0 0
  %1335 = vmatpush1.bf16.xpose.msra.mxu0 0
  %1336 = vmatprep.subr.bf16.mxu0 0
  %1337 = vmatpush1.bf16.xpose.msra.mxu0 0
  %1338 = vmatprep.subr.bf16.mxu0 0
  %1339 = vmatpush1.bf16.xpose.msra.mxu0 0
  %1340 = vmatprep.subr.bf16.mxu0 0
  %1341 = vmatpush1.bf16.xpose.msra.mxu0 0
  %1342 = vmatprep.mubr.bf16.mxu0 0
  %1343 = vmatmul.mubr.bf16.gmra.mrb[0].mxu0 %v1305
  %v1344 = vpop.f32.mrb[0].mxu0
  %v1345 = vadd.f32 0.0, %v1344
  %v1346 = vpop.f32.mrb[0].mxu0
  %v1347 = vpop.f32.mrb[0].mxu0
  %v1348 = vpop.f32.mrb[0].mxu0
  %1349 = vdwg.mxu0
  %v1351 = vsel %vm1119, %v502, 0
  %v1354 = vsel %vm1119, %v806, 0
  %1356 = vmatprep.subr.bf16.mxu0 0
  %1357 = vmatpush1.bf16.xpose.msra.mxu0 %v1354
  %1358 = vmatprep.subr.bf16.mxu0 0
  %1359 = vmatpush1.bf16.xpose.msra.mxu0 0
  %1360 = vmatprep.subr.bf16.mxu0 0
  %1361 = vmatpush1.bf16.xpose.msra.mxu0 0
  %1362 = vmatprep.subr.bf16.mxu0 0
  %1363 = vmatpush1.bf16.xpose.msra.mxu0 0
  %1364 = vmatprep.subr.bf16.mxu0 0
  %1365 = vmatpush1.bf16.xpose.msra.mxu0 0
  %1366 = vmatprep.subr.bf16.mxu0 0
  %1367 = vmatpush1.bf16.xpose.msra.mxu0 0
  %1368 = vmatprep.subr.bf16.mxu0 0
  %1369 = vmatpush1.bf16.xpose.msra.mxu0 0
  %1370 = vmatprep.subr.bf16.mxu0 0
  %1371 = vmatpush1.bf16.xpose.msra.mxu0 0
  %1372 = vmatprep.subr.bf16.mxu0 0
  %1373 = vmatpush1.bf16.xpose.msra.mxu0 0
  %1374 = vmatprep.subr.bf16.mxu0 0
  %1375 = vmatpush1.bf16.xpose.msra.mxu0 0
  %1376 = vmatprep.subr.bf16.mxu0 0
  %1377 = vmatpush1.bf16.xpose.msra.mxu0 0
  %1378 = vmatprep.subr.bf16.mxu0 0
  %1379 = vmatpush1.bf16.xpose.msra.mxu0 0
  %1380 = vmatprep.subr.bf16.mxu0 0
  %1381 = vmatpush1.bf16.xpose.msra.mxu0 0
  %1382 = vmatprep.subr.bf16.mxu0 0
  %1383 = vmatpush1.bf16.xpose.msra.mxu0 0
  %1384 = vmatprep.subr.bf16.mxu0 0
  %1385 = vmatpush1.bf16.xpose.msra.mxu0 0
  %1386 = vmatprep.subr.bf16.mxu0 0
  %1387 = vmatpush1.bf16.xpose.msra.mxu0 0
  %1388 = vmatprep.mubr.bf16.mxu0 0
  %1389 = vmatmul.mubr.bf16.gmra.mrb[0].mxu0 %v1351
  %v1390 = vpop.f32.mrb[0].mxu0
  %v1391 = vadd.f32 0.0, %v1390
  %v1392 = vpop.f32.mrb[0].mxu0
  %v1393 = vpop.f32.mrb[0].mxu0
  %v1394 = vpop.f32.mrb[0].mxu0
  %1395 = vdwg.mxu0
  %v1397 = vsel %vm1119, %v503, 0
  %v1400 = vsel %vm1119, %v807, 0
  %1402 = vmatprep.subr.bf16.mxu0 0
  %1403 = vmatpush1.bf16.xpose.msra.mxu0 %v1400
  %1404 = vmatprep.subr.bf16.mxu0 0
  %1405 = vmatpush1.bf16.xpose.msra.mxu0 0
  %1406 = vmatprep.subr.bf16.mxu0 0
  %1407 = vmatpush1.bf16.xpose.msra.mxu0 0
  %1408 = vmatprep.subr.bf16.mxu0 0
  %1409 = vmatpush1.bf16.xpose.msra.mxu0 0
  %1410 = vmatprep.subr.bf16.mxu0 0
  %1411 = vmatpush1.bf16.xpose.msra.mxu0 0
  %1412 = vmatprep.subr.bf16.mxu0 0
  %1413 = vmatpush1.bf16.xpose.msra.mxu0 0
  %1414 = vmatprep.subr.bf16.mxu0 0
  %1415 = vmatpush1.bf16.xpose.msra.mxu0 0
  %1416 = vmatprep.subr.bf16.mxu0 0
  %1417 = vmatpush1.bf16.xpose.msra.mxu0 0
  %1418 = vmatprep.subr.bf16.mxu0 0
  %1419 = vmatpush1.bf16.xpose.msra.mxu0 0
  %1420 = vmatprep.subr.bf16.mxu0 0
  %1421 = vmatpush1.bf16.xpose.msra.mxu0 0
  %1422 = vmatprep.subr.bf16.mxu0 0
  %1423 = vmatpush1.bf16.xpose.msra.mxu0 0
  %1424 = vmatprep.subr.bf16.mxu0 0
  %1425 = vmatpush1.bf16.xpose.msra.mxu0 0
  %1426 = vmatprep.subr.bf16.mxu0 0
  %1427 = vmatpush1.bf16.xpose.msra.mxu0 0
  %1428 = vmatprep.subr.bf16.mxu0 0
  %1429 = vmatpush1.bf16.xpose.msra.mxu0 0
  %1430 = vmatprep.subr.bf16.mxu0 0
  %1431 = vmatpush1.bf16.xpose.msra.mxu0 0
  %1432 = vmatprep.subr.bf16.mxu0 0
  %1433 = vmatpush1.bf16.xpose.msra.mxu0 0
  %1434 = vmatprep.mubr.bf16.mxu0 0
  %1435 = vmatmul.mubr.bf16.gmra.mrb[0].mxu0 %v1397
  %v1436 = vpop.f32.mrb[0].mxu0
  %v1437 = vadd.f32 0.0, %v1436
  %v1438 = vpop.f32.mrb[0].mxu0
  %v1439 = vpop.f32.mrb[0].mxu0
  %v1440 = vpop.f32.mrb[0].mxu0
  %1441 = vdwg.mxu0
  %v1443 = vsel %vm1119, %v504, 0
  %v1446 = vsel %vm1119, %v808, 0
  %1448 = vmatprep.subr.bf16.mxu0 0
  %1449 = vmatpush1.bf16.xpose.msra.mxu0 %v1446
  %1450 = vmatprep.subr.bf16.mxu0 0
  %1451 = vmatpush1.bf16.xpose.msra.mxu0 0
  %1452 = vmatprep.subr.bf16.mxu0 0
  %1453 = vmatpush1.bf16.xpose.msra.mxu0 0
  %1454 = vmatprep.subr.bf16.mxu0 0
  %1455 = vmatpush1.bf16.xpose.msra.mxu0 0
  %1456 = vmatprep.subr.bf16.mxu0 0
  %1457 = vmatpush1.bf16.xpose.msra.mxu0 0
  %1458 = vmatprep.subr.bf16.mxu0 0
  %1459 = vmatpush1.bf16.xpose.msra.mxu0 0
  %1460 = vmatprep.subr.bf16.mxu0 0
  %1461 = vmatpush1.bf16.xpose.msra.mxu0 0
  %1462 = vmatprep.subr.bf16.mxu0 0
  %1463 = vmatpush1.bf16.xpose.msra.mxu0 0
  %1464 = vmatprep.subr.bf16.mxu0 0
  %1465 = vmatpush1.bf16.xpose.msra.mxu0 0
  %1466 = vmatprep.subr.bf16.mxu0 0
  %1467 = vmatpush1.bf16.xpose.msra.mxu0 0
  %1468 = vmatprep.subr.bf16.mxu0 0
  %1469 = vmatpush1.bf16.xpose.msra.mxu0 0
  %1470 = vmatprep.subr.bf16.mxu0 0
  %1471 = vmatpush1.bf16.xpose.msra.mxu0 0
  %1472 = vmatprep.subr.bf16.mxu0 0
  %1473 = vmatpush1.bf16.xpose.msra.mxu0 0
  %1474 = vmatprep.subr.bf16.mxu0 0
  %1475 = vmatpush1.bf16.xpose.msra.mxu0 0
  %1476 = vmatprep.subr.bf16.mxu0 0
  %1477 = vmatpush1.bf16.xpose.msra.mxu0 0
  %1478 = vmatprep.subr.bf16.mxu0 0
  %1479 = vmatpush1.bf16.xpose.msra.mxu0 0
  %1480 = vmatprep.mubr.bf16.mxu0 0
  %1481 = vmatmul.mubr.bf16.gmra.mrb[0].mxu0 %v1443
  %v1482 = vpop.f32.mrb[0].mxu0
  %v1483 = vadd.f32 0.0, %v1482
  %v1484 = vpop.f32.mrb[0].mxu0
  %v1485 = vpop.f32.mrb[0].mxu0
  %v1486 = vpop.f32.mrb[0].mxu0
  %1487 = vdwg.mxu0
  %v1488 = vmul.f32 %v1161, 0.35355338
  %v1489 = vmul.f32 %v1207, 0.35355338
  %v1490 = vmul.f32 %v1253, 0.35355338
  %v1491 = vmul.f32 %v1299, 0.35355338
  %v1492 = vmul.f32 %v1345, 0.35355338
  %v1493 = vmul.f32 %v1391, 0.35355338
  %v1494 = vmul.f32 %v1437, 0.35355338
  %v1495 = vmul.f32 %v1483, 0.35355338
  %v1496 = vadd.f32 %v1488, %v1118
  %v1497 = vadd.f32 %v1489, %v1118
  %v1498 = vadd.f32 %v1490, %v1118
  %v1499 = vadd.f32 %v1491, %v1118
  %v1500 = vadd.f32 %v1492, %v1118
  %v1501 = vadd.f32 %v1493, %v1118
  %v1502 = vadd.f32 %v1494, %v1118
  %v1503 = vadd.f32 %v1495, %v1118
  %v1504 = vsel %vm1119, %v1496, -inf
  %1505 = vmax.xlane.f32.xlu0 %v1504
  %v1506 = vpop.xlane.xlu0 %1505
  %v1507 = vsel %vm1119, %v1497, -inf
  %1508 = vmax.xlane.f32.xlu0 %v1507
  %v1509 = vpop.xlane.xlu0 %1508
  %v1510 = vsel %vm1119, %v1498, -inf
  %1511 = vmax.xlane.f32.xlu0 %v1510
  %v1512 = vpop.xlane.xlu0 %1511
  %v1513 = vsel %vm1119, %v1499, -inf
  %1514 = vmax.xlane.f32.xlu0 %v1513
  %v1515 = vpop.xlane.xlu0 %1514
  %v1516 = vsel %vm1119, %v1500, -inf
  %1517 = vmax.xlane.f32.xlu0 %v1516
  %v1518 = vpop.xlane.xlu0 %1517
  %v1519 = vsel %vm1119, %v1501, -inf
  %1520 = vmax.xlane.f32.xlu0 %v1519
  %v1521 = vpop.xlane.xlu0 %1520
  %v1522 = vsel %vm1119, %v1502, -inf
  %1523 = vmax.xlane.f32.xlu0 %v1522
  %v1524 = vpop.xlane.xlu0 %1523
  %v1525 = vsel %vm1119, %v1503, -inf
  %1526 = vmax.xlane.f32.xlu0 %v1525
  %v1527 = vpop.xlane.xlu0 %1526
  %v1528 = vsub.f32 %v1496, %v1506
  %v1529 = vsub.f32 %v1497, %v1509
  %v1530 = vsub.f32 %v1498, %v1512
  %v1531 = vsub.f32 %v1499, %v1515
  %v1532 = vsub.f32 %v1500, %v1518
  %v1533 = vsub.f32 %v1501, %v1521
  %v1534 = vsub.f32 %v1502, %v1524
  %v1535 = vsub.f32 %v1503, %v1527
  %v1536 = vmul.f32 %v1528, 1.442695
  %v1537 = vpow.pop %v1536
  %v1538 = vmul.f32 %v1529, 1.442695
  %v1539 = vpow.pop %v1538
  %v1540 = vmul.f32 %v1530, 1.442695
  %v1541 = vpow.pop %v1540
  %v1542 = vmul.f32 %v1531, 1.442695
  %v1543 = vpow.pop %v1542
  %v1544 = vmul.f32 %v1532, 1.442695
  %v1545 = vpow.pop %v1544
  %v1546 = vmul.f32 %v1533, 1.442695
  %v1547 = vpow.pop %v1546
  %v1548 = vmul.f32 %v1534, 1.442695
  %v1549 = vpow.pop %v1548
  %v1550 = vmul.f32 %v1535, 1.442695
  %v1551 = vpow.pop %v1550
  %v1552 = vsel %vm1119, %v1537, 0.0
  %1553 = vadd.xlane.f32.xlu0 %v1552
  %v1554 = vpop.xlane.xlu0 %1553
  %v1555 = vsel %vm1119, %v1539, 0.0
  %1556 = vadd.xlane.f32.xlu0 %v1555
  %v1557 = vpop.xlane.xlu0 %1556
  %v1558 = vsel %vm1119, %v1541, 0.0
  %1559 = vadd.xlane.f32.xlu0 %v1558
  %v1560 = vpop.xlane.xlu0 %1559
  %v1561 = vsel %vm1119, %v1543, 0.0
  %1562 = vadd.xlane.f32.xlu0 %v1561
  %v1563 = vpop.xlane.xlu0 %1562
  %v1564 = vsel %vm1119, %v1545, 0.0
  %1565 = vadd.xlane.f32.xlu0 %v1564
  %v1566 = vpop.xlane.xlu0 %1565
  %v1567 = vsel %vm1119, %v1547, 0.0
  %1568 = vadd.xlane.f32.xlu0 %v1567
  %v1569 = vpop.xlane.xlu0 %1568
  %v1570 = vsel %vm1119, %v1549, 0.0
  %1571 = vadd.xlane.f32.xlu0 %v1570
  %v1572 = vpop.xlane.xlu0 %1571
  %v1573 = vsel %vm1119, %v1551, 0.0
  %1574 = vadd.xlane.f32.xlu0 %v1573
  %v1575 = vpop.xlane.xlu0 %1574
  %v1576 = vrcp.pop %v1554
  %v1577 = vrcp.pop %v1557
  %v1578 = vrcp.pop %v1560
  %v1579 = vrcp.pop %v1563
  %v1580 = vrcp.pop %v1566
  %v1581 = vrcp.pop %v1569
  %v1582 = vrcp.pop %v1572
  %v1583 = vrcp.pop %v1575
  %v1584 = vmul.f32 %v1537, %v1576
  %v1585 = vmul.f32 %v1539, %v1577
  %v1586 = vmul.f32 %v1541, %v1578
  %v1587 = vmul.f32 %v1543, %v1579
  %v1588 = vmul.f32 %v1545, %v1580
  %v1589 = vmul.f32 %v1547, %v1581
  %v1590 = vmul.f32 %v1549, %v1582
  %v1591 = vmul.f32 %v1551, %v1583
  %v1592 = vpack.c.bf16 %v1584, %v1584
  %v1593 = vpack.c.bf16 %v1585, %v1585
  %v1594 = vpack.c.bf16 %v1586, %v1586
  %v1595 = vpack.c.bf16 %v1587, %v1587
  %v1596 = vpack.c.bf16 %v1588, %v1588
  %v1597 = vpack.c.bf16 %v1589, %v1589
  %v1598 = vpack.c.bf16 %v1590, %v1590
  %v1599 = vpack.c.bf16 %v1591, %v1591
  %v1601 = vsel %vm1119, %v1592, 0
  %vm1603 = vcmask 1043456
  %v1605 = vsel %vm1603, %v1105, 0
  %1607 = vmatprep.subr.bf16.mxu0 0
  %1608 = vmatpush1.bf16.msra.mxu0 %v1605
  %1609 = vmatprep.subr.bf16.mxu0 0
  %1610 = vmatpush1.bf16.msra.mxu0 0
  %1611 = vmatprep.subr.bf16.mxu0 0
  %1612 = vmatpush1.bf16.msra.mxu0 0
  %1613 = vmatprep.subr.bf16.mxu0 0
  %1614 = vmatpush1.bf16.msra.mxu0 0
  %1615 = vmatprep.subr.bf16.mxu0 0
  %1616 = vmatpush1.bf16.msra.mxu0 0
  %1617 = vmatprep.subr.bf16.mxu0 0
  %1618 = vmatpush1.bf16.msra.mxu0 0
  %1619 = vmatprep.subr.bf16.mxu0 0
  %1620 = vmatpush1.bf16.msra.mxu0 0
  %1621 = vmatprep.subr.bf16.mxu0 0
  %1622 = vmatpush1.bf16.msra.mxu0 0
  %1623 = vmatprep.subr.bf16.mxu0 0
  %1624 = vmatpush1.bf16.msra.mxu0 0
  %1625 = vmatprep.subr.bf16.mxu0 0
  %1626 = vmatpush1.bf16.msra.mxu0 0
  %1627 = vmatprep.subr.bf16.mxu0 0
  %1628 = vmatpush1.bf16.msra.mxu0 0
  %1629 = vmatprep.subr.bf16.mxu0 0
  %1630 = vmatpush1.bf16.msra.mxu0 0
  %1631 = vmatprep.subr.bf16.mxu0 0
  %1632 = vmatpush1.bf16.msra.mxu0 0
  %1633 = vmatprep.subr.bf16.mxu0 0
  %1634 = vmatpush1.bf16.msra.mxu0 0
  %1635 = vmatprep.subr.bf16.mxu0 0
  %1636 = vmatpush1.bf16.msra.mxu0 0
  %1637 = vmatprep.subr.bf16.mxu0 0
  %1638 = vmatpush1.bf16.msra.mxu0 0
  %1639 = vmatprep.mubr.bf16.mxu0 0
  %1640 = vmatmul.mubr.bf16.gmra.mrb[0].mxu0 %v1601
  %v1641 = vpop.f32.mrb[0].mxu0
  %v1642 = vadd.f32 0.0, %v1641
  %v1643 = vpop.f32.mrb[0].mxu0
  %v1644 = vpop.f32.mrb[0].mxu0
  %v1645 = vpop.f32.mrb[0].mxu0
  %1646 = vdwg.mxu0
  %v1648 = vsel %vm1119, %v1593, 0
  %v1651 = vsel %vm1603, %v1106, 0
  %1653 = vmatprep.subr.bf16.mxu0 0
  %1654 = vmatpush1.bf16.msra.mxu0 %v1651
  %1655 = vmatprep.subr.bf16.mxu0 0
  %1656 = vmatpush1.bf16.msra.mxu0 0
  %1657 = vmatprep.subr.bf16.mxu0 0
  %1658 = vmatpush1.bf16.msra.mxu0 0
  %1659 = vmatprep.subr.bf16.mxu0 0
  %1660 = vmatpush1.bf16.msra.mxu0 0
  %1661 = vmatprep.subr.bf16.mxu0 0
  %1662 = vmatpush1.bf16.msra.mxu0 0
  %1663 = vmatprep.subr.bf16.mxu0 0
  %1664 = vmatpush1.bf16.msra.mxu0 0
  %1665 = vmatprep.subr.bf16.mxu0 0
  %1666 = vmatpush1.bf16.msra.mxu0 0
  %1667 = vmatprep.subr.bf16.mxu0 0
  %1668 = vmatpush1.bf16.msra.mxu0 0
  %1669 = vmatprep.subr.bf16.mxu0 0
  %1670 = vmatpush1.bf16.msra.mxu0 0
  %1671 = vmatprep.subr.bf16.mxu0 0
  %1672 = vmatpush1.bf16.msra.mxu0 0
  %1673 = vmatprep.subr.bf16.mxu0 0
  %1674 = vmatpush1.bf16.msra.mxu0 0
  %1675 = vmatprep.subr.bf16.mxu0 0
  %1676 = vmatpush1.bf16.msra.mxu0 0
  %1677 = vmatprep.subr.bf16.mxu0 0
  %1678 = vmatpush1.bf16.msra.mxu0 0
  %1679 = vmatprep.subr.bf16.mxu0 0
  %1680 = vmatpush1.bf16.msra.mxu0 0
  %1681 = vmatprep.subr.bf16.mxu0 0
  %1682 = vmatpush1.bf16.msra.mxu0 0
  %1683 = vmatprep.subr.bf16.mxu0 0
  %1684 = vmatpush1.bf16.msra.mxu0 0
  %1685 = vmatprep.mubr.bf16.mxu0 0
  %1686 = vmatmul.mubr.bf16.gmra.mrb[0].mxu0 %v1648
  %v1687 = vpop.f32.mrb[0].mxu0
  %v1688 = vadd.f32 0.0, %v1687
  %v1689 = vpop.f32.mrb[0].mxu0
  %v1690 = vpop.f32.mrb[0].mxu0
  %v1691 = vpop.f32.mrb[0].mxu0
  %1692 = vdwg.mxu0
  %v1694 = vsel %vm1119, %v1594, 0
  %v1697 = vsel %vm1603, %v1107, 0
  %1699 = vmatprep.subr.bf16.mxu0 0
  %1700 = vmatpush1.bf16.msra.mxu0 %v1697
  %1701 = vmatprep.subr.bf16.mxu0 0
  %1702 = vmatpush1.bf16.msra.mxu0 0
  %1703 = vmatprep.subr.bf16.mxu0 0
  %1704 = vmatpush1.bf16.msra.mxu0 0
  %1705 = vmatprep.subr.bf16.mxu0 0
  %1706 = vmatpush1.bf16.msra.mxu0 0
  %1707 = vmatprep.subr.bf16.mxu0 0
  %1708 = vmatpush1.bf16.msra.mxu0 0
  %1709 = vmatprep.subr.bf16.mxu0 0
  %1710 = vmatpush1.bf16.msra.mxu0 0
  %1711 = vmatprep.subr.bf16.mxu0 0
  %1712 = vmatpush1.bf16.msra.mxu0 0
  %1713 = vmatprep.subr.bf16.mxu0 0
  %1714 = vmatpush1.bf16.msra.mxu0 0
  %1715 = vmatprep.subr.bf16.mxu0 0
  %1716 = vmatpush1.bf16.msra.mxu0 0
  %1717 = vmatprep.subr.bf16.mxu0 0
  %1718 = vmatpush1.bf16.msra.mxu0 0
  %1719 = vmatprep.subr.bf16.mxu0 0
  %1720 = vmatpush1.bf16.msra.mxu0 0
  %1721 = vmatprep.subr.bf16.mxu0 0
  %1722 = vmatpush1.bf16.msra.mxu0 0
  %1723 = vmatprep.subr.bf16.mxu0 0
  %1724 = vmatpush1.bf16.msra.mxu0 0
  %1725 = vmatprep.subr.bf16.mxu0 0
  %1726 = vmatpush1.bf16.msra.mxu0 0
  %1727 = vmatprep.subr.bf16.mxu0 0
  %1728 = vmatpush1.bf16.msra.mxu0 0
  %1729 = vmatprep.subr.bf16.mxu0 0
  %1730 = vmatpush1.bf16.msra.mxu0 0
  %1731 = vmatprep.mubr.bf16.mxu0 0
  %1732 = vmatmul.mubr.bf16.gmra.mrb[0].mxu0 %v1694
  %v1733 = vpop.f32.mrb[0].mxu0
  %v1734 = vadd.f32 0.0, %v1733
  %v1735 = vpop.f32.mrb[0].mxu0
  %v1736 = vpop.f32.mrb[0].mxu0
  %v1737 = vpop.f32.mrb[0].mxu0
  %1738 = vdwg.mxu0
  %v1740 = vsel %vm1119, %v1595, 0
  %v1743 = vsel %vm1603, %v1108, 0
  %1745 = vmatprep.subr.bf16.mxu0 0
  %1746 = vmatpush1.bf16.msra.mxu0 %v1743
  %1747 = vmatprep.subr.bf16.mxu0 0
  %1748 = vmatpush1.bf16.msra.mxu0 0
  %1749 = vmatprep.subr.bf16.mxu0 0
  %1750 = vmatpush1.bf16.msra.mxu0 0
  %1751 = vmatprep.subr.bf16.mxu0 0
  %1752 = vmatpush1.bf16.msra.mxu0 0
  %1753 = vmatprep.subr.bf16.mxu0 0
  %1754 = vmatpush1.bf16.msra.mxu0 0
  %1755 = vmatprep.subr.bf16.mxu0 0
  %1756 = vmatpush1.bf16.msra.mxu0 0
  %1757 = vmatprep.subr.bf16.mxu0 0
  %1758 = vmatpush1.bf16.msra.mxu0 0
  %1759 = vmatprep.subr.bf16.mxu0 0
  %1760 = vmatpush1.bf16.msra.mxu0 0
  %1761 = vmatprep.subr.bf16.mxu0 0
  %1762 = vmatpush1.bf16.msra.mxu0 0
  %1763 = vmatprep.subr.bf16.mxu0 0
  %1764 = vmatpush1.bf16.msra.mxu0 0
  %1765 = vmatprep.subr.bf16.mxu0 0
  %1766 = vmatpush1.bf16.msra.mxu0 0
  %1767 = vmatprep.subr.bf16.mxu0 0
  %1768 = vmatpush1.bf16.msra.mxu0 0
  %1769 = vmatprep.subr.bf16.mxu0 0
  %1770 = vmatpush1.bf16.msra.mxu0 0
  %1771 = vmatprep.subr.bf16.mxu0 0
  %1772 = vmatpush1.bf16.msra.mxu0 0
  %1773 = vmatprep.subr.bf16.mxu0 0
  %1774 = vmatpush1.bf16.msra.mxu0 0
  %1775 = vmatprep.subr.bf16.mxu0 0
  %1776 = vmatpush1.bf16.msra.mxu0 0
  %1777 = vmatprep.mubr.bf16.mxu0 0
  %1778 = vmatmul.mubr.bf16.gmra.mrb[0].mxu0 %v1740
  %v1779 = vpop.f32.mrb[0].mxu0
  %v1780 = vadd.f32 0.0, %v1779
  %v1781 = vpop.f32.mrb[0].mxu0
  %v1782 = vpop.f32.mrb[0].mxu0
  %v1783 = vpop.f32.mrb[0].mxu0
  %1784 = vdwg.mxu0
  %v1786 = vsel %vm1119, %v1596, 0
  %v1789 = vsel %vm1603, %v1109, 0
  %1791 = vmatprep.subr.bf16.mxu0 0
  %1792 = vmatpush1.bf16.msra.mxu0 %v1789
  %1793 = vmatprep.subr.bf16.mxu0 0
  %1794 = vmatpush1.bf16.msra.mxu0 0
  %1795 = vmatprep.subr.bf16.mxu0 0
  %1796 = vmatpush1.bf16.msra.mxu0 0
  %1797 = vmatprep.subr.bf16.mxu0 0
  %1798 = vmatpush1.bf16.msra.mxu0 0
  %1799 = vmatprep.subr.bf16.mxu0 0
  %1800 = vmatpush1.bf16.msra.mxu0 0
  %1801 = vmatprep.subr.bf16.mxu0 0
  %1802 = vmatpush1.bf16.msra.mxu0 0
  %1803 = vmatprep.subr.bf16.mxu0 0
  %1804 = vmatpush1.bf16.msra.mxu0 0
  %1805 = vmatprep.subr.bf16.mxu0 0
  %1806 = vmatpush1.bf16.msra.mxu0 0
  %1807 = vmatprep.subr.bf16.mxu0 0
  %1808 = vmatpush1.bf16.msra.mxu0 0
  %1809 = vmatprep.subr.bf16.mxu0 0
  %1810 = vmatpush1.bf16.msra.mxu0 0
  %1811 = vmatprep.subr.bf16.mxu0 0
  %1812 = vmatpush1.bf16.msra.mxu0 0
  %1813 = vmatprep.subr.bf16.mxu0 0
  %1814 = vmatpush1.bf16.msra.mxu0 0
  %1815 = vmatprep.subr.bf16.mxu0 0
  %1816 = vmatpush1.bf16.msra.mxu0 0
  %1817 = vmatprep.subr.bf16.mxu0 0
  %1818 = vmatpush1.bf16.msra.mxu0 0
  %1819 = vmatprep.subr.bf16.mxu0 0
  %1820 = vmatpush1.bf16.msra.mxu0 0
  %1821 = vmatprep.subr.bf16.mxu0 0
  %1822 = vmatpush1.bf16.msra.mxu0 0
  %1823 = vmatprep.mubr.bf16.mxu0 0
  %1824 = vmatmul.mubr.bf16.gmra.mrb[0].mxu0 %v1786
  %v1825 = vpop.f32.mrb[0].mxu0
  %v1826 = vadd.f32 0.0, %v1825
  %v1827 = vpop.f32.mrb[0].mxu0
  %v1828 = vpop.f32.mrb[0].mxu0
  %v1829 = vpop.f32.mrb[0].mxu0
  %1830 = vdwg.mxu0
  %v1832 = vsel %vm1119, %v1597, 0
  %v1835 = vsel %vm1603, %v1110, 0
  %1837 = vmatprep.subr.bf16.mxu0 0
  %1838 = vmatpush1.bf16.msra.mxu0 %v1835
  %1839 = vmatprep.subr.bf16.mxu0 0
  %1840 = vmatpush1.bf16.msra.mxu0 0
  %1841 = vmatprep.subr.bf16.mxu0 0
  %1842 = vmatpush1.bf16.msra.mxu0 0
  %1843 = vmatprep.subr.bf16.mxu0 0
  %1844 = vmatpush1.bf16.msra.mxu0 0
  %1845 = vmatprep.subr.bf16.mxu0 0
  %1846 = vmatpush1.bf16.msra.mxu0 0
  %1847 = vmatprep.subr.bf16.mxu0 0
  %1848 = vmatpush1.bf16.msra.mxu0 0
  %1849 = vmatprep.subr.bf16.mxu0 0
  %1850 = vmatpush1.bf16.msra.mxu0 0
  %1851 = vmatprep.subr.bf16.mxu0 0
  %1852 = vmatpush1.bf16.msra.mxu0 0
  %1853 = vmatprep.subr.bf16.mxu0 0
  %1854 = vmatpush1.bf16.msra.mxu0 0
  %1855 = vmatprep.subr.bf16.mxu0 0
  %1856 = vmatpush1.bf16.msra.mxu0 0
  %1857 = vmatprep.subr.bf16.mxu0 0
  %1858 = vmatpush1.bf16.msra.mxu0 0
  %1859 = vmatprep.subr.bf16.mxu0 0
  %1860 = vmatpush1.bf16.msra.mxu0 0
  %1861 = vmatprep.subr.bf16.mxu0 0
  %1862 = vmatpush1.bf16.msra.mxu0 0
  %1863 = vmatprep.subr.bf16.mxu0 0
  %1864 = vmatpush1.bf16.msra.mxu0 0
  %1865 = vmatprep.subr.bf16.mxu0 0
  %1866 = vmatpush1.bf16.msra.mxu0 0
  %1867 = vmatprep.subr.bf16.mxu0 0
  %1868 = vmatpush1.bf16.msra.mxu0 0
  %1869 = vmatprep.mubr.bf16.mxu0 0
  %1870 = vmatmul.mubr.bf16.gmra.mrb[0].mxu0 %v1832
  %v1871 = vpop.f32.mrb[0].mxu0
  %v1872 = vadd.f32 0.0, %v1871
  %v1873 = vpop.f32.mrb[0].mxu0
  %v1874 = vpop.f32.mrb[0].mxu0
  %v1875 = vpop.f32.mrb[0].mxu0
  %1876 = vdwg.mxu0
  %v1878 = vsel %vm1119, %v1598, 0
  %v1881 = vsel %vm1603, %v1111, 0
  %1883 = vmatprep.subr.bf16.mxu0 0
  %1884 = vmatpush1.bf16.msra.mxu0 %v1881
  %1885 = vmatprep.subr.bf16.mxu0 0
  %1886 = vmatpush1.bf16.msra.mxu0 0
  %1887 = vmatprep.subr.bf16.mxu0 0
  %1888 = vmatpush1.bf16.msra.mxu0 0
  %1889 = vmatprep.subr.bf16.mxu0 0
  %1890 = vmatpush1.bf16.msra.mxu0 0
  %1891 = vmatprep.subr.bf16.mxu0 0
  %1892 = vmatpush1.bf16.msra.mxu0 0
  %1893 = vmatprep.subr.bf16.mxu0 0
  %1894 = vmatpush1.bf16.msra.mxu0 0
  %1895 = vmatprep.subr.bf16.mxu0 0
  %1896 = vmatpush1.bf16.msra.mxu0 0
  %1897 = vmatprep.subr.bf16.mxu0 0
  %1898 = vmatpush1.bf16.msra.mxu0 0
  %1899 = vmatprep.subr.bf16.mxu0 0
  %1900 = vmatpush1.bf16.msra.mxu0 0
  %1901 = vmatprep.subr.bf16.mxu0 0
  %1902 = vmatpush1.bf16.msra.mxu0 0
  %1903 = vmatprep.subr.bf16.mxu0 0
  %1904 = vmatpush1.bf16.msra.mxu0 0
  %1905 = vmatprep.subr.bf16.mxu0 0
  %1906 = vmatpush1.bf16.msra.mxu0 0
  %1907 = vmatprep.subr.bf16.mxu0 0
  %1908 = vmatpush1.bf16.msra.mxu0 0
  %1909 = vmatprep.subr.bf16.mxu0 0
  %1910 = vmatpush1.bf16.msra.mxu0 0
  %1911 = vmatprep.subr.bf16.mxu0 0
  %1912 = vmatpush1.bf16.msra.mxu0 0
  %1913 = vmatprep.subr.bf16.mxu0 0
  %1914 = vmatpush1.bf16.msra.mxu0 0
  %1915 = vmatprep.mubr.bf16.mxu0 0
  %1916 = vmatmul.mubr.bf16.gmra.mrb[0].mxu0 %v1878
  %v1917 = vpop.f32.mrb[0].mxu0
  %v1918 = vadd.f32 0.0, %v1917
  %v1919 = vpop.f32.mrb[0].mxu0
  %v1920 = vpop.f32.mrb[0].mxu0
  %v1921 = vpop.f32.mrb[0].mxu0
  %1922 = vdwg.mxu0
  %v1924 = vsel %vm1119, %v1599, 0
  %v1927 = vsel %vm1603, %v1112, 0
  %1929 = vmatprep.subr.bf16.mxu0 0
  %1930 = vmatpush1.bf16.msra.mxu0 %v1927
  %1931 = vmatprep.subr.bf16.mxu0 0
  %1932 = vmatpush1.bf16.msra.mxu0 0
  %1933 = vmatprep.subr.bf16.mxu0 0
  %1934 = vmatpush1.bf16.msra.mxu0 0
  %1935 = vmatprep.subr.bf16.mxu0 0
  %1936 = vmatpush1.bf16.msra.mxu0 0
  %1937 = vmatprep.subr.bf16.mxu0 0
  %1938 = vmatpush1.bf16.msra.mxu0 0
  %1939 = vmatprep.subr.bf16.mxu0 0
  %1940 = vmatpush1.bf16.msra.mxu0 0
  %1941 = vmatprep.subr.bf16.mxu0 0
  %1942 = vmatpush1.bf16.msra.mxu0 0
  %1943 = vmatprep.subr.bf16.mxu0 0
  %1944 = vmatpush1.bf16.msra.mxu0 0
  %1945 = vmatprep.subr.bf16.mxu0 0
  %1946 = vmatpush1.bf16.msra.mxu0 0
  %1947 = vmatprep.subr.bf16.mxu0 0
  %1948 = vmatpush1.bf16.msra.mxu0 0
  %1949 = vmatprep.subr.bf16.mxu0 0
  %1950 = vmatpush1.bf16.msra.mxu0 0
  %1951 = vmatprep.subr.bf16.mxu0 0
  %1952 = vmatpush1.bf16.msra.mxu0 0
  %1953 = vmatprep.subr.bf16.mxu0 0
  %1954 = vmatpush1.bf16.msra.mxu0 0
  %1955 = vmatprep.subr.bf16.mxu0 0
  %1956 = vmatpush1.bf16.msra.mxu0 0
  %1957 = vmatprep.subr.bf16.mxu0 0
  %1958 = vmatpush1.bf16.msra.mxu0 0
  %1959 = vmatprep.subr.bf16.mxu0 0
  %1960 = vmatpush1.bf16.msra.mxu0 0
  %1961 = vmatprep.mubr.bf16.mxu0 0
  %1962 = vmatmul.mubr.bf16.gmra.mrb[0].mxu0 %v1924
  %v1963 = vpop.f32.mrb[0].mxu0
  %v1964 = vadd.f32 0.0, %v1963
  %v1965 = vpop.f32.mrb[0].mxu0
  %v1966 = vpop.f32.mrb[0].mxu0
  %v1967 = vpop.f32.mrb[0].mxu0
  %1968 = vdwg.mxu0
  %v1969 = vcombine.low %v1642, %v1734
  %v1970 = vcombine.high %v1642, %v1734
  %v1972 = vunpack.c.l.s4 1983009808
  %v1973 = vunpack.c.0.s8 %v1972
  %v1974 = vlaneseq
  %v1975 = vshrl.u32 %v1974, 7
  %v1976 = vsub.s32 %v1973, %v1975
  %v1977 = vrot.slane %v1969, %v1976
  %v1979 = vunpack.c.l.s4 1983009808
  %v1980 = vunpack.c.0.s8 %v1979
  %v1981 = vlaneseq
  %v1982 = vshrl.u32 %v1981, 7
  %v1983 = vsub.s32 %v1980, %v1982
  %v1984 = vrot.slane %v1970, %v1983
  %v1985 = vcombine.low %v1688, %v1780
  %v1986 = vcombine.high %v1688, %v1780
  %v1988 = vunpack.c.l.s4 1983009808
  %v1989 = vunpack.c.0.s8 %v1988
  %v1990 = vlaneseq
  %v1991 = vshrl.u32 %v1990, 7
  %v1992 = vsub.s32 %v1989, %v1991
  %v1993 = vrot.slane %v1985, %v1992
  %v1995 = vunpack.c.l.s4 1983009808
  %v1996 = vunpack.c.0.s8 %v1995
  %v1997 = vlaneseq
  %v1998 = vshrl.u32 %v1997, 7
  %v1999 = vsub.s32 %v1996, %v1998
  %v2000 = vrot.slane %v1986, %v1999
  %v2001 = vcombine.low %v1977, %v1993
  %v2002 = vcombine.high %v1977, %v1993
  %v2004 = vunpack.c.l.s4 1934713408
  %v2005 = vunpack.c.0.s8 %v2004
  %v2006 = vlaneseq
  %v2007 = vshrl.u32 %v2006, 7
  %v2008 = vsub.s32 %v2005, %v2007
  %v2009 = vrot.slane %v2001, %v2008
  %v2011 = vunpack.c.l.s4 1934713408
  %v2012 = vunpack.c.0.s8 %v2011
  %v2013 = vlaneseq
  %v2014 = vshrl.u32 %v2013, 7
  %v2015 = vsub.s32 %v2012, %v2014
  %v2016 = vrot.slane %v2002, %v2015
  %v2017 = vcombine.low %v1984, %v2000
  %v2018 = vcombine.high %v1984, %v2000
  %v2020 = vunpack.c.l.s4 1934713408
  %v2021 = vunpack.c.0.s8 %v2020
  %v2022 = vlaneseq
  %v2023 = vshrl.u32 %v2022, 7
  %v2024 = vsub.s32 %v2021, %v2023
  %v2025 = vrot.slane %v2017, %v2024
  %v2027 = vunpack.c.l.s4 1934713408
  %v2028 = vunpack.c.0.s8 %v2027
  %v2029 = vlaneseq
  %v2030 = vshrl.u32 %v2029, 7
  %v2031 = vsub.s32 %v2028, %v2030
  %v2032 = vrot.slane %v2018, %v2031
  %v2033 = vcombine.high %v2009, 0.0
  %v2034 = vcombine.high %v2016, 0.0
  %v2035 = vcombine.high %v2025, 0.0
  %v2036 = vcombine.high %v2032, 0.0
  %v2037 = vcombine.low %v1826, %v1918
  %v2038 = vcombine.high %v1826, %v1918
  %v2040 = vunpack.c.l.s4 1983009808
  %v2041 = vunpack.c.0.s8 %v2040
  %v2042 = vlaneseq
  %v2043 = vshrl.u32 %v2042, 7
  %v2044 = vsub.s32 %v2041, %v2043
  %v2045 = vrot.slane %v2037, %v2044
  %v2047 = vunpack.c.l.s4 1983009808
  %v2048 = vunpack.c.0.s8 %v2047
  %v2049 = vlaneseq
  %v2050 = vshrl.u32 %v2049, 7
  %v2051 = vsub.s32 %v2048, %v2050
  %v2052 = vrot.slane %v2038, %v2051
  %v2053 = vcombine.low %v1872, %v1964
  %v2054 = vcombine.high %v1872, %v1964
  %v2056 = vunpack.c.l.s4 1983009808
  %v2057 = vunpack.c.0.s8 %v2056
  %v2058 = vlaneseq
  %v2059 = vshrl.u32 %v2058, 7
  %v2060 = vsub.s32 %v2057, %v2059
  %v2061 = vrot.slane %v2053, %v2060
  %v2063 = vunpack.c.l.s4 1983009808
  %v2064 = vunpack.c.0.s8 %v2063
  %v2065 = vlaneseq
  %v2066 = vshrl.u32 %v2065, 7
  %v2067 = vsub.s32 %v2064, %v2066
  %v2068 = vrot.slane %v2054, %v2067
  %v2069 = vcombine.low %v2045, %v2061
  %v2070 = vcombine.high %v2045, %v2061
  %v2072 = vunpack.c.l.s4 1934713408
  %v2073 = vunpack.c.0.s8 %v2072
  %v2074 = vlaneseq
  %v2075 = vshrl.u32 %v2074, 7
  %v2076 = vsub.s32 %v2073, %v2075
  %v2077 = vrot.slane %v2069, %v2076
  %v2079 = vunpack.c.l.s4 1934713408
  %v2080 = vunpack.c.0.s8 %v2079
  %v2081 = vlaneseq
  %v2082 = vshrl.u32 %v2081, 7
  %v2083 = vsub.s32 %v2080, %v2082
  %v2084 = vrot.slane %v2070, %v2083
  %v2085 = vcombine.low %v2052, %v2068
  %v2086 = vcombine.high %v2052, %v2068
  %v2088 = vunpack.c.l.s4 1934713408
  %v2089 = vunpack.c.0.s8 %v2088
  %v2090 = vlaneseq
  %v2091 = vshrl.u32 %v2090, 7
  %v2092 = vsub.s32 %v2089, %v2091
  %v2093 = vrot.slane %v2085, %v2092
  %v2095 = vunpack.c.l.s4 1934713408
  %v2096 = vunpack.c.0.s8 %v2095
  %v2097 = vlaneseq
  %v2098 = vshrl.u32 %v2097, 7
  %v2099 = vsub.s32 %v2096, %v2098
  %v2100 = vrot.slane %v2086, %v2099
  %v2101 = vcombine.high %v2077, 0.0
  %v2102 = vcombine.high %v2084, 0.0
  %v2103 = vcombine.high %v2093, 0.0
  %v2104 = vcombine.high %v2100, 0.0
  %v2105 = vcombine.low %v2009, %v2016
  %v2107 = vunpack.c.l.s4 1983009808
  %v2108 = vunpack.c.0.s8 %v2107
  %v2109 = vlaneseq
  %v2110 = vshrl.u32 %v2109, 7
  %v2111 = vsub.s32 %v2108, %v2110
  %v2112 = vrot.slane %v2105, %v2111
  %v2113 = vcombine.low %v2033, %v2034
  %v2115 = vunpack.c.l.s4 1983009808
  %v2116 = vunpack.c.0.s8 %v2115
  %v2117 = vlaneseq
  %v2118 = vshrl.u32 %v2117, 7
  %v2119 = vsub.s32 %v2116, %v2118
  %v2120 = vrot.slane %v2113, %v2119
  %v2121 = vcombine.low %v2025, %v2032
  %v2123 = vunpack.c.l.s4 1983009808
  %v2124 = vunpack.c.0.s8 %v2123
  %v2125 = vlaneseq
  %v2126 = vshrl.u32 %v2125, 7
  %v2127 = vsub.s32 %v2124, %v2126
  %v2128 = vrot.slane %v2121, %v2127
  %v2129 = vcombine.low %v2035, %v2036
  %v2131 = vunpack.c.l.s4 1983009808
  %v2132 = vunpack.c.0.s8 %v2131
  %v2133 = vlaneseq
  %v2134 = vshrl.u32 %v2133, 7
  %v2135 = vsub.s32 %v2132, %v2134
  %v2136 = vrot.slane %v2129, %v2135
  %v2137 = vcombine.low %v2112, %v2120
  %v2138 = vcombine.high %v2112, %v2120
  %v2140 = vunpack.c.l.s4 1934713408
  %v2141 = vunpack.c.0.s8 %v2140
  %v2142 = vlaneseq
  %v2143 = vshrl.u32 %v2142, 7
  %v2144 = vsub.s32 %v2141, %v2143
  %v2145 = vrot.slane %v2137, %v2144
  %v2147 = vunpack.c.l.s4 1934713408
  %v2148 = vunpack.c.0.s8 %v2147
  %v2149 = vlaneseq
  %v2150 = vshrl.u32 %v2149, 7
  %v2151 = vsub.s32 %v2148, %v2150
  %v2152 = vrot.slane %v2138, %v2151
  %v2153 = vcombine.low %v2128, %v2136
  %v2154 = vcombine.high %v2128, %v2136
  %v2156 = vunpack.c.l.s4 1934713408
  %v2157 = vunpack.c.0.s8 %v2156
  %v2158 = vlaneseq
  %v2159 = vshrl.u32 %v2158, 7
  %v2160 = vsub.s32 %v2157, %v2159
  %v2161 = vrot.slane %v2153, %v2160
  %v2163 = vunpack.c.l.s4 1934713408
  %v2164 = vunpack.c.0.s8 %v2163
  %v2165 = vlaneseq
  %v2166 = vshrl.u32 %v2165, 7
  %v2167 = vsub.s32 %v2164, %v2166
  %v2168 = vrot.slane %v2154, %v2167
  %v2169 = vcombine.low %v2145, %v2161
  %v2170 = vcombine.high %v2145, %v2161
  %v2171 = vcombine.low %v2152, %v2168
  %v2172 = vcombine.high %v2152, %v2168
  %v2173 = vcombine.low %v2077, %v2084
  %v2175 = vunpack.c.l.s4 1983009808
  %v2176 = vunpack.c.0.s8 %v2175
  %v2177 = vlaneseq
  %v2178 = vshrl.u32 %v2177, 7
  %v2179 = vsub.s32 %v2176, %v2178
  %v2180 = vrot.slane %v2173, %v2179
  %v2181 = vcombine.low %v2101, %v2102
  %v2183 = vunpack.c.l.s4 1983009808
  %v2184 = vunpack.c.0.s8 %v2183
  %v2185 = vlaneseq
  %v2186 = vshrl.u32 %v2185, 7
  %v2187 = vsub.s32 %v2184, %v2186
  %v2188 = vrot.slane %v2181, %v2187
  %v2189 = vcombine.low %v2093, %v2100
  %v2191 = vunpack.c.l.s4 1983009808
  %v2192 = vunpack.c.0.s8 %v2191
  %v2193 = vlaneseq
  %v2194 = vshrl.u32 %v2193, 7
  %v2195 = vsub.s32 %v2192, %v2194
  %v2196 = vrot.slane %v2189, %v2195
  %v2197 = vcombine.low %v2103, %v2104
  %v2199 = vunpack.c.l.s4 1983009808
  %v2200 = vunpack.c.0.s8 %v2199
  %v2201 = vlaneseq
  %v2202 = vshrl.u32 %v2201, 7
  %v2203 = vsub.s32 %v2200, %v2202
  %v2204 = vrot.slane %v2197, %v2203
  %v2205 = vcombine.low %v2180, %v2188
  %v2206 = vcombine.high %v2180, %v2188
  %v2208 = vunpack.c.l.s4 1934713408
  %v2209 = vunpack.c.0.s8 %v2208
  %v2210 = vlaneseq
  %v2211 = vshrl.u32 %v2210, 7
  %v2212 = vsub.s32 %v2209, %v2211
  %v2213 = vrot.slane %v2205, %v2212
  %v2215 = vunpack.c.l.s4 1934713408
  %v2216 = vunpack.c.0.s8 %v2215
  %v2217 = vlaneseq
  %v2218 = vshrl.u32 %v2217, 7
  %v2219 = vsub.s32 %v2216, %v2218
  %v2220 = vrot.slane %v2206, %v2219
  %v2221 = vcombine.low %v2196, %v2204
  %v2222 = vcombine.high %v2196, %v2204
  %v2224 = vunpack.c.l.s4 1934713408
  %v2225 = vunpack.c.0.s8 %v2224
  %v2226 = vlaneseq
  %v2227 = vshrl.u32 %v2226, 7
  %v2228 = vsub.s32 %v2225, %v2227
  %v2229 = vrot.slane %v2221, %v2228
  %v2231 = vunpack.c.l.s4 1934713408
  %v2232 = vunpack.c.0.s8 %v2231
  %v2233 = vlaneseq
  %v2234 = vshrl.u32 %v2233, 7
  %v2235 = vsub.s32 %v2232, %v2234
  %v2236 = vrot.slane %v2222, %v2235
  %v2237 = vcombine.low %v2213, %v2229
  %v2238 = vcombine.high %v2213, %v2229
  %v2239 = vcombine.low %v2220, %v2236
  %v2240 = vcombine.high %v2220, %v2236
  %2243 = vrot.lane.b32.xlu0 %v2170, 8
  %v2244 = vpop.permute.xlu0 %2243
  %2245 = vrot.lane.b32.xlu0 %v2238, 8
  %v2246 = vpop.permute.xlu0 %2245
  %2251 = vrot.lane.b32.xlu0 %v2171, 16
  %v2252 = vpop.permute.xlu0 %2251
  %2253 = vrot.lane.b32.xlu0 %v2239, 16
  %v2254 = vpop.permute.xlu0 %2253
  %2259 = vrot.lane.b32.xlu0 %v2172, 24
  %v2260 = vpop.permute.xlu0 %2259
  %2261 = vrot.lane.b32.xlu0 %v2240, 24
  %v2262 = vpop.permute.xlu0 %2261
  %v2265 = vsel %vm1119, %v2169, %v2244
  %v2266 = vsel %vm1119, %v2237, %v2246
  %vm2267 = vcmask 130048
  %v2268 = vsel %vm2267, %v2265, %v2252
  %v2269 = vsel %vm2267, %v2266, %v2254
  %vm2270 = vcmask 195584
  %v2271 = vsel %vm2270, %v2268, %v2260
  %v2272 = vsel %vm2270, %v2269, %v2262
  %v2273 = vpack.c.bf16 %v2272, %v2271
  %v2274 = vld [vmem:[%s5] sm:$0xf]
  %v2275 = vld [vmem:[%s5 + $0x4] sm:$0xf]
  %v2276 = vld [vmem:[%s5 + $0x8] sm:$0xf]
  %v2277 = vld [vmem:[%s5 + $0xc] sm:$0xf]
  %v2278 = vld [vmem:[%s6] sm:$0x1]
  %v2280 = vlaneseq
  %v2281 = vshrl.u32 %v2280, 7
  %v2282 = vsub.s32 0, %v2281
  %v2283 = vrot.slane %v2278, %v2282
  %v2289 = vunpack.c.l.b16 %v2274
  %v2290 = vunpack.c.l.b16 %v2275
  %v2291 = vunpack.c.l.b16 %v2276
  %v2292 = vunpack.c.l.b16 %v2277
  %v2293 = vpack.c.b16 %v2290, %v2289
  %v2294 = vpack.c.b16 %v2292, %v2291
  %v2298 = vsel %vm89, %v2273, 0
  %2300 = vmatprep.subr.bf16.mxu0 0
  %2301 = vmatpush1.bf16.msra.mxu0 %v2293
  %2302 = vmatprep.subr.bf16.mxu0 0
  %2303 = vmatpush1.bf16.msra.mxu0 %v2294
  %2304 = vmatprep.subr.bf16.mxu0 0
  %2305 = vmatpush1.bf16.msra.mxu0 0
  %2306 = vmatprep.subr.bf16.mxu0 0
  %2307 = vmatpush1.bf16.msra.mxu0 0
  %2308 = vmatprep.subr.bf16.mxu0 0
  %2309 = vmatpush1.bf16.msra.mxu0 0
  %2310 = vmatprep.subr.bf16.mxu0 0
  %2311 = vmatpush1.bf16.msra.mxu0 0
  %2312 = vmatprep.subr.bf16.mxu0 0
  %2313 = vmatpush1.bf16.msra.mxu0 0
  %2314 = vmatprep.subr.bf16.mxu0 0
  %2315 = vmatpush1.bf16.msra.mxu0 0
  %2316 = vmatprep.subr.bf16.mxu0 0
  %2317 = vmatpush1.bf16.msra.mxu0 0
  %2318 = vmatprep.subr.bf16.mxu0 0
  %2319 = vmatpush1.bf16.msra.mxu0 0
  %2320 = vmatprep.subr.bf16.mxu0 0
  %2321 = vmatpush1.bf16.msra.mxu0 0
  %2322 = vmatprep.subr.bf16.mxu0 0
  %2323 = vmatpush1.bf16.msra.mxu0 0
  %2324 = vmatprep.subr.bf16.mxu0 0
  %2325 = vmatpush1.bf16.msra.mxu0 0
  %2326 = vmatprep.subr.bf16.mxu0 0
  %2327 = vmatpush1.bf16.msra.mxu0 0
  %2328 = vmatprep.subr.bf16.mxu0 0
  %2329 = vmatpush1.bf16.msra.mxu0 0
  %2330 = vmatprep.subr.bf16.mxu0 0
  %2331 = vmatpush1.bf16.msra.mxu0 0
  %2332 = vmatprep.mubr.bf16.mxu0 0
  %2333 = vmatmul.mubr.bf16.gmra.mrb[0].mxu0 %v2298
  %v2334 = vpop.f32.mrb[0].mxu0
  %v2335 = vadd.f32 %v2283, %v2334
  %v2336 = vpop.f32.mrb[0].mxu0
  %v2337 = vpop.f32.mrb[0].mxu0
  %v2338 = vadd.f32 %v2283, %v2337
  %v2339 = vpop.f32.mrb[0].mxu0
  %2340 = vdwg.mxu0
  %v2341 = vadd.f32 %v85, %v2335
  %v2342 = vadd.f32 %v86, %v2338
  %v2343 = vld [vmem:[%s7] sm:$0x1]
  %v2344 = vld [vmem:[%s8] sm:$0x1]
  %v2345 = vsel %vm89, %v2341, 0.0
  %2346 = vadd.xlane.f32.xlu0 %v2345
  %v2347 = vpop.xlane.xlu0 %2346
  %v2348 = vsel %vm89, %v2342, 0.0
  %2349 = vadd.xlane.f32.xlu0 %v2348
  %v2350 = vpop.xlane.xlu0 %2349
  %v2351 = vmul.f32 %v2347, %v96
  %v2352 = vmul.f32 %v2350, %v96
  %v2353 = vmul.f32 %v2341, %v2341
  %v2354 = vmul.f32 %v2342, %v2342
  %v2355 = vsel %vm89, %v2353, 0.0
  %2356 = vadd.xlane.f32.xlu0 %v2355
  %v2357 = vpop.xlane.xlu0 %2356
  %v2358 = vsel %vm89, %v2354, 0.0
  %2359 = vadd.xlane.f32.xlu0 %v2358
  %v2360 = vpop.xlane.xlu0 %2359
  %v2361 = vmul.f32 %v2357, %v96
  %v2362 = vmul.f32 %v2360, %v96
  %v2363 = vmul.f32 %v2351, %v2351
  %v2364 = vmul.f32 %v2352, %v2352
  %v2365 = vsub.f32 %v2361, %v2363
  %v2366 = vsub.f32 %v2362, %v2364
  %v2367 = vsub.f32 %v2341, %v2351
  %v2368 = vsub.f32 %v2342, %v2352
  %v2369 = vadd.f32 %v2365, 1e-05
  %v2370 = vadd.f32 %v2366, 1e-05
  %v2371 = vrsqrt.pop %v2369
  %v2372 = vrsqrt.pop %v2370
  %v2373 = vmul.f32 %v2367, %v2371
  %v2374 = vmul.f32 %v2368, %v2372
  %v2376 = vlaneseq
  %v2377 = vshrl.u32 %v2376, 7
  %v2378 = vsub.s32 0, %v2377
  %v2379 = vrot.slane %v2343, %v2378
  %v2381 = vmul.f32 %v2373, %v2379
  %v2382 = vmul.f32 %v2374, %v2379
  %v2384 = vlaneseq
  %v2385 = vshrl.u32 %v2384, 7
  %v2386 = vsub.s32 0, %v2385
  %v2387 = vrot.slane %v2344, %v2386
  %v2389 = vadd.f32 %v2381, %v2387
  %v2390 = vadd.f32 %v2382, %v2387
  %v2391 = vpack.c.bf16 %v2390, %v2389
  %v2392 = vld [vmem:[%s9] sm:$0xf]
  %v2393 = vld [vmem:[%s9 + $0x4] sm:$0xf]
  %v2394 = vld [vmem:[%s9 + $0x8] sm:$0xf]
  %v2395 = vld [vmem:[%s9 + $0xc] sm:$0xf]
  %v2396 = vld [vmem:[%s10] sm:$0x1]
  %v2398 = vlaneseq
  %v2399 = vshrl.u32 %v2398, 7
  %v2400 = vsub.s32 0, %v2399
  %v2401 = vrot.slane %v2396, %v2400
  %v2407 = vunpack.c.l.b16 %v2392
  %v2408 = vunpack.c.l.b16 %v2393
  %v2409 = vunpack.c.l.b16 %v2394
  %v2410 = vunpack.c.l.b16 %v2395
  %v2411 = vpack.c.b16 %v2408, %v2407
  %v2412 = vpack.c.b16 %v2410, %v2409
  %v2416 = vsel %vm89, %v2391, 0
  %2418 = vmatprep.subr.bf16.mxu0 0
  %2419 = vmatpush1.bf16.msra.mxu0 %v2411
  %2420 = vmatprep.subr.bf16.mxu0 0
  %2421 = vmatpush1.bf16.msra.mxu0 %v2412
  %2422 = vmatprep.subr.bf16.mxu0 0
  %2423 = vmatpush1.bf16.msra.mxu0 0
  %2424 = vmatprep.subr.bf16.mxu0 0
  %2425 = vmatpush1.bf16.msra.mxu0 0
  %2426 = vmatprep.subr.bf16.mxu0 0
  %2427 = vmatpush1.bf16.msra.mxu0 0
  %2428 = vmatprep.subr.bf16.mxu0 0
  %2429 = vmatpush1.bf16.msra.mxu0 0
  %2430 = vmatprep.subr.bf16.mxu0 0
  %2431 = vmatpush1.bf16.msra.mxu0 0
  %2432 = vmatprep.subr.bf16.mxu0 0
  %2433 = vmatpush1.bf16.msra.mxu0 0
  %2434 = vmatprep.subr.bf16.mxu0 0
  %2435 = vmatpush1.bf16.msra.mxu0 0
  %2436 = vmatprep.subr.bf16.mxu0 0
  %2437 = vmatpush1.bf16.msra.mxu0 0
  %2438 = vmatprep.subr.bf16.mxu0 0
  %2439 = vmatpush1.bf16.msra.mxu0 0
  %2440 = vmatprep.subr.bf16.mxu0 0
  %2441 = vmatpush1.bf16.msra.mxu0 0
  %2442 = vmatprep.subr.bf16.mxu0 0
  %2443 = vmatpush1.bf16.msra.mxu0 0
  %2444 = vmatprep.subr.bf16.mxu0 0
  %2445 = vmatpush1.bf16.msra.mxu0 0
  %2446 = vmatprep.subr.bf16.mxu0 0
  %2447 = vmatpush1.bf16.msra.mxu0 0
  %2448 = vmatprep.subr.bf16.mxu0 0
  %2449 = vmatpush1.bf16.msra.mxu0 0
  %2450 = vmatprep.mubr.bf16.mxu0 0
  %2451 = vmatmul.mubr.bf16.gmra.mrb[0].mxu0 %v2416
  %v2452 = vpop.f32.mrb[0].mxu0
  %v2453 = vadd.f32 %v2401, %v2452
  %v2454 = vpop.f32.mrb[0].mxu0
  %v2455 = vpop.f32.mrb[0].mxu0
  %v2456 = vadd.f32 %v2401, %v2455
  %v2457 = vpop.f32.mrb[0].mxu0
  %2458 = vdwg.mxu0
  %v2459 = vpack.c.bf16 %v2456, %v2453
  %v2460 = vmul.bf16 %v2459, 1071267802
  %v2461 = vxor.u32 %v2460, 2147516416
  %v2463 = vmul.bf16 %v2461, 1069105081
  %v2464 = vpow.bf16.pop %v2463
  %v2465 = vadd.bf16 %v2464, 1065369472
  %v2466 = vrcp.bf16.pop %v2465
  %v2467 = vmul.bf16 1065369472, %v2466
  %v2468 = vmul.bf16 %v2459, %v2467
  %v2469 = vld [vmem:[%s11] sm:$0xf]
  %v2470 = vld [vmem:[%s11 + $0x4] sm:$0xf]
  %v2471 = vld [vmem:[%s11 + $0x8] sm:$0xf]
  %v2472 = vld [vmem:[%s11 + $0xc] sm:$0xf]
  %v2473 = vld [vmem:[%s11 + $0x10] sm:$0xf]
  %v2474 = vld [vmem:[%s11 + $0x14] sm:$0xf]
  %v2475 = vld [vmem:[%s11 + $0x18] sm:$0xf]
  %v2476 = vld [vmem:[%s11 + $0x1c] sm:$0xf]
  %v2477 = vld [vmem:[%s11 + $0x20] sm:$0xf]
  %v2478 = vld [vmem:[%s11 + $0x24] sm:$0xf]
  %v2479 = vld [vmem:[%s11 + $0x28] sm:$0xf]
  %v2480 = vld [vmem:[%s11 + $0x2c] sm:$0xf]
  %v2481 = vld [vmem:[%s11 + $0x30] sm:$0xf]
  %v2482 = vld [vmem:[%s11 + $0x34] sm:$0xf]
  %v2483 = vld [vmem:[%s11 + $0x38] sm:$0xf]
  %v2484 = vld [vmem:[%s11 + $0x3c] sm:$0xf]
  %v2485 = vld [vmem:[%s12] sm:$0x1]
  %v2487 = vlaneseq
  %v2488 = vshrl.u32 %v2487, 7
  %v2489 = vsub.s32 0, %v2488
  %v2490 = vrot.slane %v2485, %v2489
  %v2508 = vunpack.c.l.b16 %v2469
  %v2509 = vunpack.c.l.b16 %v2470
  %v2510 = vunpack.c.l.b16 %v2471
  %v2511 = vunpack.c.l.b16 %v2472
  %v2512 = vunpack.c.l.b16 %v2473
  %v2513 = vunpack.c.l.b16 %v2474
  %v2514 = vunpack.c.l.b16 %v2475
  %v2515 = vunpack.c.l.b16 %v2476
  %v2516 = vunpack.c.l.b16 %v2477
  %v2517 = vunpack.c.l.b16 %v2478
  %v2518 = vunpack.c.l.b16 %v2479
  %v2519 = vunpack.c.l.b16 %v2480
  %v2520 = vunpack.c.l.b16 %v2481
  %v2521 = vunpack.c.l.b16 %v2482
  %v2522 = vunpack.c.l.b16 %v2483
  %v2523 = vunpack.c.l.b16 %v2484
  %v2524 = vpack.c.b16 %v2509, %v2508
  %v2525 = vpack.c.b16 %v2511, %v2510
  %v2526 = vpack.c.b16 %v2513, %v2512
  %v2527 = vpack.c.b16 %v2515, %v2514
  %v2528 = vpack.c.b16 %v2517, %v2516
  %v2529 = vpack.c.b16 %v2519, %v2518
  %v2530 = vpack.c.b16 %v2521, %v2520
  %v2531 = vpack.c.b16 %v2523, %v2522
  %2540 = vmatprep.subr.bf16.mxu0 0
  %2541 = vmatpush1.bf16.msra.mxu0 %v2524
  %2542 = vmatprep.subr.bf16.mxu0 0
  %2543 = vmatpush1.bf16.msra.mxu0 %v2525
  %2544 = vmatprep.subr.bf16.mxu0 0
  %2545 = vmatpush1.bf16.msra.mxu0 %v2526
  %2546 = vmatprep.subr.bf16.mxu0 0
  %2547 = vmatpush1.bf16.msra.mxu0 %v2527
  %2548 = vmatprep.subr.bf16.mxu0 0
  %2549 = vmatpush1.bf16.msra.mxu0 %v2528
  %2550 = vmatprep.subr.bf16.mxu0 0
  %2551 = vmatpush1.bf16.msra.mxu0 %v2529
  %2552 = vmatprep.subr.bf16.mxu0 0
  %2553 = vmatpush1.bf16.msra.mxu0 %v2530
  %2554 = vmatprep.subr.bf16.mxu0 0
  %2555 = vmatpush1.bf16.msra.mxu0 %v2531
  %2556 = vmatprep.subr.bf16.mxu0 0
  %2557 = vmatpush1.bf16.msra.mxu0 0
  %2558 = vmatprep.subr.bf16.mxu0 0
  %2559 = vmatpush1.bf16.msra.mxu0 0
  %2560 = vmatprep.subr.bf16.mxu0 0
  %2561 = vmatpush1.bf16.msra.mxu0 0
  %2562 = vmatprep.subr.bf16.mxu0 0
  %2563 = vmatpush1.bf16.msra.mxu0 0
  %2564 = vmatprep.subr.bf16.mxu0 0
  %2565 = vmatpush1.bf16.msra.mxu0 0
  %2566 = vmatprep.subr.bf16.mxu0 0
  %2567 = vmatpush1.bf16.msra.mxu0 0
  %2568 = vmatprep.subr.bf16.mxu0 0
  %2569 = vmatpush1.bf16.msra.mxu0 0
  %2570 = vmatprep.subr.bf16.mxu0 0
  %2571 = vmatpush1.bf16.msra.mxu0 0
  %2572 = vmatprep.mubr.bf16.mxu0 0
  %2573 = vmatmul.mubr.bf16.gmra.mrb[0].mxu0 %v2468
  %v2574 = vpop.f32.mrb[0].mxu0
  %v2575 = vadd.f32 %v2490, %v2574
  %v2576 = vpop.f32.mrb[0].mxu0
  %v2577 = vpop.f32.mrb[0].mxu0
  %v2578 = vadd.f32 %v2490, %v2577
  %v2579 = vpop.f32.mrb[0].mxu0
  %2580 = vdwg.mxu0
  %v2581 = vadd.f32 %v2341, %v2575
  %v2582 = vadd.f32 %v2342, %v2578
  %v2583 = vld [vmem:[%s13] sm:$0x1]
  %v2584 = vld [vmem:[%s14] sm:$0x1]
  %v2585 = vsel %vm89, %v2581, 0.0
  %2586 = vadd.xlane.f32.xlu0 %v2585
  %v2587 = vpop.xlane.xlu0 %2586
  %v2588 = vsel %vm89, %v2582, 0.0
  %2589 = vadd.xlane.f32.xlu0 %v2588
  %v2590 = vpop.xlane.xlu0 %2589
  %v2591 = vmul.f32 %v2587, %v96
  %v2592 = vmul.f32 %v2590, %v96
  %v2593 = vmul.f32 %v2581, %v2581
  %v2594 = vmul.f32 %v2582, %v2582
  %v2595 = vsel %vm89, %v2593, 0.0
  %2596 = vadd.xlane.f32.xlu0 %v2595
  %v2597 = vpop.xlane.xlu0 %2596
  %v2598 = vsel %vm89, %v2594, 0.0
  %2599 = vadd.xlane.f32.xlu0 %v2598
  %v2600 = vpop.xlane.xlu0 %2599
  %v2601 = vmul.f32 %v2597, %v96
  %v2602 = vmul.f32 %v2600, %v96
  %v2603 = vmul.f32 %v2591, %v2591
  %v2604 = vmul.f32 %v2592, %v2592
  %v2605 = vsub.f32 %v2601, %v2603
  %v2606 = vsub.f32 %v2602, %v2604
  %v2607 = vsub.f32 %v2581, %v2591
  %v2608 = vsub.f32 %v2582, %v2592
  %v2609 = vadd.f32 %v2605, 1e-05
  %v2610 = vadd.f32 %v2606, 1e-05
  %v2611 = vrsqrt.pop %v2609
  %v2612 = vrsqrt.pop %v2610
  %v2613 = vmul.f32 %v2607, %v2611
  %v2614 = vmul.f32 %v2608, %v2612
  %v2616 = vlaneseq
  %v2617 = vshrl.u32 %v2616, 7
  %v2618 = vsub.s32 0, %v2617
  %v2619 = vrot.slane %v2583, %v2618
  %v2621 = vmul.f32 %v2613, %v2619
  %v2622 = vmul.f32 %v2614, %v2619
  %v2624 = vlaneseq
  %v2625 = vshrl.u32 %v2624, 7
  %v2626 = vsub.s32 0, %v2625
  %v2627 = vrot.slane %v2584, %v2626
  %v2629 = vadd.f32 %v2621, %v2627
  %v2630 = vadd.f32 %v2622, %v2627
  %v2631 = vpack.c.bf16 %v2630, %v2629
  %v2632 = vld [vmem:[%s15] sm:$0xf]
  %v2633 = vld [vmem:[%s15 + $0x4] sm:$0xf]
  %v2634 = vld [vmem:[%s15 + $0x8] sm:$0xf]
  %v2635 = vld [vmem:[%s15 + $0xc] sm:$0xf]
  %v2636 = vld [vmem:[%s16] sm:$0x1]
  %v2638 = vlaneseq
  %v2639 = vshrl.u32 %v2638, 7
  %v2640 = vsub.s32 0, %v2639
  %v2641 = vrot.slane %v2636, %v2640
  %v2647 = vunpack.c.l.b16 %v2632
  %v2648 = vunpack.c.l.b16 %v2633
  %v2649 = vunpack.c.l.b16 %v2634
  %v2650 = vunpack.c.l.b16 %v2635
  %v2651 = vpack.c.b16 %v2648, %v2647
  %v2652 = vpack.c.b16 %v2650, %v2649
  %v2656 = vsel %vm89, %v2631, 0
  %2658 = vmatprep.subr.bf16.mxu0 0
  %2659 = vmatpush1.bf16.msra.mxu0 %v2651
  %2660 = vmatprep.subr.bf16.mxu0 0
  %2661 = vmatpush1.bf16.msra.mxu0 %v2652
  %2662 = vmatprep.subr.bf16.mxu0 0
  %2663 = vmatpush1.bf16.msra.mxu0 0
  %2664 = vmatprep.subr.bf16.mxu0 0
  %2665 = vmatpush1.bf16.msra.mxu0 0
  %2666 = vmatprep.subr.bf16.mxu0 0
  %2667 = vmatpush1.bf16.msra.mxu0 0
  %2668 = vmatprep.subr.bf16.mxu0 0
  %2669 = vmatpush1.bf16.msra.mxu0 0
  %2670 = vmatprep.subr.bf16.mxu0 0
  %2671 = vmatpush1.bf16.msra.mxu0 0
  %2672 = vmatprep.subr.bf16.mxu0 0
  %2673 = vmatpush1.bf16.msra.mxu0 0
  %2674 = vmatprep.subr.bf16.mxu0 0
  %2675 = vmatpush1.bf16.msra.mxu0 0
  %2676 = vmatprep.subr.bf16.mxu0 0
  %2677 = vmatpush1.bf16.msra.mxu0 0
  %2678 = vmatprep.subr.bf16.mxu0 0
  %2679 = vmatpush1.bf16.msra.mxu0 0
  %2680 = vmatprep.subr.bf16.mxu0 0
  %2681 = vmatpush1.bf16.msra.mxu0 0
  %2682 = vmatprep.subr.bf16.mxu0 0
  %2683 = vmatpush1.bf16.msra.mxu0 0
  %2684 = vmatprep.subr.bf16.mxu0 0
  %2685 = vmatpush1.bf16.msra.mxu0 0
  %2686 = vmatprep.subr.bf16.mxu0 0
  %2687 = vmatpush1.bf16.msra.mxu0 0
  %2688 = vmatprep.subr.bf16.mxu0 0
  %2689 = vmatpush1.bf16.msra.mxu0 0
  %2690 = vmatprep.mubr.bf16.mxu0 0
  %2691 = vmatmul.mubr.bf16.gmra.mrb[0].mxu0 %v2656
  %v2692 = vpop.f32.mrb[0].mxu0
  %v2693 = vadd.f32 %v2641, %v2692
  %v2694 = vpop.f32.mrb[0].mxu0
  %v2695 = vpop.f32.mrb[0].mxu0
  %v2696 = vadd.f32 %v2641, %v2695
  %v2697 = vpop.f32.mrb[0].mxu0
  %2698 = vdwg.mxu0
  %2701 = vrot.lane.b32.xlu0 %v2693, 120
  %v2702 = vpop.permute.xlu0 %2701
  %2703 = vrot.lane.b32.xlu0 %v2696, 120
  %v2704 = vpop.permute.xlu0 %2703
  %2707 = vrot.lane.b32.xlu0 %v2693, 112
  %v2708 = vpop.permute.xlu0 %2707
  %2709 = vrot.lane.b32.xlu0 %v2696, 112
  %v2710 = vpop.permute.xlu0 %2709
  %2713 = vrot.lane.b32.xlu0 %v2693, 104
  %v2714 = vpop.permute.xlu0 %2713
  %2715 = vrot.lane.b32.xlu0 %v2696, 104
  %v2716 = vpop.permute.xlu0 %2715
  %v2719 = vcombine.low %v2693, %v2708
  %v2720 = vcombine.high %v2693, %v2708
  %v2722 = vunpack.c.l.s4 1983009808
  %v2723 = vunpack.c.0.s8 %v2722
  %v2724 = vlaneseq
  %v2725 = vshrl.u32 %v2724, 7
  %v2726 = vsub.s32 %v2723, %v2725
  %v2727 = vrot.slane %v2719, %v2726
  %v2729 = vunpack.c.l.s4 1983009808
  %v2730 = vunpack.c.0.s8 %v2729
  %v2731 = vlaneseq
  %v2732 = vshrl.u32 %v2731, 7
  %v2733 = vsub.s32 %v2730, %v2732
  %v2734 = vrot.slane %v2720, %v2733
  %v2735 = vcombine.low %v2702, %v2714
  %v2736 = vcombine.high %v2702, %v2714
  %v2738 = vunpack.c.l.s4 1983009808
  %v2739 = vunpack.c.0.s8 %v2738
  %v2740 = vlaneseq
  %v2741 = vshrl.u32 %v2740, 7
  %v2742 = vsub.s32 %v2739, %v2741
  %v2743 = vrot.slane %v2735, %v2742
  %v2745 = vunpack.c.l.s4 1983009808
  %v2746 = vunpack.c.0.s8 %v2745
  %v2747 = vlaneseq
  %v2748 = vshrl.u32 %v2747, 7
  %v2749 = vsub.s32 %v2746, %v2748
  %v2750 = vrot.slane %v2736, %v2749
  %v2751 = vcombine.low %v2727, %v2743
  %v2752 = vcombine.high %v2727, %v2743
  %v2754 = vunpack.c.l.s4 1934713408
  %v2755 = vunpack.c.0.s8 %v2754
  %v2756 = vlaneseq
  %v2757 = vshrl.u32 %v2756, 7
  %v2758 = vsub.s32 %v2755, %v2757
  %v2759 = vrot.slane %v2751, %v2758
  %v2761 = vunpack.c.l.s4 1934713408
  %v2762 = vunpack.c.0.s8 %v2761
  %v2763 = vlaneseq
  %v2764 = vshrl.u32 %v2763, 7
  %v2765 = vsub.s32 %v2762, %v2764
  %v2766 = vrot.slane %v2752, %v2765
  %v2767 = vcombine.low %v2734, %v2750
  %v2768 = vcombine.high %v2734, %v2750
  %v2770 = vunpack.c.l.s4 1934713408
  %v2771 = vunpack.c.0.s8 %v2770
  %v2772 = vlaneseq
  %v2773 = vshrl.u32 %v2772, 7
  %v2774 = vsub.s32 %v2771, %v2773
  %v2775 = vrot.slane %v2767, %v2774
  %v2777 = vunpack.c.l.s4 1934713408
  %v2778 = vunpack.c.0.s8 %v2777
  %v2779 = vlaneseq
  %v2780 = vshrl.u32 %v2779, 7
  %v2781 = vsub.s32 %v2778, %v2780
  %v2782 = vrot.slane %v2768, %v2781
  %v2783 = vcombine.high %v2759, 0.0
  %v2784 = vcombine.high %v2766, 0.0
  %v2785 = vcombine.high %v2775, 0.0
  %v2786 = vcombine.high %v2782, 0.0
  %v2787 = vcombine.low %v2696, %v2710
  %v2788 = vcombine.high %v2696, %v2710
  %v2790 = vunpack.c.l.s4 1983009808
  %v2791 = vunpack.c.0.s8 %v2790
  %v2792 = vlaneseq
  %v2793 = vshrl.u32 %v2792, 7
  %v2794 = vsub.s32 %v2791, %v2793
  %v2795 = vrot.slane %v2787, %v2794
  %v2797 = vunpack.c.l.s4 1983009808
  %v2798 = vunpack.c.0.s8 %v2797
  %v2799 = vlaneseq
  %v2800 = vshrl.u32 %v2799, 7
  %v2801 = vsub.s32 %v2798, %v2800
  %v2802 = vrot.slane %v2788, %v2801
  %v2803 = vcombine.low %v2704, %v2716
  %v2804 = vcombine.high %v2704, %v2716
  %v2806 = vunpack.c.l.s4 1983009808
  %v2807 = vunpack.c.0.s8 %v2806
  %v2808 = vlaneseq
  %v2809 = vshrl.u32 %v2808, 7
  %v2810 = vsub.s32 %v2807, %v2809
  %v2811 = vrot.slane %v2803, %v2810
  %v2813 = vunpack.c.l.s4 1983009808
  %v2814 = vunpack.c.0.s8 %v2813
  %v2815 = vlaneseq
  %v2816 = vshrl.u32 %v2815, 7
  %v2817 = vsub.s32 %v2814, %v2816
  %v2818 = vrot.slane %v2804, %v2817
  %v2819 = vcombine.low %v2795, %v2811
  %v2820 = vcombine.high %v2795, %v2811
  %v2822 = vunpack.c.l.s4 1934713408
  %v2823 = vunpack.c.0.s8 %v2822
  %v2824 = vlaneseq
  %v2825 = vshrl.u32 %v2824, 7
  %v2826 = vsub.s32 %v2823, %v2825
  %v2827 = vrot.slane %v2819, %v2826
  %v2829 = vunpack.c.l.s4 1934713408
  %v2830 = vunpack.c.0.s8 %v2829
  %v2831 = vlaneseq
  %v2832 = vshrl.u32 %v2831, 7
  %v2833 = vsub.s32 %v2830, %v2832
  %v2834 = vrot.slane %v2820, %v2833
  %v2835 = vcombine.low %v2802, %v2818
  %v2836 = vcombine.high %v2802, %v2818
  %v2838 = vunpack.c.l.s4 1934713408
  %v2839 = vunpack.c.0.s8 %v2838
  %v2840 = vlaneseq
  %v2841 = vshrl.u32 %v2840, 7
  %v2842 = vsub.s32 %v2839, %v2841
  %v2843 = vrot.slane %v2835, %v2842
  %v2845 = vunpack.c.l.s4 1934713408
  %v2846 = vunpack.c.0.s8 %v2845
  %v2847 = vlaneseq
  %v2848 = vshrl.u32 %v2847, 7
  %v2849 = vsub.s32 %v2846, %v2848
  %v2850 = vrot.slane %v2836, %v2849
  %v2851 = vcombine.high %v2827, 0.0
  %v2852 = vcombine.high %v2834, 0.0
  %v2853 = vcombine.high %v2843, 0.0
  %v2854 = vcombine.high %v2850, 0.0
  %v2855 = vcombine.low %v2759, %v2766
  %v2857 = vunpack.c.l.s4 1983009808
  %v2858 = vunpack.c.0.s8 %v2857
  %v2859 = vlaneseq
  %v2860 = vshrl.u32 %v2859, 7
  %v2861 = vsub.s32 %v2858, %v2860
  %v2862 = vrot.slane %v2855, %v2861
  %v2863 = vcombine.low %v2783, %v2784
  %v2865 = vunpack.c.l.s4 1983009808
  %v2866 = vunpack.c.0.s8 %v2865
  %v2867 = vlaneseq
  %v2868 = vshrl.u32 %v2867, 7
  %v2869 = vsub.s32 %v2866, %v2868
  %v2870 = vrot.slane %v2863, %v2869
  %v2871 = vcombine.low %v2775, %v2782
  %v2873 = vunpack.c.l.s4 1983009808
  %v2874 = vunpack.c.0.s8 %v2873
  %v2875 = vlaneseq
  %v2876 = vshrl.u32 %v2875, 7
  %v2877 = vsub.s32 %v2874, %v2876
  %v2878 = vrot.slane %v2871, %v2877
  %v2879 = vcombine.low %v2785, %v2786
  %v2881 = vunpack.c.l.s4 1983009808
  %v2882 = vunpack.c.0.s8 %v2881
  %v2883 = vlaneseq
  %v2884 = vshrl.u32 %v2883, 7
  %v2885 = vsub.s32 %v2882, %v2884
  %v2886 = vrot.slane %v2879, %v2885
  %v2887 = vcombine.low %v2862, %v2870
  %v2888 = vcombine.high %v2862, %v2870
  %v2890 = vunpack.c.l.s4 1934713408
  %v2891 = vunpack.c.0.s8 %v2890
  %v2892 = vlaneseq
  %v2893 = vshrl.u32 %v2892, 7
  %v2894 = vsub.s32 %v2891, %v2893
  %v2895 = vrot.slane %v2887, %v2894
  %v2897 = vunpack.c.l.s4 1934713408
  %v2898 = vunpack.c.0.s8 %v2897
  %v2899 = vlaneseq
  %v2900 = vshrl.u32 %v2899, 7
  %v2901 = vsub.s32 %v2898, %v2900
  %v2902 = vrot.slane %v2888, %v2901
  %v2903 = vcombine.low %v2878, %v2886
  %v2904 = vcombine.high %v2878, %v2886
  %v2906 = vunpack.c.l.s4 1934713408
  %v2907 = vunpack.c.0.s8 %v2906
  %v2908 = vlaneseq
  %v2909 = vshrl.u32 %v2908, 7
  %v2910 = vsub.s32 %v2907, %v2909
  %v2911 = vrot.slane %v2903, %v2910
  %v2913 = vunpack.c.l.s4 1934713408
  %v2914 = vunpack.c.0.s8 %v2913
  %v2915 = vlaneseq
  %v2916 = vshrl.u32 %v2915, 7
  %v2917 = vsub.s32 %v2914, %v2916
  %v2918 = vrot.slane %v2904, %v2917
  %v2919 = vcombine.low %v2895, %v2911
  %v2920 = vcombine.high %v2895, %v2911
  %v2921 = vcombine.low %v2902, %v2918
  %v2922 = vcombine.high %v2902, %v2918
  %v2923 = vcombine.low %v2827, %v2834
  %v2925 = vunpack.c.l.s4 1983009808
  %v2926 = vunpack.c.0.s8 %v2925
  %v2927 = vlaneseq
  %v2928 = vshrl.u32 %v2927, 7
  %v2929 = vsub.s32 %v2926, %v2928
  %v2930 = vrot.slane %v2923, %v2929
  %v2931 = vcombine.low %v2851, %v2852
  %v2933 = vunpack.c.l.s4 1983009808
  %v2934 = vunpack.c.0.s8 %v2933
  %v2935 = vlaneseq
  %v2936 = vshrl.u32 %v2935, 7
  %v2937 = vsub.s32 %v2934, %v2936
  %v2938 = vrot.slane %v2931, %v2937
  %v2939 = vcombine.low %v2843, %v2850
  %v2941 = vunpack.c.l.s4 1983009808
  %v2942 = vunpack.c.0.s8 %v2941
  %v2943 = vlaneseq
  %v2944 = vshrl.u32 %v2943, 7
  %v2945 = vsub.s32 %v2942, %v2944
  %v2946 = vrot.slane %v2939, %v2945
  %v2947 = vcombine.low %v2853, %v2854
  %v2949 = vunpack.c.l.s4 1983009808
  %v2950 = vunpack.c.0.s8 %v2949
  %v2951 = vlaneseq
  %v2952 = vshrl.u32 %v2951, 7
  %v2953 = vsub.s32 %v2950, %v2952
  %v2954 = vrot.slane %v2947, %v2953
  %v2955 = vcombine.low %v2930, %v2938
  %v2956 = vcombine.high %v2930, %v2938
  %v2958 = vunpack.c.l.s4 1934713408
  %v2959 = vunpack.c.0.s8 %v2958
  %v2960 = vlaneseq
  %v2961 = vshrl.u32 %v2960, 7
  %v2962 = vsub.s32 %v2959, %v2961
  %v2963 = vrot.slane %v2955, %v2962
  %v2965 = vunpack.c.l.s4 1934713408
  %v2966 = vunpack.c.0.s8 %v2965
  %v2967 = vlaneseq
  %v2968 = vshrl.u32 %v2967, 7
  %v2969 = vsub.s32 %v2966, %v2968
  %v2970 = vrot.slane %v2956, %v2969
  %v2971 = vcombine.low %v2946, %v2954
  %v2972 = vcombine.high %v2946, %v2954
  %v2974 = vunpack.c.l.s4 1934713408
  %v2975 = vunpack.c.0.s8 %v2974
  %v2976 = vlaneseq
  %v2977 = vshrl.u32 %v2976, 7
  %v2978 = vsub.s32 %v2975, %v2977
  %v2979 = vrot.slane %v2971, %v2978
  %v2981 = vunpack.c.l.s4 1934713408
  %v2982 = vunpack.c.0.s8 %v2981
  %v2983 = vlaneseq
  %v2984 = vshrl.u32 %v2983, 7
  %v2985 = vsub.s32 %v2982, %v2984
  %v2986 = vrot.slane %v2972, %v2985
  %v2987 = vcombine.low %v2963, %v2979
  %v2988 = vcombine.high %v2963, %v2979
  %v2989 = vcombine.low %v2970, %v2986
  %v2990 = vcombine.high %v2970, %v2986
  %v2991 = vpack.c.bf16 %v2919, %v2919
  %v2992 = vpack.c.bf16 %v2920, %v2920
  %v2993 = vpack.c.bf16 %v2921, %v2921
  %v2994 = vpack.c.bf16 %v2922, %v2922
  %v2995 = vpack.c.bf16 %v2987, %v2987
  %v2996 = vpack.c.bf16 %v2988, %v2988
  %v2997 = vpack.c.bf16 %v2989, %v2989
  %v2998 = vpack.c.bf16 %v2990, %v2990
  %2999 = vrot.lane.b32.xlu0 %v2693, 96
  %v3000 = vpop.permute.xlu0 %2999
  %3001 = vrot.lane.b32.xlu0 %v2696, 96
  %v3002 = vpop.permute.xlu0 %3001
  %3003 = vrot.lane.b32.xlu0 %v2702, 96
  %v3004 = vpop.permute.xlu0 %3003
  %3005 = vrot.lane.b32.xlu0 %v2704, 96
  %v3006 = vpop.permute.xlu0 %3005
  %3007 = vrot.lane.b32.xlu0 %v2708, 96
  %v3008 = vpop.permute.xlu0 %3007
  %3009 = vrot.lane.b32.xlu0 %v2710, 96
  %v3010 = vpop.permute.xlu0 %3009
  %3011 = vrot.lane.b32.xlu0 %v2714, 96
  %v3012 = vpop.permute.xlu0 %3011
  %3013 = vrot.lane.b32.xlu0 %v2716, 96
  %v3014 = vpop.permute.xlu0 %3013
  %v3023 = vcombine.low %v3000, %v3008
  %v3024 = vcombine.high %v3000, %v3008
  %v3026 = vunpack.c.l.s4 1983009808
  %v3027 = vunpack.c.0.s8 %v3026
  %v3028 = vlaneseq
  %v3029 = vshrl.u32 %v3028, 7
  %v3030 = vsub.s32 %v3027, %v3029
  %v3031 = vrot.slane %v3023, %v3030
  %v3033 = vunpack.c.l.s4 1983009808
  %v3034 = vunpack.c.0.s8 %v3033
  %v3035 = vlaneseq
  %v3036 = vshrl.u32 %v3035, 7
  %v3037 = vsub.s32 %v3034, %v3036
  %v3038 = vrot.slane %v3024, %v3037
  %v3039 = vcombine.low %v3004, %v3012
  %v3040 = vcombine.high %v3004, %v3012
  %v3042 = vunpack.c.l.s4 1983009808
  %v3043 = vunpack.c.0.s8 %v3042
  %v3044 = vlaneseq
  %v3045 = vshrl.u32 %v3044, 7
  %v3046 = vsub.s32 %v3043, %v3045
  %v3047 = vrot.slane %v3039, %v3046
  %v3049 = vunpack.c.l.s4 1983009808
  %v3050 = vunpack.c.0.s8 %v3049
  %v3051 = vlaneseq
  %v3052 = vshrl.u32 %v3051, 7
  %v3053 = vsub.s32 %v3050, %v3052
  %v3054 = vrot.slane %v3040, %v3053
  %v3055 = vcombine.low %v3031, %v3047
  %v3056 = vcombine.high %v3031, %v3047
  %v3058 = vunpack.c.l.s4 1934713408
  %v3059 = vunpack.c.0.s8 %v3058
  %v3060 = vlaneseq
  %v3061 = vshrl.u32 %v3060, 7
  %v3062 = vsub.s32 %v3059, %v3061
  %v3063 = vrot.slane %v3055, %v3062
  %v3065 = vunpack.c.l.s4 1934713408
  %v3066 = vunpack.c.0.s8 %v3065
  %v3067 = vlaneseq
  %v3068 = vshrl.u32 %v3067, 7
  %v3069 = vsub.s32 %v3066, %v3068
  %v3070 = vrot.slane %v3056, %v3069
  %v3071 = vcombine.low %v3038, %v3054
  %v3072 = vcombine.high %v3038, %v3054
  %v3074 = vunpack.c.l.s4 1934713408
  %v3075 = vunpack.c.0.s8 %v3074
  %v3076 = vlaneseq
  %v3077 = vshrl.u32 %v3076, 7
  %v3078 = vsub.s32 %v3075, %v3077
  %v3079 = vrot.slane %v3071, %v3078
  %v3081 = vunpack.c.l.s4 1934713408
  %v3082 = vunpack.c.0.s8 %v3081
  %v3083 = vlaneseq
  %v3084 = vshrl.u32 %v3083, 7
  %v3085 = vsub.s32 %v3082, %v3084
  %v3086 = vrot.slane %v3072, %v3085
  %v3087 = vcombine.high %v3063, 0.0
  %v3088 = vcombine.high %v3070, 0.0
  %v3089 = vcombine.high %v3079, 0.0
  %v3090 = vcombine.high %v3086, 0.0
  %v3091 = vcombine.low %v3002, %v3010
  %v3092 = vcombine.high %v3002, %v3010
  %v3094 = vunpack.c.l.s4 1983009808
  %v3095 = vunpack.c.0.s8 %v3094
  %v3096 = vlaneseq
  %v3097 = vshrl.u32 %v3096, 7
  %v3098 = vsub.s32 %v3095, %v3097
  %v3099 = vrot.slane %v3091, %v3098
  %v3101 = vunpack.c.l.s4 1983009808
  %v3102 = vunpack.c.0.s8 %v3101
  %v3103 = vlaneseq
  %v3104 = vshrl.u32 %v3103, 7
  %v3105 = vsub.s32 %v3102, %v3104
  %v3106 = vrot.slane %v3092, %v3105
  %v3107 = vcombine.low %v3006, %v3014
  %v3108 = vcombine.high %v3006, %v3014
  %v3110 = vunpack.c.l.s4 1983009808
  %v3111 = vunpack.c.0.s8 %v3110
  %v3112 = vlaneseq
  %v3113 = vshrl.u32 %v3112, 7
  %v3114 = vsub.s32 %v3111, %v3113
  %v3115 = vrot.slane %v3107, %v3114
  %v3117 = vunpack.c.l.s4 1983009808
  %v3118 = vunpack.c.0.s8 %v3117
  %v3119 = vlaneseq
  %v3120 = vshrl.u32 %v3119, 7
  %v3121 = vsub.s32 %v3118, %v3120
  %v3122 = vrot.slane %v3108, %v3121
  %v3123 = vcombine.low %v3099, %v3115
  %v3124 = vcombine.high %v3099, %v3115
  %v3126 = vunpack.c.l.s4 1934713408
  %v3127 = vunpack.c.0.s8 %v3126
  %v3128 = vlaneseq
  %v3129 = vshrl.u32 %v3128, 7
  %v3130 = vsub.s32 %v3127, %v3129
  %v3131 = vrot.slane %v3123, %v3130
  %v3133 = vunpack.c.l.s4 1934713408
  %v3134 = vunpack.c.0.s8 %v3133
  %v3135 = vlaneseq
  %v3136 = vshrl.u32 %v3135, 7
  %v3137 = vsub.s32 %v3134, %v3136
  %v3138 = vrot.slane %v3124, %v3137
  %v3139 = vcombine.low %v3106, %v3122
  %v3140 = vcombine.high %v3106, %v3122
  %v3142 = vunpack.c.l.s4 1934713408
  %v3143 = vunpack.c.0.s8 %v3142
  %v3144 = vlaneseq
  %v3145 = vshrl.u32 %v3144, 7
  %v3146 = vsub.s32 %v3143, %v3145
  %v3147 = vrot.slane %v3139, %v3146
  %v3149 = vunpack.c.l.s4 1934713408
  %v3150 = vunpack.c.0.s8 %v3149
  %v3151 = vlaneseq
  %v3152 = vshrl.u32 %v3151, 7
  %v3153 = vsub.s32 %v3150, %v3152
  %v3154 = vrot.slane %v3140, %v3153
  %v3155 = vcombine.high %v3131, 0.0
  %v3156 = vcombine.high %v3138, 0.0
  %v3157 = vcombine.high %v3147, 0.0
  %v3158 = vcombine.high %v3154, 0.0
  %v3159 = vcombine.low %v3063, %v3070
  %v3161 = vunpack.c.l.s4 1983009808
  %v3162 = vunpack.c.0.s8 %v3161
  %v3163 = vlaneseq
  %v3164 = vshrl.u32 %v3163, 7
  %v3165 = vsub.s32 %v3162, %v3164
  %v3166 = vrot.slane %v3159, %v3165
  %v3167 = vcombine.low %v3087, %v3088
  %v3169 = vunpack.c.l.s4 1983009808
  %v3170 = vunpack.c.0.s8 %v3169
  %v3171 = vlaneseq
  %v3172 = vshrl.u32 %v3171, 7
  %v3173 = vsub.s32 %v3170, %v3172
  %v3174 = vrot.slane %v3167, %v3173
  %v3175 = vcombine.low %v3079, %v3086
  %v3177 = vunpack.c.l.s4 1983009808
  %v3178 = vunpack.c.0.s8 %v3177
  %v3179 = vlaneseq
  %v3180 = vshrl.u32 %v3179, 7
  %v3181 = vsub.s32 %v3178, %v3180
  %v3182 = vrot.slane %v3175, %v3181
  %v3183 = vcombine.low %v3089, %v3090
  %v3185 = vunpack.c.l.s4 1983009808
  %v3186 = vunpack.c.0.s8 %v3185
  %v3187 = vlaneseq
  %v3188 = vshrl.u32 %v3187, 7
  %v3189 = vsub.s32 %v3186, %v3188
  %v3190 = vrot.slane %v3183, %v3189
  %v3191 = vcombine.low %v3166, %v3174
  %v3192 = vcombine.high %v3166, %v3174
  %v3194 = vunpack.c.l.s4 1934713408
  %v3195 = vunpack.c.0.s8 %v3194
  %v3196 = vlaneseq
  %v3197 = vshrl.u32 %v3196, 7
  %v3198 = vsub.s32 %v3195, %v3197
  %v3199 = vrot.slane %v3191, %v3198
  %v3201 = vunpack.c.l.s4 1934713408
  %v3202 = vunpack.c.0.s8 %v3201
  %v3203 = vlaneseq
  %v3204 = vshrl.u32 %v3203, 7
  %v3205 = vsub.s32 %v3202, %v3204
  %v3206 = vrot.slane %v3192, %v3205
  %v3207 = vcombine.low %v3182, %v3190
  %v3208 = vcombine.high %v3182, %v3190
  %v3210 = vunpack.c.l.s4 1934713408
  %v3211 = vunpack.c.0.s8 %v3210
  %v3212 = vlaneseq
  %v3213 = vshrl.u32 %v3212, 7
  %v3214 = vsub.s32 %v3211, %v3213
  %v3215 = vrot.slane %v3207, %v3214
  %v3217 = vunpack.c.l.s4 1934713408
  %v3218 = vunpack.c.0.s8 %v3217
  %v3219 = vlaneseq
  %v3220 = vshrl.u32 %v3219, 7
  %v3221 = vsub.s32 %v3218, %v3220
  %v3222 = vrot.slane %v3208, %v3221
  %v3223 = vcombine.low %v3199, %v3215
  %v3224 = vcombine.high %v3199, %v3215
  %v3225 = vcombine.low %v3206, %v3222
  %v3226 = vcombine.high %v3206, %v3222
  %v3227 = vcombine.low %v3131, %v3138
  %v3229 = vunpack.c.l.s4 1983009808
  %v3230 = vunpack.c.0.s8 %v3229
  %v3231 = vlaneseq
  %v3232 = vshrl.u32 %v3231, 7
  %v3233 = vsub.s32 %v3230, %v3232
  %v3234 = vrot.slane %v3227, %v3233
  %v3235 = vcombine.low %v3155, %v3156
  %v3237 = vunpack.c.l.s4 1983009808
  %v3238 = vunpack.c.0.s8 %v3237
  %v3239 = vlaneseq
  %v3240 = vshrl.u32 %v3239, 7
  %v3241 = vsub.s32 %v3238, %v3240
  %v3242 = vrot.slane %v3235, %v3241
  %v3243 = vcombine.low %v3147, %v3154
  %v3245 = vunpack.c.l.s4 1983009808
  %v3246 = vunpack.c.0.s8 %v3245
  %v3247 = vlaneseq
  %v3248 = vshrl.u32 %v3247, 7
  %v3249 = vsub.s32 %v3246, %v3248
  %v3250 = vrot.slane %v3243, %v3249
  %v3251 = vcombine.low %v3157, %v3158
  %v3253 = vunpack.c.l.s4 1983009808
  %v3254 = vunpack.c.0.s8 %v3253
  %v3255 = vlaneseq
  %v3256 = vshrl.u32 %v3255, 7
  %v3257 = vsub.s32 %v3254, %v3256
  %v3258 = vrot.slane %v3251, %v3257
  %v3259 = vcombine.low %v3234, %v3242
  %v3260 = vcombine.high %v3234, %v3242
  %v3262 = vunpack.c.l.s4 1934713408
  %v3263 = vunpack.c.0.s8 %v3262
  %v3264 = vlaneseq
  %v3265 = vshrl.u32 %v3264, 7
  %v3266 = vsub.s32 %v3263, %v3265
  %v3267 = vrot.slane %v3259, %v3266
  %v3269 = vunpack.c.l.s4 1934713408
  %v3270 = vunpack.c.0.s8 %v3269
  %v3271 = vlaneseq
  %v3272 = vshrl.u32 %v3271, 7
  %v3273 = vsub.s32 %v3270, %v3272
  %v3274 = vrot.slane %v3260, %v3273
  %v3275 = vcombine.low %v3250, %v3258
  %v3276 = vcombine.high %v3250, %v3258
  %v3278 = vunpack.c.l.s4 1934713408
  %v3279 = vunpack.c.0.s8 %v3278
  %v3280 = vlaneseq
  %v3281 = vshrl.u32 %v3280, 7
  %v3282 = vsub.s32 %v3279, %v3281
  %v3283 = vrot.slane %v3275, %v3282
  %v3285 = vunpack.c.l.s4 1934713408
  %v3286 = vunpack.c.0.s8 %v3285
  %v3287 = vlaneseq
  %v3288 = vshrl.u32 %v3287, 7
  %v3289 = vsub.s32 %v3286, %v3288
  %v3290 = vrot.slane %v3276, %v3289
  %v3291 = vcombine.low %v3267, %v3283
  %v3292 = vcombine.high %v3267, %v3283
  %v3293 = vcombine.low %v3274, %v3290
  %v3294 = vcombine.high %v3274, %v3290
  %v3295 = vpack.c.bf16 %v3223, %v3223
  %v3296 = vpack.c.bf16 %v3224, %v3224
  %v3297 = vpack.c.bf16 %v3225, %v3225
  %v3298 = vpack.c.bf16 %v3226, %v3226
  %v3299 = vpack.c.bf16 %v3291, %v3291
  %v3300 = vpack.c.bf16 %v3292, %v3292
  %v3301 = vpack.c.bf16 %v3293, %v3293
  %v3302 = vpack.c.bf16 %v3294, %v3294
  %3303 = vrot.lane.b32.xlu0 %v2693, 64
  %v3304 = vpop.permute.xlu0 %3303
  %3305 = vrot.lane.b32.xlu0 %v2696, 64
  %v3306 = vpop.permute.xlu0 %3305
  %3307 = vrot.lane.b32.xlu0 %v2702, 64
  %v3308 = vpop.permute.xlu0 %3307
  %3309 = vrot.lane.b32.xlu0 %v2704, 64
  %v3310 = vpop.permute.xlu0 %3309
  %3311 = vrot.lane.b32.xlu0 %v2708, 64
  %v3312 = vpop.permute.xlu0 %3311
  %3313 = vrot.lane.b32.xlu0 %v2710, 64
  %v3314 = vpop.permute.xlu0 %3313
  %3315 = vrot.lane.b32.xlu0 %v2714, 64
  %v3316 = vpop.permute.xlu0 %3315
  %3317 = vrot.lane.b32.xlu0 %v2716, 64
  %v3318 = vpop.permute.xlu0 %3317
  %v3327 = vcombine.low %v3304, %v3312
  %v3328 = vcombine.high %v3304, %v3312
  %v3330 = vunpack.c.l.s4 1983009808
  %v3331 = vunpack.c.0.s8 %v3330
  %v3332 = vlaneseq
  %v3333 = vshrl.u32 %v3332, 7
  %v3334 = vsub.s32 %v3331, %v3333
  %v3335 = vrot.slane %v3327, %v3334
  %v3337 = vunpack.c.l.s4 1983009808
  %v3338 = vunpack.c.0.s8 %v3337
  %v3339 = vlaneseq
  %v3340 = vshrl.u32 %v3339, 7
  %v3341 = vsub.s32 %v3338, %v3340
  %v3342 = vrot.slane %v3328, %v3341
  %v3343 = vcombine.low %v3308, %v3316
  %v3344 = vcombine.high %v3308, %v3316
  %v3346 = vunpack.c.l.s4 1983009808
  %v3347 = vunpack.c.0.s8 %v3346
  %v3348 = vlaneseq
  %v3349 = vshrl.u32 %v3348, 7
  %v3350 = vsub.s32 %v3347, %v3349
  %v3351 = vrot.slane %v3343, %v3350
  %v3353 = vunpack.c.l.s4 1983009808
  %v3354 = vunpack.c.0.s8 %v3353
  %v3355 = vlaneseq
  %v3356 = vshrl.u32 %v3355, 7
  %v3357 = vsub.s32 %v3354, %v3356
  %v3358 = vrot.slane %v3344, %v3357
  %v3359 = vcombine.low %v3335, %v3351
  %v3360 = vcombine.high %v3335, %v3351
  %v3362 = vunpack.c.l.s4 1934713408
  %v3363 = vunpack.c.0.s8 %v3362
  %v3364 = vlaneseq
  %v3365 = vshrl.u32 %v3364, 7
  %v3366 = vsub.s32 %v3363, %v3365
  %v3367 = vrot.slane %v3359, %v3366
  %v3369 = vunpack.c.l.s4 1934713408
  %v3370 = vunpack.c.0.s8 %v3369
  %v3371 = vlaneseq
  %v3372 = vshrl.u32 %v3371, 7
  %v3373 = vsub.s32 %v3370, %v3372
  %v3374 = vrot.slane %v3360, %v3373
  %v3375 = vcombine.low %v3342, %v3358
  %v3376 = vcombine.high %v3342, %v3358
  %v3378 = vunpack.c.l.s4 1934713408
  %v3379 = vunpack.c.0.s8 %v3378
  %v3380 = vlaneseq
  %v3381 = vshrl.u32 %v3380, 7
  %v3382 = vsub.s32 %v3379, %v3381
  %v3383 = vrot.slane %v3375, %v3382
  %v3385 = vunpack.c.l.s4 1934713408
  %v3386 = vunpack.c.0.s8 %v3385
  %v3387 = vlaneseq
  %v3388 = vshrl.u32 %v3387, 7
  %v3389 = vsub.s32 %v3386, %v3388
  %v3390 = vrot.slane %v3376, %v3389
  %v3391 = vcombine.high %v3367, 0.0
  %v3392 = vcombine.high %v3374, 0.0
  %v3393 = vcombine.high %v3383, 0.0
  %v3394 = vcombine.high %v3390, 0.0
  %v3395 = vcombine.low %v3306, %v3314
  %v3396 = vcombine.high %v3306, %v3314
  %v3398 = vunpack.c.l.s4 1983009808
  %v3399 = vunpack.c.0.s8 %v3398
  %v3400 = vlaneseq
  %v3401 = vshrl.u32 %v3400, 7
  %v3402 = vsub.s32 %v3399, %v3401
  %v3403 = vrot.slane %v3395, %v3402
  %v3405 = vunpack.c.l.s4 1983009808
  %v3406 = vunpack.c.0.s8 %v3405
  %v3407 = vlaneseq
  %v3408 = vshrl.u32 %v3407, 7
  %v3409 = vsub.s32 %v3406, %v3408
  %v3410 = vrot.slane %v3396, %v3409
  %v3411 = vcombine.low %v3310, %v3318
  %v3412 = vcombine.high %v3310, %v3318
  %v3414 = vunpack.c.l.s4 1983009808
  %v3415 = vunpack.c.0.s8 %v3414
  %v3416 = vlaneseq
  %v3417 = vshrl.u32 %v3416, 7
  %v3418 = vsub.s32 %v3415, %v3417
  %v3419 = vrot.slane %v3411, %v3418
  %v3421 = vunpack.c.l.s4 1983009808
  %v3422 = vunpack.c.0.s8 %v3421
  %v3423 = vlaneseq
  %v3424 = vshrl.u32 %v3423, 7
  %v3425 = vsub.s32 %v3422, %v3424
  %v3426 = vrot.slane %v3412, %v3425
  %v3427 = vcombine.low %v3403, %v3419
  %v3428 = vcombine.high %v3403, %v3419
  %v3430 = vunpack.c.l.s4 1934713408
  %v3431 = vunpack.c.0.s8 %v3430
  %v3432 = vlaneseq
  %v3433 = vshrl.u32 %v3432, 7
  %v3434 = vsub.s32 %v3431, %v3433
  %v3435 = vrot.slane %v3427, %v3434
  %v3437 = vunpack.c.l.s4 1934713408
  %v3438 = vunpack.c.0.s8 %v3437
  %v3439 = vlaneseq
  %v3440 = vshrl.u32 %v3439, 7
  %v3441 = vsub.s32 %v3438, %v3440
  %v3442 = vrot.slane %v3428, %v3441
  %v3443 = vcombine.low %v3410, %v3426
  %v3444 = vcombine.high %v3410, %v3426
  %v3446 = vunpack.c.l.s4 1934713408
  %v3447 = vunpack.c.0.s8 %v3446
  %v3448 = vlaneseq
  %v3449 = vshrl.u32 %v3448, 7
  %v3450 = vsub.s32 %v3447, %v3449
  %v3451 = vrot.slane %v3443, %v3450
  %v3453 = vunpack.c.l.s4 1934713408
  %v3454 = vunpack.c.0.s8 %v3453
  %v3455 = vlaneseq
  %v3456 = vshrl.u32 %v3455, 7
  %v3457 = vsub.s32 %v3454, %v3456
  %v3458 = vrot.slane %v3444, %v3457
  %v3459 = vcombine.high %v3435, 0.0
  %v3460 = vcombine.high %v3442, 0.0
  %v3461 = vcombine.high %v3451, 0.0
  %v3462 = vcombine.high %v3458, 0.0
  %v3463 = vcombine.low %v3367, %v3374
  %v3465 = vunpack.c.l.s4 1983009808
  %v3466 = vunpack.c.0.s8 %v3465
  %v3467 = vlaneseq
  %v3468 = vshrl.u32 %v3467, 7
  %v3469 = vsub.s32 %v3466, %v3468
  %v3470 = vrot.slane %v3463, %v3469
  %v3471 = vcombine.low %v3391, %v3392
  %v3473 = vunpack.c.l.s4 1983009808
  %v3474 = vunpack.c.0.s8 %v3473
  %v3475 = vlaneseq
  %v3476 = vshrl.u32 %v3475, 7
  %v3477 = vsub.s32 %v3474, %v3476
  %v3478 = vrot.slane %v3471, %v3477
  %v3479 = vcombine.low %v3383, %v3390
  %v3481 = vunpack.c.l.s4 1983009808
  %v3482 = vunpack.c.0.s8 %v3481
  %v3483 = vlaneseq
  %v3484 = vshrl.u32 %v3483, 7
  %v3485 = vsub.s32 %v3482, %v3484
  %v3486 = vrot.slane %v3479, %v3485
  %v3487 = vcombine.low %v3393, %v3394
  %v3489 = vunpack.c.l.s4 1983009808
  %v3490 = vunpack.c.0.s8 %v3489
  %v3491 = vlaneseq
  %v3492 = vshrl.u32 %v3491, 7
  %v3493 = vsub.s32 %v3490, %v3492
  %v3494 = vrot.slane %v3487, %v3493
  %v3495 = vcombine.low %v3470, %v3478
  %v3496 = vcombine.high %v3470, %v3478
  %v3498 = vunpack.c.l.s4 1934713408
  %v3499 = vunpack.c.0.s8 %v3498
  %v3500 = vlaneseq
  %v3501 = vshrl.u32 %v3500, 7
  %v3502 = vsub.s32 %v3499, %v3501
  %v3503 = vrot.slane %v3495, %v3502
  %v3505 = vunpack.c.l.s4 1934713408
  %v3506 = vunpack.c.0.s8 %v3505
  %v3507 = vlaneseq
  %v3508 = vshrl.u32 %v3507, 7
  %v3509 = vsub.s32 %v3506, %v3508
  %v3510 = vrot.slane %v3496, %v3509
  %v3511 = vcombine.low %v3486, %v3494
  %v3512 = vcombine.high %v3486, %v3494
  %v3514 = vunpack.c.l.s4 1934713408
  %v3515 = vunpack.c.0.s8 %v3514
  %v3516 = vlaneseq
  %v3517 = vshrl.u32 %v3516, 7
  %v3518 = vsub.s32 %v3515, %v3517
  %v3519 = vrot.slane %v3511, %v3518
  %v3521 = vunpack.c.l.s4 1934713408
  %v3522 = vunpack.c.0.s8 %v3521
  %v3523 = vlaneseq
  %v3524 = vshrl.u32 %v3523, 7
  %v3525 = vsub.s32 %v3522, %v3524
  %v3526 = vrot.slane %v3512, %v3525
  %v3527 = vcombine.low %v3503, %v3519
  %v3528 = vcombine.high %v3503, %v3519
  %v3529 = vcombine.low %v3510, %v3526
  %v3530 = vcombine.high %v3510, %v3526
  %v3531 = vcombine.low %v3435, %v3442
  %v3533 = vunpack.c.l.s4 1983009808
  %v3534 = vunpack.c.0.s8 %v3533
  %v3535 = vlaneseq
  %v3536 = vshrl.u32 %v3535, 7
  %v3537 = vsub.s32 %v3534, %v3536
  %v3538 = vrot.slane %v3531, %v3537
  %v3539 = vcombine.low %v3459, %v3460
  %v3541 = vunpack.c.l.s4 1983009808
  %v3542 = vunpack.c.0.s8 %v3541
  %v3543 = vlaneseq
  %v3544 = vshrl.u32 %v3543, 7
  %v3545 = vsub.s32 %v3542, %v3544
  %v3546 = vrot.slane %v3539, %v3545
  %v3547 = vcombine.low %v3451, %v3458
  %v3549 = vunpack.c.l.s4 1983009808
  %v3550 = vunpack.c.0.s8 %v3549
  %v3551 = vlaneseq
  %v3552 = vshrl.u32 %v3551, 7
  %v3553 = vsub.s32 %v3550, %v3552
  %v3554 = vrot.slane %v3547, %v3553
  %v3555 = vcombine.low %v3461, %v3462
  %v3557 = vunpack.c.l.s4 1983009808
  %v3558 = vunpack.c.0.s8 %v3557
  %v3559 = vlaneseq
  %v3560 = vshrl.u32 %v3559, 7
  %v3561 = vsub.s32 %v3558, %v3560
  %v3562 = vrot.slane %v3555, %v3561
  %v3563 = vcombine.low %v3538, %v3546
  %v3564 = vcombine.high %v3538, %v3546
  %v3566 = vunpack.c.l.s4 1934713408
  %v3567 = vunpack.c.0.s8 %v3566
  %v3568 = vlaneseq
  %v3569 = vshrl.u32 %v3568, 7
  %v3570 = vsub.s32 %v3567, %v3569
  %v3571 = vrot.slane %v3563, %v3570
  %v3573 = vunpack.c.l.s4 1934713408
  %v3574 = vunpack.c.0.s8 %v3573
  %v3575 = vlaneseq
  %v3576 = vshrl.u32 %v3575, 7
  %v3577 = vsub.s32 %v3574, %v3576
  %v3578 = vrot.slane %v3564, %v3577
  %v3579 = vcombine.low %v3554, %v3562
  %v3580 = vcombine.high %v3554, %v3562
  %v3582 = vunpack.c.l.s4 1934713408
  %v3583 = vunpack.c.0.s8 %v3582
  %v3584 = vlaneseq
  %v3585 = vshrl.u32 %v3584, 7
  %v3586 = vsub.s32 %v3583, %v3585
  %v3587 = vrot.slane %v3579, %v3586
  %v3589 = vunpack.c.l.s4 1934713408
  %v3590 = vunpack.c.0.s8 %v3589
  %v3591 = vlaneseq
  %v3592 = vshrl.u32 %v3591, 7
  %v3593 = vsub.s32 %v3590, %v3592
  %v3594 = vrot.slane %v3580, %v3593
  %v3595 = vcombine.low %v3571, %v3587
  %v3596 = vcombine.high %v3571, %v3587
  %v3597 = vcombine.low %v3578, %v3594
  %v3598 = vcombine.high %v3578, %v3594
  %v3599 = vpack.c.bf16 %v3527, %v3527
  %v3600 = vpack.c.bf16 %v3528, %v3528
  %v3601 = vpack.c.bf16 %v3529, %v3529
  %v3602 = vpack.c.bf16 %v3530, %v3530
  %v3603 = vpack.c.bf16 %v3595, %v3595
  %v3604 = vpack.c.bf16 %v3596, %v3596
  %v3605 = vpack.c.bf16 %v3597, %v3597
  %v3606 = vpack.c.bf16 %v3598, %v3598
  %v3608 = vsel %vm1119, %v2991, 0
  %v3611 = vsel %vm1119, %v3295, 0
  %3613 = vmatprep.subr.bf16.mxu0 0
  %3614 = vmatpush1.bf16.xpose.msra.mxu0 %v3611
  %3615 = vmatprep.subr.bf16.mxu0 0
  %3616 = vmatpush1.bf16.xpose.msra.mxu0 0
  %3617 = vmatprep.subr.bf16.mxu0 0
  %3618 = vmatpush1.bf16.xpose.msra.mxu0 0
  %3619 = vmatprep.subr.bf16.mxu0 0
  %3620 = vmatpush1.bf16.xpose.msra.mxu0 0
  %3621 = vmatprep.subr.bf16.mxu0 0
  %3622 = vmatpush1.bf16.xpose.msra.mxu0 0
  %3623 = vmatprep.subr.bf16.mxu0 0
  %3624 = vmatpush1.bf16.xpose.msra.mxu0 0
  %3625 = vmatprep.subr.bf16.mxu0 0
  %3626 = vmatpush1.bf16.xpose.msra.mxu0 0
  %3627 = vmatprep.subr.bf16.mxu0 0
  %3628 = vmatpush1.bf16.xpose.msra.mxu0 0
  %3629 = vmatprep.subr.bf16.mxu0 0
  %3630 = vmatpush1.bf16.xpose.msra.mxu0 0
  %3631 = vmatprep.subr.bf16.mxu0 0
  %3632 = vmatpush1.bf16.xpose.msra.mxu0 0
  %3633 = vmatprep.subr.bf16.mxu0 0
  %3634 = vmatpush1.bf16.xpose.msra.mxu0 0
  %3635 = vmatprep.subr.bf16.mxu0 0
  %3636 = vmatpush1.bf16.xpose.msra.mxu0 0
  %3637 = vmatprep.subr.bf16.mxu0 0
  %3638 = vmatpush1.bf16.xpose.msra.mxu0 0
  %3639 = vmatprep.subr.bf16.mxu0 0
  %3640 = vmatpush1.bf16.xpose.msra.mxu0 0
  %3641 = vmatprep.subr.bf16.mxu0 0
  %3642 = vmatpush1.bf16.xpose.msra.mxu0 0
  %3643 = vmatprep.subr.bf16.mxu0 0
  %3644 = vmatpush1.bf16.xpose.msra.mxu0 0
  %3645 = vmatprep.mubr.bf16.mxu0 0
  %3646 = vmatmul.mubr.bf16.gmra.mrb[0].mxu0 %v3608
  %v3647 = vpop.f32.mrb[0].mxu0
  %v3648 = vadd.f32 0.0, %v3647
  %v3649 = vpop.f32.mrb[0].mxu0
  %v3650 = vpop.f32.mrb[0].mxu0
  %v3651 = vpop.f32.mrb[0].mxu0
  %3652 = vdwg.mxu0
  %v3654 = vsel %vm1119, %v2992, 0
  %v3657 = vsel %vm1119, %v3296, 0
  %3659 = vmatprep.subr.bf16.mxu0 0
  %3660 = vmatpush1.bf16.xpose.msra.mxu0 %v3657
  %3661 = vmatprep.subr.bf16.mxu0 0
  %3662 = vmatpush1.bf16.xpose.msra.mxu0 0
  %3663 = vmatprep.subr.bf16.mxu0 0
  %3664 = vmatpush1.bf16.xpose.msra.mxu0 0
  %3665 = vmatprep.subr.bf16.mxu0 0
  %3666 = vmatpush1.bf16.xpose.msra.mxu0 0
  %3667 = vmatprep.subr.bf16.mxu0 0
  %3668 = vmatpush1.bf16.xpose.msra.mxu0 0
  %3669 = vmatprep.subr.bf16.mxu0 0
  %3670 = vmatpush1.bf16.xpose.msra.mxu0 0
  %3671 = vmatprep.subr.bf16.mxu0 0
  %3672 = vmatpush1.bf16.xpose.msra.mxu0 0
  %3673 = vmatprep.subr.bf16.mxu0 0
  %3674 = vmatpush1.bf16.xpose.msra.mxu0 0
  %3675 = vmatprep.subr.bf16.mxu0 0
  %3676 = vmatpush1.bf16.xpose.msra.mxu0 0
  %3677 = vmatprep.subr.bf16.mxu0 0
  %3678 = vmatpush1.bf16.xpose.msra.mxu0 0
  %3679 = vmatprep.subr.bf16.mxu0 0
  %3680 = vmatpush1.bf16.xpose.msra.mxu0 0
  %3681 = vmatprep.subr.bf16.mxu0 0
  %3682 = vmatpush1.bf16.xpose.msra.mxu0 0
  %3683 = vmatprep.subr.bf16.mxu0 0
  %3684 = vmatpush1.bf16.xpose.msra.mxu0 0
  %3685 = vmatprep.subr.bf16.mxu0 0
  %3686 = vmatpush1.bf16.xpose.msra.mxu0 0
  %3687 = vmatprep.subr.bf16.mxu0 0
  %3688 = vmatpush1.bf16.xpose.msra.mxu0 0
  %3689 = vmatprep.subr.bf16.mxu0 0
  %3690 = vmatpush1.bf16.xpose.msra.mxu0 0
  %3691 = vmatprep.mubr.bf16.mxu0 0
  %3692 = vmatmul.mubr.bf16.gmra.mrb[0].mxu0 %v3654
  %v3693 = vpop.f32.mrb[0].mxu0
  %v3694 = vadd.f32 0.0, %v3693
  %v3695 = vpop.f32.mrb[0].mxu0
  %v3696 = vpop.f32.mrb[0].mxu0
  %v3697 = vpop.f32.mrb[0].mxu0
  %3698 = vdwg.mxu0
  %v3700 = vsel %vm1119, %v2993, 0
  %v3703 = vsel %vm1119, %v3297, 0
  %3705 = vmatprep.subr.bf16.mxu0 0
  %3706 = vmatpush1.bf16.xpose.msra.mxu0 %v3703
  %3707 = vmatprep.subr.bf16.mxu0 0
  %3708 = vmatpush1.bf16.xpose.msra.mxu0 0
  %3709 = vmatprep.subr.bf16.mxu0 0
  %3710 = vmatpush1.bf16.xpose.msra.mxu0 0
  %3711 = vmatprep.subr.bf16.mxu0 0
  %3712 = vmatpush1.bf16.xpose.msra.mxu0 0
  %3713 = vmatprep.subr.bf16.mxu0 0
  %3714 = vmatpush1.bf16.xpose.msra.mxu0 0
  %3715 = vmatprep.subr.bf16.mxu0 0
  %3716 = vmatpush1.bf16.xpose.msra.mxu0 0
  %3717 = vmatprep.subr.bf16.mxu0 0
  %3718 = vmatpush1.bf16.xpose.msra.mxu0 0
  %3719 = vmatprep.subr.bf16.mxu0 0
  %3720 = vmatpush1.bf16.xpose.msra.mxu0 0
  %3721 = vmatprep.subr.bf16.mxu0 0
  %3722 = vmatpush1.bf16.xpose.msra.mxu0 0
  %3723 = vmatprep.subr.bf16.mxu0 0
  %3724 = vmatpush1.bf16.xpose.msra.mxu0 0
  %3725 = vmatprep.subr.bf16.mxu0 0
  %3726 = vmatpush1.bf16.xpose.msra.mxu0 0
  %3727 = vmatprep.subr.bf16.mxu0 0
  %3728 = vmatpush1.bf16.xpose.msra.mxu0 0
  %3729 = vmatprep.subr.bf16.mxu0 0
  %3730 = vmatpush1.bf16.xpose.msra.mxu0 0
  %3731 = vmatprep.subr.bf16.mxu0 0
  %3732 = vmatpush1.bf16.xpose.msra.mxu0 0
  %3733 = vmatprep.subr.bf16.mxu0 0
  %3734 = vmatpush1.bf16.xpose.msra.mxu0 0
  %3735 = vmatprep.subr.bf16.mxu0 0
  %3736 = vmatpush1.bf16.xpose.msra.mxu0 0
  %3737 = vmatprep.mubr.bf16.mxu0 0
  %3738 = vmatmul.mubr.bf16.gmra.mrb[0].mxu0 %v3700
  %v3739 = vpop.f32.mrb[0].mxu0
  %v3740 = vadd.f32 0.0, %v3739
  %v3741 = vpop.f32.mrb[0].mxu0
  %v3742 = vpop.f32.mrb[0].mxu0
  %v3743 = vpop.f32.mrb[0].mxu0
  %3744 = vdwg.mxu0
  %v3746 = vsel %vm1119, %v2994, 0
  %v3749 = vsel %vm1119, %v3298, 0
  %3751 = vmatprep.subr.bf16.mxu0 0
  %3752 = vmatpush1.bf16.xpose.msra.mxu0 %v3749
  %3753 = vmatprep.subr.bf16.mxu0 0
  %3754 = vmatpush1.bf16.xpose.msra.mxu0 0
  %3755 = vmatprep.subr.bf16.mxu0 0
  %3756 = vmatpush1.bf16.xpose.msra.mxu0 0
  %3757 = vmatprep.subr.bf16.mxu0 0
  %3758 = vmatpush1.bf16.xpose.msra.mxu0 0
  %3759 = vmatprep.subr.bf16.mxu0 0
  %3760 = vmatpush1.bf16.xpose.msra.mxu0 0
  %3761 = vmatprep.subr.bf16.mxu0 0
  %3762 = vmatpush1.bf16.xpose.msra.mxu0 0
  %3763 = vmatprep.subr.bf16.mxu0 0
  %3764 = vmatpush1.bf16.xpose.msra.mxu0 0
  %3765 = vmatprep.subr.bf16.mxu0 0
  %3766 = vmatpush1.bf16.xpose.msra.mxu0 0
  %3767 = vmatprep.subr.bf16.mxu0 0
  %3768 = vmatpush1.bf16.xpose.msra.mxu0 0
  %3769 = vmatprep.subr.bf16.mxu0 0
  %3770 = vmatpush1.bf16.xpose.msra.mxu0 0
  %3771 = vmatprep.subr.bf16.mxu0 0
  %3772 = vmatpush1.bf16.xpose.msra.mxu0 0
  %3773 = vmatprep.subr.bf16.mxu0 0
  %3774 = vmatpush1.bf16.xpose.msra.mxu0 0
  %3775 = vmatprep.subr.bf16.mxu0 0
  %3776 = vmatpush1.bf16.xpose.msra.mxu0 0
  %3777 = vmatprep.subr.bf16.mxu0 0
  %3778 = vmatpush1.bf16.xpose.msra.mxu0 0
  %3779 = vmatprep.subr.bf16.mxu0 0
  %3780 = vmatpush1.bf16.xpose.msra.mxu0 0
  %3781 = vmatprep.subr.bf16.mxu0 0
  %3782 = vmatpush1.bf16.xpose.msra.mxu0 0
  %3783 = vmatprep.mubr.bf16.mxu0 0
  %3784 = vmatmul.mubr.bf16.gmra.mrb[0].mxu0 %v3746
  %v3785 = vpop.f32.mrb[0].mxu0
  %v3786 = vadd.f32 0.0, %v3785
  %v3787 = vpop.f32.mrb[0].mxu0
  %v3788 = vpop.f32.mrb[0].mxu0
  %v3789 = vpop.f32.mrb[0].mxu0
  %3790 = vdwg.mxu0
  %v3792 = vsel %vm1119, %v2995, 0
  %v3795 = vsel %vm1119, %v3299, 0
  %3797 = vmatprep.subr.bf16.mxu0 0
  %3798 = vmatpush1.bf16.xpose.msra.mxu0 %v3795
  %3799 = vmatprep.subr.bf16.mxu0 0
  %3800 = vmatpush1.bf16.xpose.msra.mxu0 0
  %3801 = vmatprep.subr.bf16.mxu0 0
  %3802 = vmatpush1.bf16.xpose.msra.mxu0 0
  %3803 = vmatprep.subr.bf16.mxu0 0
  %3804 = vmatpush1.bf16.xpose.msra.mxu0 0
  %3805 = vmatprep.subr.bf16.mxu0 0
  %3806 = vmatpush1.bf16.xpose.msra.mxu0 0
  %3807 = vmatprep.subr.bf16.mxu0 0
  %3808 = vmatpush1.bf16.xpose.msra.mxu0 0
  %3809 = vmatprep.subr.bf16.mxu0 0
  %3810 = vmatpush1.bf16.xpose.msra.mxu0 0
  %3811 = vmatprep.subr.bf16.mxu0 0
  %3812 = vmatpush1.bf16.xpose.msra.mxu0 0
  %3813 = vmatprep.subr.bf16.mxu0 0
  %3814 = vmatpush1.bf16.xpose.msra.mxu0 0
  %3815 = vmatprep.subr.bf16.mxu0 0
  %3816 = vmatpush1.bf16.xpose.msra.mxu0 0
  %3817 = vmatprep.subr.bf16.mxu0 0
  %3818 = vmatpush1.bf16.xpose.msra.mxu0 0
  %3819 = vmatprep.subr.bf16.mxu0 0
  %3820 = vmatpush1.bf16.xpose.msra.mxu0 0
  %3821 = vmatprep.subr.bf16.mxu0 0
  %3822 = vmatpush1.bf16.xpose.msra.mxu0 0
  %3823 = vmatprep.subr.bf16.mxu0 0
  %3824 = vmatpush1.bf16.xpose.msra.mxu0 0
  %3825 = vmatprep.subr.bf16.mxu0 0
  %3826 = vmatpush1.bf16.xpose.msra.mxu0 0
  %3827 = vmatprep.subr.bf16.mxu0 0
  %3828 = vmatpush1.bf16.xpose.msra.mxu0 0
  %3829 = vmatprep.mubr.bf16.mxu0 0
  %3830 = vmatmul.mubr.bf16.gmra.mrb[0].mxu0 %v3792
  %v3831 = vpop.f32.mrb[0].mxu0
  %v3832 = vadd.f32 0.0, %v3831
  %v3833 = vpop.f32.mrb[0].mxu0
  %v3834 = vpop.f32.mrb[0].mxu0
  %v3835 = vpop.f32.mrb[0].mxu0
  %3836 = vdwg.mxu0
  %v3838 = vsel %vm1119, %v2996, 0
  %v3841 = vsel %vm1119, %v3300, 0
  %3843 = vmatprep.subr.bf16.mxu0 0
  %3844 = vmatpush1.bf16.xpose.msra.mxu0 %v3841
  %3845 = vmatprep.subr.bf16.mxu0 0
  %3846 = vmatpush1.bf16.xpose.msra.mxu0 0
  %3847 = vmatprep.subr.bf16.mxu0 0
  %3848 = vmatpush1.bf16.xpose.msra.mxu0 0
  %3849 = vmatprep.subr.bf16.mxu0 0
  %3850 = vmatpush1.bf16.xpose.msra.mxu0 0
  %3851 = vmatprep.subr.bf16.mxu0 0
  %3852 = vmatpush1.bf16.xpose.msra.mxu0 0
  %3853 = vmatprep.subr.bf16.mxu0 0
  %3854 = vmatpush1.bf16.xpose.msra.mxu0 0
  %3855 = vmatprep.subr.bf16.mxu0 0
  %3856 = vmatpush1.bf16.xpose.msra.mxu0 0
  %3857 = vmatprep.subr.bf16.mxu0 0
  %3858 = vmatpush1.bf16.xpose.msra.mxu0 0
  %3859 = vmatprep.subr.bf16.mxu0 0
  %3860 = vmatpush1.bf16.xpose.msra.mxu0 0
  %3861 = vmatprep.subr.bf16.mxu0 0
  %3862 = vmatpush1.bf16.xpose.msra.mxu0 0
  %3863 = vmatprep.subr.bf16.mxu0 0
  %3864 = vmatpush1.bf16.xpose.msra.mxu0 0
  %3865 = vmatprep.subr.bf16.mxu0 0
  %3866 = vmatpush1.bf16.xpose.msra.mxu0 0
  %3867 = vmatprep.subr.bf16.mxu0 0
  %3868 = vmatpush1.bf16.xpose.msra.mxu0 0
  %3869 = vmatprep.subr.bf16.mxu0 0
  %3870 = vmatpush1.bf16.xpose.msra.mxu0 0
  %3871 = vmatprep.subr.bf16.mxu0 0
  %3872 = vmatpush1.bf16.xpose.msra.mxu0 0
  %3873 = vmatprep.subr.bf16.mxu0 0
  %3874 = vmatpush1.bf16.xpose.msra.mxu0 0
  %3875 = vmatprep.mubr.bf16.mxu0 0
  %3876 = vmatmul.mubr.bf16.gmra.mrb[0].mxu0 %v3838
  %v3877 = vpop.f32.mrb[0].mxu0
  %v3878 = vadd.f32 0.0, %v3877
  %v3879 = vpop.f32.mrb[0].mxu0
  %v3880 = vpop.f32.mrb[0].mxu0
  %v3881 = vpop.f32.mrb[0].mxu0
  %3882 = vdwg.mxu0
  %v3884 = vsel %vm1119, %v2997, 0
  %v3887 = vsel %vm1119, %v3301, 0
  %3889 = vmatprep.subr.bf16.mxu0 0
  %3890 = vmatpush1.bf16.xpose.msra.mxu0 %v3887
  %3891 = vmatprep.subr.bf16.mxu0 0
  %3892 = vmatpush1.bf16.xpose.msra.mxu0 0
  %3893 = vmatprep.subr.bf16.mxu0 0
  %3894 = vmatpush1.bf16.xpose.msra.mxu0 0
  %3895 = vmatprep.subr.bf16.mxu0 0
  %3896 = vmatpush1.bf16.xpose.msra.mxu0 0
  %3897 = vmatprep.subr.bf16.mxu0 0
  %3898 = vmatpush1.bf16.xpose.msra.mxu0 0
  %3899 = vmatprep.subr.bf16.mxu0 0
  %3900 = vmatpush1.bf16.xpose.msra.mxu0 0
  %3901 = vmatprep.subr.bf16.mxu0 0
  %3902 = vmatpush1.bf16.xpose.msra.mxu0 0
  %3903 = vmatprep.subr.bf16.mxu0 0
  %3904 = vmatpush1.bf16.xpose.msra.mxu0 0
  %3905 = vmatprep.subr.bf16.mxu0 0
  %3906 = vmatpush1.bf16.xpose.msra.mxu0 0
  %3907 = vmatprep.subr.bf16.mxu0 0
  %3908 = vmatpush1.bf16.xpose.msra.mxu0 0
  %3909 = vmatprep.subr.bf16.mxu0 0
  %3910 = vmatpush1.bf16.xpose.msra.mxu0 0
  %3911 = vmatprep.subr.bf16.mxu0 0
  %3912 = vmatpush1.bf16.xpose.msra.mxu0 0
  %3913 = vmatprep.subr.bf16.mxu0 0
  %3914 = vmatpush1.bf16.xpose.msra.mxu0 0
  %3915 = vmatprep.subr.bf16.mxu0 0
  %3916 = vmatpush1.bf16.xpose.msra.mxu0 0
  %3917 = vmatprep.subr.bf16.mxu0 0
  %3918 = vmatpush1.bf16.xpose.msra.mxu0 0
  %3919 = vmatprep.subr.bf16.mxu0 0
  %3920 = vmatpush1.bf16.xpose.msra.mxu0 0
  %3921 = vmatprep.mubr.bf16.mxu0 0
  %3922 = vmatmul.mubr.bf16.gmra.mrb[0].mxu0 %v3884
  %v3923 = vpop.f32.mrb[0].mxu0
  %v3924 = vadd.f32 0.0, %v3923
  %v3925 = vpop.f32.mrb[0].mxu0
  %v3926 = vpop.f32.mrb[0].mxu0
  %v3927 = vpop.f32.mrb[0].mxu0
  %3928 = vdwg.mxu0
  %v3930 = vsel %vm1119, %v2998, 0
  %v3933 = vsel %vm1119, %v3302, 0
  %3935 = vmatprep.subr.bf16.mxu0 0
  %3936 = vmatpush1.bf16.xpose.msra.mxu0 %v3933
  %3937 = vmatprep.subr.bf16.mxu0 0
  %3938 = vmatpush1.bf16.xpose.msra.mxu0 0
  %3939 = vmatprep.subr.bf16.mxu0 0
  %3940 = vmatpush1.bf16.xpose.msra.mxu0 0
  %3941 = vmatprep.subr.bf16.mxu0 0
  %3942 = vmatpush1.bf16.xpose.msra.mxu0 0
  %3943 = vmatprep.subr.bf16.mxu0 0
  %3944 = vmatpush1.bf16.xpose.msra.mxu0 0
  %3945 = vmatprep.subr.bf16.mxu0 0
  %3946 = vmatpush1.bf16.xpose.msra.mxu0 0
  %3947 = vmatprep.subr.bf16.mxu0 0
  %3948 = vmatpush1.bf16.xpose.msra.mxu0 0
  %3949 = vmatprep.subr.bf16.mxu0 0
  %3950 = vmatpush1.bf16.xpose.msra.mxu0 0
  %3951 = vmatprep.subr.bf16.mxu0 0
  %3952 = vmatpush1.bf16.xpose.msra.mxu0 0
  %3953 = vmatprep.subr.bf16.mxu0 0
  %3954 = vmatpush1.bf16.xpose.msra.mxu0 0
  %3955 = vmatprep.subr.bf16.mxu0 0
  %3956 = vmatpush1.bf16.xpose.msra.mxu0 0
  %3957 = vmatprep.subr.bf16.mxu0 0
  %3958 = vmatpush1.bf16.xpose.msra.mxu0 0
  %3959 = vmatprep.subr.bf16.mxu0 0
  %3960 = vmatpush1.bf16.xpose.msra.mxu0 0
  %3961 = vmatprep.subr.bf16.mxu0 0
  %3962 = vmatpush1.bf16.xpose.msra.mxu0 0
  %3963 = vmatprep.subr.bf16.mxu0 0
  %3964 = vmatpush1.bf16.xpose.msra.mxu0 0
  %3965 = vmatprep.subr.bf16.mxu0 0
  %3966 = vmatpush1.bf16.xpose.msra.mxu0 0
  %3967 = vmatprep.mubr.bf16.mxu0 0
  %3968 = vmatmul.mubr.bf16.gmra.mrb[0].mxu0 %v3930
  %v3969 = vpop.f32.mrb[0].mxu0
  %v3970 = vadd.f32 0.0, %v3969
  %v3971 = vpop.f32.mrb[0].mxu0
  %v3972 = vpop.f32.mrb[0].mxu0
  %v3973 = vpop.f32.mrb[0].mxu0
  %3974 = vdwg.mxu0
  %v3975 = vmul.f32 %v3648, 0.35355338
  %v3976 = vmul.f32 %v3694, 0.35355338
  %v3977 = vmul.f32 %v3740, 0.35355338
  %v3978 = vmul.f32 %v3786, 0.35355338
  %v3979 = vmul.f32 %v3832, 0.35355338
  %v3980 = vmul.f32 %v3878, 0.35355338
  %v3981 = vmul.f32 %v3924, 0.35355338
  %v3982 = vmul.f32 %v3970, 0.35355338
  %v3983 = vadd.f32 %v3975, %v1118
  %v3984 = vadd.f32 %v3976, %v1118
  %v3985 = vadd.f32 %v3977, %v1118
  %v3986 = vadd.f32 %v3978, %v1118
  %v3987 = vadd.f32 %v3979, %v1118
  %v3988 = vadd.f32 %v3980, %v1118
  %v3989 = vadd.f32 %v3981, %v1118
  %v3990 = vadd.f32 %v3982, %v1118
  %v3991 = vsel %vm1119, %v3983, -inf
  %3992 = vmax.xlane.f32.xlu0 %v3991
  %v3993 = vpop.xlane.xlu0 %3992
  %v3994 = vsel %vm1119, %v3984, -inf
  %3995 = vmax.xlane.f32.xlu0 %v3994
  %v3996 = vpop.xlane.xlu0 %3995
  %v3997 = vsel %vm1119, %v3985, -inf
  %3998 = vmax.xlane.f32.xlu0 %v3997
  %v3999 = vpop.xlane.xlu0 %3998
  %v4000 = vsel %vm1119, %v3986, -inf
  %4001 = vmax.xlane.f32.xlu0 %v4000
  %v4002 = vpop.xlane.xlu0 %4001
  %v4003 = vsel %vm1119, %v3987, -inf
  %4004 = vmax.xlane.f32.xlu0 %v4003
  %v4005 = vpop.xlane.xlu0 %4004
  %v4006 = vsel %vm1119, %v3988, -inf
  %4007 = vmax.xlane.f32.xlu0 %v4006
  %v4008 = vpop.xlane.xlu0 %4007
  %v4009 = vsel %vm1119, %v3989, -inf
  %4010 = vmax.xlane.f32.xlu0 %v4009
  %v4011 = vpop.xlane.xlu0 %4010
  %v4012 = vsel %vm1119, %v3990, -inf
  %4013 = vmax.xlane.f32.xlu0 %v4012
  %v4014 = vpop.xlane.xlu0 %4013
  %v4015 = vsub.f32 %v3983, %v3993
  %v4016 = vsub.f32 %v3984, %v3996
  %v4017 = vsub.f32 %v3985, %v3999
  %v4018 = vsub.f32 %v3986, %v4002
  %v4019 = vsub.f32 %v3987, %v4005
  %v4020 = vsub.f32 %v3988, %v4008
  %v4021 = vsub.f32 %v3989, %v4011
  %v4022 = vsub.f32 %v3990, %v4014
  %v4023 = vmul.f32 %v4015, 1.442695
  %v4024 = vpow.pop %v4023
  %v4025 = vmul.f32 %v4016, 1.442695
  %v4026 = vpow.pop %v4025
  %v4027 = vmul.f32 %v4017, 1.442695
  %v4028 = vpow.pop %v4027
  %v4029 = vmul.f32 %v4018, 1.442695
  %v4030 = vpow.pop %v4029
  %v4031 = vmul.f32 %v4019, 1.442695
  %v4032 = vpow.pop %v4031
  %v4033 = vmul.f32 %v4020, 1.442695
  %v4034 = vpow.pop %v4033
  %v4035 = vmul.f32 %v4021, 1.442695
  %v4036 = vpow.pop %v4035
  %v4037 = vmul.f32 %v4022, 1.442695
  %v4038 = vpow.pop %v4037
  %v4039 = vsel %vm1119, %v4024, 0.0
  %4040 = vadd.xlane.f32.xlu0 %v4039
  %v4041 = vpop.xlane.xlu0 %4040
  %v4042 = vsel %vm1119, %v4026, 0.0
  %4043 = vadd.xlane.f32.xlu0 %v4042
  %v4044 = vpop.xlane.xlu0 %4043
  %v4045 = vsel %vm1119, %v4028, 0.0
  %4046 = vadd.xlane.f32.xlu0 %v4045
  %v4047 = vpop.xlane.xlu0 %4046
  %v4048 = vsel %vm1119, %v4030, 0.0
  %4049 = vadd.xlane.f32.xlu0 %v4048
  %v4050 = vpop.xlane.xlu0 %4049
  %v4051 = vsel %vm1119, %v4032, 0.0
  %4052 = vadd.xlane.f32.xlu0 %v4051
  %v4053 = vpop.xlane.xlu0 %4052
  %v4054 = vsel %vm1119, %v4034, 0.0
  %4055 = vadd.xlane.f32.xlu0 %v4054
  %v4056 = vpop.xlane.xlu0 %4055
  %v4057 = vsel %vm1119, %v4036, 0.0
  %4058 = vadd.xlane.f32.xlu0 %v4057
  %v4059 = vpop.xlane.xlu0 %4058
  %v4060 = vsel %vm1119, %v4038, 0.0
  %4061 = vadd.xlane.f32.xlu0 %v4060
  %v4062 = vpop.xlane.xlu0 %4061
  %v4063 = vrcp.pop %v4041
  %v4064 = vrcp.pop %v4044
  %v4065 = vrcp.pop %v4047
  %v4066 = vrcp.pop %v4050
  %v4067 = vrcp.pop %v4053
  %v4068 = vrcp.pop %v4056
  %v4069 = vrcp.pop %v4059
  %v4070 = vrcp.pop %v4062
  %v4071 = vmul.f32 %v4024, %v4063
  %v4072 = vmul.f32 %v4026, %v4064
  %v4073 = vmul.f32 %v4028, %v4065
  %v4074 = vmul.f32 %v4030, %v4066
  %v4075 = vmul.f32 %v4032, %v4067
  %v4076 = vmul.f32 %v4034, %v4068
  %v4077 = vmul.f32 %v4036, %v4069
  %v4078 = vmul.f32 %v4038, %v4070
  %v4079 = vpack.c.bf16 %v4071, %v4071
  %v4080 = vpack.c.bf16 %v4072, %v4072
  %v4081 = vpack.c.bf16 %v4073, %v4073
  %v4082 = vpack.c.bf16 %v4074, %v4074
  %v4083 = vpack.c.bf16 %v4075, %v4075
  %v4084 = vpack.c.bf16 %v4076, %v4076
  %v4085 = vpack.c.bf16 %v4077, %v4077
  %v4086 = vpack.c.bf16 %v4078, %v4078
  %v4088 = vsel %vm1119, %v4079, 0
  %v4091 = vsel %vm1603, %v3599, 0
  %4093 = vmatprep.subr.bf16.mxu0 0
  %4094 = vmatpush1.bf16.msra.mxu0 %v4091
  %4095 = vmatprep.subr.bf16.mxu0 0
  %4096 = vmatpush1.bf16.msra.mxu0 0
  %4097 = vmatprep.subr.bf16.mxu0 0
  %4098 = vmatpush1.bf16.msra.mxu0 0
  %4099 = vmatprep.subr.bf16.mxu0 0
  %4100 = vmatpush1.bf16.msra.mxu0 0
  %4101 = vmatprep.subr.bf16.mxu0 0
  %4102 = vmatpush1.bf16.msra.mxu0 0
  %4103 = vmatprep.subr.bf16.mxu0 0
  %4104 = vmatpush1.bf16.msra.mxu0 0
  %4105 = vmatprep.subr.bf16.mxu0 0
  %4106 = vmatpush1.bf16.msra.mxu0 0
  %4107 = vmatprep.subr.bf16.mxu0 0
  %4108 = vmatpush1.bf16.msra.mxu0 0
  %4109 = vmatprep.subr.bf16.mxu0 0
  %4110 = vmatpush1.bf16.msra.mxu0 0
  %4111 = vmatprep.subr.bf16.mxu0 0
  %4112 = vmatpush1.bf16.msra.mxu0 0
  %4113 = vmatprep.subr.bf16.mxu0 0
  %4114 = vmatpush1.bf16.msra.mxu0 0
  %4115 = vmatprep.subr.bf16.mxu0 0
  %4116 = vmatpush1.bf16.msra.mxu0 0
  %4117 = vmatprep.subr.bf16.mxu0 0
  %4118 = vmatpush1.bf16.msra.mxu0 0
  %4119 = vmatprep.subr.bf16.mxu0 0
  %4120 = vmatpush1.bf16.msra.mxu0 0
  %4121 = vmatprep.subr.bf16.mxu0 0
  %4122 = vmatpush1.bf16.msra.mxu0 0
  %4123 = vmatprep.subr.bf16.mxu0 0
  %4124 = vmatpush1.bf16.msra.mxu0 0
  %4125 = vmatprep.mubr.bf16.mxu0 0
  %4126 = vmatmul.mubr.bf16.gmra.mrb[0].mxu0 %v4088
  %v4127 = vpop.f32.mrb[0].mxu0
  %v4128 = vadd.f32 0.0, %v4127
  %v4129 = vpop.f32.mrb[0].mxu0
  %v4130 = vpop.f32.mrb[0].mxu0
  %v4131 = vpop.f32.mrb[0].mxu0
  %4132 = vdwg.mxu0
  %v4134 = vsel %vm1119, %v4080, 0
  %v4137 = vsel %vm1603, %v3600, 0
  %4139 = vmatprep.subr.bf16.mxu0 0
  %4140 = vmatpush1.bf16.msra.mxu0 %v4137
  %4141 = vmatprep.subr.bf16.mxu0 0
  %4142 = vmatpush1.bf16.msra.mxu0 0
  %4143 = vmatprep.subr.bf16.mxu0 0
  %4144 = vmatpush1.bf16.msra.mxu0 0
  %4145 = vmatprep.subr.bf16.mxu0 0
  %4146 = vmatpush1.bf16.msra.mxu0 0
  %4147 = vmatprep.subr.bf16.mxu0 0
  %4148 = vmatpush1.bf16.msra.mxu0 0
  %4149 = vmatprep.subr.bf16.mxu0 0
  %4150 = vmatpush1.bf16.msra.mxu0 0
  %4151 = vmatprep.subr.bf16.mxu0 0
  %4152 = vmatpush1.bf16.msra.mxu0 0
  %4153 = vmatprep.subr.bf16.mxu0 0
  %4154 = vmatpush1.bf16.msra.mxu0 0
  %4155 = vmatprep.subr.bf16.mxu0 0
  %4156 = vmatpush1.bf16.msra.mxu0 0
  %4157 = vmatprep.subr.bf16.mxu0 0
  %4158 = vmatpush1.bf16.msra.mxu0 0
  %4159 = vmatprep.subr.bf16.mxu0 0
  %4160 = vmatpush1.bf16.msra.mxu0 0
  %4161 = vmatprep.subr.bf16.mxu0 0
  %4162 = vmatpush1.bf16.msra.mxu0 0
  %4163 = vmatprep.subr.bf16.mxu0 0
  %4164 = vmatpush1.bf16.msra.mxu0 0
  %4165 = vmatprep.subr.bf16.mxu0 0
  %4166 = vmatpush1.bf16.msra.mxu0 0
  %4167 = vmatprep.subr.bf16.mxu0 0
  %4168 = vmatpush1.bf16.msra.mxu0 0
  %4169 = vmatprep.subr.bf16.mxu0 0
  %4170 = vmatpush1.bf16.msra.mxu0 0
  %4171 = vmatprep.mubr.bf16.mxu0 0
  %4172 = vmatmul.mubr.bf16.gmra.mrb[0].mxu0 %v4134
  %v4173 = vpop.f32.mrb[0].mxu0
  %v4174 = vadd.f32 0.0, %v4173
  %v4175 = vpop.f32.mrb[0].mxu0
  %v4176 = vpop.f32.mrb[0].mxu0
  %v4177 = vpop.f32.mrb[0].mxu0
  %4178 = vdwg.mxu0
  %v4180 = vsel %vm1119, %v4081, 0
  %v4183 = vsel %vm1603, %v3601, 0
  %4185 = vmatprep.subr.bf16.mxu0 0
  %4186 = vmatpush1.bf16.msra.mxu0 %v4183
  %4187 = vmatprep.subr.bf16.mxu0 0
  %4188 = vmatpush1.bf16.msra.mxu0 0
  %4189 = vmatprep.subr.bf16.mxu0 0
  %4190 = vmatpush1.bf16.msra.mxu0 0
  %4191 = vmatprep.subr.bf16.mxu0 0
  %4192 = vmatpush1.bf16.msra.mxu0 0
  %4193 = vmatprep.subr.bf16.mxu0 0
  %4194 = vmatpush1.bf16.msra.mxu0 0
  %4195 = vmatprep.subr.bf16.mxu0 0
  %4196 = vmatpush1.bf16.msra.mxu0 0
  %4197 = vmatprep.subr.bf16.mxu0 0
  %4198 = vmatpush1.bf16.msra.mxu0 0
  %4199 = vmatprep.subr.bf16.mxu0 0
  %4200 = vmatpush1.bf16.msra.mxu0 0
  %4201 = vmatprep.subr.bf16.mxu0 0
  %4202 = vmatpush1.bf16.msra.mxu0 0
  %4203 = vmatprep.subr.bf16.mxu0 0
  %4204 = vmatpush1.bf16.msra.mxu0 0
  %4205 = vmatprep.subr.bf16.mxu0 0
  %4206 = vmatpush1.bf16.msra.mxu0 0
  %4207 = vmatprep.subr.bf16.mxu0 0
  %4208 = vmatpush1.bf16.msra.mxu0 0
  %4209 = vmatprep.subr.bf16.mxu0 0
  %4210 = vmatpush1.bf16.msra.mxu0 0
  %4211 = vmatprep.subr.bf16.mxu0 0
  %4212 = vmatpush1.bf16.msra.mxu0 0
  %4213 = vmatprep.subr.bf16.mxu0 0
  %4214 = vmatpush1.bf16.msra.mxu0 0
  %4215 = vmatprep.subr.bf16.mxu0 0
  %4216 = vmatpush1.bf16.msra.mxu0 0
  %4217 = vmatprep.mubr.bf16.mxu0 0
  %4218 = vmatmul.mubr.bf16.gmra.mrb[0].mxu0 %v4180
  %v4219 = vpop.f32.mrb[0].mxu0
  %v4220 = vadd.f32 0.0, %v4219
  %v4221 = vpop.f32.mrb[0].mxu0
  %v4222 = vpop.f32.mrb[0].mxu0
  %v4223 = vpop.f32.mrb[0].mxu0
  %4224 = vdwg.mxu0
  %v4226 = vsel %vm1119, %v4082, 0
  %v4229 = vsel %vm1603, %v3602, 0
  %4231 = vmatprep.subr.bf16.mxu0 0
  %4232 = vmatpush1.bf16.msra.mxu0 %v4229
  %4233 = vmatprep.subr.bf16.mxu0 0
  %4234 = vmatpush1.bf16.msra.mxu0 0
  %4235 = vmatprep.subr.bf16.mxu0 0
  %4236 = vmatpush1.bf16.msra.mxu0 0
  %4237 = vmatprep.subr.bf16.mxu0 0
  %4238 = vmatpush1.bf16.msra.mxu0 0
  %4239 = vmatprep.subr.bf16.mxu0 0
  %4240 = vmatpush1.bf16.msra.mxu0 0
  %4241 = vmatprep.subr.bf16.mxu0 0
  %4242 = vmatpush1.bf16.msra.mxu0 0
  %4243 = vmatprep.subr.bf16.mxu0 0
  %4244 = vmatpush1.bf16.msra.mxu0 0
  %4245 = vmatprep.subr.bf16.mxu0 0
  %4246 = vmatpush1.bf16.msra.mxu0 0
  %4247 = vmatprep.subr.bf16.mxu0 0
  %4248 = vmatpush1.bf16.msra.mxu0 0
  %4249 = vmatprep.subr.bf16.mxu0 0
  %4250 = vmatpush1.bf16.msra.mxu0 0
  %4251 = vmatprep.subr.bf16.mxu0 0
  %4252 = vmatpush1.bf16.msra.mxu0 0
  %4253 = vmatprep.subr.bf16.mxu0 0
  %4254 = vmatpush1.bf16.msra.mxu0 0
  %4255 = vmatprep.subr.bf16.mxu0 0
  %4256 = vmatpush1.bf16.msra.mxu0 0
  %4257 = vmatprep.subr.bf16.mxu0 0
  %4258 = vmatpush1.bf16.msra.mxu0 0
  %4259 = vmatprep.subr.bf16.mxu0 0
  %4260 = vmatpush1.bf16.msra.mxu0 0
  %4261 = vmatprep.subr.bf16.mxu0 0
  %4262 = vmatpush1.bf16.msra.mxu0 0
  %4263 = vmatprep.mubr.bf16.mxu0 0
  %4264 = vmatmul.mubr.bf16.gmra.mrb[0].mxu0 %v4226
  %v4265 = vpop.f32.mrb[0].mxu0
  %v4266 = vadd.f32 0.0, %v4265
  %v4267 = vpop.f32.mrb[0].mxu0
  %v4268 = vpop.f32.mrb[0].mxu0
  %v4269 = vpop.f32.mrb[0].mxu0
  %4270 = vdwg.mxu0
  %v4272 = vsel %vm1119, %v4083, 0
  %v4275 = vsel %vm1603, %v3603, 0
  %4277 = vmatprep.subr.bf16.mxu0 0
  %4278 = vmatpush1.bf16.msra.mxu0 %v4275
  %4279 = vmatprep.subr.bf16.mxu0 0
  %4280 = vmatpush1.bf16.msra.mxu0 0
  %4281 = vmatprep.subr.bf16.mxu0 0
  %4282 = vmatpush1.bf16.msra.mxu0 0
  %4283 = vmatprep.subr.bf16.mxu0 0
  %4284 = vmatpush1.bf16.msra.mxu0 0
  %4285 = vmatprep.subr.bf16.mxu0 0
  %4286 = vmatpush1.bf16.msra.mxu0 0
  %4287 = vmatprep.subr.bf16.mxu0 0
  %4288 = vmatpush1.bf16.msra.mxu0 0
  %4289 = vmatprep.subr.bf16.mxu0 0
  %4290 = vmatpush1.bf16.msra.mxu0 0
  %4291 = vmatprep.subr.bf16.mxu0 0
  %4292 = vmatpush1.bf16.msra.mxu0 0
  %4293 = vmatprep.subr.bf16.mxu0 0
  %4294 = vmatpush1.bf16.msra.mxu0 0
  %4295 = vmatprep.subr.bf16.mxu0 0
  %4296 = vmatpush1.bf16.msra.mxu0 0
  %4297 = vmatprep.subr.bf16.mxu0 0
  %4298 = vmatpush1.bf16.msra.mxu0 0
  %4299 = vmatprep.subr.bf16.mxu0 0
  %4300 = vmatpush1.bf16.msra.mxu0 0
  %4301 = vmatprep.subr.bf16.mxu0 0
  %4302 = vmatpush1.bf16.msra.mxu0 0
  %4303 = vmatprep.subr.bf16.mxu0 0
  %4304 = vmatpush1.bf16.msra.mxu0 0
  %4305 = vmatprep.subr.bf16.mxu0 0
  %4306 = vmatpush1.bf16.msra.mxu0 0
  %4307 = vmatprep.subr.bf16.mxu0 0
  %4308 = vmatpush1.bf16.msra.mxu0 0
  %4309 = vmatprep.mubr.bf16.mxu0 0
  %4310 = vmatmul.mubr.bf16.gmra.mrb[0].mxu0 %v4272
  %v4311 = vpop.f32.mrb[0].mxu0
  %v4312 = vadd.f32 0.0, %v4311
  %v4313 = vpop.f32.mrb[0].mxu0
  %v4314 = vpop.f32.mrb[0].mxu0
  %v4315 = vpop.f32.mrb[0].mxu0
  %4316 = vdwg.mxu0
  %v4318 = vsel %vm1119, %v4084, 0
  %v4321 = vsel %vm1603, %v3604, 0
  %4323 = vmatprep.subr.bf16.mxu0 0
  %4324 = vmatpush1.bf16.msra.mxu0 %v4321
  %4325 = vmatprep.subr.bf16.mxu0 0
  %4326 = vmatpush1.bf16.msra.mxu0 0
  %4327 = vmatprep.subr.bf16.mxu0 0
  %4328 = vmatpush1.bf16.msra.mxu0 0
  %4329 = vmatprep.subr.bf16.mxu0 0
  %4330 = vmatpush1.bf16.msra.mxu0 0
  %4331 = vmatprep.subr.bf16.mxu0 0
  %4332 = vmatpush1.bf16.msra.mxu0 0
  %4333 = vmatprep.subr.bf16.mxu0 0
  %4334 = vmatpush1.bf16.msra.mxu0 0
  %4335 = vmatprep.subr.bf16.mxu0 0
  %4336 = vmatpush1.bf16.msra.mxu0 0
  %4337 = vmatprep.subr.bf16.mxu0 0
  %4338 = vmatpush1.bf16.msra.mxu0 0
  %4339 = vmatprep.subr.bf16.mxu0 0
  %4340 = vmatpush1.bf16.msra.mxu0 0
  %4341 = vmatprep.subr.bf16.mxu0 0
  %4342 = vmatpush1.bf16.msra.mxu0 0
  %4343 = vmatprep.subr.bf16.mxu0 0
  %4344 = vmatpush1.bf16.msra.mxu0 0
  %4345 = vmatprep.subr.bf16.mxu0 0
  %4346 = vmatpush1.bf16.msra.mxu0 0
  %4347 = vmatprep.subr.bf16.mxu0 0
  %4348 = vmatpush1.bf16.msra.mxu0 0
  %4349 = vmatprep.subr.bf16.mxu0 0
  %4350 = vmatpush1.bf16.msra.mxu0 0
  %4351 = vmatprep.subr.bf16.mxu0 0
  %4352 = vmatpush1.bf16.msra.mxu0 0
  %4353 = vmatprep.subr.bf16.mxu0 0
  %4354 = vmatpush1.bf16.msra.mxu0 0
  %4355 = vmatprep.mubr.bf16.mxu0 0
  %4356 = vmatmul.mubr.bf16.gmra.mrb[0].mxu0 %v4318
  %v4357 = vpop.f32.mrb[0].mxu0
  %v4358 = vadd.f32 0.0, %v4357
  %v4359 = vpop.f32.mrb[0].mxu0
  %v4360 = vpop.f32.mrb[0].mxu0
  %v4361 = vpop.f32.mrb[0].mxu0
  %4362 = vdwg.mxu0
  %v4364 = vsel %vm1119, %v4085, 0
  %v4367 = vsel %vm1603, %v3605, 0
  %4369 = vmatprep.subr.bf16.mxu0 0
  %4370 = vmatpush1.bf16.msra.mxu0 %v4367
  %4371 = vmatprep.subr.bf16.mxu0 0
  %4372 = vmatpush1.bf16.msra.mxu0 0
  %4373 = vmatprep.subr.bf16.mxu0 0
  %4374 = vmatpush1.bf16.msra.mxu0 0
  %4375 = vmatprep.subr.bf16.mxu0 0
  %4376 = vmatpush1.bf16.msra.mxu0 0
  %4377 = vmatprep.subr.bf16.mxu0 0
  %4378 = vmatpush1.bf16.msra.mxu0 0
  %4379 = vmatprep.subr.bf16.mxu0 0
  %4380 = vmatpush1.bf16.msra.mxu0 0
  %4381 = vmatprep.subr.bf16.mxu0 0
  %4382 = vmatpush1.bf16.msra.mxu0 0
  %4383 = vmatprep.subr.bf16.mxu0 0
  %4384 = vmatpush1.bf16.msra.mxu0 0
  %4385 = vmatprep.subr.bf16.mxu0 0
  %4386 = vmatpush1.bf16.msra.mxu0 0
  %4387 = vmatprep.subr.bf16.mxu0 0
  %4388 = vmatpush1.bf16.msra.mxu0 0
  %4389 = vmatprep.subr.bf16.mxu0 0
  %4390 = vmatpush1.bf16.msra.mxu0 0
  %4391 = vmatprep.subr.bf16.mxu0 0
  %4392 = vmatpush1.bf16.msra.mxu0 0
  %4393 = vmatprep.subr.bf16.mxu0 0
  %4394 = vmatpush1.bf16.msra.mxu0 0
  %4395 = vmatprep.subr.bf16.mxu0 0
  %4396 = vmatpush1.bf16.msra.mxu0 0
  %4397 = vmatprep.subr.bf16.mxu0 0
  %4398 = vmatpush1.bf16.msra.mxu0 0
  %4399 = vmatprep.subr.bf16.mxu0 0
  %4400 = vmatpush1.bf16.msra.mxu0 0
  %4401 = vmatprep.mubr.bf16.mxu0 0
  %4402 = vmatmul.mubr.bf16.gmra.mrb[0].mxu0 %v4364
  %v4403 = vpop.f32.mrb[0].mxu0
  %v4404 = vadd.f32 0.0, %v4403
  %v4405 = vpop.f32.mrb[0].mxu0
  %v4406 = vpop.f32.mrb[0].mxu0
  %v4407 = vpop.f32.mrb[0].mxu0
  %4408 = vdwg.mxu0
  %v4410 = vsel %vm1119, %v4086, 0
  %v4413 = vsel %vm1603, %v3606, 0
  %4415 = vmatprep.subr.bf16.mxu0 0
  %4416 = vmatpush1.bf16.msra.mxu0 %v4413
  %4417 = vmatprep.subr.bf16.mxu0 0
  %4418 = vmatpush1.bf16.msra.mxu0 0
  %4419 = vmatprep.subr.bf16.mxu0 0
  %4420 = vmatpush1.bf16.msra.mxu0 0
  %4421 = vmatprep.subr.bf16.mxu0 0
  %4422 = vmatpush1.bf16.msra.mxu0 0
  %4423 = vmatprep.subr.bf16.mxu0 0
  %4424 = vmatpush1.bf16.msra.mxu0 0
  %4425 = vmatprep.subr.bf16.mxu0 0
  %4426 = vmatpush1.bf16.msra.mxu0 0
  %4427 = vmatprep.subr.bf16.mxu0 0
  %4428 = vmatpush1.bf16.msra.mxu0 0
  %4429 = vmatprep.subr.bf16.mxu0 0
  %4430 = vmatpush1.bf16.msra.mxu0 0
  %4431 = vmatprep.subr.bf16.mxu0 0
  %4432 = vmatpush1.bf16.msra.mxu0 0
  %4433 = vmatprep.subr.bf16.mxu0 0
  %4434 = vmatpush1.bf16.msra.mxu0 0
  %4435 = vmatprep.subr.bf16.mxu0 0
  %4436 = vmatpush1.bf16.msra.mxu0 0
  %4437 = vmatprep.subr.bf16.mxu0 0
  %4438 = vmatpush1.bf16.msra.mxu0 0
  %4439 = vmatprep.subr.bf16.mxu0 0
  %4440 = vmatpush1.bf16.msra.mxu0 0
  %4441 = vmatprep.subr.bf16.mxu0 0
  %4442 = vmatpush1.bf16.msra.mxu0 0
  %4443 = vmatprep.subr.bf16.mxu0 0
  %4444 = vmatpush1.bf16.msra.mxu0 0
  %4445 = vmatprep.subr.bf16.mxu0 0
  %4446 = vmatpush1.bf16.msra.mxu0 0
  %4447 = vmatprep.mubr.bf16.mxu0 0
  %4448 = vmatmul.mubr.bf16.gmra.mrb[0].mxu0 %v4410
  %v4449 = vpop.f32.mrb[0].mxu0
  %v4450 = vadd.f32 0.0, %v4449
  %v4451 = vpop.f32.mrb[0].mxu0
  %v4452 = vpop.f32.mrb[0].mxu0
  %v4453 = vpop.f32.mrb[0].mxu0
  %4454 = vdwg.mxu0
  %v4455 = vcombine.low %v4128, %v4220
  %v4456 = vcombine.high %v4128, %v4220
  %v4458 = vunpack.c.l.s4 1983009808
  %v4459 = vunpack.c.0.s8 %v4458
  %v4460 = vlaneseq
  %v4461 = vshrl.u32 %v4460, 7
  %v4462 = vsub.s32 %v4459, %v4461
  %v4463 = vrot.slane %v4455, %v4462
  %v4465 = vunpack.c.l.s4 1983009808
  %v4466 = vunpack.c.0.s8 %v4465
  %v4467 = vlaneseq
  %v4468 = vshrl.u32 %v4467, 7
  %v4469 = vsub.s32 %v4466, %v4468
  %v4470 = vrot.slane %v4456, %v4469
  %v4471 = vcombine.low %v4174, %v4266
  %v4472 = vcombine.high %v4174, %v4266
  %v4474 = vunpack.c.l.s4 1983009808
  %v4475 = vunpack.c.0.s8 %v4474
  %v4476 = vlaneseq
  %v4477 = vshrl.u32 %v4476, 7
  %v4478 = vsub.s32 %v4475, %v4477
  %v4479 = vrot.slane %v4471, %v4478
  %v4481 = vunpack.c.l.s4 1983009808
  %v4482 = vunpack.c.0.s8 %v4481
  %v4483 = vlaneseq
  %v4484 = vshrl.u32 %v4483, 7
  %v4485 = vsub.s32 %v4482, %v4484
  %v4486 = vrot.slane %v4472, %v4485
  %v4487 = vcombine.low %v4463, %v4479
  %v4488 = vcombine.high %v4463, %v4479
  %v4490 = vunpack.c.l.s4 1934713408
  %v4491 = vunpack.c.0.s8 %v4490
  %v4492 = vlaneseq
  %v4493 = vshrl.u32 %v4492, 7
  %v4494 = vsub.s32 %v4491, %v4493
  %v4495 = vrot.slane %v4487, %v4494
  %v4497 = vunpack.c.l.s4 1934713408
  %v4498 = vunpack.c.0.s8 %v4497
  %v4499 = vlaneseq
  %v4500 = vshrl.u32 %v4499, 7
  %v4501 = vsub.s32 %v4498, %v4500
  %v4502 = vrot.slane %v4488, %v4501
  %v4503 = vcombine.low %v4470, %v4486
  %v4504 = vcombine.high %v4470, %v4486
  %v4506 = vunpack.c.l.s4 1934713408
  %v4507 = vunpack.c.0.s8 %v4506
  %v4508 = vlaneseq
  %v4509 = vshrl.u32 %v4508, 7
  %v4510 = vsub.s32 %v4507, %v4509
  %v4511 = vrot.slane %v4503, %v4510
  %v4513 = vunpack.c.l.s4 1934713408
  %v4514 = vunpack.c.0.s8 %v4513
  %v4515 = vlaneseq
  %v4516 = vshrl.u32 %v4515, 7
  %v4517 = vsub.s32 %v4514, %v4516
  %v4518 = vrot.slane %v4504, %v4517
  %v4519 = vcombine.high %v4495, 0.0
  %v4520 = vcombine.high %v4502, 0.0
  %v4521 = vcombine.high %v4511, 0.0
  %v4522 = vcombine.high %v4518, 0.0
  %v4523 = vcombine.low %v4312, %v4404
  %v4524 = vcombine.high %v4312, %v4404
  %v4526 = vunpack.c.l.s4 1983009808
  %v4527 = vunpack.c.0.s8 %v4526
  %v4528 = vlaneseq
  %v4529 = vshrl.u32 %v4528, 7
  %v4530 = vsub.s32 %v4527, %v4529
  %v4531 = vrot.slane %v4523, %v4530
  %v4533 = vunpack.c.l.s4 1983009808
  %v4534 = vunpack.c.0.s8 %v4533
  %v4535 = vlaneseq
  %v4536 = vshrl.u32 %v4535, 7
  %v4537 = vsub.s32 %v4534, %v4536
  %v4538 = vrot.slane %v4524, %v4537
  %v4539 = vcombine.low %v4358, %v4450
  %v4540 = vcombine.high %v4358, %v4450
  %v4542 = vunpack.c.l.s4 1983009808
  %v4543 = vunpack.c.0.s8 %v4542
  %v4544 = vlaneseq
  %v4545 = vshrl.u32 %v4544, 7
  %v4546 = vsub.s32 %v4543, %v4545
  %v4547 = vrot.slane %v4539, %v4546
  %v4549 = vunpack.c.l.s4 1983009808
  %v4550 = vunpack.c.0.s8 %v4549
  %v4551 = vlaneseq
  %v4552 = vshrl.u32 %v4551, 7
  %v4553 = vsub.s32 %v4550, %v4552
  %v4554 = vrot.slane %v4540, %v4553
  %v4555 = vcombine.low %v4531, %v4547
  %v4556 = vcombine.high %v4531, %v4547
  %v4558 = vunpack.c.l.s4 1934713408
  %v4559 = vunpack.c.0.s8 %v4558
  %v4560 = vlaneseq
  %v4561 = vshrl.u32 %v4560, 7
  %v4562 = vsub.s32 %v4559, %v4561
  %v4563 = vrot.slane %v4555, %v4562
  %v4565 = vunpack.c.l.s4 1934713408
  %v4566 = vunpack.c.0.s8 %v4565
  %v4567 = vlaneseq
  %v4568 = vshrl.u32 %v4567, 7
  %v4569 = vsub.s32 %v4566, %v4568
  %v4570 = vrot.slane %v4556, %v4569
  %v4571 = vcombine.low %v4538, %v4554
  %v4572 = vcombine.high %v4538, %v4554
  %v4574 = vunpack.c.l.s4 1934713408
  %v4575 = vunpack.c.0.s8 %v4574
  %v4576 = vlaneseq
  %v4577 = vshrl.u32 %v4576, 7
  %v4578 = vsub.s32 %v4575, %v4577
  %v4579 = vrot.slane %v4571, %v4578
  %v4581 = vunpack.c.l.s4 1934713408
  %v4582 = vunpack.c.0.s8 %v4581
  %v4583 = vlaneseq
  %v4584 = vshrl.u32 %v4583, 7
  %v4585 = vsub.s32 %v4582, %v4584
  %v4586 = vrot.slane %v4572, %v4585
  %v4587 = vcombine.high %v4563, 0.0
  %v4588 = vcombine.high %v4570, 0.0
  %v4589 = vcombine.high %v4579, 0.0
  %v4590 = vcombine.high %v4586, 0.0
  %v4591 = vcombine.low %v4495, %v4502
  %v4593 = vunpack.c.l.s4 1983009808
  %v4594 = vunpack.c.0.s8 %v4593
  %v4595 = vlaneseq
  %v4596 = vshrl.u32 %v4595, 7
  %v4597 = vsub.s32 %v4594, %v4596
  %v4598 = vrot.slane %v4591, %v4597
  %v4599 = vcombine.low %v4519, %v4520
  %v4601 = vunpack.c.l.s4 1983009808
  %v4602 = vunpack.c.0.s8 %v4601
  %v4603 = vlaneseq
  %v4604 = vshrl.u32 %v4603, 7
  %v4605 = vsub.s32 %v4602, %v4604
  %v4606 = vrot.slane %v4599, %v4605
  %v4607 = vcombine.low %v4511, %v4518
  %v4609 = vunpack.c.l.s4 1983009808
  %v4610 = vunpack.c.0.s8 %v4609
  %v4611 = vlaneseq
  %v4612 = vshrl.u32 %v4611, 7
  %v4613 = vsub.s32 %v4610, %v4612
  %v4614 = vrot.slane %v4607, %v4613
  %v4615 = vcombine.low %v4521, %v4522
  %v4617 = vunpack.c.l.s4 1983009808
  %v4618 = vunpack.c.0.s8 %v4617
  %v4619 = vlaneseq
  %v4620 = vshrl.u32 %v4619, 7
  %v4621 = vsub.s32 %v4618, %v4620
  %v4622 = vrot.slane %v4615, %v4621
  %v4623 = vcombine.low %v4598, %v4606
  %v4624 = vcombine.high %v4598, %v4606
  %v4626 = vunpack.c.l.s4 1934713408
  %v4627 = vunpack.c.0.s8 %v4626
  %v4628 = vlaneseq
  %v4629 = vshrl.u32 %v4628, 7
  %v4630 = vsub.s32 %v4627, %v4629
  %v4631 = vrot.slane %v4623, %v4630
  %v4633 = vunpack.c.l.s4 1934713408
  %v4634 = vunpack.c.0.s8 %v4633
  %v4635 = vlaneseq
  %v4636 = vshrl.u32 %v4635, 7
  %v4637 = vsub.s32 %v4634, %v4636
  %v4638 = vrot.slane %v4624, %v4637
  %v4639 = vcombine.low %v4614, %v4622
  %v4640 = vcombine.high %v4614, %v4622
  %v4642 = vunpack.c.l.s4 1934713408
  %v4643 = vunpack.c.0.s8 %v4642
  %v4644 = vlaneseq
  %v4645 = vshrl.u32 %v4644, 7
  %v4646 = vsub.s32 %v4643, %v4645
  %v4647 = vrot.slane %v4639, %v4646
  %v4649 = vunpack.c.l.s4 1934713408
  %v4650 = vunpack.c.0.s8 %v4649
  %v4651 = vlaneseq
  %v4652 = vshrl.u32 %v4651, 7
  %v4653 = vsub.s32 %v4650, %v4652
  %v4654 = vrot.slane %v4640, %v4653
  %v4655 = vcombine.low %v4631, %v4647
  %v4656 = vcombine.high %v4631, %v4647
  %v4657 = vcombine.low %v4638, %v4654
  %v4658 = vcombine.high %v4638, %v4654
  %v4659 = vcombine.low %v4563, %v4570
  %v4661 = vunpack.c.l.s4 1983009808
  %v4662 = vunpack.c.0.s8 %v4661
  %v4663 = vlaneseq
  %v4664 = vshrl.u32 %v4663, 7
  %v4665 = vsub.s32 %v4662, %v4664
  %v4666 = vrot.slane %v4659, %v4665
  %v4667 = vcombine.low %v4587, %v4588
  %v4669 = vunpack.c.l.s4 1983009808
  %v4670 = vunpack.c.0.s8 %v4669
  %v4671 = vlaneseq
  %v4672 = vshrl.u32 %v4671, 7
  %v4673 = vsub.s32 %v4670, %v4672
  %v4674 = vrot.slane %v4667, %v4673
  %v4675 = vcombine.low %v4579, %v4586
  %v4677 = vunpack.c.l.s4 1983009808
  %v4678 = vunpack.c.0.s8 %v4677
  %v4679 = vlaneseq
  %v4680 = vshrl.u32 %v4679, 7
  %v4681 = vsub.s32 %v4678, %v4680
  %v4682 = vrot.slane %v4675, %v4681
  %v4683 = vcombine.low %v4589, %v4590
  %v4685 = vunpack.c.l.s4 1983009808
  %v4686 = vunpack.c.0.s8 %v4685
  %v4687 = vlaneseq
  %v4688 = vshrl.u32 %v4687, 7
  %v4689 = vsub.s32 %v4686, %v4688
  %v4690 = vrot.slane %v4683, %v4689
  %v4691 = vcombine.low %v4666, %v4674
  %v4692 = vcombine.high %v4666, %v4674
  %v4694 = vunpack.c.l.s4 1934713408
  %v4695 = vunpack.c.0.s8 %v4694
  %v4696 = vlaneseq
  %v4697 = vshrl.u32 %v4696, 7
  %v4698 = vsub.s32 %v4695, %v4697
  %v4699 = vrot.slane %v4691, %v4698
  %v4701 = vunpack.c.l.s4 1934713408
  %v4702 = vunpack.c.0.s8 %v4701
  %v4703 = vlaneseq
  %v4704 = vshrl.u32 %v4703, 7
  %v4705 = vsub.s32 %v4702, %v4704
  %v4706 = vrot.slane %v4692, %v4705
  %v4707 = vcombine.low %v4682, %v4690
  %v4708 = vcombine.high %v4682, %v4690
  %v4710 = vunpack.c.l.s4 1934713408
  %v4711 = vunpack.c.0.s8 %v4710
  %v4712 = vlaneseq
  %v4713 = vshrl.u32 %v4712, 7
  %v4714 = vsub.s32 %v4711, %v4713
  %v4715 = vrot.slane %v4707, %v4714
  %v4717 = vunpack.c.l.s4 1934713408
  %v4718 = vunpack.c.0.s8 %v4717
  %v4719 = vlaneseq
  %v4720 = vshrl.u32 %v4719, 7
  %v4721 = vsub.s32 %v4718, %v4720
  %v4722 = vrot.slane %v4708, %v4721
  %v4723 = vcombine.low %v4699, %v4715
  %v4724 = vcombine.high %v4699, %v4715
  %v4725 = vcombine.low %v4706, %v4722
  %v4726 = vcombine.high %v4706, %v4722
  %4729 = vrot.lane.b32.xlu0 %v4656, 8
  %v4730 = vpop.permute.xlu0 %4729
  %4731 = vrot.lane.b32.xlu0 %v4724, 8
  %v4732 = vpop.permute.xlu0 %4731
  %4737 = vrot.lane.b32.xlu0 %v4657, 16
  %v4738 = vpop.permute.xlu0 %4737
  %4739 = vrot.lane.b32.xlu0 %v4725, 16
  %v4740 = vpop.permute.xlu0 %4739
  %4745 = vrot.lane.b32.xlu0 %v4658, 24
  %v4746 = vpop.permute.xlu0 %4745
  %4747 = vrot.lane.b32.xlu0 %v4726, 24
  %v4748 = vpop.permute.xlu0 %4747
  %v4751 = vsel %vm1119, %v4655, %v4730
  %v4752 = vsel %vm1119, %v4723, %v4732
  %v4753 = vsel %vm2267, %v4751, %v4738
  %v4754 = vsel %vm2267, %v4752, %v4740
  %v4755 = vsel %vm2270, %v4753, %v4746
  %v4756 = vsel %vm2270, %v4754, %v4748
  %v4757 = vpack.c.bf16 %v4756, %v4755
  %v4758 = vld [vmem:[%s17] sm:$0xf]
  %v4759 = vld [vmem:[%s17 + $0x4] sm:$0xf]
  %v4760 = vld [vmem:[%s17 + $0x8] sm:$0xf]
  %v4761 = vld [vmem:[%s17 + $0xc] sm:$0xf]
  %v4762 = vld [vmem:[%s18] sm:$0x1]
  %v4764 = vlaneseq
  %v4765 = vshrl.u32 %v4764, 7
  %v4766 = vsub.s32 0, %v4765
  %v4767 = vrot.slane %v4762, %v4766
  %v4773 = vunpack.c.l.b16 %v4758
  %v4774 = vunpack.c.l.b16 %v4759
  %v4775 = vunpack.c.l.b16 %v4760
  %v4776 = vunpack.c.l.b16 %v4761
  %v4777 = vpack.c.b16 %v4774, %v4773
  %v4778 = vpack.c.b16 %v4776, %v4775
  %v4782 = vsel %vm89, %v4757, 0
  %4784 = vmatprep.subr.bf16.mxu0 0
  %4785 = vmatpush1.bf16.msra.mxu0 %v4777
  %4786 = vmatprep.subr.bf16.mxu0 0
  %4787 = vmatpush1.bf16.msra.mxu0 %v4778
  %4788 = vmatprep.subr.bf16.mxu0 0
  %4789 = vmatpush1.bf16.msra.mxu0 0
  %4790 = vmatprep.subr.bf16.mxu0 0
  %4791 = vmatpush1.bf16.msra.mxu0 0
  %4792 = vmatprep.subr.bf16.mxu0 0
  %4793 = vmatpush1.bf16.msra.mxu0 0
  %4794 = vmatprep.subr.bf16.mxu0 0
  %4795 = vmatpush1.bf16.msra.mxu0 0
  %4796 = vmatprep.subr.bf16.mxu0 0
  %4797 = vmatpush1.bf16.msra.mxu0 0
  %4798 = vmatprep.subr.bf16.mxu0 0
  %4799 = vmatpush1.bf16.msra.mxu0 0
  %4800 = vmatprep.subr.bf16.mxu0 0
  %4801 = vmatpush1.bf16.msra.mxu0 0
  %4802 = vmatprep.subr.bf16.mxu0 0
  %4803 = vmatpush1.bf16.msra.mxu0 0
  %4804 = vmatprep.subr.bf16.mxu0 0
  %4805 = vmatpush1.bf16.msra.mxu0 0
  %4806 = vmatprep.subr.bf16.mxu0 0
  %4807 = vmatpush1.bf16.msra.mxu0 0
  %4808 = vmatprep.subr.bf16.mxu0 0
  %4809 = vmatpush1.bf16.msra.mxu0 0
  %4810 = vmatprep.subr.bf16.mxu0 0
  %4811 = vmatpush1.bf16.msra.mxu0 0
  %4812 = vmatprep.subr.bf16.mxu0 0
  %4813 = vmatpush1.bf16.msra.mxu0 0
  %4814 = vmatprep.subr.bf16.mxu0 0
  %4815 = vmatpush1.bf16.msra.mxu0 0
  %4816 = vmatprep.mubr.bf16.mxu0 0
  %4817 = vmatmul.mubr.bf16.gmra.mrb[0].mxu0 %v4782
  %v4818 = vpop.f32.mrb[0].mxu0
  %v4819 = vadd.f32 %v4767, %v4818
  %v4820 = vpop.f32.mrb[0].mxu0
  %v4821 = vpop.f32.mrb[0].mxu0
  %v4822 = vadd.f32 %v4767, %v4821
  %v4823 = vpop.f32.mrb[0].mxu0
  %4824 = vdwg.mxu0
  %v4825 = vadd.f32 %v2581, %v4819
  %v4826 = vadd.f32 %v2582, %v4822
  %v4827 = vld [vmem:[%s19] sm:$0x1]
  %v4828 = vld [vmem:[%s20] sm:$0x1]
  %v4829 = vsel %vm89, %v4825, 0.0
  %4830 = vadd.xlane.f32.xlu0 %v4829
  %v4831 = vpop.xlane.xlu0 %4830
  %v4832 = vsel %vm89, %v4826, 0.0
  %4833 = vadd.xlane.f32.xlu0 %v4832
  %v4834 = vpop.xlane.xlu0 %4833
  %v4835 = vmul.f32 %v4831, %v96
  %v4836 = vmul.f32 %v4834, %v96
  %v4837 = vmul.f32 %v4825, %v4825
  %v4838 = vmul.f32 %v4826, %v4826
  %v4839 = vsel %vm89, %v4837, 0.0
  %4840 = vadd.xlane.f32.xlu0 %v4839
  %v4841 = vpop.xlane.xlu0 %4840
  %v4842 = vsel %vm89, %v4838, 0.0
  %4843 = vadd.xlane.f32.xlu0 %v4842
  %v4844 = vpop.xlane.xlu0 %4843
  %v4845 = vmul.f32 %v4841, %v96
  %v4846 = vmul.f32 %v4844, %v96
  %v4847 = vmul.f32 %v4835, %v4835
  %v4848 = vmul.f32 %v4836, %v4836
  %v4849 = vsub.f32 %v4845, %v4847
  %v4850 = vsub.f32 %v4846, %v4848
  %v4851 = vsub.f32 %v4825, %v4835
  %v4852 = vsub.f32 %v4826, %v4836
  %v4853 = vadd.f32 %v4849, 1e-05
  %v4854 = vadd.f32 %v4850, 1e-05
  %v4855 = vrsqrt.pop %v4853
  %v4856 = vrsqrt.pop %v4854
  %v4857 = vmul.f32 %v4851, %v4855
  %v4858 = vmul.f32 %v4852, %v4856
  %v4860 = vlaneseq
  %v4861 = vshrl.u32 %v4860, 7
  %v4862 = vsub.s32 0, %v4861
  %v4863 = vrot.slane %v4827, %v4862
  %v4865 = vmul.f32 %v4857, %v4863
  %v4866 = vmul.f32 %v4858, %v4863
  %v4868 = vlaneseq
  %v4869 = vshrl.u32 %v4868, 7
  %v4870 = vsub.s32 0, %v4869
  %v4871 = vrot.slane %v4828, %v4870
  %v4873 = vadd.f32 %v4865, %v4871
  %v4874 = vadd.f32 %v4866, %v4871
  %v4875 = vpack.c.bf16 %v4874, %v4873
  %v4876 = vld [vmem:[%s21] sm:$0xf]
  %v4877 = vld [vmem:[%s21 + $0x4] sm:$0xf]
  %v4878 = vld [vmem:[%s21 + $0x8] sm:$0xf]
  %v4879 = vld [vmem:[%s21 + $0xc] sm:$0xf]
  %v4880 = vld [vmem:[%s22] sm:$0x1]
  %v4882 = vlaneseq
  %v4883 = vshrl.u32 %v4882, 7
  %v4884 = vsub.s32 0, %v4883
  %v4885 = vrot.slane %v4880, %v4884
  %v4891 = vunpack.c.l.b16 %v4876
  %v4892 = vunpack.c.l.b16 %v4877
  %v4893 = vunpack.c.l.b16 %v4878
  %v4894 = vunpack.c.l.b16 %v4879
  %v4895 = vpack.c.b16 %v4892, %v4891
  %v4896 = vpack.c.b16 %v4894, %v4893
  %v4900 = vsel %vm89, %v4875, 0
  %4902 = vmatprep.subr.bf16.mxu0 0
  %4903 = vmatpush1.bf16.msra.mxu0 %v4895
  %4904 = vmatprep.subr.bf16.mxu0 0
  %4905 = vmatpush1.bf16.msra.mxu0 %v4896
  %4906 = vmatprep.subr.bf16.mxu0 0
  %4907 = vmatpush1.bf16.msra.mxu0 0
  %4908 = vmatprep.subr.bf16.mxu0 0
  %4909 = vmatpush1.bf16.msra.mxu0 0
  %4910 = vmatprep.subr.bf16.mxu0 0
  %4911 = vmatpush1.bf16.msra.mxu0 0
  %4912 = vmatprep.subr.bf16.mxu0 0
  %4913 = vmatpush1.bf16.msra.mxu0 0
  %4914 = vmatprep.subr.bf16.mxu0 0
  %4915 = vmatpush1.bf16.msra.mxu0 0
  %4916 = vmatprep.subr.bf16.mxu0 0
  %4917 = vmatpush1.bf16.msra.mxu0 0
  %4918 = vmatprep.subr.bf16.mxu0 0
  %4919 = vmatpush1.bf16.msra.mxu0 0
  %4920 = vmatprep.subr.bf16.mxu0 0
  %4921 = vmatpush1.bf16.msra.mxu0 0
  %4922 = vmatprep.subr.bf16.mxu0 0
  %4923 = vmatpush1.bf16.msra.mxu0 0
  %4924 = vmatprep.subr.bf16.mxu0 0
  %4925 = vmatpush1.bf16.msra.mxu0 0
  %4926 = vmatprep.subr.bf16.mxu0 0
  %4927 = vmatpush1.bf16.msra.mxu0 0
  %4928 = vmatprep.subr.bf16.mxu0 0
  %4929 = vmatpush1.bf16.msra.mxu0 0
  %4930 = vmatprep.subr.bf16.mxu0 0
  %4931 = vmatpush1.bf16.msra.mxu0 0
  %4932 = vmatprep.subr.bf16.mxu0 0
  %4933 = vmatpush1.bf16.msra.mxu0 0
  %4934 = vmatprep.mubr.bf16.mxu0 0
  %4935 = vmatmul.mubr.bf16.gmra.mrb[0].mxu0 %v4900
  %v4936 = vpop.f32.mrb[0].mxu0
  %v4937 = vadd.f32 %v4885, %v4936
  %v4938 = vpop.f32.mrb[0].mxu0
  %v4939 = vpop.f32.mrb[0].mxu0
  %v4940 = vadd.f32 %v4885, %v4939
  %v4941 = vpop.f32.mrb[0].mxu0
  %4942 = vdwg.mxu0
  %v4943 = vpack.c.bf16 %v4940, %v4937
  %v4944 = vmul.bf16 %v4943, 1071267802
  %v4945 = vxor.u32 %v4944, 2147516416
  %v4947 = vmul.bf16 %v4945, 1069105081
  %v4948 = vpow.bf16.pop %v4947
  %v4949 = vadd.bf16 %v4948, 1065369472
  %v4950 = vrcp.bf16.pop %v4949
  %v4951 = vmul.bf16 1065369472, %v4950
  %v4952 = vmul.bf16 %v4943, %v4951
  %v4953 = vld [vmem:[%s23] sm:$0xf]
  %v4954 = vld [vmem:[%s23 + $0x4] sm:$0xf]
  %v4955 = vld [vmem:[%s23 + $0x8] sm:$0xf]
  %v4956 = vld [vmem:[%s23 + $0xc] sm:$0xf]
  %v4957 = vld [vmem:[%s23 + $0x10] sm:$0xf]
  %v4958 = vld [vmem:[%s23 + $0x14] sm:$0xf]
  %v4959 = vld [vmem:[%s23 + $0x18] sm:$0xf]
  %v4960 = vld [vmem:[%s23 + $0x1c] sm:$0xf]
  %v4961 = vld [vmem:[%s23 + $0x20] sm:$0xf]
  %v4962 = vld [vmem:[%s23 + $0x24] sm:$0xf]
  %v4963 = vld [vmem:[%s23 + $0x28] sm:$0xf]
  %v4964 = vld [vmem:[%s23 + $0x2c] sm:$0xf]
  %v4965 = vld [vmem:[%s23 + $0x30] sm:$0xf]
  %v4966 = vld [vmem:[%s23 + $0x34] sm:$0xf]
  %v4967 = vld [vmem:[%s23 + $0x38] sm:$0xf]
  %v4968 = vld [vmem:[%s23 + $0x3c] sm:$0xf]
  %v4969 = vld [vmem:[%s24] sm:$0x1]
  %v4971 = vlaneseq
  %v4972 = vshrl.u32 %v4971, 7
  %v4973 = vsub.s32 0, %v4972
  %v4974 = vrot.slane %v4969, %v4973
  %v4992 = vunpack.c.l.b16 %v4953
  %v4993 = vunpack.c.l.b16 %v4954
  %v4994 = vunpack.c.l.b16 %v4955
  %v4995 = vunpack.c.l.b16 %v4956
  %v4996 = vunpack.c.l.b16 %v4957
  %v4997 = vunpack.c.l.b16 %v4958
  %v4998 = vunpack.c.l.b16 %v4959
  %v4999 = vunpack.c.l.b16 %v4960
  %v5000 = vunpack.c.l.b16 %v4961
  %v5001 = vunpack.c.l.b16 %v4962
  %v5002 = vunpack.c.l.b16 %v4963
  %v5003 = vunpack.c.l.b16 %v4964
  %v5004 = vunpack.c.l.b16 %v4965
  %v5005 = vunpack.c.l.b16 %v4966
  %v5006 = vunpack.c.l.b16 %v4967
  %v5007 = vunpack.c.l.b16 %v4968
  %v5008 = vpack.c.b16 %v4993, %v4992
  %v5009 = vpack.c.b16 %v4995, %v4994
  %v5010 = vpack.c.b16 %v4997, %v4996
  %v5011 = vpack.c.b16 %v4999, %v4998
  %v5012 = vpack.c.b16 %v5001, %v5000
  %v5013 = vpack.c.b16 %v5003, %v5002
  %v5014 = vpack.c.b16 %v5005, %v5004
  %v5015 = vpack.c.b16 %v5007, %v5006
  %5024 = vmatprep.subr.bf16.mxu0 0
  %5025 = vmatpush1.bf16.msra.mxu0 %v5008
  %5026 = vmatprep.subr.bf16.mxu0 0
  %5027 = vmatpush1.bf16.msra.mxu0 %v5009
  %5028 = vmatprep.subr.bf16.mxu0 0
  %5029 = vmatpush1.bf16.msra.mxu0 %v5010
  %5030 = vmatprep.subr.bf16.mxu0 0
  %5031 = vmatpush1.bf16.msra.mxu0 %v5011
  %5032 = vmatprep.subr.bf16.mxu0 0
  %5033 = vmatpush1.bf16.msra.mxu0 %v5012
  %5034 = vmatprep.subr.bf16.mxu0 0
  %5035 = vmatpush1.bf16.msra.mxu0 %v5013
  %5036 = vmatprep.subr.bf16.mxu0 0
  %5037 = vmatpush1.bf16.msra.mxu0 %v5014
  %5038 = vmatprep.subr.bf16.mxu0 0
  %5039 = vmatpush1.bf16.msra.mxu0 %v5015
  %5040 = vmatprep.subr.bf16.mxu0 0
  %5041 = vmatpush1.bf16.msra.mxu0 0
  %5042 = vmatprep.subr.bf16.mxu0 0
  %5043 = vmatpush1.bf16.msra.mxu0 0
  %5044 = vmatprep.subr.bf16.mxu0 0
  %5045 = vmatpush1.bf16.msra.mxu0 0
  %5046 = vmatprep.subr.bf16.mxu0 0
  %5047 = vmatpush1.bf16.msra.mxu0 0
  %5048 = vmatprep.subr.bf16.mxu0 0
  %5049 = vmatpush1.bf16.msra.mxu0 0
  %5050 = vmatprep.subr.bf16.mxu0 0
  %5051 = vmatpush1.bf16.msra.mxu0 0
  %5052 = vmatprep.subr.bf16.mxu0 0
  %5053 = vmatpush1.bf16.msra.mxu0 0
  %5054 = vmatprep.subr.bf16.mxu0 0
  %5055 = vmatpush1.bf16.msra.mxu0 0
  %5056 = vmatprep.mubr.bf16.mxu0 0
  %5057 = vmatmul.mubr.bf16.gmra.mrb[0].mxu0 %v4952
  %v5058 = vpop.f32.mrb[0].mxu0
  %v5059 = vadd.f32 %v4974, %v5058
  %v5060 = vpop.f32.mrb[0].mxu0
  %v5061 = vpop.f32.mrb[0].mxu0
  %v5062 = vadd.f32 %v4974, %v5061
  %v5063 = vpop.f32.mrb[0].mxu0
  %5064 = vdwg.mxu0
  %v5065 = vadd.f32 %v4825, %v5059
  %v5066 = vadd.f32 %v4826, %v5062
  %v5067 = vpack.c.bf16 %v5065, %v5065
  %v5068 = vpack.c.bf16 %v5066, %v5066
  %vm5069 = vcmask 257024
  %5070 = vst.msk [vmem:[%s25] sm:$0xf] %vm5069, %v5067
  %5071 = vst.msk [vmem:[%s25 + $0x4] sm:$0xf] %vm5069, %v5068
  // Predicated region
  $region102: #{text_encoder_forward.2} parent=0 // pred_check
    _
  $region103: #{text_encoder_forward.2} parent=0 // pred_check_branch
    %5073 = sbr.rel (0) target = $region105
  $region104: #{text_encoder_forward.2} parent=0 // pred_region
    _
  $region105: #{text_encoder_forward.2} parent=0 // pred_fallthru
    _
  // Predicated region
  $region106: #{text_encoder_forward.2} parent=0 // pred_check
    _
  $region107: #{text_encoder_forward.2} parent=0 // pred_check_branch
    %5075 = sbr.rel (0) target = $region109
  $region108: #{text_encoder_forward.2} parent=0 // pred_region
    _
  $region109: #{text_encoder_forward.2} parent=0 // pred_fallthru
    _

// kernel: text_encoder_forward.3
$region0: #{text_encoder_forward.3}
  #allocation0 [shape = 'u32[]', space=smem, size = 0x4, offset = 0x4, fixed_abs, tag = 'smem constant byte address 0x4 - core index']
  #allocation1 [shape = 'u32[144,128]{1,0:T(1,128)}', space=vmem, size = 0x12000, scoped, tag = 'internal scratch']
  %s0 = inlined_call_operand.vmem [shape: bf16[2,32], index: 0, kind: input, shape index: {}]
  %s1 = inlined_call_operand.vmem [shape: f32[1,32], index: 1, kind: input, shape index: {}]
  %s2 = inlined_call_operand.vmem [shape: f32[1,32], index: 2, kind: input, shape index: {}]
  %s3 = inlined_call_operand.vmem [shape: bf16[32,16], index: 3, kind: input, shape index: {}]
  %s4 = inlined_call_operand.hbm [shape: f32[2,16], index: 4, kind: output, shape index: {}]
  %s5 = sld [smem:[#allocation0]]
  $region26: #{text_encoder_forward.3} parent=0
    _
  %s7 = ssub.s32 1, %s5
  %s8 = scalar_select 0, %s7, %s5
  $region1: #{text_encoder_forward.3} parent=0
    #allocation2 [shape = 'u8[1024]{0}', space=vmem, size = 0x400, scoped, tag = 'output window, operand 0, single buffered']
    #allocation3 [shape = 's32[1]{0}', space=sflag, size = 0x4, scoped, tag = 'scoped memory for text_encoder_forward.3']
    %9 = vsyncpa [#allocation3], 0
    // Predicated region
    $region2: #{text_encoder_forward.3} parent=1 // pred_check
      _
    $region3: #{text_encoder_forward.3} parent=1 // pred_check_branch
      %11 = sbr.rel (0) target = $region5
    $region4: #{text_encoder_forward.3} parent=1 // pred_region
      _
    $region5: #{text_encoder_forward.3} parent=1 // pred_fallthru
      _
    // Predicated region
    $region6: #{text_encoder_forward.3} parent=1 // pred_check
      _
    $region7: #{text_encoder_forward.3} parent=1 // pred_check_branch
      %13 = sbr.rel (0) target = $region9
    $region8: #{text_encoder_forward.3} parent=1 // pred_region
      _
    $region9: #{text_encoder_forward.3} parent=1 // pred_fallthru
      _
    // Predicated region
    $region10: #{text_encoder_forward.3} parent=1 // pred_check
      _
    $region11: #{text_encoder_forward.3} parent=1 // pred_check_branch
      %15 = sbr.rel (0) target = $region13
    $region12: #{text_encoder_forward.3} parent=1 // pred_region
      _
    $region13: #{text_encoder_forward.3} parent=1 // pred_fallthru
      _
    // Predicated region
    $region14: #{text_encoder_forward.3} parent=1 // pred_check
      _
    $region15: #{text_encoder_forward.3} parent=1 // pred_check_branch
      %17 = sbr.rel (0) target = $region17
    $region16: #{text_encoder_forward.3} parent=1 // pred_region
      _
    $region17: #{text_encoder_forward.3} parent=1 // pred_fallthru
      _
    %v19 = vld [vmem:[%s0] sm:$0x1]
    %v20 = vunpack.c.l.bf16 %v19
    %v21 = vld [vmem:[%s1] sm:$0x1]
    %v22 = vld [vmem:[%s2] sm:$0x1]
    %vm23 = vcmask 254976
    %v24 = vsel %vm23, %v20, 0.0
    %25 = vadd.xlane.f32.xlu0 %v24
    %v26 = vpop.xlane.xlu0 %25
    %v27 = vrcp.pop 32.0
    %v28 = vmul.f32 %v26, %v27
    %v29 = vmul.f32 %v20, %v20
    %v30 = vsel %vm23, %v29, 0.0
    %31 = vadd.xlane.f32.xlu0 %v30
    %v32 = vpop.xlane.xlu0 %31
    %v33 = vmul.f32 %v32, %v27
    %v34 = vmul.f32 %v28, %v28
    %v35 = vsub.f32 %v33, %v34
    %v36 = vsub.f32 %v20, %v28
    %v37 = vadd.f32 %v35, 1e-05
    %v38 = vrsqrt.pop %v37
    %v39 = vmul.f32 %v36, %v38
    %v41 = vlaneseq
    %v42 = vshrl.u32 %v41, 7
    %v43 = vsub.s32 0, %v42
    %v44 = vrot.slane %v21, %v43
    %v46 = vmul.f32 %v39, %v44
    %v48 = vlaneseq
    %v49 = vshrl.u32 %v48, 7
    %v50 = vsub.s32 0, %v49
    %v51 = vrot.slane %v22, %v50
    %v53 = vadd.f32 %v46, %v51
    %v54 = vpack.c.bf16 %v53, %v53
    %v55 = vld [vmem:[%s3] sm:$0xf]
    %v56 = vld [vmem:[%s3 + $0x4] sm:$0xf]
    %v57 = vld [vmem:[%s3 + $0x8] sm:$0xf]
    %v58 = vld [vmem:[%s3 + $0xc] sm:$0xf]
    %v63 = vunpack.c.l.b16 %v55
    %v64 = vunpack.c.l.b16 %v56
    %v65 = vunpack.c.l.b16 %v57
    %v66 = vunpack.c.l.b16 %v58
    %v67 = vpack.c.b16 %v64, %v63
    %v68 = vpack.c.b16 %v66, %v65
    %vm71 = vcmask 261120
    %v73 = vsel %vm71, %v54, 0
    %75 = vmatprep.subr.bf16.mxu0 0
    %76 = vmatpush1.bf16.msra.mxu0 %v67
    %77 = vmatprep.subr.bf16.mxu0 0
    %78 = vmatpush1.bf16.msra.mxu0 %v68
    %79 = vmatprep.subr.bf16.mxu0 0
    %80 = vmatpush1.bf16.msra.mxu0 0
    %81 = vmatprep.subr.bf16.mxu0 0
    %82 = vmatpush1.bf16.msra.mxu0 0
    %83 = vmatprep.subr.bf16.mxu0 0
    %84 = vmatpush1.bf16.msra.mxu0 0
    %85 = vmatprep.subr.bf16.mxu0 0
    %86 = vmatpush1.bf16.msra.mxu0 0
    %87 = vmatprep.subr.bf16.mxu0 0
    %88 = vmatpush1.bf16.msra.mxu0 0
    %89 = vmatprep.subr.bf16.mxu0 0
    %90 = vmatpush1.bf16.msra.mxu0 0
    %91 = vmatprep.subr.bf16.mxu0 0
    %92 = vmatpush1.bf16.msra.mxu0 0
    %93 = vmatprep.subr.bf16.mxu0 0
    %94 = vmatpush1.bf16.msra.mxu0 0
    %95 = vmatprep.subr.bf16.mxu0 0
    %96 = vmatpush1.bf16.msra.mxu0 0
    %97 = vmatprep.subr.bf16.mxu0 0
    %98 = vmatpush1.bf16.msra.mxu0 0
    %99 = vmatprep.subr.bf16.mxu0 0
    %100 = vmatpush1.bf16.msra.mxu0 0
    %101 = vmatprep.subr.bf16.mxu0 0
    %102 = vmatpush1.bf16.msra.mxu0 0
    %103 = vmatprep.subr.bf16.mxu0 0
    %104 = vmatpush1.bf16.msra.mxu0 0
    %105 = vmatprep.subr.bf16.mxu0 0
    %106 = vmatpush1.bf16.msra.mxu0 0
    %107 = vmatprep.mubr.bf16.mxu0 0
    %108 = vmatmul.mubr.bf16.gmra.mrb[0].mxu0 %v73
    %v109 = vpop.f32.mrb[0].mxu0
    %v110 = vadd.f32 0.0, %v109
    %v111 = vpop.f32.mrb[0].mxu0
    %v112 = vpop.f32.mrb[0].mxu0
    %v113 = vpop.f32.mrb[0].mxu0
    %114 = vdwg.mxu0
    %vm115 = vcmask 123904
    %116 = vst.msk [vmem:[#allocation2] sm:$0x3] %vm115, %v110
    // Predicated region
    $region18: #{text_encoder_forward.3} parent=1 // pred_check
      _
    $region19: #{text_encoder_forward.3} parent=1 // pred_check_branch
      %118 = sbr.rel (0) target = $region21
    $region20: #{text_encoder_forward.3} parent=1 // pred_region
      %s120 = ssub.s32 32, 32
      %121 = vsyncadd [#allocation3], %s120
      %s123 = sshll.u32 [#allocation2], 4
      %s124 = int_to_ptr.vmem [resolvable:$true] %s123
      %126 = dma.vmem_to_hbm [thread:$0]  %s124, 32, %s4, [#allocation3]
    $region21: #{text_encoder_forward.3} parent=1 // pred_fallthru
      _
    // Predicated region
    $region22: #{text_encoder_forward.3} parent=1 // pred_check
      _
    $region23: #{text_encoder_forward.3} parent=1 // pred_check_branch
      %128 = sbr.rel (0) target = $region25
    $region24: #{text_encoder_forward.3} parent=1 // pred_region
      %129 = dma.done [#allocation3], 32
    $region25: #{text_encoder_forward.3} parent=1 // pred_fallthru
      _
    %130 = vsyncpa [#allocation3], 1

// kernel: text_encoder_forward.2
$region0: #{text_encoder_forward.2}
  #allocation0 [shape = 'u32[]', space=smem, size = 0x4, offset = 0x4, fixed_abs, tag = 'smem constant byte address 0x4 - core index']
  #allocation1 [shape = 'u32[144,128]{1,0:T(1,128)}', space=vmem, size = 0x12000, scoped, tag = 'internal scratch']
  %s0 = inlined_call_operand.vmem [shape: bf16[2,8,32], index: 0, kind: input, shape index: {}, may-alias: {0,25}]
  %s1 = inlined_call_operand.vmem [shape: f32[1,32], index: 1, kind: input, shape index: {}]
  %s2 = inlined_call_operand.vmem [shape: f32[1,32], index: 2, kind: input, shape index: {}]
  %s3 = inlined_call_operand.vmem [shape: bf16[32,96], index: 3, kind: input, shape index: {}]
  %s4 = inlined_call_operand.vmem [shape: f32[1,96], index: 4, kind: input, shape index: {}]
  %s5 = inlined_call_operand.vmem [shape: bf16[32,32], index: 5, kind: input, shape index: {}]
  %s6 = inlined_call_operand.vmem [shape: f32[1,32], index: 6, kind: input, shape index: {}]
  %s7 = inlined_call_operand.vmem [shape: f32[1,32], index: 7, kind: input, shape index: {}]
  %s8 = inlined_call_operand.vmem [shape: f32[1,32], index: 8, kind: input, shape index: {}]
  %s9 = inlined_call_operand.vmem [shape: bf16[32,128], index: 9, kind: input, shape index: {}]
  %s10 = inlined_call_operand.vmem [shape: f32[1,128], index: 10, kind: input, shape index: {}]
  %s11 = inlined_call_operand.vmem [shape: bf16[128,32], index: 11, kind: input, shape index: {}]
  %s12 = inlined_call_operand.vmem [shape: f32[1,32], index: 12, kind: input, shape index: {}]
  %s13 = inlined_call_operand.vmem [shape: f32[1,32], index: 13, kind: input, shape index: {}]
  %s14 = inlined_call_operand.vmem [shape: f32[1,32], index: 14, kind: input, shape index: {}]
  %s15 = inlined_call_operand.vmem [shape: bf16[32,96], index: 15, kind: input, shape index: {}]
  %s16 = inlined_call_operand.vmem [shape: f32[1,96], index: 16, kind: input, shape index: {}]
  %s17 = inlined_call_operand.vmem [shape: bf16[32,32], index: 17, kind: input, shape index: {}]
  %s18 = inlined_call_operand.vmem [shape: f32[1,32], index: 18, kind: input, shape index: {}]
  %s19 = inlined_call_operand.vmem [shape: f32[1,32], index: 19, kind: input, shape index: {}]
  %s20 = inlined_call_operand.vmem [shape: f32[1,32], index: 20, kind: input, shape index: {}]
  %s21 = inlined_call_operand.vmem [shape: bf16[32,128], index: 21, kind: input, shape index: {}]
  %s22 = inlined_call_operand.vmem [shape: f32[1,128], index: 22, kind: input, shape index: {}]
  %s23 = inlined_call_operand.vmem [shape: bf16[128,32], index: 23, kind: input, shape index: {}]
  %s24 = inlined_call_operand.vmem [shape: f32[1,32], index: 24, kind: input, shape index: {}]
  %s25 = inlined_call_operand.vmem [shape: bf16[2,8,32], index: 25, kind: output, shape index: {}, may-alias: {0,25}]
  %s26 = sld [smem:[#allocation0]]
  $region110: #{text_encoder_forward.2} parent=0
    _
  %s28 = ssub.s32 1, %s26
  %s29 = scalar_select 0, %s28, %s26
  // Predicated region
  $region2: #{text_encoder_forward.2} parent=0 // pred_check
    _
  $region3: #{text_encoder_forward.2} parent=0 // pred_check_branch
    %31 = sbr.rel (0) target = $region5
  $region4: #{text_encoder_forward.2} parent=0 // pred_region
    _
  $region5: #{text_encoder_forward.2} parent=0 // pred_fallthru
    _
  // Predicated region
  $region6: #{text_encoder_forward.2} parent=0 // pred_check
    _
  $region7: #{text_encoder_forward.2} parent=0 // pred_check_branch
    %33 = sbr.rel (0) target = $region9
  $region8: #{text_encoder_forward.2} parent=0 // pred_region
    _
  $region9: #{text_encoder_forward.2} parent=0 // pred_fallthru
    _
  // Predicated region
  $region10: #{text_encoder_forward.2} parent=0 // pred_check
    _
  $region11: #{text_encoder_forward.2} parent=0 // pred_check_branch
    %35 = sbr.rel (0) target = $region13
  $region12: #{text_encoder_forward.2} parent=0 // pred_region
    _
  $region13: #{text_encoder_forward.2} parent=0 // pred_fallthru
    _
  // Predicated region
  $region14: #{text_encoder_forward.2} parent=0 // pred_check
    _
  $region15: #{text_encoder_forward.2} parent=0 // pred_check_branch
    %37 = sbr.rel (0) target = $region17
  $region16: #{text_encoder_forward.2} parent=0 // pred_region
    _
  $region17: #{text_encoder_forward.2} parent=0 // pred_fallthru
    _
  // Predicated region
  $region18: #{text_encoder_forward.2} parent=0 // pred_check
    _
  $region19: #{text_encoder_forward.2} parent=0 // pred_check_branch
    %39 = sbr.rel (0) target = $region21
  $region20: #{text_encoder_forward.2} parent=0 // pred_region
    _
  $region21: #{text_encoder_forward.2} parent=0 // pred_fallthru
    _
  // Predicated region
  $region22: #{text_encoder_forward.2} parent=0 // pred_check
    _
  $region23: #{text_encoder_forward.2} parent=0 // pred_check_branch
    %41 = sbr.rel (0) target = $region25
  $region24: #{text_encoder_forward.2} parent=0 // pred_region
    _
  $region25: #{text_encoder_forward.2} parent=0 // pred_fallthru
    _
  // Predicated region
  $region26: #{text_encoder_forward.2} parent=0 // pred_check
    _
  $region27: #{text_encoder_forward.2} parent=0 // pred_check_branch
    %43 = sbr.rel (0) target = $region29
  $region28: #{text_encoder_forward.2} parent=0 // pred_region
    _
  $region29: #{text_encoder_forward.2} parent=0 // pred_fallthru
    _
  // Predicated region
  $region30: #{text_encoder_forward.2} parent=0 // pred_check
    _
  $region31: #{text_encoder_forward.2} parent=0 // pred_check_branch
    %45 = sbr.rel (0) target = $region33
  $region32: #{text_encoder_forward.2} parent=0 // pred_region
    _
  $region33: #{text_encoder_forward.2} parent=0 // pred_fallthru
    _
  // Predicated region
  $region34: #{text_encoder_forward.2} parent=0 // pred_check
    _
  $region35: #{text_encoder_forward.2} parent=0 // pred_check_branch
    %47 = sbr.rel (0) target = $region37
  $region36: #{text_encoder_forward.2} parent=0 // pred_region
    _
  $region37: #{text_encoder_forward.2} parent=0 // pred_fallthru
    _
  // Predicated region
  $region38: #{text_encoder_forward.2} parent=0 // pred_check
    _
  $region39: #{text_encoder_forward.2} parent=0 // pred_check_branch
    %49 = sbr.rel (0) target = $region41
  $region40: #{text_encoder_forward.2} parent=0 // pred_region
    _
  $region41: #{text_encoder_forward.2} parent=0 // pred_fallthru
    _
  // Predicated region
  $region42: #{text_encoder_forward.2} parent=0 // pred_check
    _
  $region43: #{text_encoder_forward.2} parent=0 // pred_check_branch
    %51 = sbr.rel (0) target = $region45
  $region44: #{text_encoder_forward.2} parent=0 // pred_region
    _
  $region45: #{text_encoder_forward.2} parent=0 // pred_fallthru
    _
  // Predicated region
  $region46: #{text_encoder_forward.2} parent=0 // pred_check
    _
  $region47: #{text_encoder_forward.2} parent=0 // pred_check_branch
    %53 = sbr.rel (0) target = $region49
  $region48: #{text_encoder_forward.2} parent=0 // pred_region
    _
  $region49: #{text_encoder_forward.2} parent=0 // pred_fallthru
    _
  // Predicated region
  $region50: #{text_encoder_forward.2} parent=0 // pred_check
    _
  $region51: #{text_encoder_forward.2} parent=0 // pred_check_branch
    %55 = sbr.rel (0) target = $region53
  $region52: #{text_encoder_forward.2} parent=0 // pred_region
    _
  $region53: #{text_encoder_forward.2} parent=0 // pred_fallthru
    _
  // Predicated region
  $region54: #{text_encoder_forward.2} parent=0 // pred_check
    _
  $region55: #{text_encoder_forward.2} parent=0 // pred_check_branch
    %57 = sbr.rel (0) target = $region57
  $region56: #{text_encoder_forward.2} parent=0 // pred_region
    _
  $region57: #{text_encoder_forward.2} parent=0 // pred_fallthru
    _
  // Predicated region
  $region58: #{text_encoder_forward.2} parent=0 // pred_check
    _
  $region59: #{text_encoder_forward.2} parent=0 // pred_check_branch
    %59 = sbr.rel (0) target = $region61
  $region60: #{text_encoder_forward.2} parent=0 // pred_region
    _
  $region61: #{text_encoder_forward.2} parent=0 // pred_fallthru
    _
  // Predicated region
  $region62: #{text_encoder_forward.2} parent=0 // pred_check
    _
  $region63: #{text_encoder_forward.2} parent=0 // pred_check_branch
    %61 = sbr.rel (0) target = $region65
  $region64: #{text_encoder_forward.2} parent=0 // pred_region
    _
  $region65: #{text_encoder_forward.2} parent=0 // pred_fallthru
    _
  // Predicated region
  $region66: #{text_encoder_forward.2} parent=0 // pred_check
    _
  $region67: #{text_encoder_forward.2} parent=0 // pred_check_branch
    %63 = sbr.rel (0) target = $region69
  $region68: #{text_encoder_forward.2} parent=0 // pred_region
    _
  $region69: #{text_encoder_forward.2} parent=0 // pred_fallthru
    _
  // Predicated region
  $region70: #{text_encoder_forward.2} parent=0 // pred_check
    _
  $region71: #{text_encoder_forward.2} parent=0 // pred_check_branch
    %65 = sbr.rel (0) target = $region73
  $region72: #{text_encoder_forward.2} parent=0 // pred_region
    _
  $region73: #{text_encoder_forward.2} parent=0 // pred_fallthru
    _
  // Predicated region
  $region74: #{text_encoder_forward.2} parent=0 // pred_check
    _
  $region75: #{text_encoder_forward.2} parent=0 // pred_check_branch
    %67 = sbr.rel (0) target = $region77
  $region76: #{text_encoder_forward.2} parent=0 // pred_region
    _
  $region77: #{text_encoder_forward.2} parent=0 // pred_fallthru
    _
  // Predicated region
  $region78: #{text_encoder_forward.2} parent=0 // pred_check
    _
  $region79: #{text_encoder_forward.2} parent=0 // pred_check_branch
    %69 = sbr.rel (0) target = $region81
  $region80: #{text_encoder_forward.2} parent=0 // pred_region
    _
  $region81: #{text_encoder_forward.2} parent=0 // pred_fallthru
    _
  // Predicated region
  $region82: #{text_encoder_forward.2} parent=0 // pred_check
    _
  $region83: #{text_encoder_forward.2} parent=0 // pred_check_branch
    %71 = sbr.rel (0) target = $region85
  $region84: #{text_encoder_forward.2} parent=0 // pred_region
    _
  $region85: #{text_encoder_forward.2} parent=0 // pred_fallthru
    _
  // Predicated region
  $region86: #{text_encoder_forward.2} parent=0 // pred_check
    _
  $region87: #{text_encoder_forward.2} parent=0 // pred_check_branch
    %73 = sbr.rel (0) target = $region89
  $region88: #{text_encoder_forward.2} parent=0 // pred_region
    _
  $region89: #{text_encoder_forward.2} parent=0 // pred_fallthru
    _
  // Predicated region
  $region90: #{text_encoder_forward.2} parent=0 // pred_check
    _
  $region91: #{text_encoder_forward.2} parent=0 // pred_check_branch
    %75 = sbr.rel (0) target = $region93
  $region92: #{text_encoder_forward.2} parent=0 // pred_region
    _
  $region93: #{text_encoder_forward.2} parent=0 // pred_fallthru
    _
  // Predicated region
  $region94: #{text_encoder_forward.2} parent=0 // pred_check
    _
  $region95: #{text_encoder_forward.2} parent=0 // pred_check_branch
    %77 = sbr.rel (0) target = $region97
  $region96: #{text_encoder_forward.2} parent=0 // pred_region
    _
  $region97: #{text_encoder_forward.2} parent=0 // pred_fallthru
    _
  // Predicated region
  $region98: #{text_encoder_forward.2} parent=0 // pred_check
    _
  $region99: #{text_encoder_forward.2} parent=0 // pred_check_branch
    %79 = sbr.rel (0) target = $region101
  $region100: #{text_encoder_forward.2} parent=0 // pred_region
    _
  $region101: #{text_encoder_forward.2} parent=0 // pred_fallthru
    _
  %v83 = vld [vmem:[%s0] sm:$0xf]
  %v84 = vld [vmem:[%s0 + $0x4] sm:$0xf]
  %v85 = vunpack.c.l.bf16 %v83
  %v86 = vunpack.c.l.bf16 %v84
  %v87 = vld [vmem:[%s1] sm:$0x1]
  %v88 = vld [vmem:[%s2] sm:$0x1]
  %vm89 = vcmask 261120
  %v90 = vsel %vm89, %v85, 0.0
  %91 = vadd.xlane.f32.xlu0 %v90
  %v92 = vpop.xlane.xlu0 %91
  %v93 = vsel %vm89, %v86, 0.0
  %94 = vadd.xlane.f32.xlu0 %v93
  %v95 = vpop.xlane.xlu0 %94
  %v96 = vrcp.pop 32.0
  %v97 = vmul.f32 %v92, %v96
  %v98 = vmul.f32 %v95, %v96
  %v99 = vmul.f32 %v85, %v85
  %v100 = vmul.f32 %v86, %v86
  %v101 = vsel %vm89, %v99, 0.0
  %102 = vadd.xlane.f32.xlu0 %v101
  %v103 = vpop.xlane.xlu0 %102
  %v104 = vsel %vm89, %v100, 0.0
  %105 = vadd.xlane.f32.xlu0 %v104
  %v106 = vpop.xlane.xlu0 %105
  %v107 = vmul.f32 %v103, %v96
  %v108 = vmul.f32 %v106, %v96
  %v109 = vmul.f32 %v97, %v97
  %v110 = vmul.f32 %v98, %v98
  %v111 = vsub.f32 %v107, %v109
  %v112 = vsub.f32 %v108, %v110
  %v113 = vsub.f32 %v85, %v97
  %v114 = vsub.f32 %v86, %v98
  %v115 = vadd.f32 %v111, 1e-05
  %v116 = vadd.f32 %v112, 1e-05
  %v117 = vrsqrt.pop %v115
  %v118 = vrsqrt.pop %v116
  %v119 = vmul.f32 %v113, %v117
  %v120 = vmul.f32 %v114, %v118
  %v122 = vlaneseq
  %v123 = vshrl.u32 %v122, 7
  %v124 = vsub.s32 0, %v123
  %v125 = vrot.slane %v87, %v124
  %v127 = vmul.f32 %v119, %v125
  %v128 = vmul.f32 %v120, %v125
  %v130 = vlaneseq
  %v131 = vshrl.u32 %v130, 7
  %v132 = vsub.s32 0, %v131
  %v133 = vrot.slane %v88, %v132
  %v135 = vadd.f32 %v127, %v133
  %v136 = vadd.f32 %v128, %v133
  %v137 = vpack.c.bf16 %v136, %v135
  %v138 = vld [vmem:[%s3] sm:$0xf]
  %v139 = vld [vmem:[%s3 + $0x4] sm:$0xf]
  %v140 = vld [vmem:[%s3 + $0x8] sm:$0xf]
  %v141 = vld [vmem:[%s3 + $0xc] sm:$0xf]
  %v142 = vld [vmem:[%s4] sm:$0x1]
  %v144 = vlaneseq
  %v145 = vshrl.u32 %v144, 7
  %v146 = vsub.s32 0, %v145
  %v147 = vrot.slane %v142, %v146
  %v153 = vunpack.c.l.b16 %v138
  %v154 = vunpack.c.l.b16 %v139
  %v155 = vunpack.c.l.b16 %v140
  %v156 = vunpack.c.l.b16 %v141
  %v157 = vpack.c.b16 %v154, %v153
  %v158 = vpack.c.b16 %v156, %v155
  %v162 = vsel %vm89, %v137, 0
  %164 = vmatprep.subr.bf16.mxu0 0
  %165 = vmatpush1.bf16.msra.mxu0 %v157
  %166 = vmatprep.subr.bf16.mxu0 0
  %167 = vmatpush1.bf16.msra.mxu0 %v158
  %168 = vmatprep.subr.bf16.mxu0 0
  %169 = vmatpush1.bf16.msra.mxu0 0
  %170 = vmatprep.subr.bf16.mxu0 0
  %171 = vmatpush1.bf16.msra.mxu0 0
  %172 = vmatprep.subr.bf16.mxu0 0
  %173 = vmatpush1.bf16.msra.mxu0 0
  %174 = vmatprep.subr.bf16.mxu0 0
  %175 = vmatpush1.bf16.msra.mxu0 0
  %176 = vmatprep.subr.bf16.mxu0 0
  %177 = vmatpush1.bf16.msra.mxu0 0
  %178 = vmatprep.subr.bf16.mxu0 0
  %179 = vmatpush1.bf16.msra.mxu0 0
  %180 = vmatprep.subr.bf16.mxu0 0
  %181 = vmatpush1.bf16.msra.mxu0 0
  %182 = vmatprep.subr.bf16.mxu0 0
  %183 = vmatpush1.bf16.msra.mxu0 0
  %184 = vmatprep.subr.bf16.mxu0 0
  %185 = vmatpush1.bf16.msra.mxu0 0
  %186 = vmatprep.subr.bf16.mxu0 0
  %187 = vmatpush1.bf16.msra.mxu0 0
  %188 = vmatprep.subr.bf16.mxu0 0
  %189 = vmatpush1.bf16.msra.mxu0 0
  %190 = vmatprep.subr.bf16.mxu0 0
  %191 = vmatpush1.bf16.msra.mxu0 0
  %192 = vmatprep.subr.bf16.mxu0 0
  %193 = vmatpush1.bf16.msra.mxu0 0
  %194 = vmatprep.subr.bf16.mxu0 0
  %195 = vmatpush1.bf16.msra.mxu0 0
  %196 = vmatprep.mubr.bf16.mxu0 0
  %197 = vmatmul.mubr.bf16.gmra.mrb[0].mxu0 %v162
  %v198 = vpop.f32.mrb[0].mxu0
  %v199 = vadd.f32 %v147, %v198
  %v200 = vpop.f32.mrb[0].mxu0
  %v201 = vpop.f32.mrb[0].mxu0
  %v202 = vadd.f32 %v147, %v201
  %v203 = vpop.f32.mrb[0].mxu0
  %204 = vdwg.mxu0
  %207 = vrot.lane.b32.xlu0 %v199, 120
  %v208 = vpop.permute.xlu0 %207
  %209 = vrot.lane.b32.xlu0 %v202, 120
  %v210 = vpop.permute.xlu0 %209
  %213 = vrot.lane.b32.xlu0 %v199, 112
  %v214 = vpop.permute.xlu0 %213
  %215 = vrot.lane.b32.xlu0 %v202, 112
  %v216 = vpop.permute.xlu0 %215
  %219 = vrot.lane.b32.xlu0 %v199, 104
  %v220 = vpop.permute.xlu0 %219
  %221 = vrot.lane.b32.xlu0 %v202, 104
  %v222 = vpop.permute.xlu0 %221
  %v225 = vcombine.low %v199, %v214
  %v226 = vcombine.high %v199, %v214
  %v228 = vunpack.c.l.s4 1983009808
  %v229 = vunpack.c.0.s8 %v228
  %v230 = vlaneseq
  %v231 = vshrl.u32 %v230, 7
  %v232 = vsub.s32 %v229, %v231
  %v233 = vrot.slane %v225, %v232
  %v235 = vunpack.c.l.s4 1983009808
  %v236 = vunpack.c.0.s8 %v235
  %v237 = vlaneseq
  %v238 = vshrl.u32 %v237, 7
  %v239 = vsub.s32 %v236, %v238
  %v240 = vrot.slane %v226, %v239
  %v241 = vcombine.low %v208, %v220
  %v242 = vcombine.high %v208, %v220
  %v244 = vunpack.c.l.s4 1983009808
  %v245 = vunpack.c.0.s8 %v244
  %v246 = vlaneseq
  %v247 = vshrl.u32 %v246, 7
  %v248 = vsub.s32 %v245, %v247
  %v249 = vrot.slane %v241, %v248
  %v251 = vunpack.c.l.s4 1983009808
  %v252 = vunpack.c.0.s8 %v251
  %v253 = vlaneseq
  %v254 = vshrl.u32 %v253, 7
  %v255 = vsub.s32 %v252, %v254
  %v256 = vrot.slane %v242, %v255
  %v257 = vcombine.low %v233, %v249
  %v258 = vcombine.high %v233, %v249
  %v260 = vunpack.c.l.s4 1934713408
  %v261 = vunpack.c.0.s8 %v260
  %v262 = vlaneseq
  %v263 = vshrl.u32 %v262, 7
  %v264 = vsub.s32 %v261, %v263
  %v265 = vrot.slane %v257, %v264
  %v267 = vunpack.c.l.s4 1934713408
  %v268 = vunpack.c.0.s8 %v267
  %v269 = vlaneseq
  %v270 = vshrl.u32 %v269, 7
  %v271 = vsub.s32 %v268, %v270
  %v272 = vrot.slane %v258, %v271
  %v273 = vcombine.low %v240, %v256
  %v274 = vcombine.high %v240, %v256
  %v276 = vunpack.c.l.s4 1934713408
  %v277 = vunpack.c.0.s8 %v276
  %v278 = vlaneseq
  %v279 = vshrl.u32 %v278, 7
  %v280 = vsub.s32 %v277, %v279
  %v281 = vrot.slane %v273, %v280
  %v283 = vunpack.c.l.s4 1934713408
  %v284 = vunpack.c.0.s8 %v283
  %v285 = vlaneseq
  %v286 = vshrl.u32 %v285, 7
  %v287 = vsub.s32 %v284, %v286
  %v288 = vrot.slane %v274, %v287
  %v289 = vcombine.high %v265, 0.0
  %v290 = vcombine.high %v272, 0.0
  %v291 = vcombine.high %v281, 0.0
  %v292 = vcombine.high %v288, 0.0
  %v293 = vcombine.low %v202, %v216
  %v294 = vcombine.high %v202, %v216
  %v296 = vunpack.c.l.s4 1983009808
  %v297 = vunpack.c.0.s8 %v296
  %v298 = vlaneseq
  %v299 = vshrl.u32 %v298, 7
  %v300 = vsub.s32 %v297, %v299
  %v301 = vrot.slane %v293, %v300
  %v303 = vunpack.c.l.s4 1983009808
  %v304 = vunpack.c.0.s8 %v303
  %v305 = vlaneseq
  %v306 = vshrl.u32 %v305, 7
  %v307 = vsub.s32 %v304, %v306
  %v308 = vrot.slane %v294, %v307
  %v309 = vcombine.low %v210, %v222
  %v310 = vcombine.high %v210, %v222
  %v312 = vunpack.c.l.s4 1983009808
  %v313 = vunpack.c.0.s8 %v312
  %v314 = vlaneseq
  %v315 = vshrl.u32 %v314, 7
  %v316 = vsub.s32 %v313, %v315
  %v317 = vrot.slane %v309, %v316
  %v319 = vunpack.c.l.s4 1983009808
  %v320 = vunpack.c.0.s8 %v319
  %v321 = vlaneseq
  %v322 = vshrl.u32 %v321, 7
  %v323 = vsub.s32 %v320, %v322
  %v324 = vrot.slane %v310, %v323
  %v325 = vcombine.low %v301, %v317
  %v326 = vcombine.high %v301, %v317
  %v328 = vunpack.c.l.s4 1934713408
  %v329 = vunpack.c.0.s8 %v328
  %v330 = vlaneseq
  %v331 = vshrl.u32 %v330, 7
  %v332 = vsub.s32 %v329, %v331
  %v333 = vrot.slane %v325, %v332
  %v335 = vunpack.c.l.s4 1934713408
  %v336 = vunpack.c.0.s8 %v335
  %v337 = vlaneseq
  %v338 = vshrl.u32 %v337, 7
  %v339 = vsub.s32 %v336, %v338
  %v340 = vrot.slane %v326, %v339
  %v341 = vcombine.low %v308, %v324
  %v342 = vcombine.high %v308, %v324
  %v344 = vunpack.c.l.s4 1934713408
  %v345 = vunpack.c.0.s8 %v344
  %v346 = vlaneseq
  %v347 = vshrl.u32 %v346, 7
  %v348 = vsub.s32 %v345, %v347
  %v349 = vrot.slane %v341, %v348
  %v351 = vunpack.c.l.s4 1934713408
  %v352 = vunpack.c.0.s8 %v351
  %v353 = vlaneseq
  %v354 = vshrl.u32 %v353, 7
  %v355 = vsub.s32 %v352, %v354
  %v356 = vrot.slane %v342, %v355
  %v357 = vcombine.high %v333, 0.0
  %v358 = vcombine.high %v340, 0.0
  %v359 = vcombine.high %v349, 0.0
  %v360 = vcombine.high %v356, 0.0
  %v361 = vcombine.low %v265, %v272
  %v363 = vunpack.c.l.s4 1983009808
  %v364 = vunpack.c.0.s8 %v363
  %v365 = vlaneseq
  %v366 = vshrl.u32 %v365, 7
  %v367 = vsub.s32 %v364, %v366
  %v368 = vrot.slane %v361, %v367
  %v369 = vcombine.low %v289, %v290
  %v371 = vunpack.c.l.s4 1983009808
  %v372 = vunpack.c.0.s8 %v371
  %v373 = vlaneseq
  %v374 = vshrl.u32 %v373, 7
  %v375 = vsub.s32 %v372, %v374
  %v376 = vrot.slane %v369, %v375
  %v377 = vcombine.low %v281, %v288
  %v379 = vunpack.c.l.s4 1983009808
  %v380 = vunpack.c.0.s8 %v379
  %v381 = vlaneseq
  %v382 = vshrl.u32 %v381, 7
  %v383 = vsub.s32 %v380, %v382
  %v384 = vrot.slane %v377, %v383
  %v385 = vcombine.low %v291, %v292
  %v387 = vunpack.c.l.s4 1983009808
  %v388 = vunpack.c.0.s8 %v387
  %v389 = vlaneseq
  %v390 = vshrl.u32 %v389, 7
  %v391 = vsub.s32 %v388, %v390
  %v392 = vrot.slane %v385, %v391
  %v393 = vcombine.low %v368, %v376
  %v394 = vcombine.high %v368, %v376
  %v396 = vunpack.c.l.s4 1934713408
  %v397 = vunpack.c.0.s8 %v396
  %v398 = vlaneseq
  %v399 = vshrl.u32 %v398, 7
  %v400 = vsub.s32 %v397, %v399
  %v401 = vrot.slane %v393, %v400
  %v403 = vunpack.c.l.s4 1934713408
  %v404 = vunpack.c.0.s8 %v403
  %v405 = vlaneseq
  %v406 = vshrl.u32 %v405, 7
  %v407 = vsub.s32 %v404, %v406
  %v408 = vrot.slane %v394, %v407
  %v409 = vcombine.low %v384, %v392
  %v410 = vcombine.high %v384, %v392
  %v412 = vunpack.c.l.s4 1934713408
  %v413 = vunpack.c.0.s8 %v412
  %v414 = vlaneseq
  %v415 = vshrl.u32 %v414, 7
  %v416 = vsub.s32 %v413, %v415
  %v417 = vrot.slane %v409, %v416
  %v419 = vunpack.c.l.s4 1934713408
  %v420 = vunpack.c.0.s8 %v419
  %v421 = vlaneseq
  %v422 = vshrl.u32 %v421, 7
  %v423 = vsub.s32 %v420, %v422
  %v424 = vrot.slane %v410, %v423
  %v425 = vcombine.low %v401, %v417
  %v426 = vcombine.high %v401, %v417
  %v427 = vcombine.low %v408, %v424
  %v428 = vcombine.high %v408, %v424
  %v429 = vcombine.low %v333, %v340
  %v431 = vunpack.c.l.s4 1983009808
  %v432 = vunpack.c.0.s8 %v431
  %v433 = vlaneseq
  %v434 = vshrl.u32 %v433, 7
  %v435 = vsub.s32 %v432, %v434
  %v436 = vrot.slane %v429, %v435
  %v437 = vcombine.low %v357, %v358
  %v439 = vunpack.c.l.s4 1983009808
  %v440 = vunpack.c.0.s8 %v439
  %v441 = vlaneseq
  %v442 = vshrl.u32 %v441, 7
  %v443 = vsub.s32 %v440, %v442
  %v444 = vrot.slane %v437, %v443
  %v445 = vcombine.low %v349, %v356
  %v447 = vunpack.c.l.s4 1983009808
  %v448 = vunpack.c.0.s8 %v447
  %v449 = vlaneseq
  %v450 = vshrl.u32 %v449, 7
  %v451 = vsub.s32 %v448, %v450
  %v452 = vrot.slane %v445, %v451
  %v453 = vcombine.low %v359, %v360
  %v455 = vunpack.c.l.s4 1983009808
  %v456 = vunpack.c.0.s8 %v455
  %v457 = vlaneseq
  %v458 = vshrl.u32 %v457, 7
  %v459 = vsub.s32 %v456, %v458
  %v460 = vrot.slane %v453, %v459
  %v461 = vcombine.low %v436, %v444
  %v462 = vcombine.high %v436, %v444
  %v464 = vunpack.c.l.s4 1934713408
  %v465 = vunpack.c.0.s8 %v464
  %v466 = vlaneseq
  %v467 = vshrl.u32 %v466, 7
  %v468 = vsub.s32 %v465, %v467
  %v469 = vrot.slane %v461, %v468
  %v471 = vunpack.c.l.s4 1934713408
  %v472 = vunpack.c.0.s8 %v471
  %v473 = vlaneseq
  %v474 = vshrl.u32 %v473, 7
  %v475 = vsub.s32 %v472, %v474
  %v476 = vrot.slane %v462, %v475
  %v477 = vcombine.low %v452, %v460
  %v478 = vcombine.high %v452, %v460
  %v480 = vunpack.c.l.s4 1934713408
  %v481 = vunpack.c.0.s8 %v480
  %v482 = vlaneseq
  %v483 = vshrl.u32 %v482, 7
  %v484 = vsub.s32 %v481, %v483
  %v485 = vrot.slane %v477, %v484
  %v487 = vunpack.c.l.s4 1934713408
  %v488 = vunpack.c.0.s8 %v487
  %v489 = vlaneseq
  %v490 = vshrl.u32 %v489, 7
  %v491 = vsub.s32 %v488, %v490
  %v492 = vrot.slane %v478, %v491
  %v493 = vcombine.low %v469, %v485
  %v494 = vcombine.high %v469, %v485
  %v495 = vcombine.low %v476, %v492
  %v496 = vcombine.high %v476, %v492
  %v497 = vpack.c.bf16 %v425, %v425
  %v498 = vpack.c.bf16 %v426, %v426
  %v499 = vpack.c.bf16 %v427, %v427
  %v500 = vpack.c.bf16 %v428, %v428
  %v501 = vpack.c.bf16 %v493, %v493
  %v502 = vpack.c.bf16 %v494, %v494
  %v503 = vpack.c.bf16 %v495, %v495
  %v504 = vpack.c.bf16 %v496, %v496
  %505 = vrot.lane.b32.xlu0 %v199, 96
  %v506 = vpop.permute.xlu0 %505
  %507 = vrot.lane.b32.xlu0 %v202, 96
  %v508 = vpop.permute.xlu0 %507
  %509 = vrot.lane.b32.xlu0 %v208, 96
  %v510 = vpop.permute.xlu0 %509
  %511 = vrot.lane.b32.xlu0 %v210, 96
  %v512 = vpop.permute.xlu0 %511
  %513 = vrot.lane.b32.xlu0 %v214, 96
  %v514 = vpop.permute.xlu0 %513
  %515 = vrot.lane.b32.xlu0 %v216, 96
  %v516 = vpop.permute.xlu0 %515
  %517 = vrot.lane.b32.xlu0 %v220, 96
  %v518 = vpop.permute.xlu0 %517
  %519 = vrot.lane.b32.xlu0 %v222, 96
  %v520 = vpop.permute.xlu0 %519
  %v529 = vcombine.low %v506, %v514
  %v530 = vcombine.high %v506, %v514
  %v532 = vunpack.c.l.s4 1983009808
  %v533 = vunpack.c.0.s8 %v532
  %v534 = vlaneseq
  %v535 = vshrl.u32 %v534, 7
  %v536 = vsub.s32 %v533, %v535
  %v537 = vrot.slane %v529, %v536
  %v539 = vunpack.c.l.s4 1983009808
  %v540 = vunpack.c.0.s8 %v539
  %v541 = vlaneseq
  %v542 = vshrl.u32 %v541, 7
  %v543 = vsub.s32 %v540, %v542
  %v544 = vrot.slane %v530, %v543
  %v545 = vcombine.low %v510, %v518
  %v546 = vcombine.high %v510, %v518
  %v548 = vunpack.c.l.s4 1983009808
  %v549 = vunpack.c.0.s8 %v548
  %v550 = vlaneseq
  %v551 = vshrl.u32 %v550, 7
  %v552 = vsub.s32 %v549, %v551
  %v553 = vrot.slane %v545, %v552
  %v555 = vunpack.c.l.s4 1983009808
  %v556 = vunpack.c.0.s8 %v555
  %v557 = vlaneseq
  %v558 = vshrl.u32 %v557, 7
  %v559 = vsub.s32 %v556, %v558
  %v560 = vrot.slane %v546, %v559
  %v561 = vcombine.low %v537, %v553
  %v562 = vcombine.high %v537, %v553
  %v564 = vunpack.c.l.s4 1934713408
  %v565 = vunpack.c.0.s8 %v564
  %v566 = vlaneseq
  %v567 = vshrl.u32 %v566, 7
  %v568 = vsub.s32 %v565, %v567
  %v569 = vrot.slane %v561, %v568
  %v571 = vunpack.c.l.s4 1934713408
  %v572 = vunpack.c.0.s8 %v571
  %v573 = vlaneseq
  %v574 = vshrl.u32 %v573, 7
  %v575 = vsub.s32 %v572, %v574
  %v576 = vrot.slane %v562, %v575
  %v577 = vcombine.low %v544, %v560
  %v578 = vcombine.high %v544, %v560
  %v580 = vunpack.c.l.s4 1934713408
  %v581 = vunpack.c.0.s8 %v580
  %v582 = vlaneseq
  %v583 = vshrl.u32 %v582, 7
  %v584 = vsub.s32 %v581, %v583
  %v585 = vrot.slane %v577, %v584
  %v587 = vunpack.c.l.s4 1934713408
  %v588 = vunpack.c.0.s8 %v587
  %v589 = vlaneseq
  %v590 = vshrl.u32 %v589, 7
  %v591 = vsub.s32 %v588, %v590
  %v592 = vrot.slane %v578, %v591
  %v593 = vcombine.high %v569, 0.0
  %v594 = vcombine.high %v576, 0.0
  %v595 = vcombine.high %v585, 0.0
  %v596 = vcombine.high %v592, 0.0
  %v597 = vcombine.low %v508, %v516
  %v598 = vcombine.high %v508, %v516
  %v600 = vunpack.c.l.s4 1983009808
  %v601 = vunpack.c.0.s8 %v600
  %v602 = vlaneseq
  %v603 = vshrl.u32 %v602, 7
  %v604 = vsub.s32 %v601, %v603
  %v605 = vrot.slane %v597, %v604
  %v607 = vunpack.c.l.s4 1983009808
  %v608 = vunpack.c.0.s8 %v607
  %v609 = vlaneseq
  %v610 = vshrl.u32 %v609, 7
  %v611 = vsub.s32 %v608, %v610
  %v612 = vrot.slane %v598, %v611
  %v613 = vcombine.low %v512, %v520
  %v614 = vcombine.high %v512, %v520
  %v616 = vunpack.c.l.s4 1983009808
  %v617 = vunpack.c.0.s8 %v616
  %v618 = vlaneseq
  %v619 = vshrl.u32 %v618, 7
  %v620 = vsub.s32 %v617, %v619
  %v621 = vrot.slane %v613, %v620
  %v623 = vunpack.c.l.s4 1983009808
  %v624 = vunpack.c.0.s8 %v623
  %v625 = vlaneseq
  %v626 = vshrl.u32 %v625, 7
  %v627 = vsub.s32 %v624, %v626
  %v628 = vrot.slane %v614, %v627
  %v629 = vcombine.low %v605, %v621
  %v630 = vcombine.high %v605, %v621
  %v632 = vunpack.c.l.s4 1934713408
  %v633 = vunpack.c.0.s8 %v632
  %v634 = vlaneseq
  %v635 = vshrl.u32 %v634, 7
  %v636 = vsub.s32 %v633, %v635
  %v637 = vrot.slane %v629, %v636
  %v639 = vunpack.c.l.s4 1934713408
  %v640 = vunpack.c.0.s8 %v639
  %v641 = vlaneseq
  %v642 = vshrl.u32 %v641, 7
  %v643 = vsub.s32 %v640, %v642
  %v644 = vrot.slane %v630, %v643
  %v645 = vcombine.low %v612, %v628
  %v646 = vcombine.high %v612, %v628
  %v648 = vunpack.c.l.s4 1934713408
  %v649 = vunpack.c.0.s8 %v648
  %v650 = vlaneseq
  %v651 = vshrl.u32 %v650, 7
  %v652 = vsub.s32 %v649, %v651
  %v653 = vrot.slane %v645, %v652
  %v655 = vunpack.c.l.s4 1934713408
  %v656 = vunpack.c.0.s8 %v655
  %v657 = vlaneseq
  %v658 = vshrl.u32 %v657, 7
  %v659 = vsub.s32 %v656, %v658
  %v660 = vrot.slane %v646, %v659
  %v661 = vcombine.high %v637, 0.0
  %v662 = vcombine.high %v644, 0.0
  %v663 = vcombine.high %v653, 0.0
  %v664 = vcombine.high %v660, 0.0
  %v665 = vcombine.low %v569, %v576
  %v667 = vunpack.c.l.s4 1983009808
  %v668 = vunpack.c.0.s8 %v667
  %v669 = vlaneseq
  %v670 = vshrl.u32 %v669, 7
  %v671 = vsub.s32 %v668, %v670
  %v672 = vrot.slane %v665, %v671
  %v673 = vcombine.low %v593, %v594
  %v675 = vunpack.c.l.s4 1983009808
  %v676 = vunpack.c.0.s8 %v675
  %v677 = vlaneseq
  %v678 = vshrl.u32 %v677, 7
  %v679 = vsub.s32 %v676, %v678
  %v680 = vrot.slane %v673, %v679
  %v681 = vcombine.low %v585, %v592
  %v683 = vunpack.c.l.s4 1983009808
  %v684 = vunpack.c.0.s8 %v683
  %v685 = vlaneseq
  %v686 = vshrl.u32 %v685, 7
  %v687 = vsub.s32 %v684, %v686
  %v688 = vrot.slane %v681, %v687
  %v689 = vcombine.low %v595, %v596
  %v691 = vunpack.c.l.s4 1983009808
  %v692 = vunpack.c.0.s8 %v691
  %v693 = vlaneseq
  %v694 = vshrl.u32 %v693, 7
  %v695 = vsub.s32 %v692, %v694
  %v696 = vrot.slane %v689, %v695
  %v697 = vcombine.low %v672, %v680
  %v698 = vcombine.high %v672, %v680
  %v700 = vunpack.c.l.s4 1934713408
  %v701 = vunpack.c.0.s8 %v700
  %v702 = vlaneseq
  %v703 = vshrl.u32 %v702, 7
  %v704 = vsub.s32 %v701, %v703
  %v705 = vrot.slane %v697, %v704
  %v707 = vunpack.c.l.s4 1934713408
  %v708 = vunpack.c.0.s8 %v707
  %v709 = vlaneseq
  %v710 = vshrl.u32 %v709, 7
  %v711 = vsub.s32 %v708, %v710
  %v712 = vrot.slane %v698, %v711
  %v713 = vcombine.low %v688, %v696
  %v714 = vcombine.high %v688, %v696
  %v716 = vunpack.c.l.s4 1934713408
  %v717 = vunpack.c.0.s8 %v716
  %v718 = vlaneseq
  %v719 = vshrl.u32 %v718, 7
  %v720 = vsub.s32 %v717, %v719
  %v721 = vrot.slane %v713, %v720
  %v723 = vunpack.c.l.s4 1934713408
  %v724 = vunpack.c.0.s8 %v723
  %v725 = vlaneseq
  %v726 = vshrl.u32 %v725, 7
  %v727 = vsub.s32 %v724, %v726
  %v728 = vrot.slane %v714, %v727
  %v729 = vcombine.low %v705, %v721
  %v730 = vcombine.high %v705, %v721
  %v731 = vcombine.low %v712, %v728
  %v732 = vcombine.high %v712, %v728
  %v733 = vcombine.low %v637, %v644
  %v735 = vunpack.c.l.s4 1983009808
  %v736 = vunpack.c.0.s8 %v735
  %v737 = vlaneseq
  %v738 = vshrl.u32 %v737, 7
  %v739 = vsub.s32 %v736, %v738
  %v740 = vrot.slane %v733, %v739
  %v741 = vcombine.low %v661, %v662
  %v743 = vunpack.c.l.s4 1983009808
  %v744 = vunpack.c.0.s8 %v743
  %v745 = vlaneseq
  %v746 = vshrl.u32 %v745, 7
  %v747 = vsub.s32 %v744, %v746
  %v748 = vrot.slane %v741, %v747
  %v749 = vcombine.low %v653, %v660
  %v751 = vunpack.c.l.s4 1983009808
  %v752 = vunpack.c.0.s8 %v751
  %v753 = vlaneseq
  %v754 = vshrl.u32 %v753, 7
  %v755 = vsub.s32 %v752, %v754
  %v756 = vrot.slane %v749, %v755
  %v757 = vcombine.low %v663, %v664
  %v759 = vunpack.c.l.s4 1983009808
  %v760 = vunpack.c.0.s8 %v759
  %v761 = vlaneseq
  %v762 = vshrl.u32 %v761, 7
  %v763 = vsub.s32 %v760, %v762
  %v764 = vrot.slane %v757, %v763
  %v765 = vcombine.low %v740, %v748
  %v766 = vcombine.high %v740, %v748
  %v768 = vunpack.c.l.s4 1934713408
  %v769 = vunpack.c.0.s8 %v768
  %v770 = vlaneseq
  %v771 = vshrl.u32 %v770, 7
  %v772 = vsub.s32 %v769, %v771
  %v773 = vrot.slane %v765, %v772
  %v775 = vunpack.c.l.s4 1934713408
  %v776 = vunpack.c.0.s8 %v775
  %v777 = vlaneseq
  %v778 = vshrl.u32 %v777, 7
  %v779 = vsub.s32 %v776, %v778
  %v780 = vrot.slane %v766, %v779
  %v781 = vcombine.low %v756, %v764
  %v782 = vcombine.high %v756, %v764
  %v784 = vunpack.c.l.s4 1934713408
  %v785 = vunpack.c.0.s8 %v784
  %v786 = vlaneseq
  %v787 = vshrl.u32 %v786, 7
  %v788 = vsub.s32 %v785, %v787
  %v789 = vrot.slane %v781, %v788
  %v791 = vunpack.c.l.s4 1934713408
  %v792 = vunpack.c.0.s8 %v791
  %v793 = vlaneseq
  %v794 = vshrl.u32 %v793, 7
  %v795 = vsub.s32 %v792, %v794
  %v796 = vrot.slane %v782, %v795
  %v797 = vcombine.low %v773, %v789
  %v798 = vcombine.high %v773, %v789
  %v799 = vcombine.low %v780, %v796
  %v800 = vcombine.high %v780, %v796
  %v801 = vpack.c.bf16 %v729, %v729
  %v802 = vpack.c.bf16 %v730, %v730
  %v803 = vpack.c.bf16 %v731, %v731
  %v804 = vpack.c.bf16 %v732, %v732
  %v805 = vpack.c.bf16 %v797, %v797
  %v806 = vpack.c.bf16 %v798, %v798
  %v807 = vpack.c.bf16 %v799, %v799
  %v808 = vpack.c.bf16 %v800, %v800
  %809 = vrot.lane.b32.xlu0 %v199, 64
  %v810 = vpop.permute.xlu0 %809
  %811 = vrot.lane.b32.xlu0 %v202, 64
  %v812 = vpop.permute.xlu0 %811
  %813 = vrot.lane.b32.xlu0 %v208, 64
  %v814 = vpop.permute.xlu0 %813
  %815 = vrot.lane.b32.xlu0 %v210, 64
  %v816 = vpop.permute.xlu0 %815
  %817 = vrot.lane.b32.xlu0 %v214, 64
  %v818 = vpop.permute.xlu0 %817
  %819 = vrot.lane.b32.xlu0 %v216, 64
  %v820 = vpop.permute.xlu0 %819
  %821 = vrot.lane.b32.xlu0 %v220, 64
  %v822 = vpop.permute.xlu0 %821
  %823 = vrot.lane.b32.xlu0 %v222, 64
  %v824 = vpop.permute.xlu0 %823
  %v833 = vcombine.low %v810, %v818
  %v834 = vcombine.high %v810, %v818
  %v836 = vunpack.c.l.s4 1983009808
  %v837 = vunpack.c.0.s8 %v836
  %v838 = vlaneseq
  %v839 = vshrl.u32 %v838, 7
  %v840 = vsub.s32 %v837, %v839
  %v841 = vrot.slane %v833, %v840
  %v843 = vunpack.c.l.s4 1983009808
  %v844 = vunpack.c.0.s8 %v843
  %v845 = vlaneseq
  %v846 = vshrl.u32 %v845, 7
  %v847 = vsub.s32 %v844, %v846
  %v848 = vrot.slane %v834, %v847
  %v849 = vcombine.low %v814, %v822
  %v850 = vcombine.high %v814, %v822
  %v852 = vunpack.c.l.s4 1983009808
  %v853 = vunpack.c.0.s8 %v852
  %v854 = vlaneseq
  %v855 = vshrl.u32 %v854, 7
  %v856 = vsub.s32 %v853, %v855
  %v857 = vrot.slane %v849, %v856
  %v859 = vunpack.c.l.s4 1983009808
  %v860 = vunpack.c.0.s8 %v859
  %v861 = vlaneseq
  %v862 = vshrl.u32 %v861, 7
  %v863 = vsub.s32 %v860, %v862
  %v864 = vrot.slane %v850, %v863
  %v865 = vcombine.low %v841, %v857
  %v866 = vcombine.high %v841, %v857
  %v868 = vunpack.c.l.s4 1934713408
  %v869 = vunpack.c.0.s8 %v868
  %v870 = vlaneseq
  %v871 = vshrl.u32 %v870, 7
  %v872 = vsub.s32 %v869, %v871
  %v873 = vrot.slane %v865, %v872
  %v875 = vunpack.c.l.s4 1934713408
  %v876 = vunpack.c.0.s8 %v875
  %v877 = vlaneseq
  %v878 = vshrl.u32 %v877, 7
  %v879 = vsub.s32 %v876, %v878
  %v880 = vrot.slane %v866, %v879
  %v881 = vcombine.low %v848, %v864
  %v882 = vcombine.high %v848, %v864
  %v884 = vunpack.c.l.s4 1934713408
  %v885 = vunpack.c.0.s8 %v884
  %v886 = vlaneseq
  %v887 = vshrl.u32 %v886, 7
  %v888 = vsub.s32 %v885, %v887
  %v889 = vrot.slane %v881, %v888
  %v891 = vunpack.c.l.s4 1934713408
  %v892 = vunpack.c.0.s8 %v891
  %v893 = vlaneseq
  %v894 = vshrl.u32 %v893, 7
  %v895 = vsub.s32 %v892, %v894
  %v896 = vrot.slane %v882, %v895
  %v897 = vcombine.high %v873, 0.0
  %v898 = vcombine.high %v880, 0.0
  %v899 = vcombine.high %v889, 0.0
  %v900 = vcombine.high %v896, 0.0
  %v901 = vcombine.low %v812, %v820
  %v902 = vcombine.high %v812, %v820
  %v904 = vunpack.c.l.s4 1983009808
  %v905 = vunpack.c.0.s8 %v904
  %v906 = vlaneseq
  %v907 = vshrl.u32 %v906, 7
  %v908 = vsub.s32 %v905, %v907
  %v909 = vrot.slane %v901, %v908
  %v911 = vunpack.c.l.s4 1983009808
  %v912 = vunpack.c.0.s8 %v911
  %v913 = vlaneseq
  %v914 = vshrl.u32 %v913, 7
  %v915 = vsub.s32 %v912, %v914
  %v916 = vrot.slane %v902, %v915
  %v917 = vcombine.low %v816, %v824
  %v918 = vcombine.high %v816, %v824
  %v920 = vunpack.c.l.s4 1983009808
  %v921 = vunpack.c.0.s8 %v920
  %v922 = vlaneseq
  %v923 = vshrl.u32 %v922, 7
  %v924 = vsub.s32 %v921, %v923
  %v925 = vrot.slane %v917, %v924
  %v927 = vunpack.c.l.s4 1983009808
  %v928 = vunpack.c.0.s8 %v927
  %v929 = vlaneseq
  %v930 = vshrl.u32 %v929, 7
  %v931 = vsub.s32 %v928, %v930
  %v932 = vrot.slane %v918, %v931
  %v933 = vcombine.low %v909, %v925
  %v934 = vcombine.high %v909, %v925
  %v936 = vunpack.c.l.s4 1934713408
  %v937 = vunpack.c.0.s8 %v936
  %v938 = vlaneseq
  %v939 = vshrl.u32 %v938, 7
  %v940 = vsub.s32 %v937, %v939
  %v941 = vrot.slane %v933, %v940
  %v943 = vunpack.c.l.s4 1934713408
  %v944 = vunpack.c.0.s8 %v943
  %v945 = vlaneseq
  %v946 = vshrl.u32 %v945, 7
  %v947 = vsub.s32 %v944, %v946
  %v948 = vrot.slane %v934, %v947
  %v949 = vcombine.low %v916, %v932
  %v950 = vcombine.high %v916, %v932
  %v952 = vunpack.c.l.s4 1934713408
  %v953 = vunpack.c.0.s8 %v952
  %v954 = vlaneseq
  %v955 = vshrl.u32 %v954, 7
  %v956 = vsub.s32 %v953, %v955
  %v957 = vrot.slane %v949, %v956
  %v959 = vunpack.c.l.s4 1934713408
  %v960 = vunpack.c.0.s8 %v959
  %v961 = vlaneseq
  %v962 = vshrl.u32 %v961, 7
  %v963 = vsub.s32 %v960, %v962
  %v964 = vrot.slane %v950, %v963
  %v965 = vcombine.high %v941, 0.0
  %v966 = vcombine.high %v948, 0.0
  %v967 = vcombine.high %v957, 0.0
  %v968 = vcombine.high %v964, 0.0
  %v969 = vcombine.low %v873, %v880
  %v971 = vunpack.c.l.s4 1983009808
  %v972 = vunpack.c.0.s8 %v971
  %v973 = vlaneseq
  %v974 = vshrl.u32 %v973, 7
  %v975 = vsub.s32 %v972, %v974
  %v976 = vrot.slane %v969, %v975
  %v977 = vcombine.low %v897, %v898
  %v979 = vunpack.c.l.s4 1983009808
  %v980 = vunpack.c.0.s8 %v979
  %v981 = vlaneseq
  %v982 = vshrl.u32 %v981, 7
  %v983 = vsub.s32 %v980, %v982
  %v984 = vrot.slane %v977, %v983
  %v985 = vcombine.low %v889, %v896
  %v987 = vunpack.c.l.s4 1983009808
  %v988 = vunpack.c.0.s8 %v987
  %v989 = vlaneseq
  %v990 = vshrl.u32 %v989, 7
  %v991 = vsub.s32 %v988, %v990
  %v992 = vrot.slane %v985, %v991
  %v993 = vcombine.low %v899, %v900
  %v995 = vunpack.c.l.s4 1983009808
  %v996 = vunpack.c.0.s8 %v995
  %v997 = vlaneseq
  %v998 = vshrl.u32 %v997, 7
  %v999 = vsub.s32 %v996, %v998
  %v1000 = vrot.slane %v993, %v999
  %v1001 = vcombine.low %v976, %v984
  %v1002 = vcombine.high %v976, %v984
  %v1004 = vunpack.c.l.s4 1934713408
  %v1005 = vunpack.c.0.s8 %v1004
  %v1006 = vlaneseq
  %v1007 = vshrl.u32 %v1006, 7
  %v1008 = vsub.s32 %v1005, %v1007
  %v1009 = vrot.slane %v1001, %v1008
  %v1011 = vunpack.c.l.s4 1934713408
  %v1012 = vunpack.c.0.s8 %v1011
  %v1013 = vlaneseq
  %v1014 = vshrl.u32 %v1013, 7
  %v1015 = vsub.s32 %v1012, %v1014
  %v1016 = vrot.slane %v1002, %v1015
  %v1017 = vcombine.low %v992, %v1000
  %v1018 = vcombine.high %v992, %v1000
  %v1020 = vunpack.c.l.s4 1934713408
  %v1021 = vunpack.c.0.s8 %v1020
  %v1022 = vlaneseq
  %v1023 = vshrl.u32 %v1022, 7
  %v1024 = vsub.s32 %v1021, %v1023
  %v1025 = vrot.slane %v1017, %v1024
  %v1027 = vunpack.c.l.s4 1934713408
  %v1028 = vunpack.c.0.s8 %v1027
  %v1029 = vlaneseq
  %v1030 = vshrl.u32 %v1029, 7
  %v1031 = vsub.s32 %v1028, %v1030
  %v1032 = vrot.slane %v1018, %v1031
  %v1033 = vcombine.low %v1009, %v1025
  %v1034 = vcombine.high %v1009, %v1025
  %v1035 = vcombine.low %v1016, %v1032
  %v1036 = vcombine.high %v1016, %v1032
  %v1037 = vcombine.low %v941, %v948
  %v1039 = vunpack.c.l.s4 1983009808
  %v1040 = vunpack.c.0.s8 %v1039
  %v1041 = vlaneseq
  %v1042 = vshrl.u32 %v1041, 7
  %v1043 = vsub.s32 %v1040, %v1042
  %v1044 = vrot.slane %v1037, %v1043
  %v1045 = vcombine.low %v965, %v966
  %v1047 = vunpack.c.l.s4 1983009808
  %v1048 = vunpack.c.0.s8 %v1047
  %v1049 = vlaneseq
  %v1050 = vshrl.u32 %v1049, 7
  %v1051 = vsub.s32 %v1048, %v1050
  %v1052 = vrot.slane %v1045, %v1051
  %v1053 = vcombine.low %v957, %v964
  %v1055 = vunpack.c.l.s4 1983009808
  %v1056 = vunpack.c.0.s8 %v1055
  %v1057 = vlaneseq
  %v1058 = vshrl.u32 %v1057, 7
  %v1059 = vsub.s32 %v1056, %v1058
  %v1060 = vrot.slane %v1053, %v1059
  %v1061 = vcombine.low %v967, %v968
  %v1063 = vunpack.c.l.s4 1983009808
  %v1064 = vunpack.c.0.s8 %v1063
  %v1065 = vlaneseq
  %v1066 = vshrl.u32 %v1065, 7
  %v1067 = vsub.s32 %v1064, %v1066
  %v1068 = vrot.slane %v1061, %v1067
  %v1069 = vcombine.low %v1044, %v1052
  %v1070 = vcombine.high %v1044, %v1052
  %v1072 = vunpack.c.l.s4 1934713408
  %v1073 = vunpack.c.0.s8 %v1072
  %v1074 = vlaneseq
  %v1075 = vshrl.u32 %v1074, 7
  %v1076 = vsub.s32 %v1073, %v1075
  %v1077 = vrot.slane %v1069, %v1076
  %v1079 = vunpack.c.l.s4 1934713408
  %v1080 = vunpack.c.0.s8 %v1079
  %v1081 = vlaneseq
  %v1082 = vshrl.u32 %v1081, 7
  %v1083 = vsub.s32 %v1080, %v1082
  %v1084 = vrot.slane %v1070, %v1083
  %v1085 = vcombine.low %v1060, %v1068
  %v1086 = vcombine.high %v1060, %v1068
  %v1088 = vunpack.c.l.s4 1934713408
  %v1089 = vunpack.c.0.s8 %v1088
  %v1090 = vlaneseq
  %v1091 = vshrl.u32 %v1090, 7
  %v1092 = vsub.s32 %v1089, %v1091
  %v1093 = vrot.slane %v1085, %v1092
  %v1095 = vunpack.c.l.s4 1934713408
  %v1096 = vunpack.c.0.s8 %v1095
  %v1097 = vlaneseq
  %v1098 = vshrl.u32 %v1097, 7
  %v1099 = vsub.s32 %v1096, %v1098
  %v1100 = vrot.slane %v1086, %v1099
  %v1101 = vcombine.low %v1077, %v1093
  %v1102 = vcombine.high %v1077, %v1093
  %v1103 = vcombine.low %v1084, %v1100
  %v1104 = vcombine.high %v1084, %v1100
  %v1105 = vpack.c.bf16 %v1033, %v1033
  %v1106 = vpack.c.bf16 %v1034, %v1034
  %v1107 = vpack.c.bf16 %v1035, %v1035
  %v1108 = vpack.c.bf16 %v1036, %v1036
  %v1109 = vpack.c.bf16 %v1101, %v1101
  %v1110 = vpack.c.bf16 %v1102, %v1102
  %v1111 = vpack.c.bf16 %v1103, %v1103
  %v1112 = vpack.c.bf16 %v1104, %v1104
  %v1113 = vlaneseq
  %v1114 = vshrl.u32 %v1113, 7
  %v1115 = vlaneseq
  %v1116 = vand.u32 %v1115, 127
  %vm1117 = vcmp.gt.s32.totalorder %v1116, %v1114
  %v1118 = vsel %vm1117, -1e+09, 0.0
  %vm1119 = vcmask 64512
  %v1121 = vsel %vm1119, %v497, 0
  %v1124 = vsel %vm1119, %v801, 0
  %1126 = vmatprep.subr.bf16.mxu0 0
  %1127 = vmatpush1.bf16.xpose.msra.mxu0 %v1124
  %1128 = vmatprep.subr.bf16.mxu0 0
  %1129 = vmatpush1.bf16.xpose.msra.mxu0 0
  %1130 = vmatprep.subr.bf16.mxu0 0
  %1131 = vmatpush1.bf16.xpose.msra.mxu0 0
  %1132 = vmatprep.subr.bf16.mxu0 0
  %1133 = vmatpush1.bf16.xpose.msra.mxu0 0
  %1134 = vmatprep.subr.bf16.mxu0 0
  %1135 = vmatpush1.bf16.xpose.msra.mxu0 0
  %1136 = vmatprep.subr.bf16.mxu0 0
  %1137 = vmatpush1.bf16.xpose.msra.mxu0 0
  %1138 = vmatprep.subr.bf16.mxu0 0
  %1139 = vmatpush1.bf16.xpose.msra.mxu0 0
  %1140 = vmatprep.subr.bf16.mxu0 0
  %1141 = vmatpush1.bf16.xpose.msra.mxu0 0
  %1142 = vmatprep.subr.bf16.mxu0 0
  %1143 = vmatpush1.bf16.xpose.msra.mxu0 0
  %1144 = vmatprep.subr.bf16.mxu0 0
  %1145 = vmatpush1.bf16.xpose.msra.mxu0 0
  %1146 = vmatprep.subr.bf16.mxu0 0
  %1147 = vmatpush1.bf16.xpose.msra.mxu0 0
  %1148 = vmatprep.subr.bf16.mxu0 0
  %1149 = vmatpush1.bf16.xpose.msra.mxu0 0
  %1150 = vmatprep.subr.bf16.mxu0 0
  %1151 = vmatpush1.bf16.xpose.msra.mxu0 0
  %1152 = vmatprep.subr.bf16.mxu0 0
  %1153 = vmatpush1.bf16.xpose.msra.mxu0 0
  %1154 = vmatprep.subr.bf16.mxu0 0
  %1155 = vmatpush1.bf16.xpose.msra.mxu0 0
  %1156 = vmatprep.subr.bf16.mxu0 0
  %1157 = vmatpush1.bf16.xpose.msra.mxu0 0
  %1158 = vmatprep.mubr.bf16.mxu0 0
  %1159 = vmatmul.mubr.bf16.gmra.mrb[0].mxu0 %v1121
  %v1160 = vpop.f32.mrb[0].mxu0
  %v1161 = vadd.f32 0.0, %v1160
  %v1162 = vpop.f32.mrb[0].mxu0
  %v1163 = vpop.f32.mrb[0].mxu0
  %v1164 = vpop.f32.mrb[0].mxu0
  %1165 = vdwg.mxu0
  %v1167 = vsel %vm1119, %v498, 0
  %v1170 = vsel %vm1119, %v802, 0
  %1172 = vmatprep.subr.bf16.mxu0 0
  %1173 = vmatpush1.bf16.xpose.msra.mxu0 %v1170
  %1174 = vmatprep.subr.bf16.mxu0 0
  %1175 = vmatpush1.bf16.xpose.msra.mxu0 0
  %1176 = vmatprep.subr.bf16.mxu0 0
  %1177 = vmatpush1.bf16.xpose.msra.mxu0 0
  %1178 = vmatprep.subr.bf16.mxu0 0
  %1179 = vmatpush1.bf16.xpose.msra.mxu0 0
  %1180 = vmatprep.subr.bf16.mxu0 0
  %1181 = vmatpush1.bf16.xpose.msra.mxu0 0
  %1182 = vmatprep.subr.bf16.mxu0 0
  %1183 = vmatpush1.bf16.xpose.msra.mxu0 0
  %1184 = vmatprep.subr.bf16.mxu0 0
  %1185 = vmatpush1.bf16.xpose.msra.mxu0 0
  %1186 = vmatprep.subr.bf16.mxu0 0
  %1187 = vmatpush1.bf16.xpose.msra.mxu0 0
  %1188 = vmatprep.subr.bf16.mxu0 0
  %1189 = vmatpush1.bf16.xpose.msra.mxu0 0
  %1190 = vmatprep.subr.bf16.mxu0 0
  %1191 = vmatpush1.bf16.xpose.msra.mxu0 0
  %1192 = vmatprep.subr.bf16.mxu0 0
  %1193 = vmatpush1.bf16.xpose.msra.mxu0 0
  %1194 = vmatprep.subr.bf16.mxu0 0
  %1195 = vmatpush1.bf16.xpose.msra.mxu0 0
  %1196 = vmatprep.subr.bf16.mxu0 0
  %1197 = vmatpush1.bf16.xpose.msra.mxu0 0
  %1198 = vmatprep.subr.bf16.mxu0 0
  %1199 = vmatpush1.bf16.xpose.msra.mxu0 0
  %1200 = vmatprep.subr.bf16.mxu0 0
  %1201 = vmatpush1.bf16.xpose.msra.mxu0 0
  %1202 = vmatprep.subr.bf16.mxu0 0
  %1203 = vmatpush1.bf16.xpose.msra.mxu0 0
  %1204 = vmatprep.mubr.bf16.mxu0 0
  %1205 = vmatmul.mubr.bf16.gmra.mrb[0].mxu0 %v1167
  %v1206 = vpop.f32.mrb[0].mxu0
  %v1207 = vadd.f32 0.0, %v1206
  %v1208 = vpop.f32.mrb[0].mxu0
  %v1209 = vpop.f32.mrb[0].mxu0
  %v1210 = vpop.f32.mrb[0].mxu0
  %1211 = vdwg.mxu0
  %v1213 = vsel %vm1119, %v499, 0
  %v1216 = vsel %vm1119, %v803, 0
  %1218 = vmatprep.subr.bf16.mxu0 0
  %1219 = vmatpush1.bf16.xpose.msra.mxu0 %v1216
  %1220 = vmatprep.subr.bf16.mxu0 0
  %1221 = vmatpush1.bf16.xpose.msra.mxu0 0
  %1222 = vmatprep.subr.bf16.mxu0 0
  %1223 = vmatpush1.bf16.xpose.msra.mxu0 0
  %1224 = vmatprep.subr.bf16.mxu0 0
  %1225 = vmatpush1.bf16.xpose.msra.mxu0 0
  %1226 = vmatprep.subr.bf16.mxu0 0
  %1227 = vmatpush1.bf16.xpose.msra.mxu0 0
  %1228 = vmatprep.subr.bf16.mxu0 0
  %1229 = vmatpush1.bf16.xpose.msra.mxu0 0
  %1230 = vmatprep.subr.bf16.mxu0 0
  %1231 = vmatpush1.bf16.xpose.msra.mxu0 0
  %1232 = vmatprep.subr.bf16.mxu0 0
  %1233 = vmatpush1.bf16.xpose.msra.mxu0 0
  %1234 = vmatprep.subr.bf16.mxu0 0
  %1235 = vmatpush1.bf16.xpose.msra.mxu0 0
  %1236 = vmatprep.subr.bf16.mxu0 0
  %1237 = vmatpush1.bf16.xpose.msra.mxu0 0
  %1238 = vmatprep.subr.bf16.mxu0 0
  %1239 = vmatpush1.bf16.xpose.msra.mxu0 0
  %1240 = vmatprep.subr.bf16.mxu0 0
  %1241 = vmatpush1.bf16.xpose.msra.mxu0 0
  %1242 = vmatprep.subr.bf16.mxu0 0
  %1243 = vmatpush1.bf16.xpose.msra.mxu0 0
  %1244 = vmatprep.subr.bf16.mxu0 0
  %1245 = vmatpush1.bf16.xpose.msra.mxu0 0
  %1246 = vmatprep.subr.bf16.mxu0 0
  %1247 = vmatpush1.bf16.xpose.msra.mxu0 0
  %1248 = vmatprep.subr.bf16.mxu0 0
  %1249 = vmatpush1.bf16.xpose.msra.mxu0 0
  %1250 = vmatprep.mubr.bf16.mxu0 0
  %1251 = vmatmul.mubr.bf16.gmra.mrb[0].mxu0 %v1213
  %v1252 = vpop.f32.mrb[0].mxu0
  %v1253 = vadd.f32 0.0, %v1252
  %v1254 = vpop.f32.mrb[0].mxu0
  %v1255 = vpop.f32.mrb[0].mxu0
  %v1256 = vpop.f32.mrb[0].mxu0
  %1257 = vdwg.mxu0
  %v1259 = vsel %vm1119, %v500, 0
  %v1262 = vsel %vm1119, %v804, 0
  %1264 = vmatprep.subr.bf16.mxu0 0
  %1265 = vmatpush1.bf16.xpose.msra.mxu0 %v1262
  %1266 = vmatprep.subr.bf16.mxu0 0
  %1267 = vmatpush1.bf16.xpose.msra.mxu0 0
  %1268 = vmatprep.subr.bf16.mxu0 0
  %1269 = vmatpush1.bf16.xpose.msra.mxu0 0
  %1270 = vmatprep.subr.bf16.mxu0 0
  %1271 = vmatpush1.bf16.xpose.msra.mxu0 0
  %1272 = vmatprep.subr.bf16.mxu0 0
  %1273 = vmatpush1.bf16.xpose.msra.mxu0 0
  %1274 = vmatprep.subr.bf16.mxu0 0
  %1275 = vmatpush1.bf16.xpose.msra.mxu0 0
  %1276 = vmatprep.subr.bf16.mxu0 0
  %1277 = vmatpush1.bf16.xpose.msra.mxu0 0
  %1278 = vmatprep.subr.bf16.mxu0 0
  %1279 = vmatpush1.bf16.xpose.msra.mxu0 0
  %1280 = vmatprep.subr.bf16.mxu0 0
  %1281 = vmatpush1.bf16.xpose.msra.mxu0 0
  %1282 = vmatprep.subr.bf16.mxu0 0
  %1283 = vmatpush1.bf16.xpose.msra.mxu0 0
  %1284 = vmatprep.subr.bf16.mxu0 0
  %1285 = vmatpush1.bf16.xpose.msra.mxu0 0
  %1286 = vmatprep.subr.bf16.mxu0 0
  %1287 = vmatpush1.bf16.xpose.msra.mxu0 0
  %1288 = vmatprep.subr.bf16.mxu0 0
  %1289 = vmatpush1.bf16.xpose.msra.mxu0 0
  %1290 = vmatprep.subr.bf16.mxu0 0
  %1291 = vmatpush1.bf16.xpose.msra.mxu0 0
  %1292 = vmatprep.subr.bf16.mxu0 0
  %1293 = vmatpush1.bf16.xpose.msra.mxu0 0
  %1294 = vmatprep.subr.bf16.mxu0 0
  %1295 = vmatpush1.bf16.xpose.msra.mxu0 0
  %1296 = vmatprep.mubr.bf16.mxu0 0
  %1297 = vmatmul.mubr.bf16.gmra.mrb[0].mxu0 %v1259
  %v1298 = vpop.f32.mrb[0].mxu0
  %v1299 = vadd.f32 0.0, %v1298
  %v1300 = vpop.f32.mrb[0].mxu0
  %v1301 = vpop.f32.mrb[0].mxu0
  %v1302 = vpop.f32.mrb[0].mxu0
  %1303 = vdwg.mxu0
  %v1305 = vsel %vm1119, %v501, 0
  %v1308 = vsel %vm1119, %v805, 0
  %1310 = vmatprep.subr.bf16.mxu0 0
  %1311 = vmatpush1.bf16.xpose.msra.mxu0 %v1308
  %1312 = vmatprep.subr.bf16.mxu0 0
  %1313 = vmatpush1.bf16.xpose.msra.mxu0 0
  %1314 = vmatprep.subr.bf16.mxu0 0
  %1315 = vmatpush1.bf16.xpose.msra.mxu0 0
  %1316 = vmatprep.subr.bf16.mxu0 0
  %1317 = vmatpush1.bf16.xpose.msra.mxu0 0
  %1318 = vmatprep.subr.bf16.mxu0 0
  %1319 = vmatpush1.bf16.xpose.msra.mxu0 0
  %1320 = vmatprep.subr.bf16.mxu0 0
  %1321 = vmatpush1.bf16.xpose.msra.mxu0 0
  %1322 = vmatprep.subr.bf16.mxu0 0
  %1323 = vmatpush1.bf16.xpose.msra.mxu0 0
  %1324 = vmatprep.subr.bf16.mxu0 0
  %1325 = vmatpush1.bf16.xpose.msra.mxu0 0
  %1326 = vmatprep.subr.bf16.mxu0 0
  %1327 = vmatpush1.bf16.xpose.msra.mxu0 0
  %1328 = vmatprep.subr.bf16.mxu0 0
  %1329 = vmatpush1.bf16.xpose.msra.mxu0 0
  %1330 = vmatprep.subr.bf16.mxu0 0
  %1331 = vmatpush1.bf16.xpose.msra.mxu0 0
  %1332 = vmatprep.subr.bf16.mxu0 0
  %1333 = vmatpush1.bf16.xpose.msra.mxu0 0
  %1334 = vmatprep.subr.bf16.mxu0 0
  %1335 = vmatpush1.bf16.xpose.msra.mxu0 0
  %1336 = vmatprep.subr.bf16.mxu0 0
  %1337 = vmatpush1.bf16.xpose.msra.mxu0 0
  %1338 = vmatprep.subr.bf16.mxu0 0
  %1339 = vmatpush1.bf16.xpose.msra.mxu0 0
  %1340 = vmatprep.subr.bf16.mxu0 0
  %1341 = vmatpush1.bf16.xpose.msra.mxu0 0
  %1342 = vmatprep.mubr.bf16.mxu0 0
  %1343 = vmatmul.mubr.bf16.gmra.mrb[0].mxu0 %v1305
  %v1344 = vpop.f32.mrb[0].mxu0
  %v1345 = vadd.f32 0.0, %v1344
  %v1346 = vpop.f32.mrb[0].mxu0
  %v1347 = vpop.f32.mrb[0].mxu0
  %v1348 = vpop.f32.mrb[0].mxu0
  %1349 = vdwg.mxu0
  %v1351 = vsel %vm1119, %v502, 0
  %v1354 = vsel %vm1119, %v806, 0
  %1356 = vmatprep.subr.bf16.mxu0 0
  %1357 = vmatpush1.bf16.xpose.msra.mxu0 %v1354
  %1358 = vmatprep.subr.bf16.mxu0 0
  %1359 = vmatpush1.bf16.xpose.msra.mxu0 0
  %1360 = vmatprep.subr.bf16.mxu0 0
  %1361 = vmatpush1.bf16.xpose.msra.mxu0 0
  %1362 = vmatprep.subr.bf16.mxu0 0
  %1363 = vmatpush1.bf16.xpose.msra.mxu0 0
  %1364 = vmatprep.subr.bf16.mxu0 0
  %1365 = vmatpush1.bf16.xpose.msra.mxu0 0
  %1366 = vmatprep.subr.bf16.mxu0 0
  %1367 = vmatpush1.bf16.xpose.msra.mxu0 0
  %1368 = vmatprep.subr.bf16.mxu0 0
  %1369 = vmatpush1.bf16.xpose.msra.mxu0 0
  %1370 = vmatprep.subr.bf16.mxu0 0
  %1371 = vmatpush1.bf16.xpose.msra.mxu0 0
  %1372 = vmatprep.subr.bf16.mxu0 0
  %1373 = vmatpush1.bf16.xpose.msra.mxu0 0
  %1374 = vmatprep.subr.bf16.mxu0 0
  %1375 = vmatpush1.bf16.xpose.msra.mxu0 0
  %1376 = vmatprep.subr.bf16.mxu0 0
  %1377 = vmatpush1.bf16.xpose.msra.mxu0 0
  %1378 = vmatprep.subr.bf16.mxu0 0
  %1379 = vmatpush1.bf16.xpose.msra.mxu0 0
  %1380 = vmatprep.subr.bf16.mxu0 0
  %1381 = vmatpush1.bf16.xpose.msra.mxu0 0
  %1382 = vmatprep.subr.bf16.mxu0 0
  %1383 = vmatpush1.bf16.xpose.msra.mxu0 0
  %1384 = vmatprep.subr.bf16.mxu0 0
  %1385 = vmatpush1.bf16.xpose.msra.mxu0 0
  %1386 = vmatprep.subr.bf16.mxu0 0
  %1387 = vmatpush1.bf16.xpose.msra.mxu0 0
  %1388 = vmatprep.mubr.bf16.mxu0 0
  %1389 = vmatmul.mubr.bf16.gmra.mrb[0].mxu0 %v1351
  %v1390 = vpop.f32.mrb[0].mxu0
  %v1391 = vadd.f32 0.0, %v1390
  %v1392 = vpop.f32.mrb[0].mxu0
  %v1393 = vpop.f32.mrb[0].mxu0
  %v1394 = vpop.f32.mrb[0].mxu0
  %1395 = vdwg.mxu0
  %v1397 = vsel %vm1119, %v503, 0
  %v1400 = vsel %vm1119, %v807, 0
  %1402 = vmatprep.subr.bf16.mxu0 0
  %1403 = vmatpush1.bf16.xpose.msra.mxu0 %v1400
  %1404 = vmatprep.subr.bf16.mxu0 0
  %1405 = vmatpush1.bf16.xpose.msra.mxu0 0
  %1406 = vmatprep.subr.bf16.mxu0 0
  %1407 = vmatpush1.bf16.xpose.msra.mxu0 0
  %1408 = vmatprep.subr.bf16.mxu0 0
  %1409 = vmatpush1.bf16.xpose.msra.mxu0 0
  %1410 = vmatprep.subr.bf16.mxu0 0
  %1411 = vmatpush1.bf16.xpose.msra.mxu0 0
  %1412 = vmatprep.subr.bf16.mxu0 0
  %1413 = vmatpush1.bf16.xpose.msra.mxu0 0
  %1414 = vmatprep.subr.bf16.mxu0 0
  %1415 = vmatpush1.bf16.xpose.msra.mxu0 0
  %1416 = vmatprep.subr.bf16.mxu0 0
  %1417 = vmatpush1.bf16.xpose.msra.mxu0 0
  %1418 = vmatprep.subr.bf16.mxu0 0
  %1419 = vmatpush1.bf16.xpose.msra.mxu0 0
  %1420 = vmatprep.subr.bf16.mxu0 0
  %1421 = vmatpush1.bf16.xpose.msra.mxu0 0
  %1422 = vmatprep.subr.bf16.mxu0 0
  %1423 = vmatpush1.bf16.xpose.msra.mxu0 0
  %1424 = vmatprep.subr.bf16.mxu0 0
  %1425 = vmatpush1.bf16.xpose.msra.mxu0 0
  %1426 = vmatprep.subr.bf16.mxu0 0
  %1427 = vmatpush1.bf16.xpose.msra.mxu0 0
  %1428 = vmatprep.subr.bf16.mxu0 0
  %1429 = vmatpush1.bf16.xpose.msra.mxu0 0
  %1430 = vmatprep.subr.bf16.mxu0 0
  %1431 = vmatpush1.bf16.xpose.msra.mxu0 0
  %1432 = vmatprep.subr.bf16.mxu0 0
  %1433 = vmatpush1.bf16.xpose.msra.mxu0 0
  %1434 = vmatprep.mubr.bf16.mxu0 0
  %1435 = vmatmul.mubr.bf16.gmra.mrb[0].mxu0 %v1397
  %v1436 = vpop.f32.mrb[0].mxu0
  %v1437 = vadd.f32 0.0, %v1436
  %v1438 = vpop.f32.mrb[0].mxu0
  %v1439 = vpop.f32.mrb[0].mxu0
  %v1440 = vpop.f32.mrb[0].mxu0
  %1441 = vdwg.mxu0
  %v1443 = vsel %vm1119, %v504, 0
  %v1446 = vsel %vm1119, %v808, 0
  %1448 = vmatprep.subr.bf16.mxu0 0
  %1449 = vmatpush1.bf16.xpose.msra.mxu0 %v1446
  %1450 = vmatprep.subr.bf16.mxu0 0
  %1451 = vmatpush1.bf16.xpose.msra.mxu0 0
  %1452 = vmatprep.subr.bf16.mxu0 0
  %1453 = vmatpush1.bf16.xpose.msra.mxu0 0
  %1454 = vmatprep.subr.bf16.mxu0 0
  %1455 = vmatpush1.bf16.xpose.msra.mxu0 0
  %1456 = vmatprep.subr.bf16.mxu0 0
  %1457 = vmatpush1.bf16.xpose.msra.mxu0 0
  %1458 = vmatprep.subr.bf16.mxu0 0
  %1459 = vmatpush1.bf16.xpose.msra.mxu0 0
  %1460 = vmatprep.subr.bf16.mxu0 0
  %1461 = vmatpush1.bf16.xpose.msra.mxu0 0
  %1462 = vmatprep.subr.bf16.mxu0 0
  %1463 = vmatpush1.bf16.xpose.msra.mxu0 0
  %1464 = vmatprep.subr.bf16.mxu0 0
  %1465 = vmatpush1.bf16.xpose.msra.mxu0 0
  %1466 = vmatprep.subr.bf16.mxu0 0
  %1467 = vmatpush1.bf16.xpose.msra.mxu0 0
  %1468 = vmatprep.subr.bf16.mxu0 0
  %1469 = vmatpush1.bf16.xpose.msra.mxu0 0
  %1470 = vmatprep.subr.bf16.mxu0 0
  %1471 = vmatpush1.bf16.xpose.msra.mxu0 0
  %1472 = vmatprep.subr.bf16.mxu0 0
  %1473 = vmatpush1.bf16.xpose.msra.mxu0 0
  %1474 = vmatprep.subr.bf16.mxu0 0
  %1475 = vmatpush1.bf16.xpose.msra.mxu0 0
  %1476 = vmatprep.subr.bf16.mxu0 0
  %1477 = vmatpush1.bf16.xpose.msra.mxu0 0
  %1478 = vmatprep.subr.bf16.mxu0 0
  %1479 = vmatpush1.bf16.xpose.msra.mxu0 0
  %1480 = vmatprep.mubr.bf16.mxu0 0
  %1481 = vmatmul.mubr.bf16.gmra.mrb[0].mxu0 %v1443
  %v1482 = vpop.f32.mrb[0].mxu0
  %v1483 = vadd.f32 0.0, %v1482
  %v1484 = vpop.f32.mrb[0].mxu0
  %v1485 = vpop.f32.mrb[0].mxu0
  %v1486 = vpop.f32.mrb[0].mxu0
  %1487 = vdwg.mxu0
  %v1488 = vmul.f32 %v1161, 0.35355338
  %v1489 = vmul.f32 %v1207, 0.35355338
  %v1490 = vmul.f32 %v1253, 0.35355338
  %v1491 = vmul.f32 %v1299, 0.35355338
  %v1492 = vmul.f32 %v1345, 0.35355338
  %v1493 = vmul.f32 %v1391, 0.35355338
  %v1494 = vmul.f32 %v1437, 0.35355338
  %v1495 = vmul.f32 %v1483, 0.35355338
  %v1496 = vadd.f32 %v1488, %v1118
  %v1497 = vadd.f32 %v1489, %v1118
  %v1498 = vadd.f32 %v1490, %v1118
  %v1499 = vadd.f32 %v1491, %v1118
  %v1500 = vadd.f32 %v1492, %v1118
  %v1501 = vadd.f32 %v1493, %v1118
  %v1502 = vadd.f32 %v1494, %v1118
  %v1503 = vadd.f32 %v1495, %v1118
  %v1504 = vsel %vm1119, %v1496, -inf
  %1505 = vmax.xlane.f32.xlu0 %v1504
  %v1506 = vpop.xlane.xlu0 %1505
  %v1507 = vsel %vm1119, %v1497, -inf
  %1508 = vmax.xlane.f32.xlu0 %v1507
  %v1509 = vpop.xlane.xlu0 %1508
  %v1510 = vsel %vm1119, %v1498, -inf
  %1511 = vmax.xlane.f32.xlu0 %v1510
  %v1512 = vpop.xlane.xlu0 %1511
  %v1513 = vsel %vm1119, %v1499, -inf
  %1514 = vmax.xlane.f32.xlu0 %v1513
  %v1515 = vpop.xlane.xlu0 %1514
  %v1516 = vsel %vm1119, %v1500, -inf
  %1517 = vmax.xlane.f32.xlu0 %v1516
  %v1518 = vpop.xlane.xlu0 %1517
  %v1519 = vsel %vm1119, %v1501, -inf
  %1520 = vmax.xlane.f32.xlu0 %v1519
  %v1521 = vpop.xlane.xlu0 %1520
  %v1522 = vsel %vm1119, %v1502, -inf
  %1523 = vmax.xlane.f32.xlu0 %v1522
  %v1524 = vpop.xlane.xlu0 %1523
  %v1525 = vsel %vm1119, %v1503, -inf
  %1526 = vmax.xlane.f32.xlu0 %v1525
  %v1527 = vpop.xlane.xlu0 %1526
  %v1528 = vsub.f32 %v1496, %v1506
  %v1529 = vsub.f32 %v1497, %v1509
  %v1530 = vsub.f32 %v1498, %v1512
  %v1531 = vsub.f32 %v1499, %v1515
  %v1532 = vsub.f32 %v1500, %v1518
  %v1533 = vsub.f32 %v1501, %v1521
  %v1534 = vsub.f32 %v1502, %v1524
  %v1535 = vsub.f32 %v1503, %v1527
  %v1536 = vmul.f32 %v1528, 1.442695
  %v1537 = vpow.pop %v1536
  %v1538 = vmul.f32 %v1529, 1.442695
  %v1539 = vpow.pop %v1538
  %v1540 = vmul.f32 %v1530, 1.442695
  %v1541 = vpow.pop %v1540
  %v1542 = vmul.f32 %v1531, 1.442695
  %v1543 = vpow.pop %v1542
  %v1544 = vmul.f32 %v1532, 1.442695
  %v1545 = vpow.pop %v1544
  %v1546 = vmul.f32 %v1533, 1.442695
  %v1547 = vpow.pop %v1546
  %v1548 = vmul.f32 %v1534, 1.442695
  %v1549 = vpow.pop %v1548
  %v1550 = vmul.f32 %v1535, 1.442695
  %v1551 = vpow.pop %v1550
  %v1552 = vsel %vm1119, %v1537, 0.0
  %1553 = vadd.xlane.f32.xlu0 %v1552
  %v1554 = vpop.xlane.xlu0 %1553
  %v1555 = vsel %vm1119, %v1539, 0.0
  %1556 = vadd.xlane.f32.xlu0 %v1555
  %v1557 = vpop.xlane.xlu0 %1556
  %v1558 = vsel %vm1119, %v1541, 0.0
  %1559 = vadd.xlane.f32.xlu0 %v1558
  %v1560 = vpop.xlane.xlu0 %1559
  %v1561 = vsel %vm1119, %v1543, 0.0
  %1562 = vadd.xlane.f32.xlu0 %v1561
  %v1563 = vpop.xlane.xlu0 %1562
  %v1564 = vsel %vm1119, %v1545, 0.0
  %1565 = vadd.xlane.f32.xlu0 %v1564
  %v1566 = vpop.xlane.xlu0 %1565
  %v1567 = vsel %vm1119, %v1547, 0.0
  %1568 = vadd.xlane.f32.xlu0 %v1567
  %v1569 = vpop.xlane.xlu0 %1568
  %v1570 = vsel %vm1119, %v1549, 0.0
  %1571 = vadd.xlane.f32.xlu0 %v1570
  %v1572 = vpop.xlane.xlu0 %1571
  %v1573 = vsel %vm1119, %v1551, 0.0
  %1574 = vadd.xlane.f32.xlu0 %v1573
  %v1575 = vpop.xlane.xlu0 %1574
  %v1576 = vrcp.pop %v1554
  %v1577 = vrcp.pop %v1557
  %v1578 = vrcp.pop %v1560
  %v1579 = vrcp.pop %v1563
  %v1580 = vrcp.pop %v1566
  %v1581 = vrcp.pop %v1569
  %v1582 = vrcp.pop %v1572
  %v1583 = vrcp.pop %v1575
  %v1584 = vmul.f32 %v1537, %v1576
  %v1585 = vmul.f32 %v1539, %v1577
  %v1586 = vmul.f32 %v1541, %v1578
  %v1587 = vmul.f32 %v1543, %v1579
  %v1588 = vmul.f32 %v1545, %v1580
  %v1589 = vmul.f32 %v1547, %v1581
  %v1590 = vmul.f32 %v1549, %v1582
  %v1591 = vmul.f32 %v1551, %v1583
  %v1592 = vpack.c.bf16 %v1584, %v1584
  %v1593 = vpack.c.bf16 %v1585, %v1585
  %v1594 = vpack.c.bf16 %v1586, %v1586
  %v1595 = vpack.c.bf16 %v1587, %v1587
  %v1596 = vpack.c.bf16 %v1588, %v1588
  %v1597 = vpack.c.bf16 %v1589, %v1589
  %v1598 = vpack.c.bf16 %v1590, %v1590
  %v1599 = vpack.c.bf16 %v1591, %v1591
  %v1601 = vsel %vm1119, %v1592, 0
  %vm1603 = vcmask 1043456
  %v1605 = vsel %vm1603, %v1105, 0
  %1607 = vmatprep.subr.bf16.mxu0 0
  %1608 = vmatpush1.bf16.msra.mxu0 %v1605
  %1609 = vmatprep.subr.bf16.mxu0 0
  %1610 = vmatpush1.bf16.msra.mxu0 0
  %1611 = vmatprep.subr.bf16.mxu0 0
  %1612 = vmatpush1.bf16.msra.mxu0 0
  %1613 = vmatprep.subr.bf16.mxu0 0
  %1614 = vmatpush1.bf16.msra.mxu0 0
  %1615 = vmatprep.subr.bf16.mxu0 0
  %1616 = vmatpush1.bf16.msra.mxu0 0
  %1617 = vmatprep.subr.bf16.mxu0 0
  %1618 = vmatpush1.bf16.msra.mxu0 0
  %1619 = vmatprep.subr.bf16.mxu0 0
  %1620 = vmatpush1.bf16.msra.mxu0 0
  %1621 = vmatprep.subr.bf16.mxu0 0
  %1622 = vmatpush1.bf16.msra.mxu0 0
  %1623 = vmatprep.subr.bf16.mxu0 0
  %1624 = vmatpush1.bf16.msra.mxu0 0
  %1625 = vmatprep.subr.bf16.mxu0 0
  %1626 = vmatpush1.bf16.msra.mxu0 0
  %1627 = vmatprep.subr.bf16.mxu0 0
  %1628 = vmatpush1.bf16.msra.mxu0 0
  %1629 = vmatprep.subr.bf16.mxu0 0
  %1630 = vmatpush1.bf16.msra.mxu0 0
  %1631 = vmatprep.subr.bf16.mxu0 0
  %1632 = vmatpush1.bf16.msra.mxu0 0
  %1633 = vmatprep.subr.bf16.mxu0 0
  %1634 = vmatpush1.bf16.msra.mxu0 0
  %1635 = vmatprep.subr.bf16.mxu0 0
  %1636 = vmatpush1.bf16.msra.mxu0 0
  %1637 = vmatprep.subr.bf16.mxu0 0
  %1638 = vmatpush1.bf16.msra.mxu0 0
  %1639 = vmatprep.mubr.bf16.mxu0 0
  %1640 = vmatmul.mubr.bf16.gmra.mrb[0].mxu0 %v1601
  %v1641 = vpop.f32.mrb[0].mxu0
  %v1642 = vadd.f32 0.0, %v1641
  %v1643 = vpop.f32.mrb[0].mxu0
  %v1644 = vpop.f32.mrb[0].mxu0
  %v1645 = vpop.f32.mrb[0].mxu0
  %1646 = vdwg.mxu0
  %v1648 = vsel %vm1119, %v1593, 0
  %v1651 = vsel %vm1603, %v1106, 0
  %1653 = vmatprep.subr.bf16.mxu0 0
  %1654 = vmatpush1.bf16.msra.mxu0 %v1651
  %1655 = vmatprep.subr.bf16.mxu0 0
  %1656 = vmatpush1.bf16.msra.mxu0 0
  %1657 = vmatprep.subr.bf16.mxu0 0
  %1658 = vmatpush1.bf16.msra.mxu0 0
  %1659 = vmatprep.subr.bf16.mxu0 0
  %1660 = vmatpush1.bf16.msra.mxu0 0
  %1661 = vmatprep.subr.bf16.mxu0 0
  %1662 = vmatpush1.bf16.msra.mxu0 0
  %1663 = vmatprep.subr.bf16.mxu0 0
  %1664 = vmatpush1.bf16.msra.mxu0 0
  %1665 = vmatprep.subr.bf16.mxu0 0
  %1666 = vmatpush1.bf16.msra.mxu0 0
  %1667 = vmatprep.subr.bf16.mxu0 0
  %1668 = vmatpush1.bf16.msra.mxu0 0
  %1669 = vmatprep.subr.bf16.mxu0 0
  %1670 = vmatpush1.bf16.msra.mxu0 0
  %1671 = vmatprep.subr.bf16.mxu0 0
  %1672 = vmatpush1.bf16.msra.mxu0 0
  %1673 = vmatprep.subr.bf16.mxu0 0
  %1674 = vmatpush1.bf16.msra.mxu0 0
  %1675 = vmatprep.subr.bf16.mxu0 0
  %1676 = vmatpush1.bf16.msra.mxu0 0
  %1677 = vmatprep.subr.bf16.mxu0 0
  %1678 = vmatpush1.bf16.msra.mxu0 0
  %1679 = vmatprep.subr.bf16.mxu0 0
  %1680 = vmatpush1.bf16.msra.mxu0 0
  %1681 = vmatprep.subr.bf16.mxu0 0
  %1682 = vmatpush1.bf16.msra.mxu0 0
  %1683 = vmatprep.subr.bf16.mxu0 0
  %1684 = vmatpush1.bf16.msra.mxu0 0
  %1685 = vmatprep.mubr.bf16.mxu0 0
  %1686 = vmatmul.mubr.bf16.gmra.mrb[0].mxu0 %v1648
  %v1687 = vpop.f32.mrb[0].mxu0
  %v1688 = vadd.f32 0.0, %v1687
  %v1689 = vpop.f32.mrb[0].mxu0
  %v1690 = vpop.f32.mrb[0].mxu0
  %v1691 = vpop.f32.mrb[0].mxu0
  %1692 = vdwg.mxu0
  %v1694 = vsel %vm1119, %v1594, 0
  %v1697 = vsel %vm1603, %v1107, 0
  %1699 = vmatprep.subr.bf16.mxu0 0
  %1700 = vmatpush1.bf16.msra.mxu0 %v1697
  %1701 = vmatprep.subr.bf16.mxu0 0
  %1702 = vmatpush1.bf16.msra.mxu0 0
  %1703 = vmatprep.subr.bf16.mxu0 0
  %1704 = vmatpush1.bf16.msra.mxu0 0
  %1705 = vmatprep.subr.bf16.mxu0 0
  %1706 = vmatpush1.bf16.msra.mxu0 0
  %1707 = vmatprep.subr.bf16.mxu0 0
  %1708 = vmatpush1.bf16.msra.mxu0 0
  %1709 = vmatprep.subr.bf16.mxu0 0
  %1710 = vmatpush1.bf16.msra.mxu0 0
  %1711 = vmatprep.subr.bf16.mxu0 0
  %1712 = vmatpush1.bf16.msra.mxu0 0
  %1713 = vmatprep.subr.bf16.mxu0 0
  %1714 = vmatpush1.bf16.msra.mxu0 0
  %1715 = vmatprep.subr.bf16.mxu0 0
  %1716 = vmatpush1.bf16.msra.mxu0 0
  %1717 = vmatprep.subr.bf16.mxu0 0
  %1718 = vmatpush1.bf16.msra.mxu0 0
  %1719 = vmatprep.subr.bf16.mxu0 0
  %1720 = vmatpush1.bf16.msra.mxu0 0
  %1721 = vmatprep.subr.bf16.mxu0 0
  %1722 = vmatpush1.bf16.msra.mxu0 0
  %1723 = vmatprep.subr.bf16.mxu0 0
  %1724 = vmatpush1.bf16.msra.mxu0 0
  %1725 = vmatprep.subr.bf16.mxu0 0
  %1726 = vmatpush1.bf16.msra.mxu0 0
  %1727 = vmatprep.subr.bf16.mxu0 0
  %1728 = vmatpush1.bf16.msra.mxu0 0
  %1729 = vmatprep.subr.bf16.mxu0 0
  %1730 = vmatpush1.bf16.msra.mxu0 0
  %1731 = vmatprep.mubr.bf16.mxu0 0
  %1732 = vmatmul.mubr.bf16.gmra.mrb[0].mxu0 %v1694
  %v1733 = vpop.f32.mrb[0].mxu0
  %v1734 = vadd.f32 0.0, %v1733
  %v1735 = vpop.f32.mrb[0].mxu0
  %v1736 = vpop.f32.mrb[0].mxu0
  %v1737 = vpop.f32.mrb[0].mxu0
  %1738 = vdwg.mxu0
  %v1740 = vsel %vm1119, %v1595, 0
  %v1743 = vsel %vm1603, %v1108, 0
  %1745 = vmatprep.subr.bf16.mxu0 0
  %1746 = vmatpush1.bf16.msra.mxu0 %v1743
  %1747 = vmatprep.subr.bf16.mxu0 0
  %1748 = vmatpush1.bf16.msra.mxu0 0
  %1749 = vmatprep.subr.bf16.mxu0 0
  %1750 = vmatpush1.bf16.msra.mxu0 0
  %1751 = vmatprep.subr.bf16.mxu0 0
  %1752 = vmatpush1.bf16.msra.mxu0 0
  %1753 = vmatprep.subr.bf16.mxu0 0
  %1754 = vmatpush1.bf16.msra.mxu0 0
  %1755 = vmatprep.subr.bf16.mxu0 0
  %1756 = vmatpush1.bf16.msra.mxu0 0
  %1757 = vmatprep.subr.bf16.mxu0 0
  %1758 = vmatpush1.bf16.msra.mxu0 0
  %1759 = vmatprep.subr.bf16.mxu0 0
  %1760 = vmatpush1.bf16.msra.mxu0 0
  %1761 = vmatprep.subr.bf16.mxu0 0
  %1762 = vmatpush1.bf16.msra.mxu0 0
  %1763 = vmatprep.subr.bf16.mxu0 0
  %1764 = vmatpush1.bf16.msra.mxu0 0
  %1765 = vmatprep.subr.bf16.mxu0 0
  %1766 = vmatpush1.bf16.msra.mxu0 0
  %1767 = vmatprep.subr.bf16.mxu0 0
  %1768 = vmatpush1.bf16.msra.mxu0 0
  %1769 = vmatprep.subr.bf16.mxu0 0
  %1770 = vmatpush1.bf16.msra.mxu0 0
  %1771 = vmatprep.subr.bf16.mxu0 0
  %1772 = vmatpush1.bf16.msra.mxu0 0
  %1773 = vmatprep.subr.bf16.mxu0 0
  %1774 = vmatpush1.bf16.msra.mxu0 0
  %1775 = vmatprep.subr.bf16.mxu0 0
  %1776 = vmatpush1.bf16.msra.mxu0 0
  %1777 = vmatprep.mubr.bf16.mxu0 0
  %1778 = vmatmul.mubr.bf16.gmra.mrb[0].mxu0 %v1740
  %v1779 = vpop.f32.mrb[0].mxu0
  %v1780 = vadd.f32 0.0, %v1779
  %v1781 = vpop.f32.mrb[0].mxu0
  %v1782 = vpop.f32.mrb[0].mxu0
  %v1783 = vpop.f32.mrb[0].mxu0
  %1784 = vdwg.mxu0
  %v1786 = vsel %vm1119, %v1596, 0
  %v1789 = vsel %vm1603, %v1109, 0
  %1791 = vmatprep.subr.bf16.mxu0 0
  %1792 = vmatpush1.bf16.msra.mxu0 %v1789
  %1793 = vmatprep.subr.bf16.mxu0 0
  %1794 = vmatpush1.bf16.msra.mxu0 0
  %1795 = vmatprep.subr.bf16.mxu0 0
  %1796 = vmatpush1.bf16.msra.mxu0 0
  %1797 = vmatprep.subr.bf16.mxu0 0
  %1798 = vmatpush1.bf16.msra.mxu0 0
  %1799 = vmatprep.subr.bf16.mxu0 0
  %1800 = vmatpush1.bf16.msra.mxu0 0
  %1801 = vmatprep.subr.bf16.mxu0 0
  %1802 = vmatpush1.bf16.msra.mxu0 0
  %1803 = vmatprep.subr.bf16.mxu0 0
  %1804 = vmatpush1.bf16.msra.mxu0 0
  %1805 = vmatprep.subr.bf16.mxu0 0
  %1806 = vmatpush1.bf16.msra.mxu0 0
  %1807 = vmatprep.subr.bf16.mxu0 0
  %1808 = vmatpush1.bf16.msra.mxu0 0
  %1809 = vmatprep.subr.bf16.mxu0 0
  %1810 = vmatpush1.bf16.msra.mxu0 0
  %1811 = vmatprep.subr.bf16.mxu0 0
  %1812 = vmatpush1.bf16.msra.mxu0 0
  %1813 = vmatprep.subr.bf16.mxu0 0
  %1814 = vmatpush1.bf16.msra.mxu0 0
  %1815 = vmatprep.subr.bf16.mxu0 0
  %1816 = vmatpush1.bf16.msra.mxu0 0
  %1817 = vmatprep.subr.bf16.mxu0 0
  %1818 = vmatpush1.bf16.msra.mxu0 0
  %1819 = vmatprep.subr.bf16.mxu0 0
  %1820 = vmatpush1.bf16.msra.mxu0 0
  %1821 = vmatprep.subr.bf16.mxu0 0
  %1822 = vmatpush1.bf16.msra.mxu0 0
  %1823 = vmatprep.mubr.bf16.mxu0 0
  %1824 = vmatmul.mubr.bf16.gmra.mrb[0].mxu0 %v1786
  %v1825 = vpop.f32.mrb[0].mxu0
  %v1826 = vadd.f32 0.0, %v1825
  %v1827 = vpop.f32.mrb[0].mxu0
  %v1828 = vpop.f32.mrb[0].mxu0
  %v1829 = vpop.f32.mrb[0].mxu0
  %1830 = vdwg.mxu0
  %v1832 = vsel %vm1119, %v1597, 0
  %v1835 = vsel %vm1603, %v1110, 0
  %1837 = vmatprep.subr.bf16.mxu0 0
  %1838 = vmatpush1.bf16.msra.mxu0 %v1835
  %1839 = vmatprep.subr.bf16.mxu0 0
  %1840 = vmatpush1.bf16.msra.mxu0 0
  %1841 = vmatprep.subr.bf16.mxu0 0
  %1842 = vmatpush1.bf16.msra.mxu0 0
  %1843 = vmatprep.subr.bf16.mxu0 0
  %1844 = vmatpush1.bf16.msra.mxu0 0
  %1845 = vmatprep.subr.bf16.mxu0 0
  %1846 = vmatpush1.bf16.msra.mxu0 0
  %1847 = vmatprep.subr.bf16.mxu0 0
  %1848 = vmatpush1.bf16.msra.mxu0 0
  %1849 = vmatprep.subr.bf16.mxu0 0
  %1850 = vmatpush1.bf16.msra.mxu0 0
  %1851 = vmatprep.subr.bf16.mxu0 0
  %1852 = vmatpush1.bf16.msra.mxu0 0
  %1853 = vmatprep.subr.bf16.mxu0 0
  %1854 = vmatpush1.bf16.msra.mxu0 0
  %1855 = vmatprep.subr.bf16.mxu0 0
  %1856 = vmatpush1.bf16.msra.mxu0 0
  %1857 = vmatprep.subr.bf16.mxu0 0
  %1858 = vmatpush1.bf16.msra.mxu0 0
  %1859 = vmatprep.subr.bf16.mxu0 0
  %1860 = vmatpush1.bf16.msra.mxu0 0
  %1861 = vmatprep.subr.bf16.mxu0 0
  %1862 = vmatpush1.bf16.msra.mxu0 0
  %1863 = vmatprep.subr.bf16.mxu0 0
  %1864 = vmatpush1.bf16.msra.mxu0 0
  %1865 = vmatprep.subr.bf16.mxu0 0
  %1866 = vmatpush1.bf16.msra.mxu0 0
  %1867 = vmatprep.subr.bf16.mxu0 0
  %1868 = vmatpush1.bf16.msra.mxu0 0
  %1869 = vmatprep.mubr.bf16.mxu0 0
  %1870 = vmatmul.mubr.bf16.gmra.mrb[0].mxu0 %v1832
  %v1871 = vpop.f32.mrb[0].mxu0
  %v1872 = vadd.f32 0.0, %v1871
  %v1873 = vpop.f32.mrb[0].mxu0
  %v1874 = vpop.f32.mrb[0].mxu0
  %v1875 = vpop.f32.mrb[0].mxu0
  %1876 = vdwg.mxu0
  %v1878 = vsel %vm1119, %v1598, 0
  %v1881 = vsel %vm1603, %v1111, 0
  %1883 = vmatprep.subr.bf16.mxu0 0
  %1884 = vmatpush1.bf16.msra.mxu0 %v1881
  %1885 = vmatprep.subr.bf16.mxu0 0
  %1886 = vmatpush1.bf16.msra.mxu0 0
  %1887 = vmatprep.subr.bf16.mxu0 0
  %1888 = vmatpush1.bf16.msra.mxu0 0
  %1889 = vmatprep.subr.bf16.mxu0 0
  %1890 = vmatpush1.bf16.msra.mxu0 0
  %1891 = vmatprep.subr.bf16.mxu0 0
  %1892 = vmatpush1.bf16.msra.mxu0 0
  %1893 = vmatprep.subr.bf16.mxu0 0
  %1894 = vmatpush1.bf16.msra.mxu0 0
  %1895 = vmatprep.subr.bf16.mxu0 0
  %1896 = vmatpush1.bf16.msra.mxu0 0
  %1897 = vmatprep.subr.bf16.mxu0 0
  %1898 = vmatpush1.bf16.msra.mxu0 0
  %1899 = vmatprep.subr.bf16.mxu0 0
  %1900 = vmatpush1.bf16.msra.mxu0 0
  %1901 = vmatprep.subr.bf16.mxu0 0
  %1902 = vmatpush1.bf16.msra.mxu0 0
  %1903 = vmatprep.subr.bf16.mxu0 0
  %1904 = vmatpush1.bf16.msra.mxu0 0
  %1905 = vmatprep.subr.bf16.mxu0 0
  %1906 = vmatpush1.bf16.msra.mxu0 0
  %1907 = vmatprep.subr.bf16.mxu0 0
  %1908 = vmatpush1.bf16.msra.mxu0 0
  %1909 = vmatprep.subr.bf16.mxu0 0
  %1910 = vmatpush1.bf16.msra.mxu0 0
  %1911 = vmatprep.subr.bf16.mxu0 0
  %1912 = vmatpush1.bf16.msra.mxu0 0
  %1913 = vmatprep.subr.bf16.mxu0 0
  %1914 = vmatpush1.bf16.msra.mxu0 0
  %1915 = vmatprep.mubr.bf16.mxu0 0
  %1916 = vmatmul.mubr.bf16.gmra.mrb[0].mxu0 %v1878
  %v1917 = vpop.f32.mrb[0].mxu0
  %v1918 = vadd.f32 0.0, %v1917
  %v1919 = vpop.f32.mrb[0].mxu0
  %v1920 = vpop.f32.mrb[0].mxu0
  %v1921 = vpop.f32.mrb[0].mxu0
  %1922 = vdwg.mxu0
  %v1924 = vsel %vm1119, %v1599, 0
  %v1927 = vsel %vm1603, %v1112, 0
  %1929 = vmatprep.subr.bf16.mxu0 0
  %1930 = vmatpush1.bf16.msra.mxu0 %v1927
  %1931 = vmatprep.subr.bf16.mxu0 0
  %1932 = vmatpush1.bf16.msra.mxu0 0
  %1933 = vmatprep.subr.bf16.mxu0 0
  %1934 = vmatpush1.bf16.msra.mxu0 0
  %1935 = vmatprep.subr.bf16.mxu0 0
  %1936 = vmatpush1.bf16.msra.mxu0 0
  %1937 = vmatprep.subr.bf16.mxu0 0
  %1938 = vmatpush1.bf16.msra.mxu0 0
  %1939 = vmatprep.subr.bf16.mxu0 0
  %1940 = vmatpush1.bf16.msra.mxu0 0
  %1941 = vmatprep.subr.bf16.mxu0 0
  %1942 = vmatpush1.bf16.msra.mxu0 0
  %1943 = vmatprep.subr.bf16.mxu0 0
  %1944 = vmatpush1.bf16.msra.mxu0 0
  %1945 = vmatprep.subr.bf16.mxu0 0
  %1946 = vmatpush1.bf16.msra.mxu0 0
  %1947 = vmatprep.subr.bf16.mxu0 0
  %1948 = vmatpush1.bf16.msra.mxu0 0
  %1949 = vmatprep.subr.bf16.mxu0 0
  %1950 = vmatpush1.bf16.msra.mxu0 0
  %1951 = vmatprep.subr.bf16.mxu0 0
  %1952 = vmatpush1.bf16.msra.mxu0 0
  %1953 = vmatprep.subr.bf16.mxu0 0
  %1954 = vmatpush1.bf16.msra.mxu0 0
  %1955 = vmatprep.subr.bf16.mxu0 0
  %1956 = vmatpush1.bf16.msra.mxu0 0
  %1957 = vmatprep.subr.bf16.mxu0 0
  %1958 = vmatpush1.bf16.msra.mxu0 0
  %1959 = vmatprep.subr.bf16.mxu0 0
  %1960 = vmatpush1.bf16.msra.mxu0 0
  %1961 = vmatprep.mubr.bf16.mxu0 0
  %1962 = vmatmul.mubr.bf16.gmra.mrb[0].mxu0 %v1924
  %v1963 = vpop.f32.mrb[0].mxu0
  %v1964 = vadd.f32 0.0, %v1963
  %v1965 = vpop.f32.mrb[0].mxu0
  %v1966 = vpop.f32.mrb[0].mxu0
  %v1967 = vpop.f32.mrb[0].mxu0
  %1968 = vdwg.mxu0
  %v1969 = vcombine.low %v1642, %v1734
  %v1970 = vcombine.high %v1642, %v1734
  %v1972 = vunpack.c.l.s4 1983009808
  %v1973 = vunpack.c.0.s8 %v1972
  %v1974 = vlaneseq
  %v1975 = vshrl.u32 %v1974, 7
  %v1976 = vsub.s32 %v1973, %v1975
  %v1977 = vrot.slane %v1969, %v1976
  %v1979 = vunpack.c.l.s4 1983009808
  %v1980 = vunpack.c.0.s8 %v1979
  %v1981 = vlaneseq
  %v1982 = vshrl.u32 %v1981, 7
  %v1983 = vsub.s32 %v1980, %v1982
  %v1984 = vrot.slane %v1970, %v1983
  %v1985 = vcombine.low %v1688, %v1780
  %v1986 = vcombine.high %v1688, %v1780
  %v1988 = vunpack.c.l.s4 1983009808
  %v1989 = vunpack.c.0.s8 %v1988
  %v1990 = vlaneseq
  %v1991 = vshrl.u32 %v1990, 7
  %v1992 = vsub.s32 %v1989, %v1991
  %v1993 = vrot.slane %v1985, %v1992
  %v1995 = vunpack.c.l.s4 1983009808
  %v1996 = vunpack.c.0.s8 %v1995
  %v1997 = vlaneseq
  %v1998 = vshrl.u32 %v1997, 7
  %v1999 = vsub.s32 %v1996, %v1998
  %v2000 = vrot.slane %v1986, %v1999
  %v2001 = vcombine.low %v1977, %v1993
  %v2002 = vcombine.high %v1977, %v1993
  %v2004 = vunpack.c.l.s4 1934713408
  %v2005 = vunpack.c.0.s8 %v2004
  %v2006 = vlaneseq
  %v2007 = vshrl.u32 %v2006, 7
  %v2008 = vsub.s32 %v2005, %v2007
  %v2009 = vrot.slane %v2001, %v2008
  %v2011 = vunpack.c.l.s4 1934713408
  %v2012 = vunpack.c.0.s8 %v2011
  %v2013 = vlaneseq
  %v2014 = vshrl.u32 %v2013, 7
  %v2015 = vsub.s32 %v2012, %v2014
  %v2016 = vrot.slane %v2002, %v2015
  %v2017 = vcombine.low %v1984, %v2000
  %v2018 = vcombine.high %v1984, %v2000
  %v2020 = vunpack.c.l.s4 1934713408
  %v2021 = vunpack.c.0.s8 %v2020
  %v2022 = vlaneseq
  %v2023 = vshrl.u32 %v2022, 7
  %v2024 = vsub.s32 %v2021, %v2023
  %v2025 = vrot.slane %v2017, %v2024
  %v2027 = vunpack.c.l.s4 1934713408
  %v2028 = vunpack.c.0.s8 %v2027
  %v2029 = vlaneseq
  %v2030 = vshrl.u32 %v2029, 7
  %v2031 = vsub.s32 %v2028, %v2030
  %v2032 = vrot.slane %v2018, %v2031
  %v2033 = vcombine.high %v2009, 0.0
  %v2034 = vcombine.high %v2016, 0.0
  %v2035 = vcombine.high %v2025, 0.0
  %v2036 = vcombine.high %v2032, 0.0
  %v2037 = vcombine.low %v1826, %v1918
  %v2038 = vcombine.high %v1826, %v1918
  %v2040 = vunpack.c.l.s4 1983009808
  %v2041 = vunpack.c.0.s8 %v2040
  %v2042 = vlaneseq
  %v2043 = vshrl.u32 %v2042, 7
  %v2044 = vsub.s32 %v2041, %v2043
  %v2045 = vrot.slane %v2037, %v2044
  %v2047 = vunpack.c.l.s4 1983009808
  %v2048 = vunpack.c.0.s8 %v2047
  %v2049 = vlaneseq
  %v2050 = vshrl.u32 %v2049, 7
  %v2051 = vsub.s32 %v2048, %v2050
  %v2052 = vrot.slane %v2038, %v2051
  %v2053 = vcombine.low %v1872, %v1964
  %v2054 = vcombine.high %v1872, %v1964
  %v2056 = vunpack.c.l.s4 1983009808
  %v2057 = vunpack.c.0.s8 %v2056
  %v2058 = vlaneseq
  %v2059 = vshrl.u32 %v2058, 7
  %v2060 = vsub.s32 %v2057, %v2059
  %v2061 = vrot.slane %v2053, %v2060
  %v2063 = vunpack.c.l.s4 1983009808
  %v2064 = vunpack.c.0.s8 %v2063
  %v2065 = vlaneseq
  %v2066 = vshrl.u32 %v2065, 7
  %v2067 = vsub.s32 %v2064, %v2066
  %v2068 = vrot.slane %v2054, %v2067
  %v2069 = vcombine.low %v2045, %v2061
  %v2070 = vcombine.high %v2045, %v2061
  %v2072 = vunpack.c.l.s4 1934713408
  %v2073 = vunpack.c.0.s8 %v2072
  %v2074 = vlaneseq
  %v2075 = vshrl.u32 %v2074, 7
  %v2076 = vsub.s32 %v2073, %v2075
  %v2077 = vrot.slane %v2069, %v2076
  %v2079 = vunpack.c.l.s4 1934713408
  %v2080 = vunpack.c.0.s8 %v2079
  %v2081 = vlaneseq
  %v2082 = vshrl.u32 %v2081, 7
  %v2083 = vsub.s32 %v2080, %v2082
  %v2084 = vrot.slane %v2070, %v2083
  %v2085 = vcombine.low %v2052, %v2068
  %v2086 = vcombine.high %v2052, %v2068
  %v2088 = vunpack.c.l.s4 1934713408
  %v2089 = vunpack.c.0.s8 %v2088
  %v2090 = vlaneseq
  %v2091 = vshrl.u32 %v2090, 7
  %v2092 = vsub.s32 %v2089, %v2091
  %v2093 = vrot.slane %v2085, %v2092
  %v2095 = vunpack.c.l.s4 1934713408
  %v2096 = vunpack.c.0.s8 %v2095
  %v2097 = vlaneseq
  %v2098 = vshrl.u32 %v2097, 7
  %v2099 = vsub.s32 %v2096, %v2098
  %v2100 = vrot.slane %v2086, %v2099
  %v2101 = vcombine.high %v2077, 0.0
  %v2102 = vcombine.high %v2084, 0.0
  %v2103 = vcombine.high %v2093, 0.0
  %v2104 = vcombine.high %v2100, 0.0
  %v2105 = vcombine.low %v2009, %v2016
  %v2107 = vunpack.c.l.s4 1983009808
  %v2108 = vunpack.c.0.s8 %v2107
  %v2109 = vlaneseq
  %v2110 = vshrl.u32 %v2109, 7
  %v2111 = vsub.s32 %v2108, %v2110
  %v2112 = vrot.slane %v2105, %v2111
  %v2113 = vcombine.low %v2033, %v2034
  %v2115 = vunpack.c.l.s4 1983009808
  %v2116 = vunpack.c.0.s8 %v2115
  %v2117 = vlaneseq
  %v2118 = vshrl.u32 %v2117, 7
  %v2119 = vsub.s32 %v2116, %v2118
  %v2120 = vrot.slane %v2113, %v2119
  %v2121 = vcombine.low %v2025, %v2032
  %v2123 = vunpack.c.l.s4 1983009808
  %v2124 = vunpack.c.0.s8 %v2123
  %v2125 = vlaneseq
  %v2126 = vshrl.u32 %v2125, 7
  %v2127 = vsub.s32 %v2124, %v2126
  %v2128 = vrot.slane %v2121, %v2127
  %v2129 = vcombine.low %v2035, %v2036
  %v2131 = vunpack.c.l.s4 1983009808
  %v2132 = vunpack.c.0.s8 %v2131
  %v2133 = vlaneseq
  %v2134 = vshrl.u32 %v2133, 7
  %v2135 = vsub.s32 %v2132, %v2134
  %v2136 = vrot.slane %v2129, %v2135
  %v2137 = vcombine.low %v2112, %v2120
  %v2138 = vcombine.high %v2112, %v2120
  %v2140 = vunpack.c.l.s4 1934713408
  %v2141 = vunpack.c.0.s8 %v2140
  %v2142 = vlaneseq
  %v2143 = vshrl.u32 %v2142, 7
  %v2144 = vsub.s32 %v2141, %v2143
  %v2145 = vrot.slane %v2137, %v2144
  %v2147 = vunpack.c.l.s4 1934713408
  %v2148 = vunpack.c.0.s8 %v2147
  %v2149 = vlaneseq
  %v2150 = vshrl.u32 %v2149, 7
  %v2151 = vsub.s32 %v2148, %v2150
  %v2152 = vrot.slane %v2138, %v2151
  %v2153 = vcombine.low %v2128, %v2136
  %v2154 = vcombine.high %v2128, %v2136
  %v2156 = vunpack.c.l.s4 1934713408
  %v2157 = vunpack.c.0.s8 %v2156
  %v2158 = vlaneseq
  %v2159 = vshrl.u32 %v2158, 7
  %v2160 = vsub.s32 %v2157, %v2159
  %v2161 = vrot.slane %v2153, %v2160
  %v2163 = vunpack.c.l.s4 1934713408
  %v2164 = vunpack.c.0.s8 %v2163
  %v2165 = vlaneseq
  %v2166 = vshrl.u32 %v2165, 7
  %v2167 = vsub.s32 %v2164, %v2166
  %v2168 = vrot.slane %v2154, %v2167
  %v2169 = vcombine.low %v2145, %v2161
  %v2170 = vcombine.high %v2145, %v2161
  %v2171 = vcombine.low %v2152, %v2168
  %v2172 = vcombine.high %v2152, %v2168
  %v2173 = vcombine.low %v2077, %v2084
  %v2175 = vunpack.c.l.s4 1983009808
  %v2176 = vunpack.c.0.s8 %v2175
  %v2177 = vlaneseq
  %v2178 = vshrl.u32 %v2177, 7
  %v2179 = vsub.s32 %v2176, %v2178
  %v2180 = vrot.slane %v2173, %v2179
  %v2181 = vcombine.low %v2101, %v2102
  %v2183 = vunpack.c.l.s4 1983009808
  %v2184 = vunpack.c.0.s8 %v2183
  %v2185 = vlaneseq
  %v2186 = vshrl.u32 %v2185, 7
  %v2187 = vsub.s32 %v2184, %v2186
  %v2188 = vrot.slane %v2181, %v2187
  %v2189 = vcombine.low %v2093, %v2100
  %v2191 = vunpack.c.l.s4 1983009808
  %v2192 = vunpack.c.0.s8 %v2191
  %v2193 = vlaneseq
  %v2194 = vshrl.u32 %v2193, 7
  %v2195 = vsub.s32 %v2192, %v2194
  %v2196 = vrot.slane %v2189, %v2195
  %v2197 = vcombine.low %v2103, %v2104
  %v2199 = vunpack.c.l.s4 1983009808
  %v2200 = vunpack.c.0.s8 %v2199
  %v2201 = vlaneseq
  %v2202 = vshrl.u32 %v2201, 7
  %v2203 = vsub.s32 %v2200, %v2202
  %v2204 = vrot.slane %v2197, %v2203
  %v2205 = vcombine.low %v2180, %v2188
  %v2206 = vcombine.high %v2180, %v2188
  %v2208 = vunpack.c.l.s4 1934713408
  %v2209 = vunpack.c.0.s8 %v2208
  %v2210 = vlaneseq
  %v2211 = vshrl.u32 %v2210, 7
  %v2212 = vsub.s32 %v2209, %v2211
  %v2213 = vrot.slane %v2205, %v2212
  %v2215 = vunpack.c.l.s4 1934713408
  %v2216 = vunpack.c.0.s8 %v2215
  %v2217 = vlaneseq
  %v2218 = vshrl.u32 %v2217, 7
  %v2219 = vsub.s32 %v2216, %v2218
  %v2220 = vrot.slane %v2206, %v2219
  %v2221 = vcombine.low %v2196, %v2204
  %v2222 = vcombine.high %v2196, %v2204
  %v2224 = vunpack.c.l.s4 1934713408
  %v2225 = vunpack.c.0.s8 %v2224
  %v2226 = vlaneseq
  %v2227 = vshrl.u32 %v2226, 7
  %v2228 = vsub.s32 %v2225, %v2227
  %v2229 = vrot.slane %v2221, %v2228
  %v2231 = vunpack.c.l.s4 1934713408
  %v2232 = vunpack.c.0.s8 %v2231
  %v2233 = vlaneseq
  %v2234 = vshrl.u32 %v2233, 7
  %v2235 = vsub.s32 %v2232, %v2234
  %v2236 = vrot.slane %v2222, %v2235
  %v2237 = vcombine.low %v2213, %v2229
  %v2238 = vcombine.high %v2213, %v2229
  %v2239 = vcombine.low %v2220, %v2236
  %v2240 = vcombine.high %v2220, %v2236
  %2243 = vrot.lane.b32.xlu0 %v2170, 8
  %v2244 = vpop.permute.xlu0 %2243
  %2245 = vrot.lane.b32.xlu0 %v2238, 8
  %v2246 = vpop.permute.xlu0 %2245
  %2251 = vrot.lane.b32.xlu0 %v2171, 16
  %v2252 = vpop.permute.xlu0 %2251
  %2253 = vrot.lane.b32.xlu0 %v2239, 16
  %v2254 = vpop.permute.xlu0 %2253
  %2259 = vrot.lane.b32.xlu0 %v2172, 24
  %v2260 = vpop.permute.xlu0 %2259
  %2261 = vrot.lane.b32.xlu0 %v2240, 24
  %v2262 = vpop.permute.xlu0 %2261
  %v2265 = vsel %vm1119, %v2169, %v2244
  %v2266 = vsel %vm1119, %v2237, %v2246
  %vm2267 = vcmask 130048
  %v2268 = vsel %vm2267, %v2265, %v2252
  %v2269 = vsel %vm2267, %v2266, %v2254
  %vm2270 = vcmask 195584
  %v2271 = vsel %vm2270, %v2268, %v2260
  %v2272 = vsel %vm2270, %v2269, %v2262
  %v2273 = vpack.c.bf16 %v2272, %v2271
  %v2274 = vld [vmem:[%s5] sm:$0xf]
  %v2275 = vld [vmem:[%s5 + $0x4] sm:$0xf]
  %v2276 = vld [vmem:[%s5 + $0x8] sm:$0xf]
  %v2277 = vld [vmem:[%s5 + $0xc] sm:$0xf]
  %v2278 = vld [vmem:[%s6] sm:$0x1]
  %v2280 = vlaneseq
  %v2281 = vshrl.u32 %v2280, 7
  %v2282 = vsub.s32 0, %v2281
  %v2283 = vrot.slane %v2278, %v2282
  %v2289 = vunpack.c.l.b16 %v2274
  %v2290 = vunpack.c.l.b16 %v2275
  %v2291 = vunpack.c.l.b16 %v2276
  %v2292 = vunpack.c.l.b16 %v2277
  %v2293 = vpack.c.b16 %v2290, %v2289
  %v2294 = vpack.c.b16 %v2292, %v2291
  %v2298 = vsel %vm89, %v2273, 0
  %2300 = vmatprep.subr.bf16.mxu0 0
  %2301 = vmatpush1.bf16.msra.mxu0 %v2293
  %2302 = vmatprep.subr.bf16.mxu0 0
  %2303 = vmatpush1.bf16.msra.mxu0 %v2294
  %2304 = vmatprep.subr.bf16.mxu0 0
  %2305 = vmatpush1.bf16.msra.mxu0 0
  %2306 = vmatprep.subr.bf16.mxu0 0
  %2307 = vmatpush1.bf16.msra.mxu0 0
  %2308 = vmatprep.subr.bf16.mxu0 0
  %2309 = vmatpush1.bf16.msra.mxu0 0
  %2310 = vmatprep.subr.bf16.mxu0 0
  %2311 = vmatpush1.bf16.msra.mxu0 0
  %2312 = vmatprep.subr.bf16.mxu0 0
  %2313 = vmatpush1.bf16.msra.mxu0 0
  %2314 = vmatprep.subr.bf16.mxu0 0
  %2315 = vmatpush1.bf16.msra.mxu0 0
  %2316 = vmatprep.subr.bf16.mxu0 0
  %2317 = vmatpush1.bf16.msra.mxu0 0
  %2318 = vmatprep.subr.bf16.mxu0 0
  %2319 = vmatpush1.bf16.msra.mxu0 0
  %2320 = vmatprep.subr.bf16.mxu0 0
  %2321 = vmatpush1.bf16.msra.mxu0 0
  %2322 = vmatprep.subr.bf16.mxu0 0
  %2323 = vmatpush1.bf16.msra.mxu0 0
  %2324 = vmatprep.subr.bf16.mxu0 0
  %2325 = vmatpush1.bf16.msra.mxu0 0
  %2326 = vmatprep.subr.bf16.mxu0 0
  %2327 = vmatpush1.bf16.msra.mxu0 0
  %2328 = vmatprep.subr.bf16.mxu0 0
  %2329 = vmatpush1.bf16.msra.mxu0 0
  %2330 = vmatprep.subr.bf16.mxu0 0
  %2331 = vmatpush1.bf16.msra.mxu0 0
  %2332 = vmatprep.mubr.bf16.mxu0 0
  %2333 = vmatmul.mubr.bf16.gmra.mrb[0].mxu0 %v2298
  %v2334 = vpop.f32.mrb[0].mxu0
  %v2335 = vadd.f32 %v2283, %v2334
  %v2336 = vpop.f32.mrb[0].mxu0
  %v2337 = vpop.f32.mrb[0].mxu0
  %v2338 = vadd.f32 %v2283, %v2337
  %v2339 = vpop.f32.mrb[0].mxu0
  %2340 = vdwg.mxu0
  %v2341 = vadd.f32 %v85, %v2335
  %v2342 = vadd.f32 %v86, %v2338
  %v2343 = vld [vmem:[%s7] sm:$0x1]
  %v2344 = vld [vmem:[%s8] sm:$0x1]
  %v2345 = vsel %vm89, %v2341, 0.0
  %2346 = vadd.xlane.f32.xlu0 %v2345
  %v2347 = vpop.xlane.xlu0 %2346
  %v2348 = vsel %vm89, %v2342, 0.0
  %2349 = vadd.xlane.f32.xlu0 %v2348
  %v2350 = vpop.xlane.xlu0 %2349
  %v2351 = vmul.f32 %v2347, %v96
  %v2352 = vmul.f32 %v2350, %v96
  %v2353 = vmul.f32 %v2341, %v2341
  %v2354 = vmul.f32 %v2342, %v2342
  %v2355 = vsel %vm89, %v2353, 0.0
  %2356 = vadd.xlane.f32.xlu0 %v2355
  %v2357 = vpop.xlane.xlu0 %2356
  %v2358 = vsel %vm89, %v2354, 0.0
  %2359 = vadd.xlane.f32.xlu0 %v2358
  %v2360 = vpop.xlane.xlu0 %2359
  %v2361 = vmul.f32 %v2357, %v96
  %v2362 = vmul.f32 %v2360, %v96
  %v2363 = vmul.f32 %v2351, %v2351
  %v2364 = vmul.f32 %v2352, %v2352
  %v2365 = vsub.f32 %v2361, %v2363
  %v2366 = vsub.f32 %v2362, %v2364
  %v2367 = vsub.f32 %v2341, %v2351
  %v2368 = vsub.f32 %v2342, %v2352
  %v2369 = vadd.f32 %v2365, 1e-05
  %v2370 = vadd.f32 %v2366, 1e-05
  %v2371 = vrsqrt.pop %v2369
  %v2372 = vrsqrt.pop %v2370
  %v2373 = vmul.f32 %v2367, %v2371
  %v2374 = vmul.f32 %v2368, %v2372
  %v2376 = vlaneseq
  %v2377 = vshrl.u32 %v2376, 7
  %v2378 = vsub.s32 0, %v2377
  %v2379 = vrot.slane %v2343, %v2378
  %v2381 = vmul.f32 %v2373, %v2379
  %v2382 = vmul.f32 %v2374, %v2379
  %v2384 = vlaneseq
  %v2385 = vshrl.u32 %v2384, 7
  %v2386 = vsub.s32 0, %v2385
  %v2387 = vrot.slane %v2344, %v2386
  %v2389 = vadd.f32 %v2381, %v2387
  %v2390 = vadd.f32 %v2382, %v2387
  %v2391 = vpack.c.bf16 %v2390, %v2389
  %v2392 = vld [vmem:[%s9] sm:$0xf]
  %v2393 = vld [vmem:[%s9 + $0x4] sm:$0xf]
  %v2394 = vld [vmem:[%s9 + $0x8] sm:$0xf]
  %v2395 = vld [vmem:[%s9 + $0xc] sm:$0xf]
  %v2396 = vld [vmem:[%s10] sm:$0x1]
  %v2398 = vlaneseq
  %v2399 = vshrl.u32 %v2398, 7
  %v2400 = vsub.s32 0, %v2399
  %v2401 = vrot.slane %v2396, %v2400
  %v2407 = vunpack.c.l.b16 %v2392
  %v2408 = vunpack.c.l.b16 %v2393
  %v2409 = vunpack.c.l.b16 %v2394
  %v2410 = vunpack.c.l.b16 %v2395
  %v2411 = vpack.c.b16 %v2408, %v2407
  %v2412 = vpack.c.b16 %v2410, %v2409
  %v2416 = vsel %vm89, %v2391, 0
  %2418 = vmatprep.subr.bf16.mxu0 0
  %2419 = vmatpush1.bf16.msra.mxu0 %v2411
  %2420 = vmatprep.subr.bf16.mxu0 0
  %2421 = vmatpush1.bf16.msra.mxu0 %v2412
  %2422 = vmatprep.subr.bf16.mxu0 0
  %2423 = vmatpush1.bf16.msra.mxu0 0
  %2424 = vmatprep.subr.bf16.mxu0 0
  %2425 = vmatpush1.bf16.msra.mxu0 0
  %2426 = vmatprep.subr.bf16.mxu0 0
  %2427 = vmatpush1.bf16.msra.mxu0 0
  %2428 = vmatprep.subr.bf16.mxu0 0
  %2429 = vmatpush1.bf16.msra.mxu0 0
  %2430 = vmatprep.subr.bf16.mxu0 0
  %2431 = vmatpush1.bf16.msra.mxu0 0
  %2432 = vmatprep.subr.bf16.mxu0 0
  %2433 = vmatpush1.bf16.msra.mxu0 0
  %2434 = vmatprep.subr.bf16.mxu0 0
  %2435 = vmatpush1.bf16.msra.mxu0 0
  %2436 = vmatprep.subr.bf16.mxu0 0
  %2437 = vmatpush1.bf16.msra.mxu0 0
  %2438 = vmatprep.subr.bf16.mxu0 0
  %2439 = vmatpush1.bf16.msra.mxu0 0
  %2440 = vmatprep.subr.bf16.mxu0 0
  %2441 = vmatpush1.bf16.msra.mxu0 0
  %2442 = vmatprep.subr.bf16.mxu0 0
  %2443 = vmatpush1.bf16.msra.mxu0 0
  %2444 = vmatprep.subr.bf16.mxu0 0
  %2445 = vmatpush1.bf16.msra.mxu0 0
  %2446 = vmatprep.subr.bf16.mxu0 0
  %2447 = vmatpush1.bf16.msra.mxu0 0
  %2448 = vmatprep.subr.bf16.mxu0 0
  %2449 = vmatpush1.bf16.msra.mxu0 0
  %2450 = vmatprep.mubr.bf16.mxu0 0
  %2451 = vmatmul.mubr.bf16.gmra.mrb[0].mxu0 %v2416
  %v2452 = vpop.f32.mrb[0].mxu0
  %v2453 = vadd.f32 %v2401, %v2452
  %v2454 = vpop.f32.mrb[0].mxu0
  %v2455 = vpop.f32.mrb[0].mxu0
  %v2456 = vadd.f32 %v2401, %v2455
  %v2457 = vpop.f32.mrb[0].mxu0
  %2458 = vdwg.mxu0
  %v2459 = vpack.c.bf16 %v2456, %v2453
  %v2460 = vmul.bf16 %v2459, 1071267802
  %v2461 = vxor.u32 %v2460, 2147516416
  %v2463 = vmul.bf16 %v2461, 1069105081
  %v2464 = vpow.bf16.pop %v2463
  %v2465 = vadd.bf16 %v2464, 1065369472
  %v2466 = vrcp.bf16.pop %v2465
  %v2467 = vmul.bf16 1065369472, %v2466
  %v2468 = vmul.bf16 %v2459, %v2467
  %v2469 = vld [vmem:[%s11] sm:$0xf]
  %v2470 = vld [vmem:[%s11 + $0x4] sm:$0xf]
  %v2471 = vld [vmem:[%s11 + $0x8] sm:$0xf]
  %v2472 = vld [vmem:[%s11 + $0xc] sm:$0xf]
  %v2473 = vld [vmem:[%s11 + $0x10] sm:$0xf]
  %v2474 = vld [vmem:[%s11 + $0x14] sm:$0xf]
  %v2475 = vld [vmem:[%s11 + $0x18] sm:$0xf]
  %v2476 = vld [vmem:[%s11 + $0x1c] sm:$0xf]
  %v2477 = vld [vmem:[%s11 + $0x20] sm:$0xf]
  %v2478 = vld [vmem:[%s11 + $0x24] sm:$0xf]
  %v2479 = vld [vmem:[%s11 + $0x28] sm:$0xf]
  %v2480 = vld [vmem:[%s11 + $0x2c] sm:$0xf]
  %v2481 = vld [vmem:[%s11 + $0x30] sm:$0xf]
  %v2482 = vld [vmem:[%s11 + $0x34] sm:$0xf]
  %v2483 = vld [vmem:[%s11 + $0x38] sm:$0xf]
  %v2484 = vld [vmem:[%s11 + $0x3c] sm:$0xf]
  %v2485 = vld [vmem:[%s12] sm:$0x1]
  %v2487 = vlaneseq
  %v2488 = vshrl.u32 %v2487, 7
  %v2489 = vsub.s32 0, %v2488
  %v2490 = vrot.slane %v2485, %v2489
  %v2508 = vunpack.c.l.b16 %v2469
  %v2509 = vunpack.c.l.b16 %v2470
  %v2510 = vunpack.c.l.b16 %v2471
  %v2511 = vunpack.c.l.b16 %v2472
  %v2512 = vunpack.c.l.b16 %v2473
  %v2513 = vunpack.c.l.b16 %v2474
  %v2514 = vunpack.c.l.b16 %v2475
  %v2515 = vunpack.c.l.b16 %v2476
  %v2516 = vunpack.c.l.b16 %v2477
  %v2517 = vunpack.c.l.b16 %v2478
  %v2518 = vunpack.c.l.b16 %v2479
  %v2519 = vunpack.c.l.b16 %v2480
  %v2520 = vunpack.c.l.b16 %v2481
  %v2521 = vunpack.c.l.b16 %v2482
  %v2522 = vunpack.c.l.b16 %v2483
  %v2523 = vunpack.c.l.b16 %v2484
  %v2524 = vpack.c.b16 %v2509, %v2508
  %v2525 = vpack.c.b16 %v2511, %v2510
  %v2526 = vpack.c.b16 %v2513, %v2512
  %v2527 = vpack.c.b16 %v2515, %v2514
  %v2528 = vpack.c.b16 %v2517, %v2516
  %v2529 = vpack.c.b16 %v2519, %v2518
  %v2530 = vpack.c.b16 %v2521, %v2520
  %v2531 = vpack.c.b16 %v2523, %v2522
  %2540 = vmatprep.subr.bf16.mxu0 0
  %2541 = vmatpush1.bf16.msra.mxu0 %v2524
  %2542 = vmatprep.subr.bf16.mxu0 0
  %2543 = vmatpush1.bf16.msra.mxu0 %v2525
  %2544 = vmatprep.subr.bf16.mxu0 0
  %2545 = vmatpush1.bf16.msra.mxu0 %v2526
  %2546 = vmatprep.subr.bf16.mxu0 0
  %2547 = vmatpush1.bf16.msra.mxu0 %v2527
  %2548 = vmatprep.subr.bf16.mxu0 0
  %2549 = vmatpush1.bf16.msra.mxu0 %v2528
  %2550 = vmatprep.subr.bf16.mxu0 0
  %2551 = vmatpush1.bf16.msra.mxu0 %v2529
  %2552 = vmatprep.subr.bf16.mxu0 0
  %2553 = vmatpush1.bf16.msra.mxu0 %v2530
  %2554 = vmatprep.subr.bf16.mxu0 0
  %2555 = vmatpush1.bf16.msra.mxu0 %v2531
  %2556 = vmatprep.subr.bf16.mxu0 0
  %2557 = vmatpush1.bf16.msra.mxu0 0
  %2558 = vmatprep.subr.bf16.mxu0 0
  %2559 = vmatpush1.bf16.msra.mxu0 0
  %2560 = vmatprep.subr.bf16.mxu0 0
  %2561 = vmatpush1.bf16.msra.mxu0 0
  %2562 = vmatprep.subr.bf16.mxu0 0
  %2563 = vmatpush1.bf16.msra.mxu0 0
  %2564 = vmatprep.subr.bf16.mxu0 0
  %2565 = vmatpush1.bf16.msra.mxu0 0
  %2566 = vmatprep.subr.bf16.mxu0 0
  %2567 = vmatpush1.bf16.msra.mxu0 0
  %2568 = vmatprep.subr.bf16.mxu0 0
  %2569 = vmatpush1.bf16.msra.mxu0 0
  %2570 = vmatprep.subr.bf16.mxu0 0
  %2571 = vmatpush1.bf16.msra.mxu0 0
  %2572 = vmatprep.mubr.bf16.mxu0 0
  %2573 = vmatmul.mubr.bf16.gmra.mrb[0].mxu0 %v2468
  %v2574 = vpop.f32.mrb[0].mxu0
  %v2575 = vadd.f32 %v2490, %v2574
  %v2576 = vpop.f32.mrb[0].mxu0
  %v2577 = vpop.f32.mrb[0].mxu0
  %v2578 = vadd.f32 %v2490, %v2577
  %v2579 = vpop.f32.mrb[0].mxu0
  %2580 = vdwg.mxu0
  %v2581 = vadd.f32 %v2341, %v2575
  %v2582 = vadd.f32 %v2342, %v2578
  %v2583 = vld [vmem:[%s13] sm:$0x1]
  %v2584 = vld [vmem:[%s14] sm:$0x1]
  %v2585 = vsel %vm89, %v2581, 0.0
  %2586 = vadd.xlane.f32.xlu0 %v2585
  %v2587 = vpop.xlane.xlu0 %2586
  %v2588 = vsel %vm89, %v2582, 0.0
  %2589 = vadd.xlane.f32.xlu0 %v2588
  %v2590 = vpop.xlane.xlu0 %2589
  %v2591 = vmul.f32 %v2587, %v96
  %v2592 = vmul.f32 %v2590, %v96
  %v2593 = vmul.f32 %v2581, %v2581
  %v2594 = vmul.f32 %v2582, %v2582
  %v2595 = vsel %vm89, %v2593, 0.0
  %2596 = vadd.xlane.f32.xlu0 %v2595
  %v2597 = vpop.xlane.xlu0 %2596
  %v2598 = vsel %vm89, %v2594, 0.0
  %2599 = vadd.xlane.f32.xlu0 %v2598
  %v2600 = vpop.xlane.xlu0 %2599
  %v2601 = vmul.f32 %v2597, %v96
  %v2602 = vmul.f32 %v2600, %v96
  %v2603 = vmul.f32 %v2591, %v2591
  %v2604 = vmul.f32 %v2592, %v2592
  %v2605 = vsub.f32 %v2601, %v2603
  %v2606 = vsub.f32 %v2602, %v2604
  %v2607 = vsub.f32 %v2581, %v2591
  %v2608 = vsub.f32 %v2582, %v2592
  %v2609 = vadd.f32 %v2605, 1e-05
  %v2610 = vadd.f32 %v2606, 1e-05
  %v2611 = vrsqrt.pop %v2609
  %v2612 = vrsqrt.pop %v2610
  %v2613 = vmul.f32 %v2607, %v2611
  %v2614 = vmul.f32 %v2608, %v2612
  %v2616 = vlaneseq
  %v2617 = vshrl.u32 %v2616, 7
  %v2618 = vsub.s32 0, %v2617
  %v2619 = vrot.slane %v2583, %v2618
  %v2621 = vmul.f32 %v2613, %v2619
  %v2622 = vmul.f32 %v2614, %v2619
  %v2624 = vlaneseq
  %v2625 = vshrl.u32 %v2624, 7
  %v2626 = vsub.s32 0, %v2625
  %v2627 = vrot.slane %v2584, %v2626
  %v2629 = vadd.f32 %v2621, %v2627
  %v2630 = vadd.f32 %v2622, %v2627
  %v2631 = vpack.c.bf16 %v2630, %v2629
  %v2632 = vld [vmem:[%s15] sm:$0xf]
  %v2633 = vld [vmem:[%s15 + $0x4] sm:$0xf]
  %v2634 = vld [vmem:[%s15 + $0x8] sm:$0xf]
  %v2635 = vld [vmem:[%s15 + $0xc] sm:$0xf]
  %v2636 = vld [vmem:[%s16] sm:$0x1]
  %v2638 = vlaneseq
  %v2639 = vshrl.u32 %v2638, 7
  %v2640 = vsub.s32 0, %v2639
  %v2641 = vrot.slane %v2636, %v2640
  %v2647 = vunpack.c.l.b16 %v2632
  %v2648 = vunpack.c.l.b16 %v2633
  %v2649 = vunpack.c.l.b16 %v2634
  %v2650 = vunpack.c.l.b16 %v2635
  %v2651 = vpack.c.b16 %v2648, %v2647
  %v2652 = vpack.c.b16 %v2650, %v2649
  %v2656 = vsel %vm89, %v2631, 0
  %2658 = vmatprep.subr.bf16.mxu0 0
  %2659 = vmatpush1.bf16.msra.mxu0 %v2651
  %2660 = vmatprep.subr.bf16.mxu0 0
  %2661 = vmatpush1.bf16.msra.mxu0 %v2652
  %2662 = vmatprep.subr.bf16.mxu0 0
  %2663 = vmatpush1.bf16.msra.mxu0 0
  %2664 = vmatprep.subr.bf16.mxu0 0
  %2665 = vmatpush1.bf16.msra.mxu0 0
  %2666 = vmatprep.subr.bf16.mxu0 0
  %2667 = vmatpush1.bf16.msra.mxu0 0
  %2668 = vmatprep.subr.bf16.mxu0 0
  %2669 = vmatpush1.bf16.msra.mxu0 0
  %2670 = vmatprep.subr.bf16.mxu0 0
  %2671 = vmatpush1.bf16.msra.mxu0 0
  %2672 = vmatprep.subr.bf16.mxu0 0
  %2673 = vmatpush1.bf16.msra.mxu0 0
  %2674 = vmatprep.subr.bf16.mxu0 0
  %2675 = vmatpush1.bf16.msra.mxu0 0
  %2676 = vmatprep.subr.bf16.mxu0 0
  %2677 = vmatpush1.bf16.msra.mxu0 0
  %2678 = vmatprep.subr.bf16.mxu0 0
  %2679 = vmatpush1.bf16.msra.mxu0 0
  %2680 = vmatprep.subr.bf16.mxu0 0
  %2681 = vmatpush1.bf16.msra.mxu0 0
  %2682 = vmatprep.subr.bf16.mxu0 0
  %2683 = vmatpush1.bf16.msra.mxu0 0
  %2684 = vmatprep.subr.bf16.mxu0 0
  %2685 = vmatpush1.bf16.msra.mxu0 0
  %2686 = vmatprep.subr.bf16.mxu0 0
  %2687 = vmatpush1.bf16.msra.mxu0 0
  %2688 = vmatprep.subr.bf16.mxu0 0
  %2689 = vmatpush1.bf16.msra.mxu0 0
  %2690 = vmatprep.mubr.bf16.mxu0 0
  %2691 = vmatmul.mubr.bf16.gmra.mrb[0].mxu0 %v2656
  %v2692 = vpop.f32.mrb[0].mxu0
  %v2693 = vadd.f32 %v2641, %v2692
  %v2694 = vpop.f32.mrb[0].mxu0
  %v2695 = vpop.f32.mrb[0].mxu0
  %v2696 = vadd.f32 %v2641, %v2695
  %v2697 = vpop.f32.mrb[0].mxu0
  %2698 = vdwg.mxu0
  %2701 = vrot.lane.b32.xlu0 %v2693, 120
  %v2702 = vpop.permute.xlu0 %2701
  %2703 = vrot.lane.b32.xlu0 %v2696, 120
  %v2704 = vpop.permute.xlu0 %2703
  %2707 = vrot.lane.b32.xlu0 %v2693, 112
  %v2708 = vpop.permute.xlu0 %2707
  %2709 = vrot.lane.b32.xlu0 %v2696, 112
  %v2710 = vpop.permute.xlu0 %2709
  %2713 = vrot.lane.b32.xlu0 %v2693, 104
  %v2714 = vpop.permute.xlu0 %2713
  %2715 = vrot.lane.b32.xlu0 %v2696, 104
  %v2716 = vpop.permute.xlu0 %2715
  %v2719 = vcombine.low %v2693, %v2708
  %v2720 = vcombine.high %v2693, %v2708
  %v2722 = vunpack.c.l.s4 1983009808
  %v2723 = vunpack.c.0.s8 %v2722
  %v2724 = vlaneseq
  %v2725 = vshrl.u32 %v2724, 7
  %v2726 = vsub.s32 %v2723, %v2725
  %v2727 = vrot.slane %v2719, %v2726
  %v2729 = vunpack.c.l.s4 1983009808
  %v2730 = vunpack.c.0.s8 %v2729
  %v2731 = vlaneseq
  %v2732 = vshrl.u32 %v2731, 7
  %v2733 = vsub.s32 %v2730, %v2732
  %v2734 = vrot.slane %v2720, %v2733
  %v2735 = vcombine.low %v2702, %v2714
  %v2736 = vcombine.high %v2702, %v2714
  %v2738 = vunpack.c.l.s4 1983009808
  %v2739 = vunpack.c.0.s8 %v2738
  %v2740 = vlaneseq
  %v2741 = vshrl.u32 %v2740, 7
  %v2742 = vsub.s32 %v2739, %v2741
  %v2743 = vrot.slane %v2735, %v2742
  %v2745 = vunpack.c.l.s4 1983009808
  %v2746 = vunpack.c.0.s8 %v2745
  %v2747 = vlaneseq
  %v2748 = vshrl.u32 %v2747, 7
  %v2749 = vsub.s32 %v2746, %v2748
  %v2750 = vrot.slane %v2736, %v2749
  %v2751 = vcombine.low %v2727, %v2743
  %v2752 = vcombine.high %v2727, %v2743
  %v2754 = vunpack.c.l.s4 1934713408
  %v2755 = vunpack.c.0.s8 %v2754
  %v2756 = vlaneseq
  %v2757 = vshrl.u32 %v2756, 7
  %v2758 = vsub.s32 %v2755, %v2757
  %v2759 = vrot.slane %v2751, %v2758
  %v2761 = vunpack.c.l.s4 1934713408
  %v2762 = vunpack.c.0.s8 %v2761
  %v2763 = vlaneseq
  %v2764 = vshrl.u32 %v2763, 7
  %v2765 = vsub.s32 %v2762, %v2764
  %v2766 = vrot.slane %v2752, %v2765
  %v2767 = vcombine.low %v2734, %v2750
  %v2768 = vcombine.high %v2734, %v2750
  %v2770 = vunpack.c.l.s4 1934713408
  %v2771 = vunpack.c.0.s8 %v2770
  %v2772 = vlaneseq
  %v2773 = vshrl.u32 %v2772, 7
  %v2774 = vsub.s32 %v2771, %v2773
  %v2775 = vrot.slane %v2767, %v2774
  %v2777 = vunpack.c.l.s4 1934713408
  %v2778 = vunpack.c.0.s8 %v2777
  %v2779 = vlaneseq
  %v2780 = vshrl.u32 %v2779, 7
  %v2781 = vsub.s32 %v2778, %v2780
  %v2782 = vrot.slane %v2768, %v2781
  %v2783 = vcombine.high %v2759, 0.0
  %v2784 = vcombine.high %v2766, 0.0
  %v2785 = vcombine.high %v2775, 0.0
  %v2786 = vcombine.high %v2782, 0.0
  %v2787 = vcombine.low %v2696, %v2710
  %v2788 = vcombine.high %v2696, %v2710
  %v2790 = vunpack.c.l.s4 1983009808
  %v2791 = vunpack.c.0.s8 %v2790
  %v2792 = vlaneseq
  %v2793 = vshrl.u32 %v2792, 7
  %v2794 = vsub.s32 %v2791, %v2793
  %v2795 = vrot.slane %v2787, %v2794
  %v2797 = vunpack.c.l.s4 1983009808
  %v2798 = vunpack.c.0.s8 %v2797
  %v2799 = vlaneseq
  %v2800 = vshrl.u32 %v2799, 7
  %v2801 = vsub.s32 %v2798, %v2800
  %v2802 = vrot.slane %v2788, %v2801
  %v2803 = vcombine.low %v2704, %v2716
  %v2804 = vcombine.high %v2704, %v2716
  %v2806 = vunpack.c.l.s4 1983009808
  %v2807 = vunpack.c.0.s8 %v2806
  %v2808 = vlaneseq
  %v2809 = vshrl.u32 %v2808, 7
  %v2810 = vsub.s32 %v2807, %v2809
  %v2811 = vrot.slane %v2803, %v2810
  %v2813 = vunpack.c.l.s4 1983009808
  %v2814 = vunpack.c.0.s8 %v2813
  %v2815 = vlaneseq
  %v2816 = vshrl.u32 %v2815, 7
  %v2817 = vsub.s32 %v2814, %v2816
  %v2818 = vrot.slane %v2804, %v2817
  %v2819 = vcombine.low %v2795, %v2811
  %v2820 = vcombine.high %v2795, %v2811
  %v2822 = vunpack.c.l.s4 1934713408
  %v2823 = vunpack.c.0.s8 %v2822
  %v2824 = vlaneseq
  %v2825 = vshrl.u32 %v2824, 7
  %v2826 = vsub.s32 %v2823, %v2825
  %v2827 = vrot.slane %v2819, %v2826
  %v2829 = vunpack.c.l.s4 1934713408
  %v2830 = vunpack.c.0.s8 %v2829
  %v2831 = vlaneseq
  %v2832 = vshrl.u32 %v2831, 7
  %v2833 = vsub.s32 %v2830, %v2832
  %v2834 = vrot.slane %v2820, %v2833
  %v2835 = vcombine.low %v2802, %v2818
  %v2836 = vcombine.high %v2802, %v2818
  %v2838 = vunpack.c.l.s4 1934713408
  %v2839 = vunpack.c.0.s8 %v2838
  %v2840 = vlaneseq
  %v2841 = vshrl.u32 %v2840, 7
  %v2842 = vsub.s32 %v2839, %v2841
  %v2843 = vrot.slane %v2835, %v2842
  %v2845 = vunpack.c.l.s4 1934713408
  %v2846 = vunpack.c.0.s8 %v2845
  %v2847 = vlaneseq
  %v2848 = vshrl.u32 %v2847, 7
  %v2849 = vsub.s32 %v2846, %v2848
  %v2850 = vrot.slane %v2836, %v2849
  %v2851 = vcombine.high %v2827, 0.0
  %v2852 = vcombine.high %v2834, 0.0
  %v2853 = vcombine.high %v2843, 0.0
  %v2854 = vcombine.high %v2850, 0.0
  %v2855 = vcombine.low %v2759, %v2766
  %v2857 = vunpack.c.l.s4 1983009808
  %v2858 = vunpack.c.0.s8 %v2857
  %v2859 = vlaneseq
  %v2860 = vshrl.u32 %v2859, 7
  %v2861 = vsub.s32 %v2858, %v2860
  %v2862 = vrot.slane %v2855, %v2861
  %v2863 = vcombine.low %v2783, %v2784
  %v2865 = vunpack.c.l.s4 1983009808
  %v2866 = vunpack.c.0.s8 %v2865
  %v2867 = vlaneseq
  %v2868 = vshrl.u32 %v2867, 7
  %v2869 = vsub.s32 %v2866, %v2868
  %v2870 = vrot.slane %v2863, %v2869
  %v2871 = vcombine.low %v2775, %v2782
  %v2873 = vunpack.c.l.s4 1983009808
  %v2874 = vunpack.c.0.s8 %v2873
  %v2875 = vlaneseq
  %v2876 = vshrl.u32 %v2875, 7
  %v2877 = vsub.s32 %v2874, %v2876
  %v2878 = vrot.slane %v2871, %v2877
  %v2879 = vcombine.low %v2785, %v2786
  %v2881 = vunpack.c.l.s4 1983009808
  %v2882 = vunpack.c.0.s8 %v2881
  %v2883 = vlaneseq
  %v2884 = vshrl.u32 %v2883, 7
  %v2885 = vsub.s32 %v2882, %v2884
  %v2886 = vrot.slane %v2879, %v2885
  %v2887 = vcombine.low %v2862, %v2870
  %v2888 = vcombine.high %v2862, %v2870
  %v2890 = vunpack.c.l.s4 1934713408
  %v2891 = vunpack.c.0.s8 %v2890
  %v2892 = vlaneseq
  %v2893 = vshrl.u32 %v2892, 7
  %v2894 = vsub.s32 %v2891, %v2893
  %v2895 = vrot.slane %v2887, %v2894
  %v2897 = vunpack.c.l.s4 1934713408
  %v2898 = vunpack.c.0.s8 %v2897
  %v2899 = vlaneseq
  %v2900 = vshrl.u32 %v2899, 7
  %v2901 = vsub.s32 %v2898, %v2900
  %v2902 = vrot.slane %v2888, %v2901
  %v2903 = vcombine.low %v2878, %v2886
  %v2904 = vcombine.high %v2878, %v2886
  %v2906 = vunpack.c.l.s4 1934713408
  %v2907 = vunpack.c.0.s8 %v2906
  %v2908 = vlaneseq
  %v2909 = vshrl.u32 %v2908, 7
  %v2910 = vsub.s32 %v2907, %v2909
  %v2911 = vrot.slane %v2903, %v2910
  %v2913 = vunpack.c.l.s4 1934713408
  %v2914 = vunpack.c.0.s8 %v2913
  %v2915 = vlaneseq
  %v2916 = vshrl.u32 %v2915, 7
  %v2917 = vsub.s32 %v2914, %v2916
  %v2918 = vrot.slane %v2904, %v2917
  %v2919 = vcombine.low %v2895, %v2911
  %v2920 = vcombine.high %v2895, %v2911
  %v2921 = vcombine.low %v2902, %v2918
  %v2922 = vcombine.high %v2902, %v2918
  %v2923 = vcombine.low %v2827, %v2834
  %v2925 = vunpack.c.l.s4 1983009808
  %v2926 = vunpack.c.0.s8 %v2925
  %v2927 = vlaneseq
  %v2928 = vshrl.u32 %v2927, 7
  %v2929 = vsub.s32 %v2926, %v2928
  %v2930 = vrot.slane %v2923, %v2929
  %v2931 = vcombine.low %v2851, %v2852
  %v2933 = vunpack.c.l.s4 1983009808
  %v2934 = vunpack.c.0.s8 %v2933
  %v2935 = vlaneseq
  %v2936 = vshrl.u32 %v2935, 7
  %v2937 = vsub.s32 %v2934, %v2936
  %v2938 = vrot.slane %v2931, %v2937
  %v2939 = vcombine.low %v2843, %v2850
  %v2941 = vunpack.c.l.s4 1983009808
  %v2942 = vunpack.c.0.s8 %v2941
  %v2943 = vlaneseq
  %v2944 = vshrl.u32 %v2943, 7
  %v2945 = vsub.s32 %v2942, %v2944
  %v2946 = vrot.slane %v2939, %v2945
  %v2947 = vcombine.low %v2853, %v2854
  %v2949 = vunpack.c.l.s4 1983009808
  %v2950 = vunpack.c.0.s8 %v2949
  %v2951 = vlaneseq
  %v2952 = vshrl.u32 %v2951, 7
  %v2953 = vsub.s32 %v2950, %v2952
  %v2954 = vrot.slane %v2947, %v2953
  %v2955 = vcombine.low %v2930, %v2938
  %v2956 = vcombine.high %v2930, %v2938
  %v2958 = vunpack.c.l.s4 1934713408
  %v2959 = vunpack.c.0.s8 %v2958
  %v2960 = vlaneseq
  %v2961 = vshrl.u32 %v2960, 7
  %v2962 = vsub.s32 %v2959, %v2961
  %v2963 = vrot.slane %v2955, %v2962
  %v2965 = vunpack.c.l.s4 1934713408
  %v2966 = vunpack.c.0.s8 %v2965
  %v2967 = vlaneseq
  %v2968 = vshrl.u32 %v2967, 7
  %v2969 = vsub.s32 %v2966, %v2968
  %v2970 = vrot.slane %v2956, %v2969
  %v2971 = vcombine.low %v2946, %v2954
  %v2972 = vcombine.high %v2946, %v2954
  %v2974 = vunpack.c.l.s4 1934713408
  %v2975 = vunpack.c.0.s8 %v2974
  %v2976 = vlaneseq
  %v2977 = vshrl.u32 %v2976, 7
  %v2978 = vsub.s32 %v2975, %v2977
  %v2979 = vrot.slane %v2971, %v2978
  %v2981 = vunpack.c.l.s4 1934713408
  %v2982 = vunpack.c.0.s8 %v2981
  %v2983 = vlaneseq
  %v2984 = vshrl.u32 %v2983, 7
  %v2985 = vsub.s32 %v2982, %v2984
  %v2986 = vrot.slane %v2972, %v2985
  %v2987 = vcombine.low %v2963, %v2979
  %v2988 = vcombine.high %v2963, %v2979
  %v2989 = vcombine.low %v2970, %v2986
  %v2990 = vcombine.high %v2970, %v2986
  %v2991 = vpack.c.bf16 %v2919, %v2919
  %v2992 = vpack.c.bf16 %v2920, %v2920
  %v2993 = vpack.c.bf16 %v2921, %v2921
  %v2994 = vpack.c.bf16 %v2922, %v2922
  %v2995 = vpack.c.bf16 %v2987, %v2987
  %v2996 = vpack.c.bf16 %v2988, %v2988
  %v2997 = vpack.c.bf16 %v2989, %v2989
  %v2998 = vpack.c.bf16 %v2990, %v2990
  %2999 = vrot.lane.b32.xlu0 %v2693, 96
  %v3000 = vpop.permute.xlu0 %2999
  %3001 = vrot.lane.b32.xlu0 %v2696, 96
  %v3002 = vpop.permute.xlu0 %3001
  %3003 = vrot.lane.b32.xlu0 %v2702, 96
  %v3004 = vpop.permute.xlu0 %3003
  %3005 = vrot.lane.b32.xlu0 %v2704, 96
  %v3006 = vpop.permute.xlu0 %3005
  %3007 = vrot.lane.b32.xlu0 %v2708, 96
  %v3008 = vpop.permute.xlu0 %3007
  %3009 = vrot.lane.b32.xlu0 %v2710, 96
  %v3010 = vpop.permute.xlu0 %3009
  %3011 = vrot.lane.b32.xlu0 %v2714, 96
  %v3012 = vpop.permute.xlu0 %3011
  %3013 = vrot.lane.b32.xlu0 %v2716, 96
  %v3014 = vpop.permute.xlu0 %3013
  %v3023 = vcombine.low %v3000, %v3008
  %v3024 = vcombine.high %v3000, %v3008
  %v3026 = vunpack.c.l.s4 1983009808
  %v3027 = vunpack.c.0.s8 %v3026
  %v3028 = vlaneseq
  %v3029 = vshrl.u32 %v3028, 7
  %v3030 = vsub.s32 %v3027, %v3029
  %v3031 = vrot.slane %v3023, %v3030
  %v3033 = vunpack.c.l.s4 1983009808
  %v3034 = vunpack.c.0.s8 %v3033
  %v3035 = vlaneseq
  %v3036 = vshrl.u32 %v3035, 7
  %v3037 = vsub.s32 %v3034, %v3036
  %v3038 = vrot.slane %v3024, %v3037
  %v3039 = vcombine.low %v3004, %v3012
  %v3040 = vcombine.high %v3004, %v3012
  %v3042 = vunpack.c.l.s4 1983009808
  %v3043 = vunpack.c.0.s8 %v3042
  %v3044 = vlaneseq
  %v3045 = vshrl.u32 %v3044, 7
  %v3046 = vsub.s32 %v3043, %v3045
  %v3047 = vrot.slane %v3039, %v3046
  %v3049 = vunpack.c.l.s4 1983009808
  %v3050 = vunpack.c.0.s8 %v3049
  %v3051 = vlaneseq
  %v3052 = vshrl.u32 %v3051, 7
  %v3053 = vsub.s32 %v3050, %v3052
  %v3054 = vrot.slane %v3040, %v3053
  %v3055 = vcombine.low %v3031, %v3047
  %v3056 = vcombine.high %v3031, %v3047
  %v3058 = vunpack.c.l.s4 1934713408
  %v3059 = vunpack.c.0.s8 %v3058
  %v3060 = vlaneseq
  %v3061 = vshrl.u32 %v3060, 7
  %v3062 = vsub.s32 %v3059, %v3061
  %v3063 = vrot.slane %v3055, %v3062
  %v3065 = vunpack.c.l.s4 1934713408
  %v3066 = vunpack.c.0.s8 %v3065
  %v3067 = vlaneseq
  %v3068 = vshrl.u32 %v3067, 7
  %v3069 = vsub.s32 %v3066, %v3068
  %v3070 = vrot.slane %v3056, %v3069
  %v3071 = vcombine.low %v3038, %v3054
  %v3072 = vcombine.high %v3038, %v3054
  %v3074 = vunpack.c.l.s4 1934713408
  %v3075 = vunpack.c.0.s8 %v3074
  %v3076 = vlaneseq
  %v3077 = vshrl.u32 %v3076, 7
  %v3078 = vsub.s32 %v3075, %v3077
  %v3079 = vrot.slane %v3071, %v3078
  %v3081 = vunpack.c.l.s4 1934713408
  %v3082 = vunpack.c.0.s8 %v3081
  %v3083 = vlaneseq
  %v3084 = vshrl.u32 %v3083, 7
  %v3085 = vsub.s32 %v3082, %v3084
  %v3086 = vrot.slane %v3072, %v3085
  %v3087 = vcombine.high %v3063, 0.0
  %v3088 = vcombine.high %v3070, 0.0
  %v3089 = vcombine.high %v3079, 0.0
  %v3090 = vcombine.high %v3086, 0.0
  %v3091 = vcombine.low %v3002, %v3010
  %v3092 = vcombine.high %v3002, %v3010
  %v3094 = vunpack.c.l.s4 1983009808
  %v3095 = vunpack.c.0.s8 %v3094
  %v3096 = vlaneseq
  %v3097 = vshrl.u32 %v3096, 7
  %v3098 = vsub.s32 %v3095, %v3097
  %v3099 = vrot.slane %v3091, %v3098
  %v3101 = vunpack.c.l.s4 1983009808
  %v3102 = vunpack.c.0.s8 %v3101
  %v3103 = vlaneseq
  %v3104 = vshrl.u32 %v3103, 7
  %v3105 = vsub.s32 %v3102, %v3104
  %v3106 = vrot.slane %v3092, %v3105
  %v3107 = vcombine.low %v3006, %v3014
  %v3108 = vcombine.high %v3006, %v3014
  %v3110 = vunpack.c.l.s4 1983009808
  %v3111 = vunpack.c.0.s8 %v3110
  %v3112 = vlaneseq
  %v3113 = vshrl.u32 %v3112, 7
  %v3114 = vsub.s32 %v3111, %v3113
  %v3115 = vrot.slane %v3107, %v3114
  %v3117 = vunpack.c.l.s4 1983009808
  %v3118 = vunpack.c.0.s8 %v3117
  %v3119 = vlaneseq
  %v3120 = vshrl.u32 %v3119, 7
  %v3121 = vsub.s32 %v3118, %v3120
  %v3122 = vrot.slane %v3108, %v3121
  %v3123 = vcombine.low %v3099, %v3115
  %v3124 = vcombine.high %v3099, %v3115
  %v3126 = vunpack.c.l.s4 1934713408
  %v3127 = vunpack.c.0.s8 %v3126
  %v3128 = vlaneseq
  %v3129 = vshrl.u32 %v3128, 7
  %v3130 = vsub.s32 %v3127, %v3129
  %v3131 = vrot.slane %v3123, %v3130
  %v3133 = vunpack.c.l.s4 1934713408
  %v3134 = vunpack.c.0.s8 %v3133
  %v3135 = vlaneseq
  %v3136 = vshrl.u32 %v3135, 7
  %v3137 = vsub.s32 %v3134, %v3136
  %v3138 = vrot.slane %v3124, %v3137
  %v3139 = vcombine.low %v3106, %v3122
  %v3140 = vcombine.high %v3106, %v3122
  %v3142 = vunpack.c.l.s4 1934713408
  %v3143 = vunpack.c.0.s8 %v3142
  %v3144 = vlaneseq
  %v3145 = vshrl.u32 %v3144, 7
  %v3146 = vsub.s32 %v3143, %v3145
  %v3147 = vrot.slane %v3139, %v3146
  %v3149 = vunpack.c.l.s4 1934713408
  %v3150 = vunpack.c.0.s8 %v3149
  %v3151 = vlaneseq
  %v3152 = vshrl.u32 %v3151, 7
  %v3153 = vsub.s32 %v3150, %v3152
  %v3154 = vrot.slane %v3140, %v3153
  %v3155 = vcombine.high %v3131, 0.0
  %v3156 = vcombine.high %v3138, 0.0
  %v3157 = vcombine.high %v3147, 0.0
  %v3158 = vcombine.high %v3154, 0.0
  %v3159 = vcombine.low %v3063, %v3070
  %v3161 = vunpack.c.l.s4 1983009808
  %v3162 = vunpack.c.0.s8 %v3161
  %v3163 = vlaneseq
  %v3164 = vshrl.u32 %v3163, 7
  %v3165 = vsub.s32 %v3162, %v3164
  %v3166 = vrot.slane %v3159, %v3165
  %v3167 = vcombine.low %v3087, %v3088
  %v3169 = vunpack.c.l.s4 1983009808
  %v3170 = vunpack.c.0.s8 %v3169
  %v3171 = vlaneseq
  %v3172 = vshrl.u32 %v3171, 7
  %v3173 = vsub.s32 %v3170, %v3172
  %v3174 = vrot.slane %v3167, %v3173
  %v3175 = vcombine.low %v3079, %v3086
  %v3177 = vunpack.c.l.s4 1983009808
  %v3178 = vunpack.c.0.s8 %v3177
  %v3179 = vlaneseq
  %v3180 = vshrl.u32 %v3179, 7
  %v3181 = vsub.s32 %v3178, %v3180
  %v3182 = vrot.slane %v3175, %v3181
  %v3183 = vcombine.low %v3089, %v3090
  %v3185 = vunpack.c.l.s4 1983009808
  %v3186 = vunpack.c.0.s8 %v3185
  %v3187 = vlaneseq
  %v3188 = vshrl.u32 %v3187, 7
  %v3189 = vsub.s32 %v3186, %v3188
  %v3190 = vrot.slane %v3183, %v3189
  %v3191 = vcombine.low %v3166, %v3174
  %v3192 = vcombine.high %v3166, %v3174
  %v3194 = vunpack.c.l.s4 1934713408
  %v3195 = vunpack.c.0.s8 %v3194
  %v3196 = vlaneseq
  %v3197 = vshrl.u32 %v3196, 7
  %v3198 = vsub.s32 %v3195, %v3197
  %v3199 = vrot.slane %v3191, %v3198
  %v3201 = vunpack.c.l.s4 1934713408
  %v3202 = vunpack.c.0.s8 %v3201
  %v3203 = vlaneseq
  %v3204 = vshrl.u32 %v3203, 7
  %v3205 = vsub.s32 %v3202, %v3204
  %v3206 = vrot.slane %v3192, %v3205
  %v3207 = vcombine.low %v3182, %v3190
  %v3208 = vcombine.high %v3182, %v3190
  %v3210 = vunpack.c.l.s4 1934713408
  %v3211 = vunpack.c.0.s8 %v3210
  %v3212 = vlaneseq
  %v3213 = vshrl.u32 %v3212, 7
  %v3214 = vsub.s32 %v3211, %v3213
  %v3215 = vrot.slane %v3207, %v3214
  %v3217 = vunpack.c.l.s4 1934713408
  %v3218 = vunpack.c.0.s8 %v3217
  %v3219 = vlaneseq
  %v3220 = vshrl.u32 %v3219, 7
  %v3221 = vsub.s32 %v3218, %v3220
  %v3222 = vrot.slane %v3208, %v3221
  %v3223 = vcombine.low %v3199, %v3215
  %v3224 = vcombine.high %v3199, %v3215
  %v3225 = vcombine.low %v3206, %v3222
  %v3226 = vcombine.high %v3206, %v3222
  %v3227 = vcombine.low %v3131, %v3138
  %v3229 = vunpack.c.l.s4 1983009808
  %v3230 = vunpack.c.0.s8 %v3229
  %v3231 = vlaneseq
  %v3232 = vshrl.u32 %v3231, 7
  %v3233 = vsub.s32 %v3230, %v3232
  %v3234 = vrot.slane %v3227, %v3233
  %v3235 = vcombine.low %v3155, %v3156
  %v3237 = vunpack.c.l.s4 1983009808
  %v3238 = vunpack.c.0.s8 %v3237
  %v3239 = vlaneseq
  %v3240 = vshrl.u32 %v3239, 7
  %v3241 = vsub.s32 %v3238, %v3240
  %v3242 = vrot.slane %v3235, %v3241
  %v3243 = vcombine.low %v3147, %v3154
  %v3245 = vunpack.c.l.s4 1983009808
  %v3246 = vunpack.c.0.s8 %v3245
  %v3247 = vlaneseq
  %v3248 = vshrl.u32 %v3247, 7
  %v3249 = vsub.s32 %v3246, %v3248
  %v3250 = vrot.slane %v3243, %v3249
  %v3251 = vcombine.low %v3157, %v3158
  %v3253 = vunpack.c.l.s4 1983009808
  %v3254 = vunpack.c.0.s8 %v3253
  %v3255 = vlaneseq
  %v3256 = vshrl.u32 %v3255, 7
  %v3257 = vsub.s32 %v3254, %v3256
  %v3258 = vrot.slane %v3251, %v3257
  %v3259 = vcombine.low %v3234, %v3242
  %v3260 = vcombine.high %v3234, %v3242
  %v3262 = vunpack.c.l.s4 1934713408
  %v3263 = vunpack.c.0.s8 %v3262
  %v3264 = vlaneseq
  %v3265 = vshrl.u32 %v3264, 7
  %v3266 = vsub.s32 %v3263, %v3265
  %v3267 = vrot.slane %v3259, %v3266
  %v3269 = vunpack.c.l.s4 1934713408
  %v3270 = vunpack.c.0.s8 %v3269
  %v3271 = vlaneseq
  %v3272 = vshrl.u32 %v3271, 7
  %v3273 = vsub.s32 %v3270, %v3272
  %v3274 = vrot.slane %v3260, %v3273
  %v3275 = vcombine.low %v3250, %v3258
  %v3276 = vcombine.high %v3250, %v3258
  %v3278 = vunpack.c.l.s4 1934713408
  %v3279 = vunpack.c.0.s8 %v3278
  %v3280 = vlaneseq
  %v3281 = vshrl.u32 %v3280, 7
  %v3282 = vsub.s32 %v3279, %v3281
  %v3283 = vrot.slane %v3275, %v3282
  %v3285 = vunpack.c.l.s4 1934713408
  %v3286 = vunpack.c.0.s8 %v3285
  %v3287 = vlaneseq
  %v3288 = vshrl.u32 %v3287, 7
  %v3289 = vsub.s32 %v3286, %v3288
  %v3290 = vrot.slane %v3276, %v3289
  %v3291 = vcombine.low %v3267, %v3283
  %v3292 = vcombine.high %v3267, %v3283
  %v3293 = vcombine.low %v3274, %v3290
  %v3294 = vcombine.high %v3274, %v3290
  %v3295 = vpack.c.bf16 %v3223, %v3223
  %v3296 = vpack.c.bf16 %v3224, %v3224
  %v3297 = vpack.c.bf16 %v3225, %v3225
  %v3298 = vpack.c.bf16 %v3226, %v3226
  %v3299 = vpack.c.bf16 %v3291, %v3291
  %v3300 = vpack.c.bf16 %v3292, %v3292
  %v3301 = vpack.c.bf16 %v3293, %v3293
  %v3302 = vpack.c.bf16 %v3294, %v3294
  %3303 = vrot.lane.b32.xlu0 %v2693, 64
  %v3304 = vpop.permute.xlu0 %3303
  %3305 = vrot.lane.b32.xlu0 %v2696, 64
  %v3306 = vpop.permute.xlu0 %3305
  %3307 = vrot.lane.b32.xlu0 %v2702, 64
  %v3308 = vpop.permute.xlu0 %3307
  %3309 = vrot.lane.b32.xlu0 %v2704, 64
  %v3310 = vpop.permute.xlu0 %3309
  %3311 = vrot.lane.b32.xlu0 %v2708, 64
  %v3312 = vpop.permute.xlu0 %3311
  %3313 = vrot.lane.b32.xlu0 %v2710, 64
  %v3314 = vpop.permute.xlu0 %3313
  %3315 = vrot.lane.b32.xlu0 %v2714, 64
  %v3316 = vpop.permute.xlu0 %3315
  %3317 = vrot.lane.b32.xlu0 %v2716, 64
  %v3318 = vpop.permute.xlu0 %3317
  %v3327 = vcombine.low %v3304, %v3312
  %v3328 = vcombine.high %v3304, %v3312
  %v3330 = vunpack.c.l.s4 1983009808
  %v3331 = vunpack.c.0.s8 %v3330
  %v3332 = vlaneseq
  %v3333 = vshrl.u32 %v3332, 7
  %v3334 = vsub.s32 %v3331, %v3333
  %v3335 = vrot.slane %v3327, %v3334
  %v3337 = vunpack.c.l.s4 1983009808
  %v3338 = vunpack.c.0.s8 %v3337
  %v3339 = vlaneseq
  %v3340 = vshrl.u32 %v3339, 7
  %v3341 = vsub.s32 %v3338, %v3340
  %v3342 = vrot.slane %v3328, %v3341
  %v3343 = vcombine.low %v3308, %v3316
  %v3344 = vcombine.high %v3308, %v3316
  %v3346 = vunpack.c.l.s4 1983009808
  %v3347 = vunpack.c.0.s8 %v3346
  %v3348 = vlaneseq
  %v3349 = vshrl.u32 %v3348, 7
  %v3350 = vsub.s32 %v3347, %v3349
  %v3351 = vrot.slane %v3343, %v3350
  %v3353 = vunpack.c.l.s4 1983009808
  %v3354 = vunpack.c.0.s8 %v3353
  %v3355 = vlaneseq
  %v3356 = vshrl.u32 %v3355, 7
  %v3357 = vsub.s32 %v3354, %v3356
  %v3358 = vrot.slane %v3344, %v3357
  %v3359 = vcombine.low %v3335, %v3351
  %v3360 = vcombine.high %v3335, %v3351
  %v3362 = vunpack.c.l.s4 1934713408
  %v3363 = vunpack.c.0.s8 %v3362
  %v3364 = vlaneseq
  %v3365 = vshrl.u32 %v3364, 7
  %v3366 = vsub.s32 %v3363, %v3365
  %v3367 = vrot.slane %v3359, %v3366
  %v3369 = vunpack.c.l.s4 1934713408
  %v3370 = vunpack.c.0.s8 %v3369
  %v3371 = vlaneseq
  %v3372 = vshrl.u32 %v3371, 7
  %v3373 = vsub.s32 %v3370, %v3372
  %v3374 = vrot.slane %v3360, %v3373
  %v3375 = vcombine.low %v3342, %v3358
  %v3376 = vcombine.high %v3342, %v3358
  %v3378 = vunpack.c.l.s4 1934713408
  %v3379 = vunpack.c.0.s8 %v3378
  %v3380 = vlaneseq
  %v3381 = vshrl.u32 %v3380, 7
  %v3382 = vsub.s32 %v3379, %v3381
  %v3383 = vrot.slane %v3375, %v3382
  %v3385 = vunpack.c.l.s4 1934713408
  %v3386 = vunpack.c.0.s8 %v3385
  %v3387 = vlaneseq
  %v3388 = vshrl.u32 %v3387, 7
  %v3389 = vsub.s32 %v3386, %v3388
  %v3390 = vrot.slane %v3376, %v3389
  %v3391 = vcombine.high %v3367, 0.0
  %v3392 = vcombine.high %v3374, 0.0
  %v3393 = vcombine.high %v3383, 0.0
  %v3394 = vcombine.high %v3390, 0.0
  %v3395 = vcombine.low %v3306, %v3314
  %v3396 = vcombine.high %v3306, %v3314
  %v3398 = vunpack.c.l.s4 1983009808
  %v3399 = vunpack.c.0.s8 %v3398
  %v3400 = vlaneseq
  %v3401 = vshrl.u32 %v3400, 7
  %v3402 = vsub.s32 %v3399, %v3401
  %v3403 = vrot.slane %v3395, %v3402
  %v3405 = vunpack.c.l.s4 1983009808
  %v3406 = vunpack.c.0.s8 %v3405
  %v3407 = vlaneseq
  %v3408 = vshrl.u32 %v3407, 7
  %v3409 = vsub.s32 %v3406, %v3408
  %v3410 = vrot.slane %v3396, %v3409
  %v3411 = vcombine.low %v3310, %v3318
  %v3412 = vcombine.high %v3310, %v3318
  %v3414 = vunpack.c.l.s4 1983009808
  %v3415 = vunpack.c.0.s8 %v3414
  %v3416 = vlaneseq
  %v3417 = vshrl.u32 %v3416, 7
  %v3418 = vsub.s32 %v3415, %v3417
  %v3419 = vrot.slane %v3411, %v3418
  %v3421 = vunpack.c.l.s4 1983009808
  %v3422 = vunpack.c.0.s8 %v3421
  %v3423 = vlaneseq
  %v3424 = vshrl.u32 %v3423, 7
  %v3425 = vsub.s32 %v3422, %v3424
  %v3426 = vrot.slane %v3412, %v3425
  %v3427 = vcombine.low %v3403, %v3419
  %v3428 = vcombine.high %v3403, %v3419
  %v3430 = vunpack.c.l.s4 1934713408
  %v3431 = vunpack.c.0.s8 %v3430
  %v3432 = vlaneseq
  %v3433 = vshrl.u32 %v3432, 7
  %v3434 = vsub.s32 %v3431, %v3433
  %v3435 = vrot.slane %v3427, %v3434
  %v3437 = vunpack.c.l.s4 1934713408
  %v3438 = vunpack.c.0.s8 %v3437
  %v3439 = vlaneseq
  %v3440 = vshrl.u32 %v3439, 7
  %v3441 = vsub.s32 %v3438, %v3440
  %v3442 = vrot.slane %v3428, %v3441
  %v3443 = vcombine.low %v3410, %v3426
  %v3444 = vcombine.high %v3410, %v3426
  %v3446 = vunpack.c.l.s4 1934713408
  %v3447 = vunpack.c.0.s8 %v3446
  %v3448 = vlaneseq
  %v3449 = vshrl.u32 %v3448, 7
  %v3450 = vsub.s32 %v3447, %v3449
  %v3451 = vrot.slane %v3443, %v3450
  %v3453 = vunpack.c.l.s4 1934713408
  %v3454 = vunpack.c.0.s8 %v3453
  %v3455 = vlaneseq
  %v3456 = vshrl.u32 %v3455, 7
  %v3457 = vsub.s32 %v3454, %v3456
  %v3458 = vrot.slane %v3444, %v3457
  %v3459 = vcombine.high %v3435, 0.0
  %v3460 = vcombine.high %v3442, 0.0
  %v3461 = vcombine.high %v3451, 0.0
  %v3462 = vcombine.high %v3458, 0.0
  %v3463 = vcombine.low %v3367, %v3374
  %v3465 = vunpack.c.l.s4 1983009808
  %v3466 = vunpack.c.0.s8 %v3465
  %v3467 = vlaneseq
  %v3468 = vshrl.u32 %v3467, 7
  %v3469 = vsub.s32 %v3466, %v3468
  %v3470 = vrot.slane %v3463, %v3469
  %v3471 = vcombine.low %v3391, %v3392
  %v3473 = vunpack.c.l.s4 1983009808
  %v3474 = vunpack.c.0.s8 %v3473
  %v3475 = vlaneseq
  %v3476 = vshrl.u32 %v3475, 7
  %v3477 = vsub.s32 %v3474, %v3476
  %v3478 = vrot.slane %v3471, %v3477
  %v3479 = vcombine.low %v3383, %v3390
  %v3481 = vunpack.c.l.s4 1983009808
  %v3482 = vunpack.c.0.s8 %v3481
  %v3483 = vlaneseq
  %v3484 = vshrl.u32 %v3483, 7
  %v3485 = vsub.s32 %v3482, %v3484
  %v3486 = vrot.slane %v3479, %v3485
  %v3487 = vcombine.low %v3393, %v3394
  %v3489 = vunpack.c.l.s4 1983009808
  %v3490 = vunpack.c.0.s8 %v3489
  %v3491 = vlaneseq
  %v3492 = vshrl.u32 %v3491, 7
  %v3493 = vsub.s32 %v3490, %v3492
  %v3494 = vrot.slane %v3487, %v3493
  %v3495 = vcombine.low %v3470, %v3478
  %v3496 = vcombine.high %v3470, %v3478
  %v3498 = vunpack.c.l.s4 1934713408
  %v3499 = vunpack.c.0.s8 %v3498
  %v3500 = vlaneseq
  %v3501 = vshrl.u32 %v3500, 7
  %v3502 = vsub.s32 %v3499, %v3501
  %v3503 = vrot.slane %v3495, %v3502
  %v3505 = vunpack.c.l.s4 1934713408
  %v3506 = vunpack.c.0.s8 %v3505
  %v3507 = vlaneseq
  %v3508 = vshrl.u32 %v3507, 7
  %v3509 = vsub.s32 %v3506, %v3508
  %v3510 = vrot.slane %v3496, %v3509
  %v3511 = vcombine.low %v3486, %v3494
  %v3512 = vcombine.high %v3486, %v3494
  %v3514 = vunpack.c.l.s4 1934713408
  %v3515 = vunpack.c.0.s8 %v3514
  %v3516 = vlaneseq
  %v3517 = vshrl.u32 %v3516, 7
  %v3518 = vsub.s32 %v3515, %v3517
  %v3519 = vrot.slane %v3511, %v3518
  %v3521 = vunpack.c.l.s4 1934713408
  %v3522 = vunpack.c.0.s8 %v3521
  %v3523 = vlaneseq
  %v3524 = vshrl.u32 %v3523, 7
  %v3525 = vsub.s32 %v3522, %v3524
  %v3526 = vrot.slane %v3512, %v3525
  %v3527 = vcombine.low %v3503, %v3519
  %v3528 = vcombine.high %v3503, %v3519
  %v3529 = vcombine.low %v3510, %v3526
  %v3530 = vcombine.high %v3510, %v3526
  %v3531 = vcombine.low %v3435, %v3442
  %v3533 = vunpack.c.l.s4 1983009808
  %v3534 = vunpack.c.0.s8 %v3533
  %v3535 = vlaneseq
  %v3536 = vshrl.u32 %v3535, 7
  %v3537 = vsub.s32 %v3534, %v3536
  %v3538 = vrot.slane %v3531, %v3537
  %v3539 = vcombine.low %v3459, %v3460
  %v3541 = vunpack.c.l.s4 1983009808
  %v3542 = vunpack.c.0.s8 %v3541
  %v3543 = vlaneseq
  %v3544 = vshrl.u32 %v3543, 7
  %v3545 = vsub.s32 %v3542, %v3544
  %v3546 = vrot.slane %v3539, %v3545
  %v3547 = vcombine.low %v3451, %v3458
  %v3549 = vunpack.c.l.s4 1983009808
  %v3550 = vunpack.c.0.s8 %v3549
  %v3551 = vlaneseq
  %v3552 = vshrl.u32 %v3551, 7
  %v3553 = vsub.s32 %v3550, %v3552
  %v3554 = vrot.slane %v3547, %v3553
  %v3555 = vcombine.low %v3461, %v3462
  %v3557 = vunpack.c.l.s4 1983009808
  %v3558 = vunpack.c.0.s8 %v3557
  %v3559 = vlaneseq
  %v3560 = vshrl.u32 %v3559, 7
  %v3561 = vsub.s32 %v3558, %v3560
  %v3562 = vrot.slane %v3555, %v3561
  %v3563 = vcombine.low %v3538, %v3546
  %v3564 = vcombine.high %v3538, %v3546
  %v3566 = vunpack.c.l.s4 1934713408
  %v3567 = vunpack.c.0.s8 %v3566
  %v3568 = vlaneseq
  %v3569 = vshrl.u32 %v3568, 7
  %v3570 = vsub.s32 %v3567, %v3569
  %v3571 = vrot.slane %v3563, %v3570
  %v3573 = vunpack.c.l.s4 1934713408
  %v3574 = vunpack.c.0.s8 %v3573
  %v3575 = vlaneseq
  %v3576 = vshrl.u32 %v3575, 7
  %v3577 = vsub.s32 %v3574, %v3576
  %v3578 = vrot.slane %v3564, %v3577
  %v3579 = vcombine.low %v3554, %v3562
  %v3580 = vcombine.high %v3554, %v3562
  %v3582 = vunpack.c.l.s4 1934713408
  %v3583 = vunpack.c.0.s8 %v3582
  %v3584 = vlaneseq
  %v3585 = vshrl.u32 %v3584, 7
  %v3586 = vsub.s32 %v3583, %v3585
  %v3587 = vrot.slane %v3579, %v3586
  %v3589 = vunpack.c.l.s4 1934713408
  %v3590 = vunpack.c.0.s8 %v3589
  %v3591 = vlaneseq
  %v3592 = vshrl.u32 %v3591, 7
  %v3593 = vsub.s32 %v3590, %v3592
  %v3594 = vrot.slane %v3580, %v3593
  %v3595 = vcombine.low %v3571, %v3587
  %v3596 = vcombine.high %v3571, %v3587
  %v3597 = vcombine.low %v3578, %v3594
  %v3598 = vcombine.high %v3578, %v3594
  %v3599 = vpack.c.bf16 %v3527, %v3527
  %v3600 = vpack.c.bf16 %v3528, %v3528
  %v3601 = vpack.c.bf16 %v3529, %v3529
  %v3602 = vpack.c.bf16 %v3530, %v3530
  %v3603 = vpack.c.bf16 %v3595, %v3595
  %v3604 = vpack.c.bf16 %v3596, %v3596
  %v3605 = vpack.c.bf16 %v3597, %v3597
  %v3606 = vpack.c.bf16 %v3598, %v3598
  %v3608 = vsel %vm1119, %v2991, 0
  %v3611 = vsel %vm1119, %v3295, 0
  %3613 = vmatprep.subr.bf16.mxu0 0
  %3614 = vmatpush1.bf16.xpose.msra.mxu0 %v3611
  %3615 = vmatprep.subr.bf16.mxu0 0
  %3616 = vmatpush1.bf16.xpose.msra.mxu0 0
  %3617 = vmatprep.subr.bf16.mxu0 0
  %3618 = vmatpush1.bf16.xpose.msra.mxu0 0
  %3619 = vmatprep.subr.bf16.mxu0 0
  %3620 = vmatpush1.bf16.xpose.msra.mxu0 0
  %3621 = vmatprep.subr.bf16.mxu0 0
  %3622 = vmatpush1.bf16.xpose.msra.mxu0 0
  %3623 = vmatprep.subr.bf16.mxu0 0
  %3624 = vmatpush1.bf16.xpose.msra.mxu0 0
  %3625 = vmatprep.subr.bf16.mxu0 0
  %3626 = vmatpush1.bf16.xpose.msra.mxu0 0
  %3627 = vmatprep.subr.bf16.mxu0 0
  %3628 = vmatpush1.bf16.xpose.msra.mxu0 0
  %3629 = vmatprep.subr.bf16.mxu0 0
  %3630 = vmatpush1.bf16.xpose.msra.mxu0 0
  %3631 = vmatprep.subr.bf16.mxu0 0
  %3632 = vmatpush1.bf16.xpose.msra.mxu0 0
  %3633 = vmatprep.subr.bf16.mxu0 0
  %3634 = vmatpush1.bf16.xpose.msra.mxu0 0
  %3635 = vmatprep.subr.bf16.mxu0 0
  %3636 = vmatpush1.bf16.xpose.msra.mxu0 0
  %3637 = vmatprep.subr.bf16.mxu0 0
  %3638 = vmatpush1.bf16.xpose.msra.mxu0 0
  %3639 = vmatprep.subr.bf16.mxu0 0
  %3640 = vmatpush1.bf16.xpose.msra.mxu0 0
  %3641 = vmatprep.subr.bf16.mxu0 0
  %3642 = vmatpush1.bf16.xpose.msra.mxu0 0
  %3643 = vmatprep.subr.bf16.mxu0 0
  %3644 = vmatpush1.bf16.xpose.msra.mxu0 0
  %3645 = vmatprep.mubr.bf16.mxu0 0
  %3646 = vmatmul.mubr.bf16.gmra.mrb[0].mxu0 %v3608
  %v3647 = vpop.f32.mrb[0].mxu0
  %v3648 = vadd.f32 0.0, %v3647
  %v3649 = vpop.f32.mrb[0].mxu0
  %v3650 = vpop.f32.mrb[0].mxu0
  %v3651 = vpop.f32.mrb[0].mxu0
  %3652 = vdwg.mxu0
  %v3654 = vsel %vm1119, %v2992, 0
  %v3657 = vsel %vm1119, %v3296, 0
  %3659 = vmatprep.subr.bf16.mxu0 0
  %3660 = vmatpush1.bf16.xpose.msra.mxu0 %v3657
  %3661 = vmatprep.subr.bf16.mxu0 0
  %3662 = vmatpush1.bf16.xpose.msra.mxu0 0
  %3663 = vmatprep.subr.bf16.mxu0 0
  %3664 = vmatpush1.bf16.xpose.msra.mxu0 0
  %3665 = vmatprep.subr.bf16.mxu0 0
  %3666 = vmatpush1.bf16.xpose.msra.mxu0 0
  %3667 = vmatprep.subr.bf16.mxu0 0
  %3668 = vmatpush1.bf16.xpose.msra.mxu0 0
  %3669 = vmatprep.subr.bf16.mxu0 0
  %3670 = vmatpush1.bf16.xpose.msra.mxu0 0
  %3671 = vmatprep.subr.bf16.mxu0 0
  %3672 = vmatpush1.bf16.xpose.msra.mxu0 0
  %3673 = vmatprep.subr.bf16.mxu0 0
  %3674 = vmatpush1.bf16.xpose.msra.mxu0 0
  %3675 = vmatprep.subr.bf16.mxu0 0
  %3676 = vmatpush1.bf16.xpose.msra.mxu0 0
  %3677 = vmatprep.subr.bf16.mxu0 0
  %3678 = vmatpush1.bf16.xpose.msra.mxu0 0
  %3679 = vmatprep.subr.bf16.mxu0 0
  %3680 = vmatpush1.bf16.xpose.msra.mxu0 0
  %3681 = vmatprep.subr.bf16.mxu0 0
  %3682 = vmatpush1.bf16.xpose.msra.mxu0 0
  %3683 = vmatprep.subr.bf16.mxu0 0
  %3684 = vmatpush1.bf16.xpose.msra.mxu0 0
  %3685 = vmatprep.subr.bf16.mxu0 0
  %3686 = vmatpush1.bf16.xpose.msra.mxu0 0
  %3687 = vmatprep.subr.bf16.mxu0 0
  %3688 = vmatpush1.bf16.xpose.msra.mxu0 0
  %3689 = vmatprep.subr.bf16.mxu0 0
  %3690 = vmatpush1.bf16.xpose.msra.mxu0 0
  %3691 = vmatprep.mubr.bf16.mxu0 0
  %3692 = vmatmul.mubr.bf16.gmra.mrb[0].mxu0 %v3654
  %v3693 = vpop.f32.mrb[0].mxu0
  %v3694 = vadd.f32 0.0, %v3693
  %v3695 = vpop.f32.mrb[0].mxu0
  %v3696 = vpop.f32.mrb[0].mxu0
  %v3697 = vpop.f32.mrb[0].mxu0
  %3698 = vdwg.mxu0
  %v3700 = vsel %vm1119, %v2993, 0
  %v3703 = vsel %vm1119, %v3297, 0
  %3705 = vmatprep.subr.bf16.mxu0 0
  %3706 = vmatpush1.bf16.xpose.msra.mxu0 %v3703
  %3707 = vmatprep.subr.bf16.mxu0 0
  %3708 = vmatpush1.bf16.xpose.msra.mxu0 0
  %3709 = vmatprep.subr.bf16.mxu0 0
  %3710 = vmatpush1.bf16.xpose.msra.mxu0 0
  %3711 = vmatprep.subr.bf16.mxu0 0
  %3712 = vmatpush1.bf16.xpose.msra.mxu0 0
  %3713 = vmatprep.subr.bf16.mxu0 0
  %3714 = vmatpush1.bf16.xpose.msra.mxu0 0
  %3715 = vmatprep.subr.bf16.mxu0 0
  %3716 = vmatpush1.bf16.xpose.msra.mxu0 0
  %3717 = vmatprep.subr.bf16.mxu0 0
  %3718 = vmatpush1.bf16.xpose.msra.mxu0 0
  %3719 = vmatprep.subr.bf16.mxu0 0
  %3720 = vmatpush1.bf16.xpose.msra.mxu0 0
  %3721 = vmatprep.subr.bf16.mxu0 0
  %3722 = vmatpush1.bf16.xpose.msra.mxu0 0
  %3723 = vmatprep.subr.bf16.mxu0 0
  %3724 = vmatpush1.bf16.xpose.msra.mxu0 0
  %3725 = vmatprep.subr.bf16.mxu0 0
  %3726 = vmatpush1.bf16.xpose.msra.mxu0 0
  %3727 = vmatprep.subr.bf16.mxu0 0
  %3728 = vmatpush1.bf16.xpose.msra.mxu0 0
  %3729 = vmatprep.subr.bf16.mxu0 0
  %3730 = vmatpush1.bf16.xpose.msra.mxu0 0
  %3731 = vmatprep.subr.bf16.mxu0 0
  %3732 = vmatpush1.bf16.xpose.msra.mxu0 0
  %3733 = vmatprep.subr.bf16.mxu0 0
  %3734 = vmatpush1.bf16.xpose.msra.mxu0 0
  %3735 = vmatprep.subr.bf16.mxu0 0
  %3736 = vmatpush1.bf16.xpose.msra.mxu0 0
  %3737 = vmatprep.mubr.bf16.mxu0 0
  %3738 = vmatmul.mubr.bf16.gmra.mrb[0].mxu0 %v3700
  %v3739 = vpop.f32.mrb[0].mxu0
  %v3740 = vadd.f32 0.0, %v3739
  %v3741 = vpop.f32.mrb[0].mxu0
  %v3742 = vpop.f32.mrb[0].mxu0
  %v3743 = vpop.f32.mrb[0].mxu0
  %3744 = vdwg.mxu0
  %v3746 = vsel %vm1119, %v2994, 0
  %v3749 = vsel %vm1119, %v3298, 0
  %3751 = vmatprep.subr.bf16.mxu0 0
  %3752 = vmatpush1.bf16.xpose.msra.mxu0 %v3749
  %3753 = vmatprep.subr.bf16.mxu0 0
  %3754 = vmatpush1.bf16.xpose.msra.mxu0 0
  %3755 = vmatprep.subr.bf16.mxu0 0
  %3756 = vmatpush1.bf16.xpose.msra.mxu0 0
  %3757 = vmatprep.subr.bf16.mxu0 0
  %3758 = vmatpush1.bf16.xpose.msra.mxu0 0
  %3759 = vmatprep.subr.bf16.mxu0 0
  %3760 = vmatpush1.bf16.xpose.msra.mxu0 0
  %3761 = vmatprep.subr.bf16.mxu0 0
  %3762 = vmatpush1.bf16.xpose.msra.mxu0 0
  %3763 = vmatprep.subr.bf16.mxu0 0
  %3764 = vmatpush1.bf16.xpose.msra.mxu0 0
  %3765 = vmatprep.subr.bf16.mxu0 0
  %3766 = vmatpush1.bf16.xpose.msra.mxu0 0
  %3767 = vmatprep.subr.bf16.mxu0 0
  %3768 = vmatpush1.bf16.xpose.msra.mxu0 0
  %3769 = vmatprep.subr.bf16.mxu0 0
  %3770 = vmatpush1.bf16.xpose.msra.mxu0 0
  %3771 = vmatprep.subr.bf16.mxu0 0
  %3772 = vmatpush1.bf16.xpose.msra.mxu0 0
  %3773 = vmatprep.subr.bf16.mxu0 0
  %3774 = vmatpush1.bf16.xpose.msra.mxu0 0
  %3775 = vmatprep.subr.bf16.mxu0 0
  %3776 = vmatpush1.bf16.xpose.msra.mxu0 0
  %3777 = vmatprep.subr.bf16.mxu0 0
  %3778 = vmatpush1.bf16.xpose.msra.mxu0 0
  %3779 = vmatprep.subr.bf16.mxu0 0
  %3780 = vmatpush1.bf16.xpose.msra.mxu0 0
  %3781 = vmatprep.subr.bf16.mxu0 0
  %3782 = vmatpush1.bf16.xpose.msra.mxu0 0
  %3783 = vmatprep.mubr.bf16.mxu0 0
  %3784 = vmatmul.mubr.bf16.gmra.mrb[0].mxu0 %v3746
  %v3785 = vpop.f32.mrb[0].mxu0
  %v3786 = vadd.f32 0.0, %v3785
  %v3787 = vpop.f32.mrb[0].mxu0
  %v3788 = vpop.f32.mrb[0].mxu0
  %v3789 = vpop.f32.mrb[0].mxu0
  %3790 = vdwg.mxu0
  %v3792 = vsel %vm1119, %v2995, 0
  %v3795 = vsel %vm1119, %v3299, 0
  %3797 = vmatprep.subr.bf16.mxu0 0
  %3798 = vmatpush1.bf16.xpose.msra.mxu0 %v3795
  %3799 = vmatprep.subr.bf16.mxu0 0
  %3800 = vmatpush1.bf16.xpose.msra.mxu0 0
  %3801 = vmatprep.subr.bf16.mxu0 0
  %3802 = vmatpush1.bf16.xpose.msra.mxu0 0
  %3803 = vmatprep.subr.bf16.mxu0 0
  %3804 = vmatpush1.bf16.xpose.msra.mxu0 0
  %3805 = vmatprep.subr.bf16.mxu0 0
  %3806 = vmatpush1.bf16.xpose.msra.mxu0 0
  %3807 = vmatprep.subr.bf16.mxu0 0
  %3808 = vmatpush1.bf16.xpose.msra.mxu0 0
  %3809 = vmatprep.subr.bf16.mxu0 0
  %3810 = vmatpush1.bf16.xpose.msra.mxu0 0
  %3811 = vmatprep.subr.bf16.mxu0 0
  %3812 = vmatpush1.bf16.xpose.msra.mxu0 0
  %3813 = vmatprep.subr.bf16.mxu0 0
  %3814 = vmatpush1.bf16.xpose.msra.mxu0 0
  %3815 = vmatprep.subr.bf16.mxu0 0
  %3816 = vmatpush1.bf16.xpose.msra.mxu0 0
  %3817 = vmatprep.subr.bf16.mxu0 0
  %3818 = vmatpush1.bf16.xpose.msra.mxu0 0
  %3819 = vmatprep.subr.bf16.mxu0 0
  %3820 = vmatpush1.bf16.xpose.msra.mxu0 0
  %3821 = vmatprep.subr.bf16.mxu0 0
  %3822 = vmatpush1.bf16.xpose.msra.mxu0 0
  %3823 = vmatprep.subr.bf16.mxu0 0
  %3824 = vmatpush1.bf16.xpose.msra.mxu0 0
  %3825 = vmatprep.subr.bf16.mxu0 0
  %3826 = vmatpush1.bf16.xpose.msra.mxu0 0
  %3827 = vmatprep.subr.bf16.mxu0 0
  %3828 = vmatpush1.bf16.xpose.msra.mxu0 0
  %3829 = vmatprep.mubr.bf16.mxu0 0
  %3830 = vmatmul.mubr.bf16.gmra.mrb[0].mxu0 %v3792
  %v3831 = vpop.f32.mrb[0].mxu0
  %v3832 = vadd.f32 0.0, %v3831
  %v3833 = vpop.f32.mrb[0].mxu0
  %v3834 = vpop.f32.mrb[0].mxu0
  %v3835 = vpop.f32.mrb[0].mxu0
  %3836 = vdwg.mxu0
  %v3838 = vsel %vm1119, %v2996, 0
  %v3841 = vsel %vm1119, %v3300, 0
  %3843 = vmatprep.subr.bf16.mxu0 0
  %3844 = vmatpush1.bf16.xpose.msra.mxu0 %v3841
  %3845 = vmatprep.subr.bf16.mxu0 0
  %3846 = vmatpush1.bf16.xpose.msra.mxu0 0
  %3847 = vmatprep.subr.bf16.mxu0 0
  %3848 = vmatpush1.bf16.xpose.msra.mxu0 0
  %3849 = vmatprep.subr.bf16.mxu0 0
  %3850 = vmatpush1.bf16.xpose.msra.mxu0 0
  %3851 = vmatprep.subr.bf16.mxu0 0
  %3852 = vmatpush1.bf16.xpose.msra.mxu0 0
  %3853 = vmatprep.subr.bf16.mxu0 0
  %3854 = vmatpush1.bf16.xpose.msra.mxu0 0
  %3855 = vmatprep.subr.bf16.mxu0 0
  %3856 = vmatpush1.bf16.xpose.msra.mxu0 0
  %3857 = vmatprep.subr.bf16.mxu0 0
  %3858 = vmatpush1.bf16.xpose.msra.mxu0 0
  %3859 = vmatprep.subr.bf16.mxu0 0
  %3860 = vmatpush1.bf16.xpose.msra.mxu0 0
  %3861 = vmatprep.subr.bf16.mxu0 0
  %3862 = vmatpush1.bf16.xpose.msra.mxu0 0
  %3863 = vmatprep.subr.bf16.mxu0 0
  %3864 = vmatpush1.bf16.xpose.msra.mxu0 0
  %3865 = vmatprep.subr.bf16.mxu0 0
  %3866 = vmatpush1.bf16.xpose.msra.mxu0 0
  %3867 = vmatprep.subr.bf16.mxu0 0
  %3868 = vmatpush1.bf16.xpose.msra.mxu0 0
  %3869 = vmatprep.subr.bf16.mxu0 0
  %3870 = vmatpush1.bf16.xpose.msra.mxu0 0
  %3871 = vmatprep.subr.bf16.mxu0 0
  %3872 = vmatpush1.bf16.xpose.msra.mxu0 0
  %3873 = vmatprep.subr.bf16.mxu0 0
  %3874 = vmatpush1.bf16.xpose.msra.mxu0 0
  %3875 = vmatprep.mubr.bf16.mxu0 0
  %3876 = vmatmul.mubr.bf16.gmra.mrb[0].mxu0 %v3838
  %v3877 = vpop.f32.mrb[0].mxu0
  %v3878 = vadd.f32 0.0, %v3877
  %v3879 = vpop.f32.mrb[0].mxu0
  %v3880 = vpop.f32.mrb[0].mxu0
  %v3881 = vpop.f32.mrb[0].mxu0
  %3882 = vdwg.mxu0
  %v3884 = vsel %vm1119, %v2997, 0
  %v3887 = vsel %vm1119, %v3301, 0
  %3889 = vmatprep.subr.bf16.mxu0 0
  %3890 = vmatpush1.bf16.xpose.msra.mxu0 %v3887
  %3891 = vmatprep.subr.bf16.mxu0 0
  %3892 = vmatpush1.bf16.xpose.msra.mxu0 0
  %3893 = vmatprep.subr.bf16.mxu0 0
  %3894 = vmatpush1.bf16.xpose.msra.mxu0 0
  %3895 = vmatprep.subr.bf16.mxu0 0
  %3896 = vmatpush1.bf16.xpose.msra.mxu0 0
  %3897 = vmatprep.subr.bf16.mxu0 0
  %3898 = vmatpush1.bf16.xpose.msra.mxu0 0
  %3899 = vmatprep.subr.bf16.mxu0 0
  %3900 = vmatpush1.bf16.xpose.msra.mxu0 0
  %3901 = vmatprep.subr.bf16.mxu0 0
  %3902 = vmatpush1.bf16.xpose.msra.mxu0 0
  %3903 = vmatprep.subr.bf16.mxu0 0
  %3904 = vmatpush1.bf16.xpose.msra.mxu0 0
  %3905 = vmatprep.subr.bf16.mxu0 0
  %3906 = vmatpush1.bf16.xpose.msra.mxu0 0
  %3907 = vmatprep.subr.bf16.mxu0 0
  %3908 = vmatpush1.bf16.xpose.msra.mxu0 0
  %3909 = vmatprep.subr.bf16.mxu0 0
  %3910 = vmatpush1.bf16.xpose.msra.mxu0 0
  %3911 = vmatprep.subr.bf16.mxu0 0
  %3912 = vmatpush1.bf16.xpose.msra.mxu0 0
  %3913 = vmatprep.subr.bf16.mxu0 0
  %3914 = vmatpush1.bf16.xpose.msra.mxu0 0
  %3915 = vmatprep.subr.bf16.mxu0 0
  %3916 = vmatpush1.bf16.xpose.msra.mxu0 0
  %3917 = vmatprep.subr.bf16.mxu0 0
  %3918 = vmatpush1.bf16.xpose.msra.mxu0 0
  %3919 = vmatprep.subr.bf16.mxu0 0
  %3920 = vmatpush1.bf16.xpose.msra.mxu0 0
  %3921 = vmatprep.mubr.bf16.mxu0 0
  %3922 = vmatmul.mubr.bf16.gmra.mrb[0].mxu0 %v3884
  %v3923 = vpop.f32.mrb[0].mxu0
  %v3924 = vadd.f32 0.0, %v3923
  %v3925 = vpop.f32.mrb[0].mxu0
  %v3926 = vpop.f32.mrb[0].mxu0
  %v3927 = vpop.f32.mrb[0].mxu0
  %3928 = vdwg.mxu0
  %v3930 = vsel %vm1119, %v2998, 0
  %v3933 = vsel %vm1119, %v3302, 0
  %3935 = vmatprep.subr.bf16.mxu0 0
  %3936 = vmatpush1.bf16.xpose.msra.mxu0 %v3933
  %3937 = vmatprep.subr.bf16.mxu0 0
  %3938 = vmatpush1.bf16.xpose.msra.mxu0 0
  %3939 = vmatprep.subr.bf16.mxu0 0
  %3940 = vmatpush1.bf16.xpose.msra.mxu0 0
  %3941 = vmatprep.subr.bf16.mxu0 0
  %3942 = vmatpush1.bf16.xpose.msra.mxu0 0
  %3943 = vmatprep.subr.bf16.mxu0 0
  %3944 = vmatpush1.bf16.xpose.msra.mxu0 0
  %3945 = vmatprep.subr.bf16.mxu0 0
  %3946 = vmatpush1.bf16.xpose.msra.mxu0 0
  %3947 = vmatprep.subr.bf16.mxu0 0
  %3948 = vmatpush1.bf16.xpose.msra.mxu0 0
  %3949 = vmatprep.subr.bf16.mxu0 0
  %3950 = vmatpush1.bf16.xpose.msra.mxu0 0
  %3951 = vmatprep.subr.bf16.mxu0 0
  %3952 = vmatpush1.bf16.xpose.msra.mxu0 0
  %3953 = vmatprep.subr.bf16.mxu0 0
  %3954 = vmatpush1.bf16.xpose.msra.mxu0 0
  %3955 = vmatprep.subr.bf16.mxu0 0
  %3956 = vmatpush1.bf16.xpose.msra.mxu0 0
  %3957 = vmatprep.subr.bf16.mxu0 0
  %3958 = vmatpush1.bf16.xpose.msra.mxu0 0
  %3959 = vmatprep.subr.bf16.mxu0 0
  %3960 = vmatpush1.bf16.xpose.msra.mxu0 0
  %3961 = vmatprep.subr.bf16.mxu0 0
  %3962 = vmatpush1.bf16.xpose.msra.mxu0 0
  %3963 = vmatprep.subr.bf16.mxu0 0
  %3964 = vmatpush1.bf16.xpose.msra.mxu0 0
  %3965 = vmatprep.subr.bf16.mxu0 0
  %3966 = vmatpush1.bf16.xpose.msra.mxu0 0
  %3967 = vmatprep.mubr.bf16.mxu0 0
  %3968 = vmatmul.mubr.bf16.gmra.mrb[0].mxu0 %v3930
  %v3969 = vpop.f32.mrb[0].mxu0
  %v3970 = vadd.f32 0.0, %v3969
  %v3971 = vpop.f32.mrb[0].mxu0
  %v3972 = vpop.f32.mrb[0].mxu0
  %v3973 = vpop.f32.mrb[0].mxu0
  %3974 = vdwg.mxu0
  %v3975 = vmul.f32 %v3648, 0.35355338
  %v3976 = vmul.f32 %v3694, 0.35355338
  %v3977 = vmul.f32 %v3740, 0.35355338
  %v3978 = vmul.f32 %v3786, 0.35355338
  %v3979 = vmul.f32 %v3832, 0.35355338
  %v3980 = vmul.f32 %v3878, 0.35355338
  %v3981 = vmul.f32 %v3924, 0.35355338
  %v3982 = vmul.f32 %v3970, 0.35355338
  %v3983 = vadd.f32 %v3975, %v1118
  %v3984 = vadd.f32 %v3976, %v1118
  %v3985 = vadd.f32 %v3977, %v1118
  %v3986 = vadd.f32 %v3978, %v1118
  %v3987 = vadd.f32 %v3979, %v1118
  %v3988 = vadd.f32 %v3980, %v1118
  %v3989 = vadd.f32 %v3981, %v1118
  %v3990 = vadd.f32 %v3982, %v1118
  %v3991 = vsel %vm1119, %v3983, -inf
  %3992 = vmax.xlane.f32.xlu0 %v3991
  %v3993 = vpop.xlane.xlu0 %3992
  %v3994 = vsel %vm1119, %v3984, -inf
  %3995 = vmax.xlane.f32.xlu0 %v3994
  %v3996 = vpop.xlane.xlu0 %3995
  %v3997 = vsel %vm1119, %v3985, -inf
  %3998 = vmax.xlane.f32.xlu0 %v3997
  %v3999 = vpop.xlane.xlu0 %3998
  %v4000 = vsel %vm1119, %v3986, -inf
  %4001 = vmax.xlane.f32.xlu0 %v4000
  %v4002 = vpop.xlane.xlu0 %4001
  %v4003 = vsel %vm1119, %v3987, -inf
  %4004 = vmax.xlane.f32.xlu0 %v4003
  %v4005 = vpop.xlane.xlu0 %4004
  %v4006 = vsel %vm1119, %v3988, -inf
  %4007 = vmax.xlane.f32.xlu0 %v4006
  %v4008 = vpop.xlane.xlu0 %4007
  %v4009 = vsel %vm1119, %v3989, -inf
  %4010 = vmax.xlane.f32.xlu0 %v4009
  %v4011 = vpop.xlane.xlu0 %4010
  %v4012 = vsel %vm1119, %v3990, -inf
  %4013 = vmax.xlane.f32.xlu0 %v4012
  %v4014 = vpop.xlane.xlu0 %4013
  %v4015 = vsub.f32 %v3983, %v3993
  %v4016 = vsub.f32 %v3984, %v3996
  %v4017 = vsub.f32 %v3985, %v3999
  %v4018 = vsub.f32 %v3986, %v4002
  %v4019 = vsub.f32 %v3987, %v4005
  %v4020 = vsub.f32 %v3988, %v4008
  %v4021 = vsub.f32 %v3989, %v4011
  %v4022 = vsub.f32 %v3990, %v4014
  %v4023 = vmul.f32 %v4015, 1.442695
  %v4024 = vpow.pop %v4023
  %v4025 = vmul.f32 %v4016, 1.442695
  %v4026 = vpow.pop %v4025
  %v4027 = vmul.f32 %v4017, 1.442695
  %v4028 = vpow.pop %v4027
  %v4029 = vmul.f32 %v4018, 1.442695
  %v4030 = vpow.pop %v4029
  %v4031 = vmul.f32 %v4019, 1.442695
  %v4032 = vpow.pop %v4031
  %v4033 = vmul.f32 %v4020, 1.442695
  %v4034 = vpow.pop %v4033
  %v4035 = vmul.f32 %v4021, 1.442695
  %v4036 = vpow.pop %v4035
  %v4037 = vmul.f32 %v4022, 1.442695
  %v4038 = vpow.pop %v4037
  %v4039 = vsel %vm1119, %v4024, 0.0
  %4040 = vadd.xlane.f32.xlu0 %v4039
  %v4041 = vpop.xlane.xlu0 %4040
  %v4042 = vsel %vm1119, %v4026, 0.0
  %4043 = vadd.xlane.f32.xlu0 %v4042
  %v4044 = vpop.xlane.xlu0 %4043
  %v4045 = vsel %vm1119, %v4028, 0.0
  %4046 = vadd.xlane.f32.xlu0 %v4045
  %v4047 = vpop.xlane.xlu0 %4046
  %v4048 = vsel %vm1119, %v4030, 0.0
  %4049 = vadd.xlane.f32.xlu0 %v4048
  %v4050 = vpop.xlane.xlu0 %4049
  %v4051 = vsel %vm1119, %v4032, 0.0
  %4052 = vadd.xlane.f32.xlu0 %v4051
  %v4053 = vpop.xlane.xlu0 %4052
  %v4054 = vsel %vm1119, %v4034, 0.0
  %4055 = vadd.xlane.f32.xlu0 %v4054
  %v4056 = vpop.xlane.xlu0 %4055
  %v4057 = vsel %vm1119, %v4036, 0.0
  %4058 = vadd.xlane.f32.xlu0 %v4057
  %v4059 = vpop.xlane.xlu0 %4058
  %v4060 = vsel %vm1119, %v4038, 0.0
  %4061 = vadd.xlane.f32.xlu0 %v4060
  %v4062 = vpop.xlane.xlu0 %4061
  %v4063 = vrcp.pop %v4041
  %v4064 = vrcp.pop %v4044
  %v4065 = vrcp.pop %v4047
  %v4066 = vrcp.pop %v4050
  %v4067 = vrcp.pop %v4053
  %v4068 = vrcp.pop %v4056
  %v4069 = vrcp.pop %v4059
  %v4070 = vrcp.pop %v4062
  %v4071 = vmul.f32 %v4024, %v4063
  %v4072 = vmul.f32 %v4026, %v4064
  %v4073 = vmul.f32 %v4028, %v4065
  %v4074 = vmul.f32 %v4030, %v4066
  %v4075 = vmul.f32 %v4032, %v4067
  %v4076 = vmul.f32 %v4034, %v4068
  %v4077 = vmul.f32 %v4036, %v4069
  %v4078 = vmul.f32 %v4038, %v4070
  %v4079 = vpack.c.bf16 %v4071, %v4071
  %v4080 = vpack.c.bf16 %v4072, %v4072
  %v4081 = vpack.c.bf16 %v4073, %v4073
  %v4082 = vpack.c.bf16 %v4074, %v4074
  %v4083 = vpack.c.bf16 %v4075, %v4075
  %v4084 = vpack.c.bf16 %v4076, %v4076
  %v4085 = vpack.c.bf16 %v4077, %v4077
  %v4086 = vpack.c.bf16 %v4078, %v4078
  %v4088 = vsel %vm1119, %v4079, 0
  %v4091 = vsel %vm1603, %v3599, 0
  %4093 = vmatprep.subr.bf16.mxu0 0
  %4094 = vmatpush1.bf16.msra.mxu0 %v4091
  %4095 = vmatprep.subr.bf16.mxu0 0
  %4096 = vmatpush1.bf16.msra.mxu0 0
  %4097 = vmatprep.subr.bf16.mxu0 0
  %4098 = vmatpush1.bf16.msra.mxu0 0
  %4099 = vmatprep.subr.bf16.mxu0 0
  %4100 = vmatpush1.bf16.msra.mxu0 0
  %4101 = vmatprep.subr.bf16.mxu0 0
  %4102 = vmatpush1.bf16.msra.mxu0 0
  %4103 = vmatprep.subr.bf16.mxu0 0
  %4104 = vmatpush1.bf16.msra.mxu0 0
  %4105 = vmatprep.subr.bf16.mxu0 0
  %4106 = vmatpush1.bf16.msra.mxu0 0
  %4107 = vmatprep.subr.bf16.mxu0 0
  %4108 = vmatpush1.bf16.msra.mxu0 0
  %4109 = vmatprep.subr.bf16.mxu0 0
  %4110 = vmatpush1.bf16.msra.mxu0 0
  %4111 = vmatprep.subr.bf16.mxu0 0
  %4112 = vmatpush1.bf16.msra.mxu0 0
  %4113 = vmatprep.subr.bf16.mxu0 0
  %4114 = vmatpush1.bf16.msra.mxu0 0
  %4115 = vmatprep.subr.bf16.mxu0 0
  %4116 = vmatpush1.bf16.msra.mxu0 0
  %4117 = vmatprep.subr.bf16.mxu0 0
  %4118 = vmatpush1.bf16.msra.mxu0 0
  %4119 = vmatprep.subr.bf16.mxu0 0
  %4120 = vmatpush1.bf16.msra.mxu0 0
  %4121 = vmatprep.subr.bf16.mxu0 0
  %4122 = vmatpush1.bf16.msra.mxu0 0
  %4123 = vmatprep.subr.bf16.mxu0 0
  %4124 = vmatpush1.bf16.msra.mxu0 0
  %4125 = vmatprep.mubr.bf16.mxu0 0
  %4126 = vmatmul.mubr.bf16.gmra.mrb[0].mxu0 %v4088
  %v4127 = vpop.f32.mrb[0].mxu0
  %v4128 = vadd.f32 0.0, %v4127
  %v4129 = vpop.f32.mrb[0].mxu0
  %v4130 = vpop.f32.mrb[0].mxu0
  %v4131 = vpop.f32.mrb[0].mxu0
  %4132 = vdwg.mxu0
  %v4134 = vsel %vm1119, %v4080, 0
  %v4137 = vsel %vm1603, %v3600, 0
  %4139 = vmatprep.subr.bf16.mxu0 0
  %4140 = vmatpush1.bf16.msra.mxu0 %v4137
  %4141 = vmatprep.subr.bf16.mxu0 0
  %4142 = vmatpush1.bf16.msra.mxu0 0
  %4143 = vmatprep.subr.bf16.mxu0 0
  %4144 = vmatpush1.bf16.msra.mxu0 0
  %4145 = vmatprep.subr.bf16.mxu0 0
  %4146 = vmatpush1.bf16.msra.mxu0 0
  %4147 = vmatprep.subr.bf16.mxu0 0
  %4148 = vmatpush1.bf16.msra.mxu0 0
  %4149 = vmatprep.subr.bf16.mxu0 0
  %4150 = vmatpush1.bf16.msra.mxu0 0
  %4151 = vmatprep.subr.bf16.mxu0 0
  %4152 = vmatpush1.bf16.msra.mxu0 0
  %4153 = vmatprep.subr.bf16.mxu0 0
  %4154 = vmatpush1.bf16.msra.mxu0 0
  %4155 = vmatprep.subr.bf16.mxu0 0
  %4156 = vmatpush1.bf16.msra.mxu0 0
  %4157 = vmatprep.subr.bf16.mxu0 0
  %4158 = vmatpush1.bf16.msra.mxu0 0
  %4159 = vmatprep.subr.bf16.mxu0 0
  %4160 = vmatpush1.bf16.msra.mxu0 0
  %4161 = vmatprep.subr.bf16.mxu0 0
  %4162 = vmatpush1.bf16.msra.mxu0 0
  %4163 = vmatprep.subr.bf16.mxu0 0
  %4164 = vmatpush1.bf16.msra.mxu0 0
  %4165 = vmatprep.subr.bf16.mxu0 0
  %4166 = vmatpush1.bf16.msra.mxu0 0
  %4167 = vmatprep.subr.bf16.mxu0 0
  %4168 = vmatpush1.bf16.msra.mxu0 0
  %4169 = vmatprep.subr.bf16.mxu0 0
  %4170 = vmatpush1.bf16.msra.mxu0 0
  %4171 = vmatprep.mubr.bf16.mxu0 0
  %4172 = vmatmul.mubr.bf16.gmra.mrb[0].mxu0 %v4134
  %v4173 = vpop.f32.mrb[0].mxu0
  %v4174 = vadd.f32 0.0, %v4173
  %v4175 = vpop.f32.mrb[0].mxu0
  %v4176 = vpop.f32.mrb[0].mxu0
  %v4177 = vpop.f32.mrb[0].mxu0
  %4178 = vdwg.mxu0
  %v4180 = vsel %vm1119, %v4081, 0
  %v4183 = vsel %vm1603, %v3601, 0
  %4185 = vmatprep.subr.bf16.mxu0 0
  %4186 = vmatpush1.bf16.msra.mxu0 %v4183
  %4187 = vmatprep.subr.bf16.mxu0 0
  %4188 = vmatpush1.bf16.msra.mxu0 0
  %4189 = vmatprep.subr.bf16.mxu0 0
  %4190 = vmatpush1.bf16.msra.mxu0 0
  %4191 = vmatprep.subr.bf16.mxu0 0
  %4192 = vmatpush1.bf16.msra.mxu0 0
  %4193 = vmatprep.subr.bf16.mxu0 0
  %4194 = vmatpush1.bf16.msra.mxu0 0
  %4195 = vmatprep.subr.bf16.mxu0 0
  %4196 = vmatpush1.bf16.msra.mxu0 0
  %4197 = vmatprep.subr.bf16.mxu0 0
  %4198 = vmatpush1.bf16.msra.mxu0 0
  %4199 = vmatprep.subr.bf16.mxu0 0
  %4200 = vmatpush1.bf16.msra.mxu0 0
  %4201 = vmatprep.subr.bf16.mxu0 0
  %4202 = vmatpush1.bf16.msra.mxu0 0
  %4203 = vmatprep.subr.bf16.mxu0 0
  %4204 = vmatpush1.bf16.msra.mxu0 0
  %4205 = vmatprep.subr.bf16.mxu0 0
  %4206 = vmatpush1.bf16.msra.mxu0 0
  %4207 = vmatprep.subr.bf16.mxu0 0
  %4208 = vmatpush1.bf16.msra.mxu0 0
  %4209 = vmatprep.subr.bf16.mxu0 0
  %4210 = vmatpush1.bf16.msra.mxu0 0
  %4211 = vmatprep.subr.bf16.mxu0 0
  %4212 = vmatpush1.bf16.msra.mxu0 0
  %4213 = vmatprep.subr.bf16.mxu0 0
  %4214 = vmatpush1.bf16.msra.mxu0 0
  %4215 = vmatprep.subr.bf16.mxu0 0
  %4216 = vmatpush1.bf16.msra.mxu0 0
  %4217 = vmatprep.mubr.bf16.mxu0 0
  %4218 = vmatmul.mubr.bf16.gmra.mrb[0].mxu0 %v4180
  %v4219 = vpop.f32.mrb[0].mxu0
  %v4220 = vadd.f32 0.0, %v4219
  %v4221 = vpop.f32.mrb[0].mxu0
  %v4222 = vpop.f32.mrb[0].mxu0
  %v4223 = vpop.f32.mrb[0].mxu0
  %4224 = vdwg.mxu0
  %v4226 = vsel %vm1119, %v4082, 0
  %v4229 = vsel %vm1603, %v3602, 0
  %4231 = vmatprep.subr.bf16.mxu0 0
  %4232 = vmatpush1.bf16.msra.mxu0 %v4229
  %4233 = vmatprep.subr.bf16.mxu0 0
  %4234 = vmatpush1.bf16.msra.mxu0 0
  %4235 = vmatprep.subr.bf16.mxu0 0
  %4236 = vmatpush1.bf16.msra.mxu0 0
  %4237 = vmatprep.subr.bf16.mxu0 0
  %4238 = vmatpush1.bf16.msra.mxu0 0
  %4239 = vmatprep.subr.bf16.mxu0 0
  %4240 = vmatpush1.bf16.msra.mxu0 0
  %4241 = vmatprep.subr.bf16.mxu0 0
  %4242 = vmatpush1.bf16.msra.mxu0 0
  %4243 = vmatprep.subr.bf16.mxu0 0
  %4244 = vmatpush1.bf16.msra.mxu0 0
  %4245 = vmatprep.subr.bf16.mxu0 0
  %4246 = vmatpush1.bf16.msra.mxu0 0
  %4247 = vmatprep.subr.bf16.mxu0 0
  %4248 = vmatpush1.bf16.msra.mxu0 0
  %4249 = vmatprep.subr.bf16.mxu0 0
  %4250 = vmatpush1.bf16.msra.mxu0 0
  %4251 = vmatprep.subr.bf16.mxu0 0
  %4252 = vmatpush1.bf16.msra.mxu0 0
  %4253 = vmatprep.subr.bf16.mxu0 0
  %4254 = vmatpush1.bf16.msra.mxu0 0
  %4255 = vmatprep.subr.bf16.mxu0 0
  %4256 = vmatpush1.bf16.msra.mxu0 0
  %4257 = vmatprep.subr.bf16.mxu0 0
  %4258 = vmatpush1.bf16.msra.mxu0 0
  %4259 = vmatprep.subr.bf16.mxu0 0
  %4260 = vmatpush1.bf16.msra.mxu0 0
  %4261 = vmatprep.subr.bf16.mxu0 0
  %4262 = vmatpush1.bf16.msra.mxu0 0
  %4263 = vmatprep.mubr.bf16.mxu0 0
  %4264 = vmatmul.mubr.bf16.gmra.mrb[0].mxu0 %v4226
  %v4265 = vpop.f32.mrb[0].mxu0
  %v4266 = vadd.f32 0.0, %v4265
  %v4267 = vpop.f32.mrb[0].mxu0
  %v4268 = vpop.f32.mrb[0].mxu0
  %v4269 = vpop.f32.mrb[0].mxu0
  %4270 = vdwg.mxu0
  %v4272 = vsel %vm1119, %v4083, 0
  %v4275 = vsel %vm1603, %v3603, 0
  %4277 = vmatprep.subr.bf16.mxu0 0
  %4278 = vmatpush1.bf16.msra.mxu0 %v4275
  %4279 = vmatprep.subr.bf16.mxu0 0
  %4280 = vmatpush1.bf16.msra.mxu0 0
  %4281 = vmatprep.subr.bf16.mxu0 0
  %4282 = vmatpush1.bf16.msra.mxu0 0
  %4283 = vmatprep.subr.bf16.mxu0 0
  %4284 = vmatpush1.bf16.msra.mxu0 0
  %4285 = vmatprep.subr.bf16.mxu0 0
  %4286 = vmatpush1.bf16.msra.mxu0 0
  %4287 = vmatprep.subr.bf16.mxu0 0
  %4288 = vmatpush1.bf16.msra.mxu0 0
  %4289 = vmatprep.subr.bf16.mxu0 0
  %4290 = vmatpush1.bf16.msra.mxu0 0
  %4291 = vmatprep.subr.bf16.mxu0 0
  %4292 = vmatpush1.bf16.msra.mxu0 0
  %4293 = vmatprep.subr.bf16.mxu0 0
  %4294 = vmatpush1.bf16.msra.mxu0 0
  %4295 = vmatprep.subr.bf16.mxu0 0
  %4296 = vmatpush1.bf16.msra.mxu0 0
  %4297 = vmatprep.subr.bf16.mxu0 0
  %4298 = vmatpush1.bf16.msra.mxu0 0
  %4299 = vmatprep.subr.bf16.mxu0 0
  %4300 = vmatpush1.bf16.msra.mxu0 0
  %4301 = vmatprep.subr.bf16.mxu0 0
  %4302 = vmatpush1.bf16.msra.mxu0 0
  %4303 = vmatprep.subr.bf16.mxu0 0
  %4304 = vmatpush1.bf16.msra.mxu0 0
  %4305 = vmatprep.subr.bf16.mxu0 0
  %4306 = vmatpush1.bf16.msra.mxu0 0
  %4307 = vmatprep.subr.bf16.mxu0 0
  %4308 = vmatpush1.bf16.msra.mxu0 0
  %4309 = vmatprep.mubr.bf16.mxu0 0
  %4310 = vmatmul.mubr.bf16.gmra.mrb[0].mxu0 %v4272
  %v4311 = vpop.f32.mrb[0].mxu0
  %v4312 = vadd.f32 0.0, %v4311
  %v4313 = vpop.f32.mrb[0].mxu0
  %v4314 = vpop.f32.mrb[0].mxu0
  %v4315 = vpop.f32.mrb[0].mxu0
  %4316 = vdwg.mxu0
  %v4318 = vsel %vm1119, %v4084, 0
  %v4321 = vsel %vm1603, %v3604, 0
  %4323 = vmatprep.subr.bf16.mxu0 0
  %4324 = vmatpush1.bf16.msra.mxu0 %v4321
  %4325 = vmatprep.subr.bf16.mxu0 0
  %4326 = vmatpush1.bf16.msra.mxu0 0
  %4327 = vmatprep.subr.bf16.mxu0 0
  %4328 = vmatpush1.bf16.msra.mxu0 0
  %4329 = vmatprep.subr.bf16.mxu0 0
  %4330 = vmatpush1.bf16.msra.mxu0 0
  %4331 = vmatprep.subr.bf16.mxu0 0
  %4332 = vmatpush1.bf16.msra.mxu0 0
  %4333 = vmatprep.subr.bf16.mxu0 0
  %4334 = vmatpush1.bf16.msra.mxu0 0
  %4335 = vmatprep.subr.bf16.mxu0 0
  %4336 = vmatpush1.bf16.msra.mxu0 0
  %4337 = vmatprep.subr.bf16.mxu0 0
  %4338 = vmatpush1.bf16.msra.mxu0 0
  %4339 = vmatprep.subr.bf16.mxu0 0
  %4340 = vmatpush1.bf16.msra.mxu0 0
  %4341 = vmatprep.subr.bf16.mxu0 0
  %4342 = vmatpush1.bf16.msra.mxu0 0
  %4343 = vmatprep.subr.bf16.mxu0 0
  %4344 = vmatpush1.bf16.msra.mxu0 0
  %4345 = vmatprep.subr.bf16.mxu0 0
  %4346 = vmatpush1.bf16.msra.mxu0 0
  %4347 = vmatprep.subr.bf16.mxu0 0
  %4348 = vmatpush1.bf16.msra.mxu0 0
  %4349 = vmatprep.subr.bf16.mxu0 0
  %4350 = vmatpush1.bf16.msra.mxu0 0
  %4351 = vmatprep.subr.bf16.mxu0 0
  %4352 = vmatpush1.bf16.msra.mxu0 0
  %4353 = vmatprep.subr.bf16.mxu0 0
  %4354 = vmatpush1.bf16.msra.mxu0 0
  %4355 = vmatprep.mubr.bf16.mxu0 0
  %4356 = vmatmul.mubr.bf16.gmra.mrb[0].mxu0 %v4318
  %v4357 = vpop.f32.mrb[0].mxu0
  %v4358 = vadd.f32 0.0, %v4357
  %v4359 = vpop.f32.mrb[0].mxu0
  %v4360 = vpop.f32.mrb[0].mxu0
  %v4361 = vpop.f32.mrb[0].mxu0
  %4362 = vdwg.mxu0
  %v4364 = vsel %vm1119, %v4085, 0
  %v4367 = vsel %vm1603, %v3605, 0
  %4369 = vmatprep.subr.bf16.mxu0 0
  %4370 = vmatpush1.bf16.msra.mxu0 %v4367
  %4371 = vmatprep.subr.bf16.mxu0 0
  %4372 = vmatpush1.bf16.msra.mxu0 0
  %4373 = vmatprep.subr.bf16.mxu0 0
  %4374 = vmatpush1.bf16.msra.mxu0 0
  %4375 = vmatprep.subr.bf16.mxu0 0
  %4376 = vmatpush1.bf16.msra.mxu0 0
  %4377 = vmatprep.subr.bf16.mxu0 0
  %4378 = vmatpush1.bf16.msra.mxu0 0
  %4379 = vmatprep.subr.bf16.mxu0 0
  %4380 = vmatpush1.bf16.msra.mxu0 0
  %4381 = vmatprep.subr.bf16.mxu0 0
  %4382 = vmatpush1.bf16.msra.mxu0 0
  %4383 = vmatprep.subr.bf16.mxu0 0
  %4384 = vmatpush1.bf16.msra.mxu0 0
  %4385 = vmatprep.subr.bf16.mxu0 0
  %4386 = vmatpush1.bf16.msra.mxu0 0
  %4387 = vmatprep.subr.bf16.mxu0 0
  %4388 = vmatpush1.bf16.msra.mxu0 0
  %4389 = vmatprep.subr.bf16.mxu0 0
  %4390 = vmatpush1.bf16.msra.mxu0 0
  %4391 = vmatprep.subr.bf16.mxu0 0
  %4392 = vmatpush1.bf16.msra.mxu0 0
  %4393 = vmatprep.subr.bf16.mxu0 0
  %4394 = vmatpush1.bf16.msra.mxu0 0
  %4395 = vmatprep.subr.bf16.mxu0 0
  %4396 = vmatpush1.bf16.msra.mxu0 0
  %4397 = vmatprep.subr.bf16.mxu0 0
  %4398 = vmatpush1.bf16.msra.mxu0 0
  %4399 = vmatprep.subr.bf16.mxu0 0
  %4400 = vmatpush1.bf16.msra.mxu0 0
  %4401 = vmatprep.mubr.bf16.mxu0 0
  %4402 = vmatmul.mubr.bf16.gmra.mrb[0].mxu0 %v4364
  %v4403 = vpop.f32.mrb[0].mxu0
  %v4404 = vadd.f32 0.0, %v4403
  %v4405 = vpop.f32.mrb[0].mxu0
  %v4406 = vpop.f32.mrb[0].mxu0
  %v4407 = vpop.f32.mrb[0].mxu0
  %4408 = vdwg.mxu0
  %v4410 = vsel %vm1119, %v4086, 0
  %v4413 = vsel %vm1603, %v3606, 0
  %4415 = vmatprep.subr.bf16.mxu0 0
  %4416 = vmatpush1.bf16.msra.mxu0 %v4413
  %4417 = vmatprep.subr.bf16.mxu0 0
  %4418 = vmatpush1.bf16.msra.mxu0 0
  %4419 = vmatprep.subr.bf16.mxu0 0
  %4420 = vmatpush1.bf16.msra.mxu0 0
  %4421 = vmatprep.subr.bf16.mxu0 0
  %4422 = vmatpush1.bf16.msra.mxu0 0
  %4423 = vmatprep.subr.bf16.mxu0 0
  %4424 = vmatpush1.bf16.msra.mxu0 0
  %4425 = vmatprep.subr.bf16.mxu0 0
  %4426 = vmatpush1.bf16.msra.mxu0 0
  %4427 = vmatprep.subr.bf16.mxu0 0
  %4428 = vmatpush1.bf16.msra.mxu0 0
  %4429 = vmatprep.subr.bf16.mxu0 0
  %4430 = vmatpush1.bf16.msra.mxu0 0
  %4431 = vmatprep.subr.bf16.mxu0 0
  %4432 = vmatpush1.bf16.msra.mxu0 0
  %4433 = vmatprep.subr.bf16.mxu0 0
  %4434 = vmatpush1.bf16.msra.mxu0 0
  %4435 = vmatprep.subr.bf16.mxu0 0
  %4436 = vmatpush1.bf16.msra.mxu0 0
  %4437 = vmatprep.subr.bf16.mxu0 0
  %4438 = vmatpush1.bf16.msra.mxu0 0
  %4439 = vmatprep.subr.bf16.mxu0 0
  %4440 = vmatpush1.bf16.msra.mxu0 0
  %4441 = vmatprep.subr.bf16.mxu0 0
  %4442 = vmatpush1.bf16.msra.mxu0 0
  %4443 = vmatprep.subr.bf16.mxu0 0
  %4444 = vmatpush1.bf16.msra.mxu0 0
  %4445 = vmatprep.subr.bf16.mxu0 0
  %4446 = vmatpush1.bf16.msra.mxu0 0
  %4447 = vmatprep.mubr.bf16.mxu0 0
  %4448 = vmatmul.mubr.bf16.gmra.mrb[0].mxu0 %v4410
  %v4449 = vpop.f32.mrb[0].mxu0
  %v4450 = vadd.f32 0.0, %v4449
  %v4451 = vpop.f32.mrb[0].mxu0
  %v4452 = vpop.f32.mrb[0].mxu0
  %v4453 = vpop.f32.mrb[0].mxu0
  %4454 = vdwg.mxu0
  %v4455 = vcombine.low %v4128, %v4220
  %v4456 = vcombine.high %v4128, %v4220
  %v4458 = vunpack.c.l.s4 1983009808
  %v4459 = vunpack.c.0.s8 %v4458
  %v4460 = vlaneseq
  %v4461 = vshrl.u32 %v4460, 7
  %v4462 = vsub.s32 %v4459, %v4461
  %v4463 = vrot.slane %v4455, %v4462
  %v4465 = vunpack.c.l.s4 1983009808
  %v4466 = vunpack.c.0.s8 %v4465
  %v4467 = vlaneseq
  %v4468 = vshrl.u32 %v4467, 7
  %v4469 = vsub.s32 %v4466, %v4468
  %v4470 = vrot.slane %v4456, %v4469
  %v4471 = vcombine.low %v4174, %v4266
  %v4472 = vcombine.high %v4174, %v4266
  %v4474 = vunpack.c.l.s4 1983009808
  %v4475 = vunpack.c.0.s8 %v4474
  %v4476 = vlaneseq
  %v4477 = vshrl.u32 %v4476, 7
  %v4478 = vsub.s32 %v4475, %v4477
  %v4479 = vrot.slane %v4471, %v4478
  %v4481 = vunpack.c.l.s4 1983009808
  %v4482 = vunpack.c.0.s8 %v4481
  %v4483 = vlaneseq
  %v4484 = vshrl.u32 %v4483, 7
  %v4485 = vsub.s32 %v4482, %v4484
  %v4486 = vrot.slane %v4472, %v4485
  %v4487 = vcombine.low %v4463, %v4479
  %v4488 = vcombine.high %v4463, %v4479
  %v4490 = vunpack.c.l.s4 1934713408
  %v4491 = vunpack.c.0.s8 %v4490
  %v4492 = vlaneseq
  %v4493 = vshrl.u32 %v4492, 7
  %v4494 = vsub.s32 %v4491, %v4493
  %v4495 = vrot.slane %v4487, %v4494
  %v4497 = vunpack.c.l.s4 1934713408
  %v4498 = vunpack.c.0.s8 %v4497
  %v4499 = vlaneseq
  %v4500 = vshrl.u32 %v4499, 7
  %v4501 = vsub.s32 %v4498, %v4500
  %v4502 = vrot.slane %v4488, %v4501
  %v4503 = vcombine.low %v4470, %v4486
  %v4504 = vcombine.high %v4470, %v4486
  %v4506 = vunpack.c.l.s4 1934713408
  %v4507 = vunpack.c.0.s8 %v4506
  %v4508 = vlaneseq
  %v4509 = vshrl.u32 %v4508, 7
  %v4510 = vsub.s32 %v4507, %v4509
  %v4511 = vrot.slane %v4503, %v4510
  %v4513 = vunpack.c.l.s4 1934713408
  %v4514 = vunpack.c.0.s8 %v4513
  %v4515 = vlaneseq
  %v4516 = vshrl.u32 %v4515, 7
  %v4517 = vsub.s32 %v4514, %v4516
  %v4518 = vrot.slane %v4504, %v4517
  %v4519 = vcombine.high %v4495, 0.0
  %v4520 = vcombine.high %v4502, 0.0
  %v4521 = vcombine.high %v4511, 0.0
  %v4522 = vcombine.high %v4518, 0.0
  %v4523 = vcombine.low %v4312, %v4404
  %v4524 = vcombine.high %v4312, %v4404
  %v4526 = vunpack.c.l.s4 1983009808
  %v4527 = vunpack.c.0.s8 %v4526
  %v4528 = vlaneseq
  %v4529 = vshrl.u32 %v4528, 7
  %v4530 = vsub.s32 %v4527, %v4529
  %v4531 = vrot.slane %v4523, %v4530
  %v4533 = vunpack.c.l.s4 1983009808
  %v4534 = vunpack.c.0.s8 %v4533
  %v4535 = vlaneseq
  %v4536 = vshrl.u32 %v4535, 7
  %v4537 = vsub.s32 %v4534, %v4536
  %v4538 = vrot.slane %v4524, %v4537
  %v4539 = vcombine.low %v4358, %v4450
  %v4540 = vcombine.high %v4358, %v4450
  %v4542 = vunpack.c.l.s4 1983009808
  %v4543 = vunpack.c.0.s8 %v4542
  %v4544 = vlaneseq
  %v4545 = vshrl.u32 %v4544, 7
  %v4546 = vsub.s32 %v4543, %v4545
  %v4547 = vrot.slane %v4539, %v4546
  %v4549 = vunpack.c.l.s4 1983009808
  %v4550 = vunpack.c.0.s8 %v4549
  %v4551 = vlaneseq
  %v4552 = vshrl.u32 %v4551, 7
  %v4553 = vsub.s32 %v4550, %v4552
  %v4554 = vrot.slane %v4540, %v4553
  %v4555 = vcombine.low %v4531, %v4547
  %v4556 = vcombine.high %v4531, %v4547
  %v4558 = vunpack.c.l.s4 1934713408
  %v4559 = vunpack.c.0.s8 %v4558
  %v4560 = vlaneseq
  %v4561 = vshrl.u32 %v4560, 7
  %v4562 = vsub.s32 %v4559, %v4561
  %v4563 = vrot.slane %v4555, %v4562
  %v4565 = vunpack.c.l.s4 1934713408
  %v4566 = vunpack.c.0.s8 %v4565
  %v4567 = vlaneseq
  %v4568 = vshrl.u32 %v4567, 7
  %v4569 = vsub.s32 %v4566, %v4568
  %v4570 = vrot.slane %v4556, %v4569
  %v4571 = vcombine.low %v4538, %v4554
  %v4572 = vcombine.high %v4538, %v4554
  %v4574 = vunpack.c.l.s4 1934713408
  %v4575 = vunpack.c.0.s8 %v4574
  %v4576 = vlaneseq
  %v4577 = vshrl.u32 %v4576, 7
  %v4578 = vsub.s32 %v4575, %v4577
  %v4579 = vrot.slane %v4571, %v4578
  %v4581 = vunpack.c.l.s4 1934713408
  %v4582 = vunpack.c.0.s8 %v4581
  %v4583 = vlaneseq
  %v4584 = vshrl.u32 %v4583, 7
  %v4585 = vsub.s32 %v4582, %v4584
  %v4586 = vrot.slane %v4572, %v4585
  %v4587 = vcombine.high %v4563, 0.0
  %v4588 = vcombine.high %v4570, 0.0
  %v4589 = vcombine.high %v4579, 0.0
  %v4590 = vcombine.high %v4586, 0.0
  %v4591 = vcombine.low %v4495, %v4502
  %v4593 = vunpack.c.l.s4 1983009808
  %v4594 = vunpack.c.0.s8 %v4593
  %v4595 = vlaneseq
  %v4596 = vshrl.u32 %v4595, 7
  %v4597 = vsub.s32 %v4594, %v4596
  %v4598 = vrot.slane %v4591, %v4597
  %v4599 = vcombine.low %v4519, %v4520
  %v4601 = vunpack.c.l.s4 1983009808
  %v4602 = vunpack.c.0.s8 %v4601
  %v4603 = vlaneseq
  %v4604 = vshrl.u32 %v4603, 7
  %v4605 = vsub.s32 %v4602, %v4604
  %v4606 = vrot.slane %v4599, %v4605
  %v4607 = vcombine.low %v4511, %v4518
  %v4609 = vunpack.c.l.s4 1983009808
  %v4610 = vunpack.c.0.s8 %v4609
  %v4611 = vlaneseq
  %v4612 = vshrl.u32 %v4611, 7
  %v4613 = vsub.s32 %v4610, %v4612
  %v4614 = vrot.slane %v4607, %v4613
  %v4615 = vcombine.low %v4521, %v4522
  %v4617 = vunpack.c.l.s4 1983009808
  %v4618 = vunpack.c.0.s8 %v4617
  %v4619 = vlaneseq
  %v4620 = vshrl.u32 %v4619, 7
  %v4621 = vsub.s32 %v4618, %v4620
  %v4622 = vrot.slane %v4615, %v4621
  %v4623 = vcombine.low %v4598, %v4606
  %v4624 = vcombine.high %v4598, %v4606
  %v4626 = vunpack.c.l.s4 1934713408
  %v4627 = vunpack.c.0.s8 %v4626
  %v4628 = vlaneseq
  %v4629 = vshrl.u32 %v4628, 7
  %v4630 = vsub.s32 %v4627, %v4629
  %v4631 = vrot.slane %v4623, %v4630
  %v4633 = vunpack.c.l.s4 1934713408
  %v4634 = vunpack.c.0.s8 %v4633
  %v4635 = vlaneseq
  %v4636 = vshrl.u32 %v4635, 7
  %v4637 = vsub.s32 %v4634, %v4636
  %v4638 = vrot.slane %v4624, %v4637
  %v4639 = vcombine.low %v4614, %v4622
  %v4640 = vcombine.high %v4614, %v4622
  %v4642 = vunpack.c.l.s4 1934713408
  %v4643 = vunpack.c.0.s8 %v4642
  %v4644 = vlaneseq
  %v4645 = vshrl.u32 %v4644, 7
  %v4646 = vsub.s32 %v4643, %v4645
  %v4647 = vrot.slane %v4639, %v4646
  %v4649 = vunpack.c.l.s4 1934713408
  %v4650 = vunpack.c.0.s8 %v4649
  %v4651 = vlaneseq
  %v4652 = vshrl.u32 %v4651, 7
  %v4653 = vsub.s32 %v4650, %v4652
  %v4654 = vrot.slane %v4640, %v4653
  %v4655 = vcombine.low %v4631, %v4647
  %v4656 = vcombine.high %v4631, %v4647
  %v4657 = vcombine.low %v4638, %v4654
  %v4658 = vcombine.high %v4638, %v4654
  %v4659 = vcombine.low %v4563, %v4570
  %v4661 = vunpack.c.l.s4 1983009808
  %v4662 = vunpack.c.0.s8 %v4661
  %v4663 = vlaneseq
  %v4664 = vshrl.u32 %v4663, 7
  %v4665 = vsub.s32 %v4662, %v4664
  %v4666 = vrot.slane %v4659, %v4665
  %v4667 = vcombine.low %v4587, %v4588
  %v4669 = vunpack.c.l.s4 1983009808
  %v4670 = vunpack.c.0.s8 %v4669
  %v4671 = vlaneseq
  %v4672 = vshrl.u32 %v4671, 7
  %v4673 = vsub.s32 %v4670, %v4672
  %v4674 = vrot.slane %v4667, %v4673
  %v4675 = vcombine.low %v4579, %v4586
  %v4677 = vunpack.c.l.s4 1983009808
  %v4678 = vunpack.c.0.s8 %v4677
  %v4679 = vlaneseq
  %v4680 = vshrl.u32 %v4679, 7
  %v4681 = vsub.s32 %v4678, %v4680
  %v4682 = vrot.slane %v4675, %v4681
  %v4683 = vcombine.low %v4589, %v4590
  %v4685 = vunpack.c.l.s4 1983009808
  %v4686 = vunpack.c.0.s8 %v4685
  %v4687 = vlaneseq
  %v4688 = vshrl.u32 %v4687, 7
  %v4689 = vsub.s32 %v4686, %v4688
  %v4690 = vrot.slane %v4683, %v4689
  %v4691 = vcombine.low %v4666, %v4674
  %v4692 = vcombine.high %v4666, %v4674
  %v4694 = vunpack.c.l.s4 1934713408
  %v4695 = vunpack.c.0.s8 %v4694
  %v4696 = vlaneseq
  %v4697 = vshrl.u32 %v4696, 7
  %v4698 = vsub.s32 %v4695, %v4697
  %v4699 = vrot.slane %v4691, %v4698
  %v4701 = vunpack.c.l.s4 1934713408
  %v4702 = vunpack.c.0.s8 %v4701
  %v4703 = vlaneseq
  %v4704 = vshrl.u32 %v4703, 7
  %v4705 = vsub.s32 %v4702, %v4704
  %v4706 = vrot.slane %v4692, %v4705
  %v4707 = vcombine.low %v4682, %v4690
  %v4708 = vcombine.high %v4682, %v4690
  %v4710 = vunpack.c.l.s4 1934713408
  %v4711 = vunpack.c.0.s8 %v4710
  %v4712 = vlaneseq
  %v4713 = vshrl.u32 %v4712, 7
  %v4714 = vsub.s32 %v4711, %v4713
  %v4715 = vrot.slane %v4707, %v4714
  %v4717 = vunpack.c.l.s4 1934713408
  %v4718 = vunpack.c.0.s8 %v4717
  %v4719 = vlaneseq
  %v4720 = vshrl.u32 %v4719, 7
  %v4721 = vsub.s32 %v4718, %v4720
  %v4722 = vrot.slane %v4708, %v4721
  %v4723 = vcombine.low %v4699, %v4715
  %v4724 = vcombine.high %v4699, %v4715
  %v4725 = vcombine.low %v4706, %v4722
  %v4726 = vcombine.high %v4706, %v4722
  %4729 = vrot.lane.b32.xlu0 %v4656, 8
  %v4730 = vpop.permute.xlu0 %4729
  %4731 = vrot.lane.b32.xlu0 %v4724, 8
  %v4732 = vpop.permute.xlu0 %4731
  %4737 = vrot.lane.b32.xlu0 %v4657, 16
  %v4738 = vpop.permute.xlu0 %4737
  %4739 = vrot.lane.b32.xlu0 %v4725, 16
  %v4740 = vpop.permute.xlu0 %4739
  %4745 = vrot.lane.b32.xlu0 %v4658, 24
  %v4746 = vpop.permute.xlu0 %4745
  %4747 = vrot.lane.b32.xlu0 %v4726, 24
  %v4748 = vpop.permute.xlu0 %4747
  %v4751 = vsel %vm1119, %v4655, %v4730
  %v4752 = vsel %vm1119, %v4723, %v4732
  %v4753 = vsel %vm2267, %v4751, %v4738
  %v4754 = vsel %vm2267, %v4752, %v4740
  %v4755 = vsel %vm2270, %v4753, %v4746
  %v4756 = vsel %vm2270, %v4754, %v4748
  %v4757 = vpack.c.bf16 %v4756, %v4755
  %v4758 = vld [vmem:[%s17] sm:$0xf]
  %v4759 = vld [vmem:[%s17 + $0x4] sm:$0xf]
  %v4760 = vld [vmem:[%s17 + $0x8] sm:$0xf]
  %v4761 = vld [vmem:[%s17 + $0xc] sm:$0xf]
  %v4762 = vld [vmem:[%s18] sm:$0x1]
  %v4764 = vlaneseq
  %v4765 = vshrl.u32 %v4764, 7
  %v4766 = vsub.s32 0, %v4765
  %v4767 = vrot.slane %v4762, %v4766
  %v4773 = vunpack.c.l.b16 %v4758
  %v4774 = vunpack.c.l.b16 %v4759
  %v4775 = vunpack.c.l.b16 %v4760
  %v4776 = vunpack.c.l.b16 %v4761
  %v4777 = vpack.c.b16 %v4774, %v4773
  %v4778 = vpack.c.b16 %v4776, %v4775
  %v4782 = vsel %vm89, %v4757, 0
  %4784 = vmatprep.subr.bf16.mxu0 0
  %4785 = vmatpush1.bf16.msra.mxu0 %v4777
  %4786 = vmatprep.subr.bf16.mxu0 0
  %4787 = vmatpush1.bf16.msra.mxu0 %v4778
  %4788 = vmatprep.subr.bf16.mxu0 0
  %4789 = vmatpush1.bf16.msra.mxu0 0
  %4790 = vmatprep.subr.bf16.mxu0 0
  %4791 = vmatpush1.bf16.msra.mxu0 0
  %4792 = vmatprep.subr.bf16.mxu0 0
  %4793 = vmatpush1.bf16.msra.mxu0 0
  %4794 = vmatprep.subr.bf16.mxu0 0
  %4795 = vmatpush1.bf16.msra.mxu0 0
  %4796 = vmatprep.subr.bf16.mxu0 0
  %4797 = vmatpush1.bf16.msra.mxu0 0
  %4798 = vmatprep.subr.bf16.mxu0 0
  %4799 = vmatpush1.bf16.msra.mxu0 0
  %4800 = vmatprep.subr.bf16.mxu0 0
  %4801 = vmatpush1.bf16.msra.mxu0 0
  %4802 = vmatprep.subr.bf16.mxu0 0
  %4803 = vmatpush1.bf16.msra.mxu0 0
  %4804 = vmatprep.subr.bf16.mxu0 0
  %4805 = vmatpush1.bf16.msra.mxu0 0
  %4806 = vmatprep.subr.bf16.mxu0 0
  %4807 = vmatpush1.bf16.msra.mxu0 0
  %4808 = vmatprep.subr.bf16.mxu0 0
  %4809 = vmatpush1.bf16.msra.mxu0 0
  %4810 = vmatprep.subr.bf16.mxu0 0
  %4811 = vmatpush1.bf16.msra.mxu0 0
  %4812 = vmatprep.subr.bf16.mxu0 0
  %4813 = vmatpush1.bf16.msra.mxu0 0
  %4814 = vmatprep.subr.bf16.mxu0 0
  %4815 = vmatpush1.bf16.msra.mxu0 0
  %4816 = vmatprep.mubr.bf16.mxu0 0
  %4817 = vmatmul.mubr.bf16.gmra.mrb[0].mxu0 %v4782
  %v4818 = vpop.f32.mrb[0].mxu0
  %v4819 = vadd.f32 %v4767, %v4818
  %v4820 = vpop.f32.mrb[0].mxu0
  %v4821 = vpop.f32.mrb[0].mxu0
  %v4822 = vadd.f32 %v4767, %v4821
  %v4823 = vpop.f32.mrb[0].mxu0
  %4824 = vdwg.mxu0
  %v4825 = vadd.f32 %v2581, %v4819
  %v4826 = vadd.f32 %v2582, %v4822
  %v4827 = vld [vmem:[%s19] sm:$0x1]
  %v4828 = vld [vmem:[%s20] sm:$0x1]
  %v4829 = vsel %vm89, %v4825, 0.0
  %4830 = vadd.xlane.f32.xlu0 %v4829
  %v4831 = vpop.xlane.xlu0 %4830
  %v4832 = vsel %vm89, %v4826, 0.0
  %4833 = vadd.xlane.f32.xlu0 %v4832
  %v4834 = vpop.xlane.xlu0 %4833
  %v4835 = vmul.f32 %v4831, %v96
  %v4836 = vmul.f32 %v4834, %v96
  %v4837 = vmul.f32 %v4825, %v4825
  %v4838 = vmul.f32 %v4826, %v4826
  %v4839 = vsel %vm89, %v4837, 0.0
  %4840 = vadd.xlane.f32.xlu0 %v4839
  %v4841 = vpop.xlane.xlu0 %4840
  %v4842 = vsel %vm89, %v4838, 0.0
  %4843 = vadd.xlane.f32.xlu0 %v4842
  %v4844 = vpop.xlane.xlu0 %4843
  %v4845 = vmul.f32 %v4841, %v96
  %v4846 = vmul.f32 %v4844, %v96
  %v4847 = vmul.f32 %v4835, %v4835
  %v4848 = vmul.f32 %v4836, %v4836
  %v4849 = vsub.f32 %v4845, %v4847
  %v4850 = vsub.f32 %v4846, %v4848
  %v4851 = vsub.f32 %v4825, %v4835
  %v4852 = vsub.f32 %v4826, %v4836
  %v4853 = vadd.f32 %v4849, 1e-05
  %v4854 = vadd.f32 %v4850, 1e-05
  %v4855 = vrsqrt.pop %v4853
  %v4856 = vrsqrt.pop %v4854
  %v4857 = vmul.f32 %v4851, %v4855
  %v4858 = vmul.f32 %v4852, %v4856
  %v4860 = vlaneseq
  %v4861 = vshrl.u32 %v4860, 7
  %v4862 = vsub.s32 0, %v4861
  %v4863 = vrot.slane %v4827, %v4862
  %v4865 = vmul.f32 %v4857, %v4863
  %v4866 = vmul.f32 %v4858, %v4863
  %v4868 = vlaneseq
  %v4869 = vshrl.u32 %v4868, 7
  %v4870 = vsub.s32 0, %v4869
  %v4871 = vrot.slane %v4828, %v4870
  %v4873 = vadd.f32 %v4865, %v4871
  %v4874 = vadd.f32 %v4866, %v4871
  %v4875 = vpack.c.bf16 %v4874, %v4873
  %v4876 = vld [vmem:[%s21] sm:$0xf]
  %v4877 = vld [vmem:[%s21 + $0x4] sm:$0xf]
  %v4878 = vld [vmem:[%s21 + $0x8] sm:$0xf]
  %v4879 = vld [vmem:[%s21 + $0xc] sm:$0xf]
  %v4880 = vld [vmem:[%s22] sm:$0x1]
  %v4882 = vlaneseq
  %v4883 = vshrl.u32 %v4882, 7
  %v4884 = vsub.s32 0, %v4883
  %v4885 = vrot.slane %v4880, %v4884
  %v4891 = vunpack.c.l.b16 %v4876
  %v4892 = vunpack.c.l.b16 %v4877
  %v4893 = vunpack.c.l.b16 %v4878
  %v4894 = vunpack.c.l.b16 %v4879
  %v4895 = vpack.c.b16 %v4892, %v4891
  %v4896 = vpack.c.b16 %v4894, %v4893
  %v4900 = vsel %vm89, %v4875, 0
  %4902 = vmatprep.subr.bf16.mxu0 0
  %4903 = vmatpush1.bf16.msra.mxu0 %v4895
  %4904 = vmatprep.subr.bf16.mxu0 0
  %4905 = vmatpush1.bf16.msra.mxu0 %v4896
  %4906 = vmatprep.subr.bf16.mxu0 0
  %4907 = vmatpush1.bf16.msra.mxu0 0
  %4908 = vmatprep.subr.bf16.mxu0 0
  %4909 = vmatpush1.bf16.msra.mxu0 0
  %4910 = vmatprep.subr.bf16.mxu0 0
  %4911 = vmatpush1.bf16.msra.mxu0 0
  %4912 = vmatprep.subr.bf16.mxu0 0
  %4913 = vmatpush1.bf16.msra.mxu0 0
  %4914 = vmatprep.subr.bf16.mxu0 0
  %4915 = vmatpush1.bf16.msra.mxu0 0
  %4916 = vmatprep.subr.bf16.mxu0 0
  %4917 = vmatpush1.bf16.msra.mxu0 0
  %4918 = vmatprep.subr.bf16.mxu0 0
  %4919 = vmatpush1.bf16.msra.mxu0 0
  %4920 = vmatprep.subr.bf16.mxu0 0
  %4921 = vmatpush1.bf16.msra.mxu0 0
  %4922 = vmatprep.subr.bf16.mxu0 0
  %4923 = vmatpush1.bf16.msra.mxu0 0
  %4924 = vmatprep.subr.bf16.mxu0 0
  %4925 = vmatpush1.bf16.msra.mxu0 0
  %4926 = vmatprep.subr.bf16.mxu0 0
  %4927 = vmatpush1.bf16.msra.mxu0 0
  %4928 = vmatprep.subr.bf16.mxu0 0
  %4929 = vmatpush1.bf16.msra.mxu0 0
  %4930 = vmatprep.subr.bf16.mxu0 0
  %4931 = vmatpush1.bf16.msra.mxu0 0
  %4932 = vmatprep.subr.bf16.mxu0 0
  %4933 = vmatpush1.bf16.msra.mxu0 0
  %4934 = vmatprep.mubr.bf16.mxu0 0
  %4935 = vmatmul.mubr.bf16.gmra.mrb[0].mxu0 %v4900
  %v4936 = vpop.f32.mrb[0].mxu0
  %v4937 = vadd.f32 %v4885, %v4936
  %v4938 = vpop.f32.mrb[0].mxu0
  %v4939 = vpop.f32.mrb[0].mxu0
  %v4940 = vadd.f32 %v4885, %v4939
  %v4941 = vpop.f32.mrb[0].mxu0
  %4942 = vdwg.mxu0
  %v4943 = vpack.c.bf16 %v4940, %v4937
  %v4944 = vmul.bf16 %v4943, 1071267802
  %v4945 = vxor.u32 %v4944, 2147516416
  %v4947 = vmul.bf16 %v4945, 1069105081
  %v4948 = vpow.bf16.pop %v4947
  %v4949 = vadd.bf16 %v4948, 1065369472
  %v4950 = vrcp.bf16.pop %v4949
  %v4951 = vmul.bf16 1065369472, %v4950
  %v4952 = vmul.bf16 %v4943, %v4951
  %v4953 = vld [vmem:[%s23] sm:$0xf]
  %v4954 = vld [vmem:[%s23 + $0x4] sm:$0xf]
  %v4955 = vld [vmem:[%s23 + $0x8] sm:$0xf]
  %v4956 = vld [vmem:[%s23 + $0xc] sm:$0xf]
  %v4957 = vld [vmem:[%s23 + $0x10] sm:$0xf]
  %v4958 = vld [vmem:[%s23 + $0x14] sm:$0xf]
  %v4959 = vld [vmem:[%s23 + $0x18] sm:$0xf]
  %v4960 = vld [vmem:[%s23 + $0x1c] sm:$0xf]
  %v4961 = vld [vmem:[%s23 + $0x20] sm:$0xf]
  %v4962 = vld [vmem:[%s23 + $0x24] sm:$0xf]
  %v4963 = vld [vmem:[%s23 + $0x28] sm:$0xf]
  %v4964 = vld [vmem:[%s23 + $0x2c] sm:$0xf]
  %v4965 = vld [vmem:[%s23 + $0x30] sm:$0xf]
  %v4966 = vld [vmem:[%s23 + $0x34] sm:$0xf]
  %v4967 = vld [vmem:[%s23 + $0x38] sm:$0xf]
  %v4968 = vld [vmem:[%s23 + $0x3c] sm:$0xf]
  %v4969 = vld [vmem:[%s24] sm:$0x1]
  %v4971 = vlaneseq
  %v4972 = vshrl.u32 %v4971, 7
  %v4973 = vsub.s32 0, %v4972
  %v4974 = vrot.slane %v4969, %v4973
  %v4992 = vunpack.c.l.b16 %v4953
  %v4993 = vunpack.c.l.b16 %v4954
  %v4994 = vunpack.c.l.b16 %v4955
  %v4995 = vunpack.c.l.b16 %v4956
  %v4996 = vunpack.c.l.b16 %v4957
  %v4997 = vunpack.c.l.b16 %v4958
  %v4998 = vunpack.c.l.b16 %v4959
  %v4999 = vunpack.c.l.b16 %v4960
  %v5000 = vunpack.c.l.b16 %v4961
  %v5001 = vunpack.c.l.b16 %v4962
  %v5002 = vunpack.c.l.b16 %v4963
  %v5003 = vunpack.c.l.b16 %v4964
  %v5004 = vunpack.c.l.b16 %v4965
  %v5005 = vunpack.c.l.b16 %v4966
  %v5006 = vunpack.c.l.b16 %v4967
  %v5007 = vunpack.c.l.b16 %v4968
  %v5008 = vpack.c.b16 %v4993, %v4992
  %v5009 = vpack.c.b16 %v4995, %v4994
  %v5010 = vpack.c.b16 %v4997, %v4996
  %v5011 = vpack.c.b16 %v4999, %v4998
  %v5012 = vpack.c.b16 %v5001, %v5000
  %v5013 = vpack.c.b16 %v5003, %v5002
  %v5014 = vpack.c.b16 %v5005, %v5004
  %v5015 = vpack.c.b16 %v5007, %v5006
  %5024 = vmatprep.subr.bf16.mxu0 0
  %5025 = vmatpush1.bf16.msra.mxu0 %v5008
  %5026 = vmatprep.subr.bf16.mxu0 0
  %5027 = vmatpush1.bf16.msra.mxu0 %v5009
  %5028 = vmatprep.subr.bf16.mxu0 0
  %5029 = vmatpush1.bf16.msra.mxu0 %v5010
  %5030 = vmatprep.subr.bf16.mxu0 0
  %5031 = vmatpush1.bf16.msra.mxu0 %v5011
  %5032 = vmatprep.subr.bf16.mxu0 0
  %5033 = vmatpush1.bf16.msra.mxu0 %v5012
  %5034 = vmatprep.subr.bf16.mxu0 0
  %5035 = vmatpush1.bf16.msra.mxu0 %v5013
  %5036 = vmatprep.subr.bf16.mxu0 0
  %5037 = vmatpush1.bf16.msra.mxu0 %v5014
  %5038 = vmatprep.subr.bf16.mxu0 0
  %5039 = vmatpush1.bf16.msra.mxu0 %v5015
  %5040 = vmatprep.subr.bf16.mxu0 0
  %5041 = vmatpush1.bf16.msra.mxu0 0
  %5042 = vmatprep.subr.bf16.mxu0 0
  %5043 = vmatpush1.bf16.msra.mxu0 0
  %5044 = vmatprep.subr.bf16.mxu0 0
  %5045 = vmatpush1.bf16.msra.mxu0 0
  %5046 = vmatprep.subr.bf16.mxu0 0
  %5047 = vmatpush1.bf16.msra.mxu0 0
  %5048 = vmatprep.subr.bf16.mxu0 0
  %5049 = vmatpush1.bf16.msra.mxu0 0
  %5050 = vmatprep.subr.bf16.mxu0 0
  %5051 = vmatpush1.bf16.msra.mxu0 0
  %5052 = vmatprep.subr.bf16.mxu0 0
  %5053 = vmatpush1.bf16.msra.mxu0 0
  %5054 = vmatprep.subr.bf16.mxu0 0
  %5055 = vmatpush1.bf16.msra.mxu0 0
  %5056 = vmatprep.mubr.bf16.mxu0 0
  %5057 = vmatmul.mubr.bf16.gmra.mrb[0].mxu0 %v4952
  %v5058 = vpop.f32.mrb[0].mxu0
  %v5059 = vadd.f32 %v4974, %v5058
  %v5060 = vpop.f32.mrb[0].mxu0
  %v5061 = vpop.f32.mrb[0].mxu0
  %v5062 = vadd.f32 %v4974, %v5061
  %v5063 = vpop.f32.mrb[0].mxu0
  %5064 = vdwg.mxu0
  %v5065 = vadd.f32 %v4825, %v5059
  %v5066 = vadd.f32 %v4826, %v5062
  %v5067 = vpack.c.bf16 %v5065, %v5065
  %v5068 = vpack.c.bf16 %v5066, %v5066
  %vm5069 = vcmask 257024
  %5070 = vst.msk [vmem:[%s25] sm:$0xf] %vm5069, %v5067
  %5071 = vst.msk [vmem:[%s25 + $0x4] sm:$0xf] %vm5069, %v5068
  // Predicated region
  $region102: #{text_encoder_forward.2} parent=0 // pred_check
    _
  $region103: #{text_encoder_forward.2} parent=0 // pred_check_branch
    %5073 = sbr.rel (0) target = $region105
  $region104: #{text_encoder_forward.2} parent=0 // pred_region
    _
  $region105: #{text_encoder_forward.2} parent=0 // pred_fallthru
    _
  // Predicated region
  $region106: #{text_encoder_forward.2} parent=0 // pred_check
    _
  $region107: #{text_encoder_forward.2} parent=0 // pred_check_branch
    %5075 = sbr.rel (0) target = $region109
  $region108: #{text_encoder_forward.2} parent=0 // pred_region
    _
  $region109: #{text_encoder_forward.2} parent=0 // pred_fallthru
    _

</llo_original>
